<compile_context>
chip_gen: v7x
topology: tpu7x:2x2x1
jax: 0.10.0
libtpu: 0.0.40
codegen_flags: <defaults>
</compile_context>

<pallas_src>
import functools
import math

import jax
import jax.numpy as jnp
from jax import lax
from jax.experimental import pallas as pl
from jax.experimental.pallas import tpu as pltpu


SEQ_ALIGN = 16   # bf16 packs two rows per sublane -> token tiles aligned to 16


# ----------------------------------------------------------------------------
# Tiling helper
# ----------------------------------------------------------------------------

def _tile(dim, preferred, align):
    """Largest tile <= preferred that divides `dim` and is a multiple of
    `align`; falls back to the full dim (always a legal Pallas block).  Token
    axes are pre-padded to a multiple of SEQ_ALIGN so the fallback only
    triggers for small, bounded shapes."""
    if dim % align == 0:
        t = min(preferred, dim)
        t -= t % align
        while t >= align:
            if dim % t == 0:
                return t
            t -= align
    return dim


# ----------------------------------------------------------------------------
# Fused linear kernel (single k step, weight VMEM-resident):
#   out = epilogue( prologue(x) @ w )
#   prologue = optional modulated LayerNorm (adaLN)
#   epilogue = [+bias] -> [activation] -> [res + gate * (.)]
# ----------------------------------------------------------------------------

def _fused_linear_kernel(*refs, has_ln, has_bias, has_gate, activation, eps):
    it = iter(refs)
    x_ref = next(it)                                  # (1, tt, K)   bf16
    shift_ref = next(it) if has_ln else None          # (1, 1, K)    f32
    scale_ref = next(it) if has_ln else None          # (1, 1, K)    f32
    w_ref = next(it)                                  # (K, tn)      bf16
    b_ref = next(it) if has_bias else None            # (1, tn)      f32
    gate_ref = next(it) if has_gate else None         # (1, 1, tn)   f32
    res_ref = next(it) if has_gate else None          # (1, tt, tn)  bf16
    o_ref = next(it)                                  # (1, tt, tn)

    x = x_ref[0]
    if has_ln:
        xf = x.astype(jnp.float32)
        mean = jnp.mean(xf, axis=-1, keepdims=True)
        var = jnp.mean(jnp.square(xf - mean), axis=-1, keepdims=True)
        xn = (xf - mean) * lax.rsqrt(var + eps)
        xf = (xn * (1.0 + scale_ref[0].astype(jnp.float32))
              + shift_ref[0].astype(jnp.float32))
        x = xf.astype(jnp.bfloat16)

    y = jnp.dot(x, w_ref[...], preferred_element_type=jnp.float32)

    if has_bias:
        y = y + b_ref[...].astype(jnp.float32)
    if activation == "gelu":
        y = jax.nn.gelu(y, approximate=True)     # DiT uses tanh-approx GELU
    elif activation == "silu":
        y = jax.nn.silu(y)
    if has_gate:
        y = res_ref[0].astype(jnp.float32) + gate_ref[0].astype(jnp.float32) * y
    o_ref[0] = y.astype(o_ref.dtype)


def fused_linear(x, w, b=None, *, ln=None, activation=None, gate=None, res=None,
                 out_dtype=jnp.bfloat16, eps=1e-6, tt_pref=256, tn_pref=4096):
    """x: (B, T, K); w: (K, N); b: (N,); ln: (shift, scale) each (B, K);
    gate: (B, N); res: (B, T, N).  Returns (B, T, N) in out_dtype.
    K is contracted in a single step so the weight block stays VMEM-resident
    (constant index_map -> DMA'd once per kernel when tn == N)."""
    assert (gate is None) == (res is None)
    B, T, K = x.shape
    N = w.shape[1]
    assert K % 128 == 0, "contraction dim must be a multiple of the 128-lane width"

    tt = _tile(T, tt_pref, SEQ_ALIGN)
    tn = _tile(N, tn_pref, 128)
    grid = (B, N // tn, T // tt)    # weight index only depends on j -> resident

    x = x.astype(jnp.bfloat16)
    w = w.astype(jnp.bfloat16)

    inputs = [x]
    in_specs = [pl.BlockSpec((1, tt, K), lambda bb, j, i: (bb, i, 0))]
    if ln is not None:
        shift, scale = ln
        cspec = pl.BlockSpec((1, 1, K), lambda bb, j, i: (bb, 0, 0))
        inputs += [shift.reshape(B, 1, K).astype(jnp.float32),
                   scale.reshape(B, 1, K).astype(jnp.float32)]
        in_specs += [cspec, cspec]
    inputs.append(w)
    in_specs.append(pl.BlockSpec((K, tn), lambda bb, j, i: (0, j)))
    if b is not None:
        inputs.append(b.reshape(1, N).astype(jnp.float32))
        in_specs.append(pl.BlockSpec((1, tn), lambda bb, j, i: (0, j)))
    if gate is not None:
        inputs.append(gate.reshape(B, 1, N).astype(jnp.float32))
        in_specs.append(pl.BlockSpec((1, 1, tn), lambda bb, j, i: (bb, 0, j)))
        inputs.append(res.astype(jnp.bfloat16))
        in_specs.append(pl.BlockSpec((1, tt, tn), lambda bb, j, i: (bb, i, j)))

    kernel = functools.partial(
        _fused_linear_kernel, has_ln=ln is not None, has_bias=b is not None,
        has_gate=gate is not None, activation=activation, eps=eps)

    out_itemsize = jnp.dtype(out_dtype).itemsize
    in_bytes = sum(int(a.size) * a.dtype.itemsize for a in inputs)
    cost = pl.CostEstimate(
        flops=int(2 * B * T * N * K),
        transcendentals=int(B * T * N if activation else 0),
        bytes_accessed=int(in_bytes + B * T * N * out_itemsize))

    return pl.pallas_call(
        kernel,
        out_shape=jax.ShapeDtypeStruct((B, T, N), out_dtype),
        grid=grid,
        in_specs=in_specs,
        out_specs=pl.BlockSpec((1, tt, tn), lambda bb, j, i: (bb, i, j)),
        compiler_params=pltpu.CompilerParams(
            dimension_semantics=("parallel", "parallel", "parallel")),
        cost_estimate=cost,
    )(*inputs)


# ----------------------------------------------------------------------------
# Flash-style multi-head self attention (non-causal), heads sliced from qkv.
# The 1/sqrt(Dh) scale is pre-folded into the q columns of the qkv weights.
# ----------------------------------------------------------------------------

def _flash_attn_kernel(q_ref, k_ref, v_ref, o_ref, m_sc, l_sc, acc_sc,
                       *, n_kv, tkv, kv_len, masked):
    kv = pl.program_id(3)

    @pl.when(kv == 0)
    def _init():
        m_sc[...] = jnp.full(m_sc.shape, -jnp.inf, m_sc.dtype)
        l_sc[...] = jnp.zeros(l_sc.shape, l_sc.dtype)
        acc_sc[...] = jnp.zeros(acc_sc.shape, acc_sc.dtype)

    q = q_ref[0]                                   # (tq, Dh)  bf16 (pre-scaled)
    k = k_ref[0]                                   # (tkv, Dh) bf16
    v = v_ref[0]                                   # (tkv, Dh) bf16
    # contract last dims directly (no in-kernel transpose)
    s = lax.dot_general(q, k, (((1,), (1,)), ((), ())),
                        preferred_element_type=jnp.float32)        # (tq, tkv)
    if masked:   # mask padded key columns (sequence padded to SEQ_ALIGN)
        col = lax.broadcasted_iota(jnp.int32, s.shape, 1) + kv * tkv
        s = jnp.where(col < kv_len, s, -1e30)

    m_prev = m_sc[...]
    m_new = jnp.maximum(m_prev, jnp.max(s, axis=-1, keepdims=True))
    alpha = jnp.exp(m_prev - m_new)
    p = jnp.exp(s - m_new)
    l_sc[...] = alpha * l_sc[...] + jnp.sum(p, axis=-1, keepdims=True)
    acc_sc[...] = alpha * acc_sc[...] + jnp.dot(
        p.astype(v.dtype), v, preferred_element_type=jnp.float32)
    m_sc[...] = m_new

    @pl.when(kv == n_kv - 1)
    def _finalize():
        o_ref[0] = (acc_sc[...] *
                    pl.reciprocal(l_sc[...], approx=True)).astype(o_ref.dtype)


def pallas_mhsa(qkv, n_heads, *, kv_len=None, tq_pref=512, tkv_pref=512):
    """qkv: (B, T, 3*D) packed as [q | k | v]; within each of q/k/v, head h is
    the contiguous Dh-column slice h*Dh:(h+1)*Dh (standard qkv.chunk(3) then
    'b t (h dh) -> b h t dh' layout).  Returns (B, T, D), heads concatenated.
    kv_len < T masks padded key columns."""
    B, T, threeD = qkv.shape
    D = threeD // 3
    Dh = D // n_heads
    # TODO(synk): support head_dim that is not a multiple of 128 (needs a glue
    # fallback path); not needed for the lane-aligned configs used here.
    assert D % n_heads == 0 and Dh % 128 == 0, "head_dim must be a multiple of 128"
    if kv_len is None:
        kv_len = T

    tq = _tile(T, tq_pref, SEQ_ALIGN)
    tkv = _tile(T, tkv_pref, SEQ_ALIGN)
    n_kv = T // tkv
    grid = (B, n_heads, T // tq, n_kv)

    qkv = qkv.astype(jnp.bfloat16)

    q_spec = pl.BlockSpec((1, tq, Dh), lambda b, h, i, j: (b, i, h))
    k_spec = pl.BlockSpec((1, tkv, Dh), lambda b, h, i, j: (b, j, n_heads + h))
    v_spec = pl.BlockSpec((1, tkv, Dh), lambda b, h, i, j: (b, j, 2 * n_heads + h))
    o_spec = pl.BlockSpec((1, tq, Dh), lambda b, h, i, j: (b, i, h))

    cost = pl.CostEstimate(flops=int(4 * B * n_heads * T * T * Dh),
                           transcendentals=int(B * n_heads * T * T),
                           bytes_accessed=int(4 * B * T * D * 2))

    return pl.pallas_call(
        functools.partial(_flash_attn_kernel, n_kv=n_kv, tkv=tkv,
                          kv_len=kv_len, masked=kv_len < T),
        out_shape=jax.ShapeDtypeStruct((B, T, D), jnp.bfloat16),
        grid=grid,
        in_specs=[q_spec, k_spec, v_spec],
        out_specs=o_spec,
        scratch_shapes=[pltpu.VMEM((tq, 1), jnp.float32),
                        pltpu.VMEM((tq, 1), jnp.float32),
                        pltpu.VMEM((tq, Dh), jnp.float32)],
        compiler_params=pltpu.CompilerParams(
            dimension_semantics=("parallel", "parallel", "parallel", "arbitrary")),
        cost_estimate=cost,
    )(qkv, qkv, qkv)


# ----------------------------------------------------------------------------
# Standalone modulated LayerNorm (used for the video FinalLayer; the in-block
# LNs are fused into the matmul prologues above).
# ----------------------------------------------------------------------------

def _modln_kernel(x_ref, shift_ref, scale_ref, o_ref, *, eps):
    x = x_ref[0].astype(jnp.float32)                       # (tt, D)
    mean = jnp.mean(x, axis=-1, keepdims=True)
    var = jnp.mean(jnp.square(x - mean), axis=-1, keepdims=True)
    xn = (x - mean) * lax.rsqrt(var + eps)
    o_ref[0] = (xn * (1.0 + scale_ref[0].astype(jnp.float32))
                + shift_ref[0].astype(jnp.float32)).astype(o_ref.dtype)


def pallas_modulated_layernorm(x, shift, scale, *, eps=1e-6,
                               out_dtype=jnp.float32, tt_pref=512):
    """x: (B, T, D); shift/scale: (B, D) adaLN modulation.  eps=1e-6 (DiT
    LayerNorm with elementwise_affine=False)."""
    B, T, D = x.shape
    tt = _tile(T, tt_pref, SEQ_ALIGN)
    xspec = pl.BlockSpec((1, tt, D), lambda b, i: (b, i, 0))
    cspec = pl.BlockSpec((1, 1, D), lambda b, i: (b, 0, 0))
    return pl.pallas_call(
        functools.partial(_modln_kernel, eps=eps),
        out_shape=jax.ShapeDtypeStruct((B, T, D), out_dtype),
        grid=(B, T // tt),
        in_specs=[xspec, cspec, cspec],
        out_specs=xspec,
        compiler_params=pltpu.CompilerParams(
            dimension_semantics=("parallel", "parallel")),
    )(x.astype(jnp.bfloat16),
      shift.reshape(B, 1, D).astype(jnp.float32),
      scale.reshape(B, 1, D).astype(jnp.float32))


# ----------------------------------------------------------------------------
# Parameter initialization (deterministic, synthetic).
# DiT block weights bf16 (MXU path); small conditioning / head weights f32.
# ----------------------------------------------------------------------------

def init_params(key, cfg):
    d = cfg["d_model"]
    L = cfg["n_layers"]
    keys = iter(jax.random.split(key, 16 + 8 * L))

    def nrm(shape, dtype=jnp.float32, s=0.02):
        return (jax.random.normal(next(keys), shape, jnp.float32) * s).astype(dtype)

    def zeros(shape):
        return jnp.zeros(shape, jnp.float32)

    params = {
        # ControlEmbedding: Linear(2->d) + Linear(n_buttons->d), fused as one
        # Linear([mouse|btn] -> d) (mathematically identical, biases summed).
        "ctrl_w": nrm((2 + cfg["n_buttons"], d)), "ctrl_b": zeros((d,)),
        # TimestepEmbedding: sinusoidal(d) -> Linear -> SiLU -> Linear
        "t_w1": nrm((d, d)), "t_b1": zeros((d,)),
        "t_w2": nrm((d, d)), "t_b2": zeros((d,)),
        # proj_in / audio_proj_in (no bias)
        "proj_in_w": nrm((cfg["channels"], d)),
        "audio_proj_in_w": nrm((cfg["audio_channels"], d)),
        # learned positional encoding over the interleaved sequence
        "pos_enc": nrm((cfg["tokens_per_frame"] * cfg["n_frames"], d)),
        # All adaLN projections stacked along the output dim:
        #   [block_0 (6d) | ... | block_{L-1} (6d) | final_video (2d) | final_audio (2d)]
        "adaln_all_w": nrm((d, 6 * d * L + 4 * d)),
        "adaln_all_b": zeros((6 * d * L + 4 * d,)),
        "blocks": [],
        "fl_video": {"w": nrm((d, cfg["channels"])), "b": zeros((cfg["channels"],))},
        "fl_audio": {"w": nrm((d, cfg["audio_channels"])),
                     "b": zeros((cfg["audio_channels"],))},
    }
    for _ in range(L):
        params["blocks"].append({
            "qkv_w": nrm((d, 3 * d), jnp.bfloat16), "qkv_b": zeros((3 * d,)),
            "attn_out_w": nrm((d, d), jnp.bfloat16), "attn_out_b": zeros((d,)),
            "fc1_w": nrm((d, 4 * d), jnp.bfloat16), "fc1_b": zeros((4 * d,)),
            "fc2_w": nrm((4 * d, d), jnp.bfloat16), "fc2_b": zeros((d,)),
        })
    return params


# ----------------------------------------------------------------------------
# Forward pass (glue + Pallas kernels)
# ----------------------------------------------------------------------------

def timestep_embedding(t, dim, max_period=10000.0):
    half = dim // 2
    freqs = jnp.exp(-math.log(max_period) *
                    jnp.arange(half, dtype=jnp.float32) / half)
    args = t.astype(jnp.float32)[:, None] * freqs[None, :]
    return jnp.concatenate([jnp.cos(args), jnp.sin(args)], axis=-1)


def _layernorm_modulate_xla(x, shift, scale, eps=1e-6):
    """XLA modulated LayerNorm for tiny tensors (audio final head: n rows)."""
    x = x.astype(jnp.float32)
    mean = jnp.mean(x, axis=-1, keepdims=True)
    var = jnp.mean(jnp.square(x - mean), axis=-1, keepdims=True)
    xn = (x - mean) * lax.rsqrt(var + eps)
    return xn * (1.0 + scale[:, None, :]) + shift[:, None, :]


def gamerft_audio_forward(params, cfg, x, audio, t, mouse, btn,
                          kv_cache=None, additive_attn_mask=None):
    # TODO(synk): kv_cache incremental-decode path and additive_attn_mask are
    # not implemented (None only).
    assert kv_cache is None and additive_attn_mask is None

    d = cfg["d_model"]
    H = cfg["n_heads"]
    L = cfg["n_layers"]
    Dh = d // H
    b, n, c, h, w = x.shape
    hw = h * w
    f = hw + 1
    T = n * f

    # ---------------- conditioning (tiny matmuls -> XLA, f32) ----------------
    ctrl_cond = jnp.concatenate([mouse, btn], axis=-1) @ params["ctrl_w"] + params["ctrl_b"]
    t_freq = timestep_embedding(t, d)
    t_hidden = jax.nn.silu(t_freq @ params["t_w1"] + params["t_b1"])
    t_cond = t_hidden @ params["t_w2"] + params["t_b2"]
    cond = ctrl_cond + t_cond                                      # (b, d)

    # silu(cond) hoisted; all adaLN projections batched into one small matmul.
    adaln_all = jax.nn.silu(cond) @ params["adaln_all_w"] + params["adaln_all_b"]
    block_mod = [adaln_all[:, i * 6 * d:(i + 1) * 6 * d] for i in range(L)]
    fl_video_mod = adaln_all[:, 6 * d * L: 6 * d * L + 2 * d]
    fl_audio_mod = adaln_all[:, 6 * d * L + 2 * d:]

    # ------------- token embedding (K=4/8 contractions -> XLA) -------------
    pos = params["pos_enc"].reshape(n, f, d)
    x_tok = jnp.transpose(x, (0, 1, 3, 4, 2)).reshape(b, n, hw, c) @ params["proj_in_w"]
    x_tok = x_tok + pos[None, :, :hw, :]
    audio_tok = audio @ params["audio_proj_in_w"] + pos[None, :, hw, :]
    # interleave one audio token after each frame's spatial tokens
    x_tok = jnp.concatenate([x_tok, audio_tok[:, :, None, :]], axis=2)
    x_tok = x_tok.reshape(b, T, d).astype(jnp.bfloat16)            # (b, T, d)

    # Pad the token axis to a multiple of 16 (bf16 sublane pair).  Padded keys
    # are masked inside the attention kernel; padded rows are sliced off below.
    T_pad = -(-T // SEQ_ALIGN) * SEQ_ALIGN
    if T_pad != T:
        x_tok = jnp.pad(x_tok, ((0, 0), (0, T_pad - T), (0, 0)))

    # Fold the 1/sqrt(Dh) attention scale into the q columns of the qkv
    # projection (weight prep; composite math identical to scaling q@k^T).
    q_col_scale = jnp.concatenate(
        [jnp.full((d,), 1.0 / math.sqrt(Dh), jnp.float32),
         jnp.ones((2 * d,), jnp.float32)])

    # ---------------- DiT blocks (Pallas) ----------------
    # NOTE: residual stream kept in bf16 between kernels; epilogue math is f32.
    for li, blk in enumerate(params["blocks"]):
        (shift_msa, scale_msa, gate_msa,
         shift_mlp, scale_mlp, gate_mlp) = jnp.split(block_mod[li], 6, axis=-1)

        qkv_w = (blk["qkv_w"].astype(jnp.float32)
                 * q_col_scale[None, :]).astype(jnp.bfloat16)
        qkv_b = blk["qkv_b"] * q_col_scale

        # attention branch: modulated LN fused into the qkv matmul prologue
        qkv = fused_linear(x_tok, qkv_w, qkv_b, ln=(shift_msa, scale_msa))
        attn = pallas_mhsa(qkv, H, kv_len=T)                       # (b, T_pad, d)
        x_tok = fused_linear(attn, blk["attn_out_w"], blk["attn_out_b"],
                             gate=gate_msa, res=x_tok)             # fused gated res

        # MLP branch: modulated LN fused into the fc1 prologue, GELU epilogue
        m = fused_linear(x_tok, blk["fc1_w"], blk["fc1_b"],
                         ln=(shift_mlp, scale_mlp), activation="gelu")
        x_tok = fused_linear(m, blk["fc2_w"], blk["fc2_b"],
                             gate=gate_mlp, res=x_tok)

    x_tok = x_tok[:, :T]                                           # drop padding

    # ---------------- output heads ----------------
    x4 = x_tok.reshape(b, n, f, d)
    video_tok = x4[:, :, :hw, :].reshape(b, n * hw, d)
    audio_tok_out = x4[:, :, hw, :]                                # (b, n, d)

    # Video head: Pallas modulated LN; the lane-sparse (d -> channels=4)
    # projection is left to XLA (sub-128-lane output / masked stores otherwise).
    shift_v, scale_v = jnp.split(fl_video_mod, 2, axis=-1)
    video_n = pallas_modulated_layernorm(video_tok, shift_v, scale_v)
    video = video_n @ params["fl_video"]["w"] + params["fl_video"]["b"]
    video = jnp.transpose(video.reshape(b, n, h, w, c), (0, 1, 4, 2, 3))

    # Audio head: only n tokens per batch -> pure XLA.
    shift_a, scale_a = jnp.split(fl_audio_mod, 2, axis=-1)
    audio_n = _layernorm_modulate_xla(audio_tok_out, shift_a, scale_a)
    audio_out = audio_n @ params["fl_audio"]["w"] + params["fl_audio"]["b"]
    return video, audio_out


# ----------------------------------------------------------------------------
# Main
# ----------------------------------------------------------------------------

if __name__ == "__main__":
    cfg = dict(
        channels=4,
        audio_channels=8,
        d_model=256,              # multiple of 128 (lane width)
        n_heads=2,                # head_dim = 128
        n_layers=2,
        n_buttons=8,
        sample_size=4,            # h = w = 4
        n_frames=2,
        tokens_per_frame=4 * 4 + 1,   # spatial tokens + 1 audio token / frame
    )

    key = jax.random.PRNGKey(0)
    k_param, k_x, k_a, k_t, k_m, k_b = jax.random.split(key, 6)
    params = init_params(k_param, cfg)

    b = 2
    n = cfg["n_frames"]
    c = cfg["channels"]
    ss = cfg["sample_size"]

    x = jax.random.normal(k_x, (b, n, c, ss, ss), jnp.float32)
    audio = jax.random.normal(k_a, (b, n, cfg["audio_channels"]), jnp.float32)
    t = jax.random.uniform(k_t, (b,), jnp.float32)
    mouse = jax.random.normal(k_m, (b, 2), jnp.float32)
    btn = jax.random.normal(k_b, (b, cfg["n_buttons"]), jnp.float32)

    @jax.jit
    def run(params, x, audio, t, mouse, btn):
        return gamerft_audio_forward(params, cfg, x, audio, t, mouse, btn)

    video_out, audio_out = run(params, x, audio, t, mouse, btn)
    jax.block_until_ready((video_out, audio_out))

    assert video_out.shape == (b, n, c, ss, ss), video_out.shape
    assert audio_out.shape == (b, n, cfg["audio_channels"]), audio_out.shape
    assert bool(jnp.isfinite(video_out).all()) and bool(jnp.isfinite(audio_out).all())
    print("KERNEL_OK")
</pallas_src>

<mosaic_0001>
module attributes {stable_mosaic.version = 11 : i64} {
  func.func @_flash_attn_kernel(%arg0: i32, %arg1: i32, %arg2: i32, %arg3: i32, %arg4: memref<1x48x128xbf16, #tpu.memory_space<vmem>>, %arg5: memref<1x48x128xbf16, #tpu.memory_space<vmem>>, %arg6: memref<1x48x128xbf16, #tpu.memory_space<vmem>>, %arg7: memref<1x48x128xbf16, #tpu.memory_space<vmem>>, %arg8: memref<48x1xf32, #tpu.memory_space<vmem>>, %arg9: memref<48x1xf32, #tpu.memory_space<vmem>>, %arg10: memref<48x128xf32, #tpu.memory_space<vmem>>) attributes {dimension_semantics = [#tpu.dimension_semantics<parallel>, #tpu.dimension_semantics<parallel>, #tpu.dimension_semantics<parallel>, #tpu.dimension_semantics<arbitrary>], iteration_bounds = array<i64: 2, 2, 1, 1>, scalar_prefetch = 0 : i64, scratch_operands = 3 : i64, tpu.core_type = #tpu.core_type<tc>, window_params = [{transform_indices = @transform_0, window_bounds = array<i64: 1, 48, 128>}, {transform_indices = @transform_1, window_bounds = array<i64: 1, 48, 128>}, {transform_indices = @transform_2, window_bounds = array<i64: 1, 48, 128>}, {transform_indices = @transform_3, window_bounds = array<i64: 1, 48, 128>}]} {
    %c0_i32 = arith.constant 0 : i32
    %0 = arith.cmpi eq, %arg3, %c0_i32 : i32
    %1 = arith.extui %0 : i1 to i32
    %c0_i32_0 = arith.constant 0 : i32
    %2 = arith.cmpi ne, %1, %c0_i32_0 : i32
    scf.if %2 {
      %cst_27 = arith.constant 0xFF800000 : f32
      %44 = vector.broadcast %cst_27 : f32 to vector<48x1xf32>
      %c0_28 = arith.constant 0 : index
      %c0_29 = arith.constant 0 : index
      %45 = vector.load %arg8[%c0_28, %c0_29] : memref<48x1xf32, #tpu.memory_space<vmem>>, vector<48x1xf32>
      tpu.vector_store %arg8[%c0_28, %c0_29], %44 {strides = array<i32>} : memref<48x1xf32, #tpu.memory_space<vmem>>, vector<48x1xf32>,
      %cst_30 = arith.constant 0.000000e+00 : f32
      %46 = vector.broadcast %cst_30 : f32 to vector<48x1xf32>
      %c0_31 = arith.constant 0 : index
      %c0_32 = arith.constant 0 : index
      %47 = vector.load %arg9[%c0_31, %c0_32] : memref<48x1xf32, #tpu.memory_space<vmem>>, vector<48x1xf32>
      tpu.vector_store %arg9[%c0_31, %c0_32], %46 {strides = array<i32>} : memref<48x1xf32, #tpu.memory_space<vmem>>, vector<48x1xf32>,
      %cst_33 = arith.constant 0.000000e+00 : f32
      %48 = vector.broadcast %cst_33 : f32 to vector<48x128xf32>
      %c0_34 = arith.constant 0 : index
      %c0_35 = arith.constant 0 : index
      %49 = vector.load %arg10[%c0_34, %c0_35] : memref<48x128xf32, #tpu.memory_space<vmem>>, vector<48x128xf32>
      tpu.vector_store %arg10[%c0_34, %c0_35], %48 {strides = array<i32>} : memref<48x128xf32, #tpu.memory_space<vmem>>, vector<48x128xf32>,
    } else {
    }
    %c0 = arith.constant 0 : index
    %c0_1 = arith.constant 0 : index
    %c0_2 = arith.constant 0 : index
    %3 = vector.load %arg4[%c0, %c0_1, %c0_2] : memref<1x48x128xbf16, #tpu.memory_space<vmem>>, vector<1x48x128xbf16>
    %4 = vector.shape_cast %3 : vector<1x48x128xbf16> to vector<48x128xbf16>
    %c0_3 = arith.constant 0 : index
    %c0_4 = arith.constant 0 : index
    %c0_5 = arith.constant 0 : index
    %5 = vector.load %arg5[%c0_3, %c0_4, %c0_5] : memref<1x48x128xbf16, #tpu.memory_space<vmem>>, vector<1x48x128xbf16>
    %6 = vector.shape_cast %5 : vector<1x48x128xbf16> to vector<48x128xbf16>
    %c0_6 = arith.constant 0 : index
    %c0_7 = arith.constant 0 : index
    %c0_8 = arith.constant 0 : index
    %7 = vector.load %arg6[%c0_6, %c0_7, %c0_8] : memref<1x48x128xbf16, #tpu.memory_space<vmem>>, vector<1x48x128xbf16>
    %8 = vector.shape_cast %7 : vector<1x48x128xbf16> to vector<48x128xbf16>
    %cst = arith.constant dense<0.000000e+00> : vector<48x48xf32>
    %9 = tpu.matmul %4, %6, %cst {dimension_numbers = #tpu.dot_dimension_numbers<[1], [1], [0], [0], [0, 0, 1, 0], [], []>} : vector<48x128xbf16>, vector<48x128xbf16>, vector<48x48xf32> -> vector<48x48xf32>
    %10 = tpu.iota {dimensions = array<i32: 1>} : vector<48x48xi32>
    %c48_i32 = arith.constant 48 : i32
    %11 = arith.muli %arg3, %c48_i32 : i32
    %12 = vector.broadcast %11 : i32 to vector<48x48xi32>
    %13 = arith.addi %10, %12 : vector<48x48xi32>
    %c34_i32 = arith.constant 34 : i32
    %14 = vector.broadcast %c34_i32 : i32 to vector<48x48xi32>
    %15 = arith.cmpi slt, %13, %14 : vector<48x48xi32>
    %cst_9 = arith.constant -1.000000e+30 : f32
    %16 = vector.broadcast %cst_9 : f32 to vector<48x48xf32>
    %17 = arith.select %15, %9, %16 : vector<48x48xi1>, vector<48x48xf32>
    %c0_10 = arith.constant 0 : index
    %c0_11 = arith.constant 0 : index
    %18 = vector.load %arg8[%c0_10, %c0_11] : memref<48x1xf32, #tpu.memory_space<vmem>>, vector<48x1xf32>
    %cst_12 = arith.constant dense<0xFF800000> : vector<48xf32>
    %19 = vector.multi_reduction <maximumf>, %17, %cst_12 [1] : vector<48x48xf32> to vector<48xf32>
    %20 = vector.shape_cast %19 : vector<48xf32> to vector<48x1xf32>
    %21 = arith.maximumf %18, %20 : vector<48x1xf32>
    %22 = arith.subf %18, %21 : vector<48x1xf32>
    %23 = math.exp %22 : vector<48x1xf32>
    %24 = vector.broadcast %21 : vector<48x1xf32> to vector<48x48xf32>
    %25 = arith.subf %17, %24 : vector<48x48xf32>
    %26 = math.exp %25 : vector<48x48xf32>
    %c0_13 = arith.constant 0 : index
    %c0_14 = arith.constant 0 : index
    %27 = vector.load %arg9[%c0_13, %c0_14] : memref<48x1xf32, #tpu.memory_space<vmem>>, vector<48x1xf32>
    %28 = arith.mulf %23, %27 : vector<48x1xf32>
    %cst_15 = arith.constant dense<0.000000e+00> : vector<48xf32>
    %29 = vector.multi_reduction <add>, %26, %cst_15 [1] : vector<48x48xf32> to vector<48xf32>
    %30 = vector.shape_cast %29 : vector<48xf32> to vector<48x1xf32>
    %31 = arith.addf %28, %30 : vector<48x1xf32>
    %c0_16 = arith.constant 0 : index
    %c0_17 = arith.constant 0 : index
    %32 = vector.load %arg9[%c0_16, %c0_17] : memref<48x1xf32, #tpu.memory_space<vmem>>, vector<48x1xf32>
    tpu.vector_store %arg9[%c0_16, %c0_17], %31 {strides = array<i32>} : memref<48x1xf32, #tpu.memory_space<vmem>>, vector<48x1xf32>,
    %c0_18 = arith.constant 0 : index
    %c0_19 = arith.constant 0 : index
    %33 = vector.load %arg10[%c0_18, %c0_19] : memref<48x128xf32, #tpu.memory_space<vmem>>, vector<48x128xf32>
    %34 = vector.broadcast %23 : vector<48x1xf32> to vector<48x128xf32>
    %35 = arith.mulf %34, %33 : vector<48x128xf32>
    %36 = arith.truncf %26 : vector<48x48xf32> to vector<48x48xbf16>
    %cst_20 = arith.constant dense<0.000000e+00> : vector<48x128xf32>
    %37 = tpu.matmul %36, %8, %cst_20 {dimension_numbers = #tpu.dot_dimension_numbers<[1], [0], [0], [1], [0, 0, 1, 1], [], []>} : vector<48x48xbf16>, vector<48x128xbf16>, vector<48x128xf32> -> vector<48x128xf32>
    %38 = arith.addf %35, %37 : vector<48x128xf32>
    %c0_21 = arith.constant 0 : index
    %c0_22 = arith.constant 0 : index
    %39 = vector.load %arg10[%c0_21, %c0_22] : memref<48x128xf32, #tpu.memory_space<vmem>>, vector<48x128xf32>
    tpu.vector_store %arg10[%c0_21, %c0_22], %38 {strides = array<i32>} : memref<48x128xf32, #tpu.memory_space<vmem>>, vector<48x128xf32>,
    %c0_23 = arith.constant 0 : index
    %c0_24 = arith.constant 0 : index
    %40 = vector.load %arg8[%c0_23, %c0_24] : memref<48x1xf32, #tpu.memory_space<vmem>>, vector<48x1xf32>
    tpu.vector_store %arg8[%c0_23, %c0_24], %21 {strides = array<i32>} : memref<48x1xf32, #tpu.memory_space<vmem>>, vector<48x1xf32>,
    %c0_i32_25 = arith.constant 0 : i32
    %41 = arith.cmpi eq, %arg3, %c0_i32_25 : i32
    %42 = arith.extui %41 : i1 to i32
    %c0_i32_26 = arith.constant 0 : i32
    %43 = arith.cmpi ne, %42, %c0_i32_26 : i32
    scf.if %43 {
      %c0_27 = arith.constant 0 : index
      %c0_28 = arith.constant 0 : index
      %44 = vector.load %arg10[%c0_27, %c0_28] : memref<48x128xf32, #tpu.memory_space<vmem>>, vector<48x128xf32>
      %c0_29 = arith.constant 0 : index
      %c0_30 = arith.constant 0 : index
      %45 = vector.load %arg9[%c0_29, %c0_30] : memref<48x1xf32, #tpu.memory_space<vmem>>, vector<48x1xf32>
      %46 = tpu.reciprocal %45 {approx = true} : vector<48x1xf32> -> vector<48x1xf32>
      %47 = vector.broadcast %46 : vector<48x1xf32> to vector<48x128xf32>
      %48 = arith.mulf %44, %47 : vector<48x128xf32>
      %49 = arith.truncf %48 : vector<48x128xf32> to vector<48x128xbf16>
      %c0_31 = arith.constant 0 : index
      %c0_32 = arith.constant 0 : index
      %c0_33 = arith.constant 0 : index
      %50 = vector.load %arg7[%c0_31, %c0_32, %c0_33] : memref<1x48x128xbf16, #tpu.memory_space<vmem>>, vector<1x48x128xbf16>
      %51 = vector.shape_cast %50 : vector<1x48x128xbf16> to vector<48x128xbf16>
      %52 = vector.shape_cast %49 : vector<48x128xbf16> to vector<1x48x128xbf16>
      tpu.vector_store %arg7[%c0_31, %c0_32, %c0_33], %52 {strides = array<i32>} : memref<1x48x128xbf16, #tpu.memory_space<vmem>>, vector<1x48x128xbf16>,
    } else {
    }
    return
  }
  func.func @transform_0(%arg0: i32, %arg1: i32, %arg2: i32, %arg3: i32) -> (i32, i32, i32) {
    %c0_i32 = arith.constant 0 : i32
    return %arg0, %arg2, %arg1 : i32, i32, i32
  }
  func.func @transform_1(%arg0: i32, %arg1: i32, %arg2: i32, %arg3: i32) -> (i32, i32, i32) {
    %c2_i32 = arith.constant 2 : i32
    %0 = arith.addi %c2_i32, %arg1 : i32
    %c0_i32 = arith.constant 0 : i32
    return %arg0, %arg3, %0 : i32, i32, i32
  }
  func.func @transform_2(%arg0: i32, %arg1: i32, %arg2: i32, %arg3: i32) -> (i32, i32, i32) {
    %c4_i32 = arith.constant 4 : i32
    %0 = arith.addi %c4_i32, %arg1 : i32
    %c0_i32 = arith.constant 0 : i32
    return %arg0, %arg3, %0 : i32, i32, i32
  }
  func.func @transform_3(%arg0: i32, %arg1: i32, %arg2: i32, %arg3: i32) -> (i32, i32, i32) {
    %c0_i32 = arith.constant 0 : i32
    return %arg0, %arg2, %arg1 : i32, i32, i32
  }
}

module attributes {stable_mosaic.version = 11 : i64} {
  func.func @_fused_linear_kernel(%arg0: i32, %arg1: i32, %arg2: i32, %arg3: memref<1x48x256xbf16, #tpu.memory_space<vmem>>, %arg4: memref<1x1x256xf32, #tpu.memory_space<vmem>>, %arg5: memref<1x1x256xf32, #tpu.memory_space<vmem>>, %arg6: memref<256x768xbf16, #tpu.memory_space<vmem>>, %arg7: memref<1x768xf32, #tpu.memory_space<vmem>>, %arg8: memref<1x48x768xbf16, #tpu.memory_space<vmem>>) attributes {dimension_semantics = [#tpu.dimension_semantics<parallel>, #tpu.dimension_semantics<parallel>, #tpu.dimension_semantics<parallel>], iteration_bounds = array<i64: 2, 1, 1>, scalar_prefetch = 0 : i64, scratch_operands = 0 : i64, tpu.core_type = #tpu.core_type<tc>, window_params = [{transform_indices = @transform_0, window_bounds = array<i64: 1, 48, 256>}, {transform_indices = @transform_1, window_bounds = array<i64: 1, 1, 256>}, {transform_indices = @transform_2, window_bounds = array<i64: 1, 1, 256>}, {transform_indices = @transform_3, window_bounds = array<i64: 256, 768>}, {transform_indices = @transform_4, window_bounds = array<i64: 1, 768>}, {transform_indices = @transform_5, window_bounds = array<i64: 1, 48, 768>}]} {
    %c0 = arith.constant 0 : index
    %c0_0 = arith.constant 0 : index
    %c0_1 = arith.constant 0 : index
    %0 = vector.load %arg3[%c0, %c0_0, %c0_1] : memref<1x48x256xbf16, #tpu.memory_space<vmem>>, vector<1x48x256xbf16>
    %1 = vector.shape_cast %0 : vector<1x48x256xbf16> to vector<48x256xbf16>
    %2 = arith.extf %1 : vector<48x256xbf16> to vector<48x256xf32>
    %cst = arith.constant dense<0.000000e+00> : vector<48xf32>
    %3 = vector.multi_reduction <add>, %2, %cst [1] : vector<48x256xf32> to vector<48xf32>
    %4 = vector.shape_cast %3 : vector<48xf32> to vector<48x1xf32>
    %cst_2 = arith.constant 2.560000e+02 : f32
    %5 = vector.broadcast %cst_2 : f32 to vector<48x1xf32>
    %6 = arith.divf %4, %5 : vector<48x1xf32>
    %7 = vector.broadcast %6 : vector<48x1xf32> to vector<48x256xf32>
    %8 = arith.subf %2, %7 : vector<48x256xf32>
    %9 = arith.mulf %8, %8 : vector<48x256xf32>
    %cst_3 = arith.constant dense<0.000000e+00> : vector<48xf32>
    %10 = vector.multi_reduction <add>, %9, %cst_3 [1] : vector<48x256xf32> to vector<48xf32>
    %11 = vector.shape_cast %10 : vector<48xf32> to vector<48x1xf32>
    %cst_4 = arith.constant 2.560000e+02 : f32
    %12 = vector.broadcast %cst_4 : f32 to vector<48x1xf32>
    %13 = arith.divf %11, %12 : vector<48x1xf32>
    %14 = vector.broadcast %6 : vector<48x1xf32> to vector<48x256xf32>
    %15 = arith.subf %2, %14 : vector<48x256xf32>
    %cst_5 = arith.constant 9.99999997E-7 : f32
    %16 = vector.broadcast %cst_5 : f32 to vector<48x1xf32>
    %17 = arith.addf %13, %16 : vector<48x1xf32>
    %18 = math.rsqrt %17 : vector<48x1xf32>
    %19 = vector.broadcast %18 : vector<48x1xf32> to vector<48x256xf32>
    %20 = arith.mulf %15, %19 : vector<48x256xf32>
    %c0_6 = arith.constant 0 : index
    %c0_7 = arith.constant 0 : index
    %c0_8 = arith.constant 0 : index
    %21 = vector.load %arg5[%c0_6, %c0_7, %c0_8] : memref<1x1x256xf32, #tpu.memory_space<vmem>>, vector<1x1x256xf32>
    %22 = vector.shape_cast %21 : vector<1x1x256xf32> to vector<1x256xf32>
    %cst_9 = arith.constant 1.000000e+00 : f32
    %23 = vector.broadcast %cst_9 : f32 to vector<1x256xf32>
    %24 = arith.addf %23, %22 : vector<1x256xf32>
    %25 = vector.broadcast %24 : vector<1x256xf32> to vector<48x256xf32>
    %26 = arith.mulf %20, %25 : vector<48x256xf32>
    %c0_10 = arith.constant 0 : index
    %c0_11 = arith.constant 0 : index
    %c0_12 = arith.constant 0 : index
    %27 = vector.load %arg4[%c0_10, %c0_11, %c0_12] : memref<1x1x256xf32, #tpu.memory_space<vmem>>, vector<1x1x256xf32>
    %28 = vector.shape_cast %27 : vector<1x1x256xf32> to vector<1x256xf32>
    %29 = vector.broadcast %28 : vector<1x256xf32> to vector<48x256xf32>
    %30 = arith.addf %26, %29 : vector<48x256xf32>
    %31 = arith.truncf %30 : vector<48x256xf32> to vector<48x256xbf16>
    %c0_13 = arith.constant 0 : index
    %c0_14 = arith.constant 0 : index
    %32 = vector.load %arg6[%c0_13, %c0_14] : memref<256x768xbf16, #tpu.memory_space<vmem>>, vector<256x768xbf16>
    %cst_15 = arith.constant dense<0.000000e+00> : vector<48x768xf32>
    %33 = tpu.matmul %31, %32, %cst_15 {dimension_numbers = #tpu.dot_dimension_numbers<[1], [0], [0], [1], [0, 0, 1, 1], [], []>} : vector<48x256xbf16>, vector<256x768xbf16>, vector<48x768xf32> -> vector<48x768xf32>
    %c0_16 = arith.constant 0 : index
    %c0_17 = arith.constant 0 : index
    %34 = vector.load %arg7[%c0_16, %c0_17] : memref<1x768xf32, #tpu.memory_space<vmem>>, vector<1x768xf32>
    %35 = vector.broadcast %34 : vector<1x768xf32> to vector<48x768xf32>
    %36 = arith.addf %33, %35 : vector<48x768xf32>
    %37 = arith.truncf %36 : vector<48x768xf32> to vector<48x768xbf16>
    %c0_18 = arith.constant 0 : index
    %c0_19 = arith.constant 0 : index
    %c0_20 = arith.constant 0 : index
    %38 = vector.load %arg8[%c0_18, %c0_19, %c0_20] : memref<1x48x768xbf16, #tpu.memory_space<vmem>>, vector<1x48x768xbf16>
    %39 = vector.shape_cast %38 : vector<1x48x768xbf16> to vector<48x768xbf16>
    %40 = vector.shape_cast %37 : vector<48x768xbf16> to vector<1x48x768xbf16>
    tpu.vector_store %arg8[%c0_18, %c0_19, %c0_20], %40 {strides = array<i32>} : memref<1x48x768xbf16, #tpu.memory_space<vmem>>, vector<1x48x768xbf16>,
    return
  }
  func.func @transform_0(%arg0: i32, %arg1: i32, %arg2: i32) -> (i32, i32, i32) {
    %c0_i32 = arith.constant 0 : i32
    %c0_i32_0 = arith.constant 0 : i32
    return %arg0, %arg2, %c0_i32 : i32, i32, i32
  }
  func.func @transform_1(%arg0: i32, %arg1: i32, %arg2: i32) -> (i32, i32, i32) {
    %c0_i32 = arith.constant 0 : i32
    %c0_i32_0 = arith.constant 0 : i32
    %c0_i32_1 = arith.constant 0 : i32
    return %arg0, %c0_i32, %c0_i32_0 : i32, i32, i32
  }
  func.func @transform_2(%arg0: i32, %arg1: i32, %arg2: i32) -> (i32, i32, i32) {
    %c0_i32 = arith.constant 0 : i32
    %c0_i32_0 = arith.constant 0 : i32
    %c0_i32_1 = arith.constant 0 : i32
    return %arg0, %c0_i32, %c0_i32_0 : i32, i32, i32
  }
  func.func @transform_3(%arg0: i32, %arg1: i32, %arg2: i32) -> (i32, i32) {
    %c0_i32 = arith.constant 0 : i32
    %c0_i32_0 = arith.constant 0 : i32
    return %c0_i32, %arg1 : i32, i32
  }
  func.func @transform_4(%arg0: i32, %arg1: i32, %arg2: i32) -> (i32, i32) {
    %c0_i32 = arith.constant 0 : i32
    %c0_i32_0 = arith.constant 0 : i32
    return %c0_i32, %arg1 : i32, i32
  }
  func.func @transform_5(%arg0: i32, %arg1: i32, %arg2: i32) -> (i32, i32, i32) {
    %c0_i32 = arith.constant 0 : i32
    return %arg0, %arg2, %arg1 : i32, i32, i32
  }
}

module attributes {stable_mosaic.version = 11 : i64} {
  func.func @_fused_linear_kernel(%arg0: i32, %arg1: i32, %arg2: i32, %arg3: memref<1x48x256xbf16, #tpu.memory_space<vmem>>, %arg4: memref<256x256xbf16, #tpu.memory_space<vmem>>, %arg5: memref<1x256xf32, #tpu.memory_space<vmem>>, %arg6: memref<1x1x256xf32, #tpu.memory_space<vmem>>, %arg7: memref<1x48x256xbf16, #tpu.memory_space<vmem>>, %arg8: memref<1x48x256xbf16, #tpu.memory_space<vmem>>) attributes {dimension_semantics = [#tpu.dimension_semantics<parallel>, #tpu.dimension_semantics<parallel>, #tpu.dimension_semantics<parallel>], iteration_bounds = array<i64: 2, 1, 1>, scalar_prefetch = 0 : i64, scratch_operands = 0 : i64, tpu.core_type = #tpu.core_type<tc>, window_params = [{transform_indices = @transform_0, window_bounds = array<i64: 1, 48, 256>}, {transform_indices = @transform_1, window_bounds = array<i64: 256, 256>}, {transform_indices = @transform_2, window_bounds = array<i64: 1, 256>}, {transform_indices = @transform_3, window_bounds = array<i64: 1, 1, 256>}, {transform_indices = @transform_4, window_bounds = array<i64: 1, 48, 256>}, {transform_indices = @transform_5, window_bounds = array<i64: 1, 48, 256>}]} {
    %c0 = arith.constant 0 : index
    %c0_0 = arith.constant 0 : index
    %c0_1 = arith.constant 0 : index
    %0 = vector.load %arg3[%c0, %c0_0, %c0_1] : memref<1x48x256xbf16, #tpu.memory_space<vmem>>, vector<1x48x256xbf16>
    %1 = vector.shape_cast %0 : vector<1x48x256xbf16> to vector<48x256xbf16>
    %c0_2 = arith.constant 0 : index
    %c0_3 = arith.constant 0 : index
    %2 = vector.load %arg4[%c0_2, %c0_3] : memref<256x256xbf16, #tpu.memory_space<vmem>>, vector<256x256xbf16>
    %cst = arith.constant dense<0.000000e+00> : vector<48x256xf32>
    %3 = tpu.matmul %1, %2, %cst {dimension_numbers = #tpu.dot_dimension_numbers<[1], [0], [0], [1], [0, 0, 1, 1], [], []>} : vector<48x256xbf16>, vector<256x256xbf16>, vector<48x256xf32> -> vector<48x256xf32>
    %c0_4 = arith.constant 0 : index
    %c0_5 = arith.constant 0 : index
    %4 = vector.load %arg5[%c0_4, %c0_5] : memref<1x256xf32, #tpu.memory_space<vmem>>, vector<1x256xf32>
    %5 = vector.broadcast %4 : vector<1x256xf32> to vector<48x256xf32>
    %6 = arith.addf %3, %5 : vector<48x256xf32>
    %c0_6 = arith.constant 0 : index
    %c0_7 = arith.constant 0 : index
    %c0_8 = arith.constant 0 : index
    %7 = vector.load %arg7[%c0_6, %c0_7, %c0_8] : memref<1x48x256xbf16, #tpu.memory_space<vmem>>, vector<1x48x256xbf16>
    %8 = vector.shape_cast %7 : vector<1x48x256xbf16> to vector<48x256xbf16>
    %9 = arith.extf %8 : vector<48x256xbf16> to vector<48x256xf32>
    %c0_9 = arith.constant 0 : index
    %c0_10 = arith.constant 0 : index
    %c0_11 = arith.constant 0 : index
    %10 = vector.load %arg6[%c0_9, %c0_10, %c0_11] : memref<1x1x256xf32, #tpu.memory_space<vmem>>, vector<1x1x256xf32>
    %11 = vector.shape_cast %10 : vector<1x1x256xf32> to vector<1x256xf32>
    %12 = vector.broadcast %11 : vector<1x256xf32> to vector<48x256xf32>
    %13 = arith.mulf %12, %6 : vector<48x256xf32>
    %14 = arith.addf %9, %13 : vector<48x256xf32>
    %15 = arith.truncf %14 : vector<48x256xf32> to vector<48x256xbf16>
    %c0_12 = arith.constant 0 : index
    %c0_13 = arith.constant 0 : index
    %c0_14 = arith.constant 0 : index
    %16 = vector.load %arg8[%c0_12, %c0_13, %c0_14] : memref<1x48x256xbf16, #tpu.memory_space<vmem>>, vector<1x48x256xbf16>
    %17 = vector.shape_cast %16 : vector<1x48x256xbf16> to vector<48x256xbf16>
    %18 = vector.shape_cast %15 : vector<48x256xbf16> to vector<1x48x256xbf16>
    tpu.vector_store %arg8[%c0_12, %c0_13, %c0_14], %18 {strides = array<i32>} : memref<1x48x256xbf16, #tpu.memory_space<vmem>>, vector<1x48x256xbf16>,
    return
  }
  func.func @transform_0(%arg0: i32, %arg1: i32, %arg2: i32) -> (i32, i32, i32) {
    %c0_i32 = arith.constant 0 : i32
    %c0_i32_0 = arith.constant 0 : i32
    return %arg0, %arg2, %c0_i32 : i32, i32, i32
  }
  func.func @transform_1(%arg0: i32, %arg1: i32, %arg2: i32) -> (i32, i32) {
    %c0_i32 = arith.constant 0 : i32
    %c0_i32_0 = arith.constant 0 : i32
    return %c0_i32, %arg1 : i32, i32
  }
  func.func @transform_2(%arg0: i32, %arg1: i32, %arg2: i32) -> (i32, i32) {
    %c0_i32 = arith.constant 0 : i32
    %c0_i32_0 = arith.constant 0 : i32
    return %c0_i32, %arg1 : i32, i32
  }
  func.func @transform_3(%arg0: i32, %arg1: i32, %arg2: i32) -> (i32, i32, i32) {
    %c0_i32 = arith.constant 0 : i32
    %c0_i32_0 = arith.constant 0 : i32
    return %arg0, %c0_i32, %arg1 : i32, i32, i32
  }
  func.func @transform_4(%arg0: i32, %arg1: i32, %arg2: i32) -> (i32, i32, i32) {
    %c0_i32 = arith.constant 0 : i32
    return %arg0, %arg2, %arg1 : i32, i32, i32
  }
  func.func @transform_5(%arg0: i32, %arg1: i32, %arg2: i32) -> (i32, i32, i32) {
    %c0_i32 = arith.constant 0 : i32
    return %arg0, %arg2, %arg1 : i32, i32, i32
  }
}

module attributes {stable_mosaic.version = 11 : i64} {
  func.func @_fused_linear_kernel(%arg0: i32, %arg1: i32, %arg2: i32, %arg3: memref<1x48x256xbf16, #tpu.memory_space<vmem>>, %arg4: memref<1x1x256xf32, #tpu.memory_space<vmem>>, %arg5: memref<1x1x256xf32, #tpu.memory_space<vmem>>, %arg6: memref<256x1024xbf16, #tpu.memory_space<vmem>>, %arg7: memref<1x1024xf32, #tpu.memory_space<vmem>>, %arg8: memref<1x48x1024xbf16, #tpu.memory_space<vmem>>) attributes {dimension_semantics = [#tpu.dimension_semantics<parallel>, #tpu.dimension_semantics<parallel>, #tpu.dimension_semantics<parallel>], iteration_bounds = array<i64: 2, 1, 1>, scalar_prefetch = 0 : i64, scratch_operands = 0 : i64, tpu.core_type = #tpu.core_type<tc>, window_params = [{transform_indices = @transform_0, window_bounds = array<i64: 1, 48, 256>}, {transform_indices = @transform_1, window_bounds = array<i64: 1, 1, 256>}, {transform_indices = @transform_2, window_bounds = array<i64: 1, 1, 256>}, {transform_indices = @transform_3, window_bounds = array<i64: 256, 1024>}, {transform_indices = @transform_4, window_bounds = array<i64: 1, 1024>}, {transform_indices = @transform_5, window_bounds = array<i64: 1, 48, 1024>}]} {
    %c0 = arith.constant 0 : index
    %c0_0 = arith.constant 0 : index
    %c0_1 = arith.constant 0 : index
    %0 = vector.load %arg3[%c0, %c0_0, %c0_1] : memref<1x48x256xbf16, #tpu.memory_space<vmem>>, vector<1x48x256xbf16>
    %1 = vector.shape_cast %0 : vector<1x48x256xbf16> to vector<48x256xbf16>
    %2 = arith.extf %1 : vector<48x256xbf16> to vector<48x256xf32>
    %cst = arith.constant dense<0.000000e+00> : vector<48xf32>
    %3 = vector.multi_reduction <add>, %2, %cst [1] : vector<48x256xf32> to vector<48xf32>
    %4 = vector.shape_cast %3 : vector<48xf32> to vector<48x1xf32>
    %cst_2 = arith.constant 2.560000e+02 : f32
    %5 = vector.broadcast %cst_2 : f32 to vector<48x1xf32>
    %6 = arith.divf %4, %5 : vector<48x1xf32>
    %7 = vector.broadcast %6 : vector<48x1xf32> to vector<48x256xf32>
    %8 = arith.subf %2, %7 : vector<48x256xf32>
    %9 = arith.mulf %8, %8 : vector<48x256xf32>
    %cst_3 = arith.constant dense<0.000000e+00> : vector<48xf32>
    %10 = vector.multi_reduction <add>, %9, %cst_3 [1] : vector<48x256xf32> to vector<48xf32>
    %11 = vector.shape_cast %10 : vector<48xf32> to vector<48x1xf32>
    %cst_4 = arith.constant 2.560000e+02 : f32
    %12 = vector.broadcast %cst_4 : f32 to vector<48x1xf32>
    %13 = arith.divf %11, %12 : vector<48x1xf32>
    %14 = vector.broadcast %6 : vector<48x1xf32> to vector<48x256xf32>
    %15 = arith.subf %2, %14 : vector<48x256xf32>
    %cst_5 = arith.constant 9.99999997E-7 : f32
    %16 = vector.broadcast %cst_5 : f32 to vector<48x1xf32>
    %17 = arith.addf %13, %16 : vector<48x1xf32>
    %18 = math.rsqrt %17 : vector<48x1xf32>
    %19 = vector.broadcast %18 : vector<48x1xf32> to vector<48x256xf32>
    %20 = arith.mulf %15, %19 : vector<48x256xf32>
    %c0_6 = arith.constant 0 : index
    %c0_7 = arith.constant 0 : index
    %c0_8 = arith.constant 0 : index
    %21 = vector.load %arg5[%c0_6, %c0_7, %c0_8] : memref<1x1x256xf32, #tpu.memory_space<vmem>>, vector<1x1x256xf32>
    %22 = vector.shape_cast %21 : vector<1x1x256xf32> to vector<1x256xf32>
    %cst_9 = arith.constant 1.000000e+00 : f32
    %23 = vector.broadcast %cst_9 : f32 to vector<1x256xf32>
    %24 = arith.addf %23, %22 : vector<1x256xf32>
    %25 = vector.broadcast %24 : vector<1x256xf32> to vector<48x256xf32>
    %26 = arith.mulf %20, %25 : vector<48x256xf32>
    %c0_10 = arith.constant 0 : index
    %c0_11 = arith.constant 0 : index
    %c0_12 = arith.constant 0 : index
    %27 = vector.load %arg4[%c0_10, %c0_11, %c0_12] : memref<1x1x256xf32, #tpu.memory_space<vmem>>, vector<1x1x256xf32>
    %28 = vector.shape_cast %27 : vector<1x1x256xf32> to vector<1x256xf32>
    %29 = vector.broadcast %28 : vector<1x256xf32> to vector<48x256xf32>
    %30 = arith.addf %26, %29 : vector<48x256xf32>
    %31 = arith.truncf %30 : vector<48x256xf32> to vector<48x256xbf16>
    %c0_13 = arith.constant 0 : index
    %c0_14 = arith.constant 0 : index
    %32 = vector.load %arg6[%c0_13, %c0_14] : memref<256x1024xbf16, #tpu.memory_space<vmem>>, vector<256x1024xbf16>
    %cst_15 = arith.constant dense<0.000000e+00> : vector<48x1024xf32>
    %33 = tpu.matmul %31, %32, %cst_15 {dimension_numbers = #tpu.dot_dimension_numbers<[1], [0], [0], [1], [0, 0, 1, 1], [], []>} : vector<48x256xbf16>, vector<256x1024xbf16>, vector<48x1024xf32> -> vector<48x1024xf32>
    %c0_16 = arith.constant 0 : index
    %c0_17 = arith.constant 0 : index
    %34 = vector.load %arg7[%c0_16, %c0_17] : memref<1x1024xf32, #tpu.memory_space<vmem>>, vector<1x1024xf32>
    %35 = vector.broadcast %34 : vector<1x1024xf32> to vector<48x1024xf32>
    %36 = arith.addf %33, %35 : vector<48x1024xf32>
    %37 = arith.mulf %36, %36 : vector<48x1024xf32>
    %38 = arith.mulf %36, %37 : vector<48x1024xf32>
    %cst_18 = arith.constant 4.471500e-02 : f32
    %39 = vector.broadcast %cst_18 : f32 to vector<48x1024xf32>
    %40 = arith.mulf %39, %38 : vector<48x1024xf32>
    %41 = arith.addf %36, %40 : vector<48x1024xf32>
    %cst_19 = arith.constant 0.797884583 : f32
    %42 = vector.broadcast %cst_19 : f32 to vector<48x1024xf32>
    %43 = arith.mulf %42, %41 : vector<48x1024xf32>
    %44 = math.tanh %43 : vector<48x1024xf32>
    %cst_20 = arith.constant 1.000000e+00 : f32
    %45 = vector.broadcast %cst_20 : f32 to vector<48x1024xf32>
    %46 = arith.addf %45, %44 : vector<48x1024xf32>
    %cst_21 = arith.constant 5.000000e-01 : f32
    %47 = vector.broadcast %cst_21 : f32 to vector<48x1024xf32>
    %48 = arith.mulf %47, %46 : vector<48x1024xf32>
    %49 = arith.mulf %36, %48 : vector<48x1024xf32>
    %50 = arith.truncf %49 : vector<48x1024xf32> to vector<48x1024xbf16>
    %c0_22 = arith.constant 0 : index
    %c0_23 = arith.constant 0 : index
    %c0_24 = arith.constant 0 : index
    %51 = vector.load %arg8[%c0_22, %c0_23, %c0_24] : memref<1x48x1024xbf16, #tpu.memory_space<vmem>>, vector<1x48x1024xbf16>
    %52 = vector.shape_cast %51 : vector<1x48x1024xbf16> to vector<48x1024xbf16>
    %53 = vector.shape_cast %50 : vector<48x1024xbf16> to vector<1x48x1024xbf16>
    tpu.vector_store %arg8[%c0_22, %c0_23, %c0_24], %53 {strides = array<i32>} : memref<1x48x1024xbf16, #tpu.memory_space<vmem>>, vector<1x48x1024xbf16>,
    return
  }
  func.func @transform_0(%arg0: i32, %arg1: i32, %arg2: i32) -> (i32, i32, i32) {
    %c0_i32 = arith.constant 0 : i32
    %c0_i32_0 = arith.constant 0 : i32
    return %arg0, %arg2, %c0_i32 : i32, i32, i32
  }
  func.func @transform_1(%arg0: i32, %arg1: i32, %arg2: i32) -> (i32, i32, i32) {
    %c0_i32 = arith.constant 0 : i32
    %c0_i32_0 = arith.constant 0 : i32
    %c0_i32_1 = arith.constant 0 : i32
    return %arg0, %c0_i32, %c0_i32_0 : i32, i32, i32
  }
  func.func @transform_2(%arg0: i32, %arg1: i32, %arg2: i32) -> (i32, i32, i32) {
    %c0_i32 = arith.constant 0 : i32
    %c0_i32_0 = arith.constant 0 : i32
    %c0_i32_1 = arith.constant 0 : i32
    return %arg0, %c0_i32, %c0_i32_0 : i32, i32, i32
  }
  func.func @transform_3(%arg0: i32, %arg1: i32, %arg2: i32) -> (i32, i32) {
    %c0_i32 = arith.constant 0 : i32
    %c0_i32_0 = arith.constant 0 : i32
    return %c0_i32, %arg1 : i32, i32
  }
  func.func @transform_4(%arg0: i32, %arg1: i32, %arg2: i32) -> (i32, i32) {
    %c0_i32 = arith.constant 0 : i32
    %c0_i32_0 = arith.constant 0 : i32
    return %c0_i32, %arg1 : i32, i32
  }
  func.func @transform_5(%arg0: i32, %arg1: i32, %arg2: i32) -> (i32, i32, i32) {
    %c0_i32 = arith.constant 0 : i32
    return %arg0, %arg2, %arg1 : i32, i32, i32
  }
}

module attributes {stable_mosaic.version = 11 : i64} {
  func.func @_fused_linear_kernel(%arg0: i32, %arg1: i32, %arg2: i32, %arg3: memref<1x48x1024xbf16, #tpu.memory_space<vmem>>, %arg4: memref<1024x256xbf16, #tpu.memory_space<vmem>>, %arg5: memref<1x256xf32, #tpu.memory_space<vmem>>, %arg6: memref<1x1x256xf32, #tpu.memory_space<vmem>>, %arg7: memref<1x48x256xbf16, #tpu.memory_space<vmem>>, %arg8: memref<1x48x256xbf16, #tpu.memory_space<vmem>>) attributes {dimension_semantics = [#tpu.dimension_semantics<parallel>, #tpu.dimension_semantics<parallel>, #tpu.dimension_semantics<parallel>], iteration_bounds = array<i64: 2, 1, 1>, scalar_prefetch = 0 : i64, scratch_operands = 0 : i64, tpu.core_type = #tpu.core_type<tc>, window_params = [{transform_indices = @transform_0, window_bounds = array<i64: 1, 48, 1024>}, {transform_indices = @transform_1, window_bounds = array<i64: 1024, 256>}, {transform_indices = @transform_2, window_bounds = array<i64: 1, 256>}, {transform_indices = @transform_3, window_bounds = array<i64: 1, 1, 256>}, {transform_indices = @transform_4, window_bounds = array<i64: 1, 48, 256>}, {transform_indices = @transform_5, window_bounds = array<i64: 1, 48, 256>}]} {
    %c0 = arith.constant 0 : index
    %c0_0 = arith.constant 0 : index
    %c0_1 = arith.constant 0 : index
    %0 = vector.load %arg3[%c0, %c0_0, %c0_1] : memref<1x48x1024xbf16, #tpu.memory_space<vmem>>, vector<1x48x1024xbf16>
    %1 = vector.shape_cast %0 : vector<1x48x1024xbf16> to vector<48x1024xbf16>
    %c0_2 = arith.constant 0 : index
    %c0_3 = arith.constant 0 : index
    %2 = vector.load %arg4[%c0_2, %c0_3] : memref<1024x256xbf16, #tpu.memory_space<vmem>>, vector<1024x256xbf16>
    %cst = arith.constant dense<0.000000e+00> : vector<48x256xf32>
    %3 = tpu.matmul %1, %2, %cst {dimension_numbers = #tpu.dot_dimension_numbers<[1], [0], [0], [1], [0, 0, 1, 1], [], []>} : vector<48x1024xbf16>, vector<1024x256xbf16>, vector<48x256xf32> -> vector<48x256xf32>
    %c0_4 = arith.constant 0 : index
    %c0_5 = arith.constant 0 : index
    %4 = vector.load %arg5[%c0_4, %c0_5] : memref<1x256xf32, #tpu.memory_space<vmem>>, vector<1x256xf32>
    %5 = vector.broadcast %4 : vector<1x256xf32> to vector<48x256xf32>
    %6 = arith.addf %3, %5 : vector<48x256xf32>
    %c0_6 = arith.constant 0 : index
    %c0_7 = arith.constant 0 : index
    %c0_8 = arith.constant 0 : index
    %7 = vector.load %arg7[%c0_6, %c0_7, %c0_8] : memref<1x48x256xbf16, #tpu.memory_space<vmem>>, vector<1x48x256xbf16>
    %8 = vector.shape_cast %7 : vector<1x48x256xbf16> to vector<48x256xbf16>
    %9 = arith.extf %8 : vector<48x256xbf16> to vector<48x256xf32>
    %c0_9 = arith.constant 0 : index
    %c0_10 = arith.constant 0 : index
    %c0_11 = arith.constant 0 : index
    %10 = vector.load %arg6[%c0_9, %c0_10, %c0_11] : memref<1x1x256xf32, #tpu.memory_space<vmem>>, vector<1x1x256xf32>
    %11 = vector.shape_cast %10 : vector<1x1x256xf32> to vector<1x256xf32>
    %12 = vector.broadcast %11 : vector<1x256xf32> to vector<48x256xf32>
    %13 = arith.mulf %12, %6 : vector<48x256xf32>
    %14 = arith.addf %9, %13 : vector<48x256xf32>
    %15 = arith.truncf %14 : vector<48x256xf32> to vector<48x256xbf16>
    %c0_12 = arith.constant 0 : index
    %c0_13 = arith.constant 0 : index
    %c0_14 = arith.constant 0 : index
    %16 = vector.load %arg8[%c0_12, %c0_13, %c0_14] : memref<1x48x256xbf16, #tpu.memory_space<vmem>>, vector<1x48x256xbf16>
    %17 = vector.shape_cast %16 : vector<1x48x256xbf16> to vector<48x256xbf16>
    %18 = vector.shape_cast %15 : vector<48x256xbf16> to vector<1x48x256xbf16>
    tpu.vector_store %arg8[%c0_12, %c0_13, %c0_14], %18 {strides = array<i32>} : memref<1x48x256xbf16, #tpu.memory_space<vmem>>, vector<1x48x256xbf16>,
    return
  }
  func.func @transform_0(%arg0: i32, %arg1: i32, %arg2: i32) -> (i32, i32, i32) {
    %c0_i32 = arith.constant 0 : i32
    %c0_i32_0 = arith.constant 0 : i32
    return %arg0, %arg2, %c0_i32 : i32, i32, i32
  }
  func.func @transform_1(%arg0: i32, %arg1: i32, %arg2: i32) -> (i32, i32) {
    %c0_i32 = arith.constant 0 : i32
    %c0_i32_0 = arith.constant 0 : i32
    return %c0_i32, %arg1 : i32, i32
  }
  func.func @transform_2(%arg0: i32, %arg1: i32, %arg2: i32) -> (i32, i32) {
    %c0_i32 = arith.constant 0 : i32
    %c0_i32_0 = arith.constant 0 : i32
    return %c0_i32, %arg1 : i32, i32
  }
  func.func @transform_3(%arg0: i32, %arg1: i32, %arg2: i32) -> (i32, i32, i32) {
    %c0_i32 = arith.constant 0 : i32
    %c0_i32_0 = arith.constant 0 : i32
    return %arg0, %c0_i32, %arg1 : i32, i32, i32
  }
  func.func @transform_4(%arg0: i32, %arg1: i32, %arg2: i32) -> (i32, i32, i32) {
    %c0_i32 = arith.constant 0 : i32
    return %arg0, %arg2, %arg1 : i32, i32, i32
  }
  func.func @transform_5(%arg0: i32, %arg1: i32, %arg2: i32) -> (i32, i32, i32) {
    %c0_i32 = arith.constant 0 : i32
    return %arg0, %arg2, %arg1 : i32, i32, i32
  }
}

module attributes {stable_mosaic.version = 11 : i64} {
  func.func @_modln_kernel(%arg0: i32, %arg1: i32, %arg2: memref<1x32x256xbf16, #tpu.memory_space<vmem>>, %arg3: memref<1x1x256xf32, #tpu.memory_space<vmem>>, %arg4: memref<1x1x256xf32, #tpu.memory_space<vmem>>, %arg5: memref<1x32x256xf32, #tpu.memory_space<vmem>>) attributes {dimension_semantics = [#tpu.dimension_semantics<parallel>, #tpu.dimension_semantics<parallel>], iteration_bounds = array<i64: 2, 1>, scalar_prefetch = 0 : i64, scratch_operands = 0 : i64, tpu.core_type = #tpu.core_type<tc>, window_params = [{transform_indices = @transform_0, window_bounds = array<i64: 1, 32, 256>}, {transform_indices = @transform_1, window_bounds = array<i64: 1, 1, 256>}, {transform_indices = @transform_2, window_bounds = array<i64: 1, 1, 256>}, {transform_indices = @transform_3, window_bounds = array<i64: 1, 32, 256>}]} {
    %c0 = arith.constant 0 : index
    %c0_0 = arith.constant 0 : index
    %c0_1 = arith.constant 0 : index
    %0 = vector.load %arg2[%c0, %c0_0, %c0_1] : memref<1x32x256xbf16, #tpu.memory_space<vmem>>, vector<1x32x256xbf16>
    %1 = vector.shape_cast %0 : vector<1x32x256xbf16> to vector<32x256xbf16>
    %2 = arith.extf %1 : vector<32x256xbf16> to vector<32x256xf32>
    %cst = arith.constant dense<0.000000e+00> : vector<32xf32>
    %3 = vector.multi_reduction <add>, %2, %cst [1] : vector<32x256xf32> to vector<32xf32>
    %4 = vector.shape_cast %3 : vector<32xf32> to vector<32x1xf32>
    %cst_2 = arith.constant 2.560000e+02 : f32
    %5 = vector.broadcast %cst_2 : f32 to vector<32x1xf32>
    %6 = arith.divf %4, %5 : vector<32x1xf32>
    %7 = vector.broadcast %6 : vector<32x1xf32> to vector<32x256xf32>
    %8 = arith.subf %2, %7 : vector<32x256xf32>
    %9 = arith.mulf %8, %8 : vector<32x256xf32>
    %cst_3 = arith.constant dense<0.000000e+00> : vector<32xf32>
    %10 = vector.multi_reduction <add>, %9, %cst_3 [1] : vector<32x256xf32> to vector<32xf32>
    %11 = vector.shape_cast %10 : vector<32xf32> to vector<32x1xf32>
    %cst_4 = arith.constant 2.560000e+02 : f32
    %12 = vector.broadcast %cst_4 : f32 to vector<32x1xf32>
    %13 = arith.divf %11, %12 : vector<32x1xf32>
    %14 = vector.broadcast %6 : vector<32x1xf32> to vector<32x256xf32>
    %15 = arith.subf %2, %14 : vector<32x256xf32>
    %cst_5 = arith.constant 9.99999997E-7 : f32
    %16 = vector.broadcast %cst_5 : f32 to vector<32x1xf32>
    %17 = arith.addf %13, %16 : vector<32x1xf32>
    %18 = math.rsqrt %17 : vector<32x1xf32>
    %19 = vector.broadcast %18 : vector<32x1xf32> to vector<32x256xf32>
    %20 = arith.mulf %15, %19 : vector<32x256xf32>
    %c0_6 = arith.constant 0 : index
    %c0_7 = arith.constant 0 : index
    %c0_8 = arith.constant 0 : index
    %21 = vector.load %arg4[%c0_6, %c0_7, %c0_8] : memref<1x1x256xf32, #tpu.memory_space<vmem>>, vector<1x1x256xf32>
    %22 = vector.shape_cast %21 : vector<1x1x256xf32> to vector<1x256xf32>
    %cst_9 = arith.constant 1.000000e+00 : f32
    %23 = vector.broadcast %cst_9 : f32 to vector<1x256xf32>
    %24 = arith.addf %23, %22 : vector<1x256xf32>
    %25 = vector.broadcast %24 : vector<1x256xf32> to vector<32x256xf32>
    %26 = arith.mulf %20, %25 : vector<32x256xf32>
    %c0_10 = arith.constant 0 : index
    %c0_11 = arith.constant 0 : index
    %c0_12 = arith.constant 0 : index
    %27 = vector.load %arg3[%c0_10, %c0_11, %c0_12] : memref<1x1x256xf32, #tpu.memory_space<vmem>>, vector<1x1x256xf32>
    %28 = vector.shape_cast %27 : vector<1x1x256xf32> to vector<1x256xf32>
    %29 = vector.broadcast %28 : vector<1x256xf32> to vector<32x256xf32>
    %30 = arith.addf %26, %29 : vector<32x256xf32>
    %c0_13 = arith.constant 0 : index
    %c0_14 = arith.constant 0 : index
    %c0_15 = arith.constant 0 : index
    %31 = vector.load %arg5[%c0_13, %c0_14, %c0_15] : memref<1x32x256xf32, #tpu.memory_space<vmem>>, vector<1x32x256xf32>
    %32 = vector.shape_cast %31 : vector<1x32x256xf32> to vector<32x256xf32>
    %33 = vector.shape_cast %30 : vector<32x256xf32> to vector<1x32x256xf32>
    tpu.vector_store %arg5[%c0_13, %c0_14, %c0_15], %33 {strides = array<i32>} : memref<1x32x256xf32, #tpu.memory_space<vmem>>, vector<1x32x256xf32>,
    return
  }
  func.func @transform_0(%arg0: i32, %arg1: i32) -> (i32, i32, i32) {
    %c0_i32 = arith.constant 0 : i32
    %c0_i32_0 = arith.constant 0 : i32
    return %arg0, %arg1, %c0_i32 : i32, i32, i32
  }
  func.func @transform_1(%arg0: i32, %arg1: i32) -> (i32, i32, i32) {
    %c0_i32 = arith.constant 0 : i32
    %c0_i32_0 = arith.constant 0 : i32
    %c0_i32_1 = arith.constant 0 : i32
    return %arg0, %c0_i32, %c0_i32_0 : i32, i32, i32
  }
  func.func @transform_2(%arg0: i32, %arg1: i32) -> (i32, i32, i32) {
    %c0_i32 = arith.constant 0 : i32
    %c0_i32_0 = arith.constant 0 : i32
    %c0_i32_1 = arith.constant 0 : i32
    return %arg0, %c0_i32, %c0_i32_0 : i32, i32, i32
  }
  func.func @transform_3(%arg0: i32, %arg1: i32) -> (i32, i32, i32) {
    %c0_i32 = arith.constant 0 : i32
    %c0_i32_0 = arith.constant 0 : i32
    return %arg0, %arg1, %c0_i32 : i32, i32, i32
  }
}

</mosaic_0001>

<llo_original>
// kernel: run.12
$region0: #{run.12}
  #allocation0 [shape = 'u32[]', space=smem, size = 0x4, offset = 0x4, fixed_abs, tag = 'smem constant byte address 0x4 - core index']
  #allocation1 [shape = 'u32[144,128]{1,0:T(1,128)}', space=vmem, size = 0x12000, scoped, tag = 'internal scratch']
  #allocation2 [shape = 'f32[48,1]{1,0:T(8,128)}', space=vmem, size = 0x6000, scoped, tag = 'scratch operand']
  #allocation3 [shape = 'f32[48,1]{1,0:T(8,128)}', space=vmem, size = 0x6000, scoped, tag = 'scratch operand']
  #allocation4 [shape = 'f32[48,128]{1,0:T(8,128)}', space=vmem, size = 0x6000, scoped, tag = 'scratch operand']
  %s0 = inlined_call_operand.vmem [shape: bf16[2,48,768], index: 0, kind: input, shape index: {}, may-alias: {0,1,2}]
  %s1 = inlined_call_operand.vmem [shape: bf16[2,48,768], index: 1, kind: input, shape index: {}, may-alias: {0,1,2}]
  %s2 = inlined_call_operand.vmem [shape: bf16[2,48,768], index: 2, kind: input, shape index: {}, may-alias: {0,1,2}]
  %s3 = inlined_call_operand.vmem [shape: bf16[2,48,256], index: 3, kind: output, shape index: {}]
  %s4 = sld [smem:[#allocation0]]
  $region213: #{run.12} parent=0
    _
  %s6 = ssub.s32 1, %s4
  %s7 = scalar_select 0, %s6, %s4
  $region1: #{run.12} parent=0
    #allocation5 [shape = 'u8[24576]{0}', space=vmem, size = 0x6000, scoped, tag = 'input window, operand 0']
    #allocation6 [shape = 'u8[24576]{0}', space=vmem, size = 0x6000, scoped, tag = 'input window, operand 1']
    #allocation7 [shape = 'u8[24576]{0}', space=vmem, size = 0x6000, scoped, tag = 'input window, operand 2']
    #allocation8 [shape = 'u8[24576]{0}', space=vmem, size = 0x6000, scoped, tag = 'output window, operand 0']
    loop: start=0, step=1, limit=6
    $region2: #{run.12} parent=1 // loop_pre_header
      _
    $region3: #{run.12} parent=1 // loop_header
      %s9 = sphi 0, %s13
      %p10 = scmp.ge.s32.totalorder %s9, 6
      %s16 = sphi 0, %s42
      %s17 = sphi 0, %s38
      %s18 = sphi 0, %s34
      %s19 = sphi 0, %s30
      %s20 = sphi 0, %s16
      %s21 = sphi 0, %s17
      %s22 = sphi 0, %s18
      %s23 = sphi 0, %s19
      %s24 = sphi 0, %s20
      %s25 = sphi 0, %s21
      %s26 = sphi 0, %s22
      %s27 = sphi 0, %s23
      %s49 = sphi 0, %s51
      %s52 = sphi 0, %s49
      %s53 = sphi 0, %s52
      %s69 = sphi 0, %s53
      %s81 = sphi 0, %s83
      %s84 = sphi 0, %s81
      %s85 = sphi 0, %s84
      %s101 = sphi 0, %s85
      %s113 = sphi 0, %s115
      %s116 = sphi 0, %s113
      %s117 = sphi 0, %s116
      %s133 = sphi 0, %s117
      %s143 = sphi 0, %s145
      %s146 = sphi 0, %s143
      %s147 = sphi 0, %s146
      %s163 = sphi 0, %s147
    $region4: #{run.12} parent=1 // loop_header_branch
      %12 = sbr.rel (%p10) target = $region8
    $region5: #{run.12} parent=1 // loop_body
      %s14 = ssub.s32 %s9, 1
      %s15 = ssub.s32 %s9, 2
      %s28 = sadd.s32 1, %s19
      %p29 = scmp.ge.s32.totalorder %s28, 1
      %s30 = scalar_select %p29, 0, %s28
      %s31 = sadd.s32 1, %s18
      %s32 = scalar_select %p29, %s31, %s18
      %p33 = scmp.ge.s32.totalorder %s32, 1
      %s34 = scalar_select %p33, 0, %s32
      %s35 = sadd.s32 1, %s17
      %s36 = scalar_select %p33, %s35, %s17
      %p37 = scmp.ge.s32.totalorder %s36, 2
      %s38 = scalar_select %p37, 0, %s36
      %s39 = sadd.s32 1, %s16
      %s40 = scalar_select %p37, %s39, %s16
      %p41 = scmp.ge.s32.totalorder %s40, 2
      %s42 = scalar_select %p41, 0, %s40
      %s43 = ssub.s32 %s16, %s42
      %s44 = ssub.s32 %s18, %s34
      %s45 = sor.u32 %s43, %s44
      %s46 = ssub.s32 %s17, %s38
      %s47 = sor.u32 %s45, %s46
      %p48 = scmp.eq.s32.totalorder %s47, 0
      %s50 = sadd.s32 %s49, 1
      %s51 = scalar_select %p48, %s49, %s50
      %p54 = pneg %p48
      %p55 = scmp.eq.s32.totalorder %s9, 3
      %p56 = por %p54, %p55
      %p57 = scmp.ne.s32.totalorder %s49, %s52
      %p58 = scmp.eq.s32.totalorder %s9, 0
      %p59 = por %p57, %p58
      %p60 = scmp.ne.s32.totalorder %s49, %s52
      %p61 = scmp.eq.s32.totalorder %s14, 3
      %p62 = por %p60, %p61
      %p63 = scmp.ne.s32.totalorder %s52, %s53
      %p64 = scmp.eq.s32.totalorder %s14, 0
      %p65 = por %p63, %p64
      %p66 = scmp.ne.s32.totalorder %s52, %s53
      %p67 = scmp.eq.s32.totalorder %s15, 3
      %p68 = por %p66, %p67
      %p70 = scmp.ne.s32.totalorder %s53, %s69
      %p71 = scmp.eq.s32.totalorder %s15, 0
      %p72 = por %p70, %p71
      %s73 = sadd.s32 %s17, 2
      %s74 = sadd.s32 %s38, 2
      %s75 = ssub.s32 %s16, %s42
      %s76 = ssub.s32 %s19, %s30
      %s77 = sor.u32 %s75, %s76
      %s78 = ssub.s32 %s73, %s74
      %s79 = sor.u32 %s77, %s78
      %p80 = scmp.eq.s32.totalorder %s79, 0
      %s82 = sadd.s32 %s81, 1
      %s83 = scalar_select %p80, %s81, %s82
      %p86 = pneg %p80
      %p87 = scmp.eq.s32.totalorder %s9, 3
      %p88 = por %p86, %p87
      %p89 = scmp.ne.s32.totalorder %s81, %s84
      %p90 = scmp.eq.s32.totalorder %s9, 0
      %p91 = por %p89, %p90
      %p92 = scmp.ne.s32.totalorder %s81, %s84
      %p93 = scmp.eq.s32.totalorder %s14, 3
      %p94 = por %p92, %p93
      %p95 = scmp.ne.s32.totalorder %s84, %s85
      %p96 = scmp.eq.s32.totalorder %s14, 0
      %p97 = por %p95, %p96
      %p98 = scmp.ne.s32.totalorder %s84, %s85
      %p99 = scmp.eq.s32.totalorder %s15, 3
      %p100 = por %p98, %p99
      %p102 = scmp.ne.s32.totalorder %s85, %s101
      %p103 = scmp.eq.s32.totalorder %s15, 0
      %p104 = por %p102, %p103
      %s105 = sadd.s32 %s17, 4
      %s106 = sadd.s32 %s38, 4
      %s107 = ssub.s32 %s16, %s42
      %s108 = ssub.s32 %s19, %s30
      %s109 = sor.u32 %s107, %s108
      %s110 = ssub.s32 %s105, %s106
      %s111 = sor.u32 %s109, %s110
      %p112 = scmp.eq.s32.totalorder %s111, 0
      %s114 = sadd.s32 %s113, 1
      %s115 = scalar_select %p112, %s113, %s114
      %p118 = pneg %p112
      %p119 = scmp.eq.s32.totalorder %s9, 3
      %p120 = por %p118, %p119
      %p121 = scmp.ne.s32.totalorder %s113, %s116
      %p122 = scmp.eq.s32.totalorder %s9, 0
      %p123 = por %p121, %p122
      %p124 = scmp.ne.s32.totalorder %s113, %s116
      %p125 = scmp.eq.s32.totalorder %s14, 3
      %p126 = por %p124, %p125
      %p127 = scmp.ne.s32.totalorder %s116, %s117
      %p128 = scmp.eq.s32.totalorder %s14, 0
      %p129 = por %p127, %p128
      %p130 = scmp.ne.s32.totalorder %s116, %s117
      %p131 = scmp.eq.s32.totalorder %s15, 3
      %p132 = por %p130, %p131
      %p134 = scmp.ne.s32.totalorder %s117, %s133
      %p135 = scmp.eq.s32.totalorder %s15, 0
      %p136 = por %p134, %p135
      %s137 = ssub.s32 %s16, %s42
      %s138 = ssub.s32 %s18, %s34
      %s139 = sor.u32 %s137, %s138
      %s140 = ssub.s32 %s17, %s38
      %s141 = sor.u32 %s139, %s140
      %p142 = scmp.eq.s32.totalorder %s141, 0
      %s144 = sadd.s32 %s143, 1
      %s145 = scalar_select %p142, %s143, %s144
      %p148 = pneg %p142
      %p149 = scmp.eq.s32.totalorder %s9, 3
      %p150 = por %p148, %p149
      %p151 = scmp.ne.s32.totalorder %s143, %s146
      %p152 = scmp.eq.s32.totalorder %s9, 0
      %p153 = por %p151, %p152
      %p154 = scmp.ne.s32.totalorder %s143, %s146
      %p155 = scmp.eq.s32.totalorder %s14, 3
      %p156 = por %p154, %p155
      %p157 = scmp.ne.s32.totalorder %s146, %s147
      %p158 = scmp.eq.s32.totalorder %s14, 0
      %p159 = por %p157, %p158
      %p160 = scmp.ne.s32.totalorder %s146, %s147
      %p161 = scmp.eq.s32.totalorder %s15, 3
      %p162 = por %p160, %p161
      %p164 = scmp.ne.s32.totalorder %s147, %s163
      %p165 = scmp.eq.s32.totalorder %s15, 0
      %p166 = por %p164, %p165
      %p167 = scmp.le.s32.totalorder 1, %s9
      %p168 = scmp.lt.s32.totalorder %s9, 5
      %p169 = pnand %p167, %p168
      %p170 = pneg %p169
      // Predicated region
      $region9: #{run.12} parent=5 // pred_check
        _
      $region10: #{run.12} parent=5 // pred_check_branch
        %172 = sbr.rel (%p169) target = $region12
      $region11: #{run.12} parent=5 // pred_region
        %s173 = ssub.s32 %s9, 1
      $region12: #{run.12} parent=5 // pred_fallthru
        _
      %p174 = scmp.lt.s32.totalorder %s9, 4
      // Predicated region
      $region13: #{run.12} parent=5 // pred_check
        %p175 = pneg %p174
      $region14: #{run.12} parent=5 // pred_check_branch
        %177 = sbr.rel (%p175) target = $region16
      $region15: #{run.12} parent=5 // pred_region
        // Predicated region
        $region17: #{run.12} parent=15 // pred_check
          %p178 = pneg %p59
        $region18: #{run.12} parent=15 // pred_check_branch
          %180 = sbr.rel (%p178) target = $region20
        $region19: #{run.12} parent=15 // pred_region
          %s181 = sand.u32 %s49, 1
          %s182 = sand.u32 %s49, 1
          %s183 = smul.addr %s182, 24
          %s184 = scalar_lea.vmem [#allocation5], %s183
          %s185 = smul.u32 6, %s18
          %s186 = smul.addr %s185, 6
          %s187 = sadd.s32 %s17, %s186
          %s188 = smul.addr %s16, 36
          %s189 = sadd.s32 %s187, %s188
          %s190 = smul.addr %s189, 4
          %s191 = scalar_lea.vmem %s0, %s190
          // Predicated region
          $region21: #{run.12} parent=19 // pred_check
            _
          $region22: #{run.12} parent=19 // pred_check_branch
            %193 = sbr.rel (0) target = $region24
          $region23: #{run.12} parent=19 // pred_region
            // Predicated region
            $region25: #{run.12} parent=23 // pred_check
              _
            $region26: #{run.12} parent=23 // pred_check_branch
              %195 = sbr.rel target = $region28
            $region27: #{run.12} parent=23 // pred_region
              // Predicated region
              $region40: #{run.12} parent=27 // pred_check
                _
              $region41: #{run.12} parent=27 // pred_check_branch
                %220 = sbr.rel (0) target = $region43
              $region42: #{run.12} parent=27 // pred_region
                loop: start=0, step=1, limit=1
                $region44: #{run.12} parent=42 // loop_pre_header
                  _
                $region45: #{run.12} parent=42 // loop_header
                  %s222 = sphi 0, %s226
                  %p223 = scmp.ge.s32.totalorder %s222, 1
                  %s227 = sphi %s191, %s191
                  %s228 = sphi %s184, %s184
                $region46: #{run.12} parent=42 // loop_header_branch
                  %225 = sbr.rel (%p223) target = $region50
                $region47: #{run.12} parent=42 // loop_body
                  _
                $region48: #{run.12} parent=42 // loop_footer
                  %s226 = sadd.s32 1, %s222
                $region49: #{run.12} parent=42 // loop_footer_branch
                  %221 = sbr.rel target = $region45
                $region50: #{run.12} parent=42 // loop_exit
                  _
                loop: start=0, step=1, limit=1
                $region51: #{run.12} parent=42 // loop_pre_header
                  _
                $region52: #{run.12} parent=42 // loop_header
                  %s231 = sphi 0, %s235
                  %p232 = scmp.ge.s32.totalorder %s231, 1
                  %s236 = sphi %s191, %s191
                  %s237 = sphi %s184, %s184
                $region53: #{run.12} parent=42 // loop_header_branch
                  %234 = sbr.rel (%p232) target = $region57
                $region54: #{run.12} parent=42 // loop_body
                  %v238 = vld [vmem:[%s236] sm:$0xf]
                  %239 = vst [vmem:[%s237] sm:$0xf] %v238
                  %v240 = vld [vmem:[%s236 + $0x18] sm:$0xf]
                  %241 = vst [vmem:[%s237 + $0x4] sm:$0xf] %v240
                  %v242 = vld [vmem:[%s236 + $0x30] sm:$0xf]
                  %243 = vst [vmem:[%s237 + $0x8] sm:$0xf] %v242
                  %v244 = vld [vmem:[%s236 + $0x48] sm:$0xf]
                  %245 = vst [vmem:[%s237 + $0xc] sm:$0xf] %v244
                  %v246 = vld [vmem:[%s236 + $0x60] sm:$0xf]
                  %247 = vst [vmem:[%s237 + $0x10] sm:$0xf] %v246
                  %v248 = vld [vmem:[%s236 + $0x78] sm:$0xf]
                  %249 = vst [vmem:[%s237 + $0x14] sm:$0xf] %v248
                $region55: #{run.12} parent=42 // loop_footer
                  %s235 = sadd.s32 1, %s231
                $region56: #{run.12} parent=42 // loop_footer_branch
                  %230 = sbr.rel target = $region52
                $region57: #{run.12} parent=42 // loop_exit
                  _
              $region43: #{run.12} parent=27 // pred_fallthru
                _
            $region28: #{run.12} parent=23 // pred_fallthru
              _
            // Predicated region
            $region29: #{run.12} parent=23 // pred_check
              _
            $region30: #{run.12} parent=23 // pred_check_branch
              %197 = sbr.rel (0) target = $region32
            $region31: #{run.12} parent=23 // pred_region
              loop: start=0, step=1, limit=1
              $region33: #{run.12} parent=31 // loop_pre_header
                _
              $region34: #{run.12} parent=31 // loop_header
                %s200 = sphi 0, %s204
                %p201 = scmp.ge.s32.totalorder %s200, 1
                %s205 = sphi %s191, %s191
                %s206 = sphi %s184, %s184
              $region35: #{run.12} parent=31 // loop_header_branch
                %203 = sbr.rel (%p201) target = $region39
              $region36: #{run.12} parent=31 // loop_body
                %v207 = vld [vmem:[%s205] sm:$0xf]
                %208 = vst [vmem:[%s206] sm:$0xf] %v207
                %v209 = vld [vmem:[%s205 + $0x18] sm:$0xf]
                %210 = vst [vmem:[%s206 + $0x4] sm:$0xf] %v209
                %v211 = vld [vmem:[%s205 + $0x30] sm:$0xf]
                %212 = vst [vmem:[%s206 + $0x8] sm:$0xf] %v211
                %v213 = vld [vmem:[%s205 + $0x48] sm:$0xf]
                %214 = vst [vmem:[%s206 + $0xc] sm:$0xf] %v213
                %v215 = vld [vmem:[%s205 + $0x60] sm:$0xf]
                %216 = vst [vmem:[%s206 + $0x10] sm:$0xf] %v215
                %v217 = vld [vmem:[%s205 + $0x78] sm:$0xf]
                %218 = vst [vmem:[%s206 + $0x14] sm:$0xf] %v217
              $region37: #{run.12} parent=31 // loop_footer
                %s204 = sadd.s32 1, %s200
              $region38: #{run.12} parent=31 // loop_footer_branch
                %199 = sbr.rel target = $region34
              $region39: #{run.12} parent=31 // loop_exit
                _
            $region32: #{run.12} parent=23 // pred_fallthru
              _
          $region24: #{run.12} parent=19 // pred_fallthru
            _
          %250 = vnop
        $region20: #{run.12} parent=15 // pred_fallthru
          _
        // Predicated region
        $region58: #{run.12} parent=15 // pred_check
          %p251 = pneg %p91
        $region59: #{run.12} parent=15 // pred_check_branch
          %253 = sbr.rel (%p251) target = $region61
        $region60: #{run.12} parent=15 // pred_region
          %s254 = sand.u32 %s81, 1
          %s255 = sand.u32 %s81, 1
          %s256 = smul.addr %s255, 24
          %s257 = scalar_lea.vmem [#allocation6], %s256
          %s258 = sadd.s32 %s17, 2
          %s259 = smul.u32 6, %s19
          %s260 = smul.addr %s259, 6
          %s261 = sadd.s32 %s258, %s260
          %s262 = smul.addr %s16, 36
          %s263 = sadd.s32 %s261, %s262
          %s264 = smul.addr %s263, 4
          %s265 = scalar_lea.vmem %s1, %s264
          // Predicated region
          $region62: #{run.12} parent=60 // pred_check
            _
          $region63: #{run.12} parent=60 // pred_check_branch
            %267 = sbr.rel (0) target = $region65
          $region64: #{run.12} parent=60 // pred_region
            // Predicated region
            $region66: #{run.12} parent=64 // pred_check
              _
            $region67: #{run.12} parent=64 // pred_check_branch
              %269 = sbr.rel target = $region69
            $region68: #{run.12} parent=64 // pred_region
              // Predicated region
              $region81: #{run.12} parent=68 // pred_check
                _
              $region82: #{run.12} parent=68 // pred_check_branch
                %294 = sbr.rel (0) target = $region84
              $region83: #{run.12} parent=68 // pred_region
                loop: start=0, step=1, limit=1
                $region85: #{run.12} parent=83 // loop_pre_header
                  _
                $region86: #{run.12} parent=83 // loop_header
                  %s296 = sphi 0, %s300
                  %p297 = scmp.ge.s32.totalorder %s296, 1
                  %s301 = sphi %s265, %s265
                  %s302 = sphi %s257, %s257
                $region87: #{run.12} parent=83 // loop_header_branch
                  %299 = sbr.rel (%p297) target = $region91
                $region88: #{run.12} parent=83 // loop_body
                  _
                $region89: #{run.12} parent=83 // loop_footer
                  %s300 = sadd.s32 1, %s296
                $region90: #{run.12} parent=83 // loop_footer_branch
                  %295 = sbr.rel target = $region86
                $region91: #{run.12} parent=83 // loop_exit
                  _
                loop: start=0, step=1, limit=1
                $region92: #{run.12} parent=83 // loop_pre_header
                  _
                $region93: #{run.12} parent=83 // loop_header
                  %s305 = sphi 0, %s309
                  %p306 = scmp.ge.s32.totalorder %s305, 1
                  %s310 = sphi %s265, %s265
                  %s311 = sphi %s257, %s257
                $region94: #{run.12} parent=83 // loop_header_branch
                  %308 = sbr.rel (%p306) target = $region98
                $region95: #{run.12} parent=83 // loop_body
                  %v312 = vld [vmem:[%s310] sm:$0xf]
                  %313 = vst [vmem:[%s311] sm:$0xf] %v312
                  %v314 = vld [vmem:[%s310 + $0x18] sm:$0xf]
                  %315 = vst [vmem:[%s311 + $0x4] sm:$0xf] %v314
                  %v316 = vld [vmem:[%s310 + $0x30] sm:$0xf]
                  %317 = vst [vmem:[%s311 + $0x8] sm:$0xf] %v316
                  %v318 = vld [vmem:[%s310 + $0x48] sm:$0xf]
                  %319 = vst [vmem:[%s311 + $0xc] sm:$0xf] %v318
                  %v320 = vld [vmem:[%s310 + $0x60] sm:$0xf]
                  %321 = vst [vmem:[%s311 + $0x10] sm:$0xf] %v320
                  %v322 = vld [vmem:[%s310 + $0x78] sm:$0xf]
                  %323 = vst [vmem:[%s311 + $0x14] sm:$0xf] %v322
                $region96: #{run.12} parent=83 // loop_footer
                  %s309 = sadd.s32 1, %s305
                $region97: #{run.12} parent=83 // loop_footer_branch
                  %304 = sbr.rel target = $region93
                $region98: #{run.12} parent=83 // loop_exit
                  _
              $region84: #{run.12} parent=68 // pred_fallthru
                _
            $region69: #{run.12} parent=64 // pred_fallthru
              _
            // Predicated region
            $region70: #{run.12} parent=64 // pred_check
              _
            $region71: #{run.12} parent=64 // pred_check_branch
              %271 = sbr.rel (0) target = $region73
            $region72: #{run.12} parent=64 // pred_region
              loop: start=0, step=1, limit=1
              $region74: #{run.12} parent=72 // loop_pre_header
                _
              $region75: #{run.12} parent=72 // loop_header
                %s274 = sphi 0, %s278
                %p275 = scmp.ge.s32.totalorder %s274, 1
                %s279 = sphi %s265, %s265
                %s280 = sphi %s257, %s257
              $region76: #{run.12} parent=72 // loop_header_branch
                %277 = sbr.rel (%p275) target = $region80
              $region77: #{run.12} parent=72 // loop_body
                %v281 = vld [vmem:[%s279] sm:$0xf]
                %282 = vst [vmem:[%s280] sm:$0xf] %v281
                %v283 = vld [vmem:[%s279 + $0x18] sm:$0xf]
                %284 = vst [vmem:[%s280 + $0x4] sm:$0xf] %v283
                %v285 = vld [vmem:[%s279 + $0x30] sm:$0xf]
                %286 = vst [vmem:[%s280 + $0x8] sm:$0xf] %v285
                %v287 = vld [vmem:[%s279 + $0x48] sm:$0xf]
                %288 = vst [vmem:[%s280 + $0xc] sm:$0xf] %v287
                %v289 = vld [vmem:[%s279 + $0x60] sm:$0xf]
                %290 = vst [vmem:[%s280 + $0x10] sm:$0xf] %v289
                %v291 = vld [vmem:[%s279 + $0x78] sm:$0xf]
                %292 = vst [vmem:[%s280 + $0x14] sm:$0xf] %v291
              $region78: #{run.12} parent=72 // loop_footer
                %s278 = sadd.s32 1, %s274
              $region79: #{run.12} parent=72 // loop_footer_branch
                %273 = sbr.rel target = $region75
              $region80: #{run.12} parent=72 // loop_exit
                _
            $region73: #{run.12} parent=64 // pred_fallthru
              _
          $region65: #{run.12} parent=60 // pred_fallthru
            _
          %324 = vnop
        $region61: #{run.12} parent=15 // pred_fallthru
          _
        // Predicated region
        $region99: #{run.12} parent=15 // pred_check
          %p325 = pneg %p123
        $region100: #{run.12} parent=15 // pred_check_branch
          %327 = sbr.rel (%p325) target = $region102
        $region101: #{run.12} parent=15 // pred_region
          %s328 = sand.u32 %s113, 1
          %s329 = sand.u32 %s113, 1
          %s330 = smul.addr %s329, 24
          %s331 = scalar_lea.vmem [#allocation7], %s330
          %s332 = sadd.s32 %s17, 4
          %s333 = smul.u32 6, %s19
          %s334 = smul.addr %s333, 6
          %s335 = sadd.s32 %s332, %s334
          %s336 = smul.addr %s16, 36
          %s337 = sadd.s32 %s335, %s336
          %s338 = smul.addr %s337, 4
          %s339 = scalar_lea.vmem %s2, %s338
          // Predicated region
          $region103: #{run.12} parent=101 // pred_check
            _
          $region104: #{run.12} parent=101 // pred_check_branch
            %341 = sbr.rel (0) target = $region106
          $region105: #{run.12} parent=101 // pred_region
            // Predicated region
            $region107: #{run.12} parent=105 // pred_check
              _
            $region108: #{run.12} parent=105 // pred_check_branch
              %343 = sbr.rel target = $region110
            $region109: #{run.12} parent=105 // pred_region
              // Predicated region
              $region122: #{run.12} parent=109 // pred_check
                _
              $region123: #{run.12} parent=109 // pred_check_branch
                %368 = sbr.rel (0) target = $region125
              $region124: #{run.12} parent=109 // pred_region
                loop: start=0, step=1, limit=1
                $region126: #{run.12} parent=124 // loop_pre_header
                  _
                $region127: #{run.12} parent=124 // loop_header
                  %s370 = sphi 0, %s374
                  %p371 = scmp.ge.s32.totalorder %s370, 1
                  %s375 = sphi %s339, %s339
                  %s376 = sphi %s331, %s331
                $region128: #{run.12} parent=124 // loop_header_branch
                  %373 = sbr.rel (%p371) target = $region132
                $region129: #{run.12} parent=124 // loop_body
                  _
                $region130: #{run.12} parent=124 // loop_footer
                  %s374 = sadd.s32 1, %s370
                $region131: #{run.12} parent=124 // loop_footer_branch
                  %369 = sbr.rel target = $region127
                $region132: #{run.12} parent=124 // loop_exit
                  _
                loop: start=0, step=1, limit=1
                $region133: #{run.12} parent=124 // loop_pre_header
                  _
                $region134: #{run.12} parent=124 // loop_header
                  %s379 = sphi 0, %s383
                  %p380 = scmp.ge.s32.totalorder %s379, 1
                  %s384 = sphi %s339, %s339
                  %s385 = sphi %s331, %s331
                $region135: #{run.12} parent=124 // loop_header_branch
                  %382 = sbr.rel (%p380) target = $region139
                $region136: #{run.12} parent=124 // loop_body
                  %v386 = vld [vmem:[%s384] sm:$0xf]
                  %387 = vst [vmem:[%s385] sm:$0xf] %v386
                  %v388 = vld [vmem:[%s384 + $0x18] sm:$0xf]
                  %389 = vst [vmem:[%s385 + $0x4] sm:$0xf] %v388
                  %v390 = vld [vmem:[%s384 + $0x30] sm:$0xf]
                  %391 = vst [vmem:[%s385 + $0x8] sm:$0xf] %v390
                  %v392 = vld [vmem:[%s384 + $0x48] sm:$0xf]
                  %393 = vst [vmem:[%s385 + $0xc] sm:$0xf] %v392
                  %v394 = vld [vmem:[%s384 + $0x60] sm:$0xf]
                  %395 = vst [vmem:[%s385 + $0x10] sm:$0xf] %v394
                  %v396 = vld [vmem:[%s384 + $0x78] sm:$0xf]
                  %397 = vst [vmem:[%s385 + $0x14] sm:$0xf] %v396
                $region137: #{run.12} parent=124 // loop_footer
                  %s383 = sadd.s32 1, %s379
                $region138: #{run.12} parent=124 // loop_footer_branch
                  %378 = sbr.rel target = $region134
                $region139: #{run.12} parent=124 // loop_exit
                  _
              $region125: #{run.12} parent=109 // pred_fallthru
                _
            $region110: #{run.12} parent=105 // pred_fallthru
              _
            // Predicated region
            $region111: #{run.12} parent=105 // pred_check
              _
            $region112: #{run.12} parent=105 // pred_check_branch
              %345 = sbr.rel (0) target = $region114
            $region113: #{run.12} parent=105 // pred_region
              loop: start=0, step=1, limit=1
              $region115: #{run.12} parent=113 // loop_pre_header
                _
              $region116: #{run.12} parent=113 // loop_header
                %s348 = sphi 0, %s352
                %p349 = scmp.ge.s32.totalorder %s348, 1
                %s353 = sphi %s339, %s339
                %s354 = sphi %s331, %s331
              $region117: #{run.12} parent=113 // loop_header_branch
                %351 = sbr.rel (%p349) target = $region121
              $region118: #{run.12} parent=113 // loop_body
                %v355 = vld [vmem:[%s353] sm:$0xf]
                %356 = vst [vmem:[%s354] sm:$0xf] %v355
                %v357 = vld [vmem:[%s353 + $0x18] sm:$0xf]
                %358 = vst [vmem:[%s354 + $0x4] sm:$0xf] %v357
                %v359 = vld [vmem:[%s353 + $0x30] sm:$0xf]
                %360 = vst [vmem:[%s354 + $0x8] sm:$0xf] %v359
                %v361 = vld [vmem:[%s353 + $0x48] sm:$0xf]
                %362 = vst [vmem:[%s354 + $0xc] sm:$0xf] %v361
                %v363 = vld [vmem:[%s353 + $0x60] sm:$0xf]
                %364 = vst [vmem:[%s354 + $0x10] sm:$0xf] %v363
                %v365 = vld [vmem:[%s353 + $0x78] sm:$0xf]
                %366 = vst [vmem:[%s354 + $0x14] sm:$0xf] %v365
              $region119: #{run.12} parent=113 // loop_footer
                %s352 = sadd.s32 1, %s348
              $region120: #{run.12} parent=113 // loop_footer_branch
                %347 = sbr.rel target = $region116
              $region121: #{run.12} parent=113 // loop_exit
                _
            $region114: #{run.12} parent=105 // pred_fallthru
              _
          $region106: #{run.12} parent=101 // pred_fallthru
            _
          %398 = vnop
        $region102: #{run.12} parent=15 // pred_fallthru
          _
      $region16: #{run.12} parent=5 // pred_fallthru
        _
      %p399 = scmp.le.s32.totalorder 1, %s9
      %p400 = scmp.lt.s32.totalorder %s9, 5
      %p401 = pnand %p399, %p400
      %p402 = pneg %p401
      // Predicated region
      $region140: #{run.12} parent=5 // pred_check
        _
      $region141: #{run.12} parent=5 // pred_check_branch
        %404 = sbr.rel (%p401) target = $region143
      $region142: #{run.12} parent=5 // pred_region
        %s405 = ssub.s32 %s9, 1
        %s406 = sand.u32 %s52, 1
        %s407 = sand.u32 %s52, 1
        %s408 = smul.addr %s407, 24
        %s409 = scalar_lea.vmem [#allocation5], %s408
        // Predicated region
        $region144: #{run.12} parent=142 // pred_check
          %p410 = pneg %p65
        $region145: #{run.12} parent=142 // pred_check_branch
          %412 = sbr.rel (%p410) target = $region147
        $region146: #{run.12} parent=142 // pred_region
          _
        $region147: #{run.12} parent=142 // pred_fallthru
          _
        %s413 = sand.u32 %s84, 1
        %s414 = sand.u32 %s84, 1
        %s415 = smul.addr %s414, 24
        %s416 = scalar_lea.vmem [#allocation6], %s415
        // Predicated region
        $region148: #{run.12} parent=142 // pred_check
          %p417 = pneg %p97
        $region149: #{run.12} parent=142 // pred_check_branch
          %419 = sbr.rel (%p417) target = $region151
        $region150: #{run.12} parent=142 // pred_region
          _
        $region151: #{run.12} parent=142 // pred_fallthru
          _
        %s420 = sand.u32 %s116, 1
        %s421 = sand.u32 %s116, 1
        %s422 = smul.addr %s421, 24
        %s423 = scalar_lea.vmem [#allocation7], %s422
        // Predicated region
        $region152: #{run.12} parent=142 // pred_check
          %p424 = pneg %p129
        $region153: #{run.12} parent=142 // pred_check_branch
          %426 = sbr.rel (%p424) target = $region155
        $region154: #{run.12} parent=142 // pred_region
          _
        $region155: #{run.12} parent=142 // pred_fallthru
          _
        %s427 = sand.u32 %s52, 1
        %s428 = sand.u32 %s52, 1
        %s429 = smul.addr %s428, 24
        %s430 = scalar_lea.vmem [#allocation5], %s429
        %p431 = pneg %p65
        %p432 = pneg %p62
        %s433 = sand.u32 %s84, 1
        %s434 = sand.u32 %s84, 1
        %s435 = smul.addr %s434, 24
        %s436 = scalar_lea.vmem [#allocation6], %s435
        %p437 = pneg %p97
        %p438 = pneg %p94
        %s439 = sand.u32 %s116, 1
        %s440 = sand.u32 %s116, 1
        %s441 = smul.addr %s440, 24
        %s442 = scalar_lea.vmem [#allocation7], %s441
        %p443 = pneg %p129
        %p444 = pneg %p126
        %p445 = pneg %p159
        %p446 = pneg %p156
        %s447 = sand.u32 %s146, 1
        %s448 = sand.u32 %s146, 1
        %s449 = smul.addr %s448, 24
        %s450 = scalar_lea.vmem [#allocation8], %s449
        %s451 = smul.u32 6, %s22
        %s452 = sadd.s32 %s21, 2
        %s453 = smul.u32 6, %s23
        %s454 = sadd.s32 %s21, 4
        %s455 = smul.u32 6, %s23
        %s456 = smul.u32 6, %s22
        %p458 = scmp.eq.s32.totalorder %s23, 0
        // Predicated region
        $region156: #{run.12} parent=142 // pred_check
          %p459 = pneg %p458
        $region157: #{run.12} parent=142 // pred_check_branch
          %461 = sbr.rel (%p459) target = $region159
        $region158: #{run.12} parent=142 // pred_region
          %vm462 = vcmask 7168
          %463 = vst.msk [vmem:[#allocation2] sm:$0xff] %vm462, -inf
          %464 = vst.msk [vmem:[#allocation2 + $0x8] sm:$0xff] %vm462, -inf
          %465 = vst.msk [vmem:[#allocation2 + $0x10] sm:$0xff] %vm462, -inf
          %466 = vst.msk [vmem:[#allocation2 + $0x18] sm:$0xff] %vm462, -inf
          %467 = vst.msk [vmem:[#allocation2 + $0x20] sm:$0xff] %vm462, -inf
          %468 = vst.msk [vmem:[#allocation2 + $0x28] sm:$0xff] %vm462, -inf
          %469 = vst.msk [vmem:[#allocation3] sm:$0xff] %vm462, 0.0
          %470 = vst.msk [vmem:[#allocation3 + $0x8] sm:$0xff] %vm462, 0.0
          %471 = vst.msk [vmem:[#allocation3 + $0x10] sm:$0xff] %vm462, 0.0
          %472 = vst.msk [vmem:[#allocation3 + $0x18] sm:$0xff] %vm462, 0.0
          %473 = vst.msk [vmem:[#allocation3 + $0x20] sm:$0xff] %vm462, 0.0
          %474 = vst.msk [vmem:[#allocation3 + $0x28] sm:$0xff] %vm462, 0.0
          %475 = vst [vmem:[#allocation4] sm:$0xff] 0.0
          %476 = vst [vmem:[#allocation4 + $0x8] sm:$0xff] 0.0
          %477 = vst [vmem:[#allocation4 + $0x10] sm:$0xff] 0.0
          %478 = vst [vmem:[#allocation4 + $0x18] sm:$0xff] 0.0
          %479 = vst [vmem:[#allocation4 + $0x20] sm:$0xff] 0.0
          %480 = vst [vmem:[#allocation4 + $0x28] sm:$0xff] 0.0
        $region159: #{run.12} parent=142 // pred_fallthru
          _
        %v481 = vld [vmem:[%s409] sm:$0xf]
        %v482 = vld [vmem:[%s409 + $0x4] sm:$0xf]
        %v483 = vld [vmem:[%s409 + $0x8] sm:$0xf]
        %v484 = vld [vmem:[%s409 + $0xc] sm:$0xf]
        %v485 = vld [vmem:[%s409 + $0x10] sm:$0xf]
        %v486 = vld [vmem:[%s409 + $0x14] sm:$0xf]
        %v487 = vld [vmem:[%s416] sm:$0xf]
        %v488 = vld [vmem:[%s416 + $0x4] sm:$0xf]
        %v489 = vld [vmem:[%s416 + $0x8] sm:$0xf]
        %v490 = vld [vmem:[%s416 + $0xc] sm:$0xf]
        %v491 = vld [vmem:[%s416 + $0x10] sm:$0xf]
        %v492 = vld [vmem:[%s416 + $0x14] sm:$0xf]
        %v493 = vld [vmem:[%s423] sm:$0xf]
        %v494 = vld [vmem:[%s423 + $0x4] sm:$0xf]
        %v495 = vld [vmem:[%s423 + $0x8] sm:$0xf]
        %v496 = vld [vmem:[%s423 + $0xc] sm:$0xf]
        %v497 = vld [vmem:[%s423 + $0x10] sm:$0xf]
        %v498 = vld [vmem:[%s423 + $0x14] sm:$0xf]
        %v505 = vunpack.c.l.b16 %v481
        %v506 = vunpack.c.l.b16 %v482
        %v507 = vunpack.c.l.b16 %v483
        %v508 = vunpack.c.l.b16 %v484
        %v509 = vunpack.c.l.b16 %v485
        %v510 = vunpack.c.l.b16 %v486
        %v511 = vpack.c.b16 %v506, %v505
        %v512 = vpack.c.b16 %v508, %v507
        %v513 = vpack.c.b16 %v510, %v509
        %v523 = vunpack.c.l.b16 %v487
        %v524 = vunpack.c.l.b16 %v488
        %v525 = vunpack.c.l.b16 %v489
        %v526 = vunpack.c.l.b16 %v490
        %v527 = vunpack.c.l.b16 %v491
        %v528 = vunpack.c.l.b16 %v492
        %v529 = vpack.c.b16 %v524, %v523
        %v530 = vpack.c.b16 %v526, %v525
        %v531 = vpack.c.b16 %v528, %v527
        %535 = vmatprep.subr.bf16.mxu0 0
        %536 = vmatpush1.bf16.xpose.msra.mxu0 %v529
        %537 = vmatprep.subr.bf16.mxu0 0
        %538 = vmatpush1.bf16.xpose.msra.mxu0 %v530
        %539 = vmatprep.subr.bf16.mxu0 0
        %540 = vmatpush1.bf16.xpose.msra.mxu0 %v531
        %541 = vmatprep.subr.bf16.mxu0 0
        %542 = vmatpush1.bf16.xpose.msra.mxu0 0
        %543 = vmatprep.subr.bf16.mxu0 0
        %544 = vmatpush1.bf16.xpose.msra.mxu0 0
        %545 = vmatprep.subr.bf16.mxu0 0
        %546 = vmatpush1.bf16.xpose.msra.mxu0 0
        %547 = vmatprep.subr.bf16.mxu0 0
        %548 = vmatpush1.bf16.xpose.msra.mxu0 0
        %549 = vmatprep.subr.bf16.mxu0 0
        %550 = vmatpush1.bf16.xpose.msra.mxu0 0
        %551 = vmatprep.subr.bf16.mxu0 0
        %552 = vmatpush1.bf16.xpose.msra.mxu0 0
        %553 = vmatprep.subr.bf16.mxu0 0
        %554 = vmatpush1.bf16.xpose.msra.mxu0 0
        %555 = vmatprep.subr.bf16.mxu0 0
        %556 = vmatpush1.bf16.xpose.msra.mxu0 0
        %557 = vmatprep.subr.bf16.mxu0 0
        %558 = vmatpush1.bf16.xpose.msra.mxu0 0
        %559 = vmatprep.subr.bf16.mxu0 0
        %560 = vmatpush1.bf16.xpose.msra.mxu0 0
        %561 = vmatprep.subr.bf16.mxu0 0
        %562 = vmatpush1.bf16.xpose.msra.mxu0 0
        %563 = vmatprep.subr.bf16.mxu0 0
        %564 = vmatpush1.bf16.xpose.msra.mxu0 0
        %565 = vmatprep.subr.bf16.mxu0 0
        %566 = vmatpush1.bf16.xpose.msra.mxu0 0
        %567 = vmatprep.mubr.bf16.mxu0 0
        %568 = vmatmul.mubr.bf16.gmra.mrb[0].mxu0 %v511
        %v569 = vpop.f32.mrb[0].mxu0
        %v570 = vadd.f32 0.0, %v569
        %v571 = vpop.f32.mrb[0].mxu0
        %v572 = vpop.f32.mrb[0].mxu0
        %v573 = vadd.f32 0.0, %v572
        %v574 = vpop.f32.mrb[0].mxu0
        %575 = vmatprep.mubr.bf16.mxu0 0
        %576 = vmatmul.mubr.bf16.gmra.mrb[0].mxu0 %v512
        %v577 = vpop.f32.mrb[0].mxu0
        %v578 = vadd.f32 0.0, %v577
        %v579 = vpop.f32.mrb[0].mxu0
        %v580 = vpop.f32.mrb[0].mxu0
        %v581 = vadd.f32 0.0, %v580
        %v582 = vpop.f32.mrb[0].mxu0
        %583 = vmatprep.mubr.bf16.mxu0 0
        %584 = vmatmul.mubr.bf16.gmra.mrb[0].mxu0 %v513
        %v585 = vpop.f32.mrb[0].mxu0
        %v586 = vadd.f32 0.0, %v585
        %v587 = vpop.f32.mrb[0].mxu0
        %v588 = vpop.f32.mrb[0].mxu0
        %v589 = vadd.f32 0.0, %v588
        %v590 = vpop.f32.mrb[0].mxu0
        %591 = vdwg.mxu0
        %v592 = vlaneseq
        %v593 = vand.u32 %v592, 127
        %s594 = smul.u32 %s23, 48
        %v595 = vstv %s594
        %v596 = vadd.s32 %v593, %v595
        %vm597 = vcmp.lt.s32.totalorder %v596, 34
        %v598 = vsel %vm597, %v570, -1e+30
        %v599 = vsel %vm597, %v573, -1e+30
        %v600 = vsel %vm597, %v578, -1e+30
        %v601 = vsel %vm597, %v581, -1e+30
        %v602 = vsel %vm597, %v586, -1e+30
        %v603 = vsel %vm597, %v589, -1e+30
        %v604 = vld [vmem:[#allocation2] sm:$0xff]
        %v605 = vld [vmem:[#allocation2 + $0x8] sm:$0xff]
        %v606 = vld [vmem:[#allocation2 + $0x10] sm:$0xff]
        %v607 = vld [vmem:[#allocation2 + $0x18] sm:$0xff]
        %v608 = vld [vmem:[#allocation2 + $0x20] sm:$0xff]
        %v609 = vld [vmem:[#allocation2 + $0x28] sm:$0xff]
        %vm610 = vcmask 392192
        %v611 = vsel %vm610, %v598, -inf
        %612 = vmax.xlane.f32.xlu0 %v611
        %v613 = vpop.xlane.xlu0 %612
        %v614 = vsel %vm610, %v599, -inf
        %615 = vmax.xlane.f32.xlu0 %v614
        %v616 = vpop.xlane.xlu0 %615
        %v617 = vsel %vm610, %v600, -inf
        %618 = vmax.xlane.f32.xlu0 %v617
        %v619 = vpop.xlane.xlu0 %618
        %v620 = vsel %vm610, %v601, -inf
        %621 = vmax.xlane.f32.xlu0 %v620
        %v622 = vpop.xlane.xlu0 %621
        %v623 = vsel %vm610, %v602, -inf
        %624 = vmax.xlane.f32.xlu0 %v623
        %v625 = vpop.xlane.xlu0 %624
        %v626 = vsel %vm610, %v603, -inf
        %627 = vmax.xlane.f32.xlu0 %v626
        %v628 = vpop.xlane.xlu0 %627
        %v629 = vmax.f32 %v604, %v613
        %v630 = vmax.f32 %v605, %v616
        %v631 = vmax.f32 %v606, %v619
        %v632 = vmax.f32 %v607, %v622
        %v633 = vmax.f32 %v608, %v625
        %v634 = vmax.f32 %v609, %v628
        %v635 = vsub.f32 %v604, %v629
        %v636 = vsub.f32 %v605, %v630
        %v637 = vsub.f32 %v606, %v631
        %v638 = vsub.f32 %v607, %v632
        %v639 = vsub.f32 %v608, %v633
        %v640 = vsub.f32 %v609, %v634
        %v641 = vmul.f32 %v635, 1.442695
        %v642 = vpow.pop %v641
        %v643 = vmul.f32 %v636, 1.442695
        %v644 = vpow.pop %v643
        %v645 = vmul.f32 %v637, 1.442695
        %v646 = vpow.pop %v645
        %v647 = vmul.f32 %v638, 1.442695
        %v648 = vpow.pop %v647
        %v649 = vmul.f32 %v639, 1.442695
        %v650 = vpow.pop %v649
        %v651 = vmul.f32 %v640, 1.442695
        %v652 = vpow.pop %v651
        %654 = vset.pattern.permute.xlu0 0
        %655 = vperm.xlu0 %654, %v629
        %v656 = vpop.permute.xlu0 %655
        %659 = vset.pattern.permute.xlu0 0
        %660 = vperm.xlu0 %659, %v630
        %v661 = vpop.permute.xlu0 %660
        %664 = vset.pattern.permute.xlu0 0
        %665 = vperm.xlu0 %664, %v631
        %v666 = vpop.permute.xlu0 %665
        %669 = vset.pattern.permute.xlu0 0
        %670 = vperm.xlu0 %669, %v632
        %v671 = vpop.permute.xlu0 %670
        %674 = vset.pattern.permute.xlu0 0
        %675 = vperm.xlu0 %674, %v633
        %v676 = vpop.permute.xlu0 %675
        %679 = vset.pattern.permute.xlu0 0
        %680 = vperm.xlu0 %679, %v634
        %v681 = vpop.permute.xlu0 %680
        %v683 = vsub.f32 %v598, %v656
        %v684 = vsub.f32 %v599, %v661
        %v685 = vsub.f32 %v600, %v666
        %v686 = vsub.f32 %v601, %v671
        %v687 = vsub.f32 %v602, %v676
        %v688 = vsub.f32 %v603, %v681
        %v689 = vmul.f32 %v683, 1.442695
        %v690 = vpow.pop %v689
        %v691 = vmul.f32 %v684, 1.442695
        %v692 = vpow.pop %v691
        %v693 = vmul.f32 %v685, 1.442695
        %v694 = vpow.pop %v693
        %v695 = vmul.f32 %v686, 1.442695
        %v696 = vpow.pop %v695
        %v697 = vmul.f32 %v687, 1.442695
        %v698 = vpow.pop %v697
        %v699 = vmul.f32 %v688, 1.442695
        %v700 = vpow.pop %v699
        %v701 = vld [vmem:[#allocation3] sm:$0xff]
        %v702 = vld [vmem:[#allocation3 + $0x8] sm:$0xff]
        %v703 = vld [vmem:[#allocation3 + $0x10] sm:$0xff]
        %v704 = vld [vmem:[#allocation3 + $0x18] sm:$0xff]
        %v705 = vld [vmem:[#allocation3 + $0x20] sm:$0xff]
        %v706 = vld [vmem:[#allocation3 + $0x28] sm:$0xff]
        %v707 = vmul.f32 %v642, %v701
        %v708 = vmul.f32 %v644, %v702
        %v709 = vmul.f32 %v646, %v703
        %v710 = vmul.f32 %v648, %v704
        %v711 = vmul.f32 %v650, %v705
        %v712 = vmul.f32 %v652, %v706
        %v713 = vsel %vm610, %v690, 0.0
        %714 = vadd.xlane.f32.xlu0 %v713
        %v715 = vpop.xlane.xlu0 %714
        %v716 = vsel %vm610, %v692, 0.0
        %717 = vadd.xlane.f32.xlu0 %v716
        %v718 = vpop.xlane.xlu0 %717
        %v719 = vsel %vm610, %v694, 0.0
        %720 = vadd.xlane.f32.xlu0 %v719
        %v721 = vpop.xlane.xlu0 %720
        %v722 = vsel %vm610, %v696, 0.0
        %723 = vadd.xlane.f32.xlu0 %v722
        %v724 = vpop.xlane.xlu0 %723
        %v725 = vsel %vm610, %v698, 0.0
        %726 = vadd.xlane.f32.xlu0 %v725
        %v727 = vpop.xlane.xlu0 %726
        %v728 = vsel %vm610, %v700, 0.0
        %729 = vadd.xlane.f32.xlu0 %v728
        %v730 = vpop.xlane.xlu0 %729
        %v731 = vadd.f32 %v707, %v715
        %v732 = vadd.f32 %v708, %v718
        %v733 = vadd.f32 %v709, %v721
        %v734 = vadd.f32 %v710, %v724
        %v735 = vadd.f32 %v711, %v727
        %v736 = vadd.f32 %v712, %v730
        %vm737 = vcmask 7168
        %738 = vst.msk [vmem:[#allocation3] sm:$0xff] %vm737, %v731
        %739 = vst.msk [vmem:[#allocation3 + $0x8] sm:$0xff] %vm737, %v732
        %740 = vst.msk [vmem:[#allocation3 + $0x10] sm:$0xff] %vm737, %v733
        %741 = vst.msk [vmem:[#allocation3 + $0x18] sm:$0xff] %vm737, %v734
        %742 = vst.msk [vmem:[#allocation3 + $0x20] sm:$0xff] %vm737, %v735
        %743 = vst.msk [vmem:[#allocation3 + $0x28] sm:$0xff] %vm737, %v736
        %v744 = vld [vmem:[#allocation4] sm:$0xff]
        %v745 = vld [vmem:[#allocation4 + $0x8] sm:$0xff]
        %v746 = vld [vmem:[#allocation4 + $0x10] sm:$0xff]
        %v747 = vld [vmem:[#allocation4 + $0x18] sm:$0xff]
        %v748 = vld [vmem:[#allocation4 + $0x20] sm:$0xff]
        %v749 = vld [vmem:[#allocation4 + $0x28] sm:$0xff]
        %751 = vset.pattern.permute.xlu0 0
        %752 = vperm.xlu0 %751, %v642
        %v753 = vpop.permute.xlu0 %752
        %756 = vset.pattern.permute.xlu0 0
        %757 = vperm.xlu0 %756, %v644
        %v758 = vpop.permute.xlu0 %757
        %761 = vset.pattern.permute.xlu0 0
        %762 = vperm.xlu0 %761, %v646
        %v763 = vpop.permute.xlu0 %762
        %766 = vset.pattern.permute.xlu0 0
        %767 = vperm.xlu0 %766, %v648
        %v768 = vpop.permute.xlu0 %767
        %771 = vset.pattern.permute.xlu0 0
        %772 = vperm.xlu0 %771, %v650
        %v773 = vpop.permute.xlu0 %772
        %776 = vset.pattern.permute.xlu0 0
        %777 = vperm.xlu0 %776, %v652
        %v778 = vpop.permute.xlu0 %777
        %v780 = vmul.f32 %v753, %v744
        %v781 = vmul.f32 %v758, %v745
        %v782 = vmul.f32 %v763, %v746
        %v783 = vmul.f32 %v768, %v747
        %v784 = vmul.f32 %v773, %v748
        %v785 = vmul.f32 %v778, %v749
        %v786 = vpack.c.bf16 %v692, %v690
        %v787 = vpack.c.bf16 %v696, %v694
        %v788 = vpack.c.bf16 %v700, %v698
        %v795 = vunpack.c.l.b16 %v493
        %v796 = vunpack.c.l.b16 %v494
        %v797 = vunpack.c.l.b16 %v495
        %v798 = vunpack.c.l.b16 %v496
        %v799 = vunpack.c.l.b16 %v497
        %v800 = vunpack.c.l.b16 %v498
        %v801 = vpack.c.b16 %v796, %v795
        %v802 = vpack.c.b16 %v798, %v797
        %v803 = vpack.c.b16 %v800, %v799
        %v808 = vsel %vm610, %v786, 0
        %v811 = vsel %vm610, %v787, 0
        %v814 = vsel %vm610, %v788, 0
        %816 = vmatprep.subr.bf16.mxu0 0
        %817 = vmatpush1.bf16.msra.mxu0 %v801
        %818 = vmatprep.subr.bf16.mxu0 0
        %819 = vmatpush1.bf16.msra.mxu0 %v802
        %820 = vmatprep.subr.bf16.mxu0 0
        %821 = vmatpush1.bf16.msra.mxu0 %v803
        %822 = vmatprep.subr.bf16.mxu0 0
        %823 = vmatpush1.bf16.msra.mxu0 0
        %824 = vmatprep.subr.bf16.mxu0 0
        %825 = vmatpush1.bf16.msra.mxu0 0
        %826 = vmatprep.subr.bf16.mxu0 0
        %827 = vmatpush1.bf16.msra.mxu0 0
        %828 = vmatprep.subr.bf16.mxu0 0
        %829 = vmatpush1.bf16.msra.mxu0 0
        %830 = vmatprep.subr.bf16.mxu0 0
        %831 = vmatpush1.bf16.msra.mxu0 0
        %832 = vmatprep.subr.bf16.mxu0 0
        %833 = vmatpush1.bf16.msra.mxu0 0
        %834 = vmatprep.subr.bf16.mxu0 0
        %835 = vmatpush1.bf16.msra.mxu0 0
        %836 = vmatprep.subr.bf16.mxu0 0
        %837 = vmatpush1.bf16.msra.mxu0 0
        %838 = vmatprep.subr.bf16.mxu0 0
        %839 = vmatpush1.bf16.msra.mxu0 0
        %840 = vmatprep.subr.bf16.mxu0 0
        %841 = vmatpush1.bf16.msra.mxu0 0
        %842 = vmatprep.subr.bf16.mxu0 0
        %843 = vmatpush1.bf16.msra.mxu0 0
        %844 = vmatprep.subr.bf16.mxu0 0
        %845 = vmatpush1.bf16.msra.mxu0 0
        %846 = vmatprep.subr.bf16.mxu0 0
        %847 = vmatpush1.bf16.msra.mxu0 0
        %848 = vmatprep.mubr.bf16.mxu0 0
        %849 = vmatmul.mubr.bf16.gmra.mrb[0].mxu0 %v808
        %v850 = vpop.f32.mrb[0].mxu0
        %v851 = vadd.f32 0.0, %v850
        %v852 = vpop.f32.mrb[0].mxu0
        %v853 = vpop.f32.mrb[0].mxu0
        %v854 = vadd.f32 0.0, %v853
        %v855 = vpop.f32.mrb[0].mxu0
        %856 = vmatprep.mubr.bf16.mxu0 0
        %857 = vmatmul.mubr.bf16.gmra.mrb[0].mxu0 %v811
        %v858 = vpop.f32.mrb[0].mxu0
        %v859 = vadd.f32 0.0, %v858
        %v860 = vpop.f32.mrb[0].mxu0
        %v861 = vpop.f32.mrb[0].mxu0
        %v862 = vadd.f32 0.0, %v861
        %v863 = vpop.f32.mrb[0].mxu0
        %864 = vmatprep.mubr.bf16.mxu0 0
        %865 = vmatmul.mubr.bf16.gmra.mrb[0].mxu0 %v814
        %v866 = vpop.f32.mrb[0].mxu0
        %v867 = vadd.f32 0.0, %v866
        %v868 = vpop.f32.mrb[0].mxu0
        %v869 = vpop.f32.mrb[0].mxu0
        %v870 = vadd.f32 0.0, %v869
        %v871 = vpop.f32.mrb[0].mxu0
        %872 = vdwg.mxu0
        %v873 = vadd.f32 %v780, %v851
        %v874 = vadd.f32 %v781, %v854
        %v875 = vadd.f32 %v782, %v859
        %v876 = vadd.f32 %v783, %v862
        %v877 = vadd.f32 %v784, %v867
        %v878 = vadd.f32 %v785, %v870
        %879 = vst [vmem:[#allocation4] sm:$0xff] %v873
        %880 = vst [vmem:[#allocation4 + $0x8] sm:$0xff] %v874
        %881 = vst [vmem:[#allocation4 + $0x10] sm:$0xff] %v875
        %882 = vst [vmem:[#allocation4 + $0x18] sm:$0xff] %v876
        %883 = vst [vmem:[#allocation4 + $0x20] sm:$0xff] %v877
        %884 = vst [vmem:[#allocation4 + $0x28] sm:$0xff] %v878
        %885 = vst.msk [vmem:[#allocation2] sm:$0xff] %vm737, %v629
        %886 = vst.msk [vmem:[#allocation2 + $0x8] sm:$0xff] %vm737, %v630
        %887 = vst.msk [vmem:[#allocation2 + $0x10] sm:$0xff] %vm737, %v631
        %888 = vst.msk [vmem:[#allocation2 + $0x18] sm:$0xff] %vm737, %v632
        %889 = vst.msk [vmem:[#allocation2 + $0x20] sm:$0xff] %vm737, %v633
        %890 = vst.msk [vmem:[#allocation2 + $0x28] sm:$0xff] %vm737, %v634
        // Predicated region
        $region160: #{run.12} parent=142 // pred_check
          %p891 = pneg %p458
        $region161: #{run.12} parent=142 // pred_check_branch
          %893 = sbr.rel (%p891) target = $region163
        $region162: #{run.12} parent=142 // pred_region
          %v894 = vld [vmem:[#allocation4] sm:$0xff]
          %v895 = vld [vmem:[#allocation4 + $0x8] sm:$0xff]
          %v896 = vld [vmem:[#allocation4 + $0x10] sm:$0xff]
          %v897 = vld [vmem:[#allocation4 + $0x18] sm:$0xff]
          %v898 = vld [vmem:[#allocation4 + $0x20] sm:$0xff]
          %v899 = vld [vmem:[#allocation4 + $0x28] sm:$0xff]
          %v900 = vld [vmem:[#allocation3] sm:$0xff]
          %v901 = vld [vmem:[#allocation3 + $0x8] sm:$0xff]
          %v902 = vld [vmem:[#allocation3 + $0x10] sm:$0xff]
          %v903 = vld [vmem:[#allocation3 + $0x18] sm:$0xff]
          %v904 = vld [vmem:[#allocation3 + $0x20] sm:$0xff]
          %v905 = vld [vmem:[#allocation3 + $0x28] sm:$0xff]
          %v906 = vrcp.pop %v900
          %v907 = vrcp.pop %v901
          %v908 = vrcp.pop %v902
          %v909 = vrcp.pop %v903
          %v910 = vrcp.pop %v904
          %v911 = vrcp.pop %v905
          %913 = vset.pattern.permute.xlu0 0
          %914 = vperm.xlu0 %913, %v906
          %v915 = vpop.permute.xlu0 %914
          %918 = vset.pattern.permute.xlu0 0
          %919 = vperm.xlu0 %918, %v907
          %v920 = vpop.permute.xlu0 %919
          %923 = vset.pattern.permute.xlu0 0
          %924 = vperm.xlu0 %923, %v908
          %v925 = vpop.permute.xlu0 %924
          %928 = vset.pattern.permute.xlu0 0
          %929 = vperm.xlu0 %928, %v909
          %v930 = vpop.permute.xlu0 %929
          %933 = vset.pattern.permute.xlu0 0
          %934 = vperm.xlu0 %933, %v910
          %v935 = vpop.permute.xlu0 %934
          %938 = vset.pattern.permute.xlu0 0
          %939 = vperm.xlu0 %938, %v911
          %v940 = vpop.permute.xlu0 %939
          %v942 = vmul.f32 %v894, %v915
          %v943 = vmul.f32 %v895, %v920
          %v944 = vmul.f32 %v896, %v925
          %v945 = vmul.f32 %v897, %v930
          %v946 = vmul.f32 %v898, %v935
          %v947 = vmul.f32 %v899, %v940
          %v948 = vpack.c.bf16 %v943, %v942
          %v949 = vpack.c.bf16 %v945, %v944
          %v950 = vpack.c.bf16 %v947, %v946
          %v954 = vunpack.c.l.b16 %v948
          %v955 = vunpack.c.h.b16 %v948
          %v956 = vunpack.c.l.b16 %v949
          %v957 = vunpack.c.h.b16 %v949
          %v958 = vunpack.c.l.b16 %v950
          %v959 = vunpack.c.h.b16 %v950
          %v960 = vpack.c.b16 %v954, %v954
          %v961 = vpack.c.b16 %v955, %v955
          %v962 = vpack.c.b16 %v956, %v956
          %v963 = vpack.c.b16 %v957, %v957
          %v964 = vpack.c.b16 %v958, %v958
          %v965 = vpack.c.b16 %v959, %v959
          %972 = vst [vmem:[%s450] sm:$0xf] %v960
          %973 = vst [vmem:[%s450 + $0x4] sm:$0xf] %v961
          %974 = vst [vmem:[%s450 + $0x8] sm:$0xf] %v962
          %975 = vst [vmem:[%s450 + $0xc] sm:$0xf] %v963
          %976 = vst [vmem:[%s450 + $0x10] sm:$0xf] %v964
          %977 = vst [vmem:[%s450 + $0x14] sm:$0xf] %v965
        $region163: #{run.12} parent=142 // pred_fallthru
          _
        %s978 = sand.u32 %s146, 1
        %s979 = sand.u32 %s146, 1
        %s980 = smul.addr %s979, 24
        %s981 = scalar_lea.vmem [#allocation8], %s980
        // Predicated region
        $region164: #{run.12} parent=142 // pred_check
          %p982 = pneg %p156
        $region165: #{run.12} parent=142 // pred_check_branch
          %984 = sbr.rel (%p982) target = $region167
        $region166: #{run.12} parent=142 // pred_region
          %s985 = smul.u32 6, %s22
          %s986 = smul.addr %s985, 2
          %s987 = sadd.s32 %s21, %s986
          %s988 = smul.addr %s20, 12
          %s989 = sadd.s32 %s987, %s988
          %s990 = smul.addr %s989, 4
          %s991 = scalar_lea.vmem %s3, %s990
          // Predicated region
          $region168: #{run.12} parent=166 // pred_check
            _
          $region169: #{run.12} parent=166 // pred_check_branch
            %993 = sbr.rel (0) target = $region171
          $region170: #{run.12} parent=166 // pred_region
            // Predicated region
            $region172: #{run.12} parent=170 // pred_check
              _
            $region173: #{run.12} parent=170 // pred_check_branch
              %995 = sbr.rel target = $region175
            $region174: #{run.12} parent=170 // pred_region
              // Predicated region
              $region187: #{run.12} parent=174 // pred_check
                _
              $region188: #{run.12} parent=174 // pred_check_branch
                %1020 = sbr.rel (0) target = $region190
              $region189: #{run.12} parent=174 // pred_region
                loop: start=0, step=1, limit=1
                $region191: #{run.12} parent=189 // loop_pre_header
                  _
                $region192: #{run.12} parent=189 // loop_header
                  %s1022 = sphi 0, %s1026
                  %p1023 = scmp.ge.s32.totalorder %s1022, 1
                  %s1027 = sphi %s981, %s981
                  %s1028 = sphi %s991, %s991
                $region193: #{run.12} parent=189 // loop_header_branch
                  %1025 = sbr.rel (%p1023) target = $region197
                $region194: #{run.12} parent=189 // loop_body
                  _
                $region195: #{run.12} parent=189 // loop_footer
                  %s1026 = sadd.s32 1, %s1022
                $region196: #{run.12} parent=189 // loop_footer_branch
                  %1021 = sbr.rel target = $region192
                $region197: #{run.12} parent=189 // loop_exit
                  _
                loop: start=0, step=1, limit=1
                $region198: #{run.12} parent=189 // loop_pre_header
                  _
                $region199: #{run.12} parent=189 // loop_header
                  %s1031 = sphi 0, %s1035
                  %p1032 = scmp.ge.s32.totalorder %s1031, 1
                  %s1036 = sphi %s981, %s981
                  %s1037 = sphi %s991, %s991
                $region200: #{run.12} parent=189 // loop_header_branch
                  %1034 = sbr.rel (%p1032) target = $region204
                $region201: #{run.12} parent=189 // loop_body
                  %v1038 = vld [vmem:[%s1036] sm:$0xf]
                  %1039 = vst [vmem:[%s1037] sm:$0xf] %v1038
                  %v1040 = vld [vmem:[%s1036 + $0x4] sm:$0xf]
                  %1041 = vst [vmem:[%s1037 + $0x8] sm:$0xf] %v1040
                  %v1042 = vld [vmem:[%s1036 + $0x8] sm:$0xf]
                  %1043 = vst [vmem:[%s1037 + $0x10] sm:$0xf] %v1042
                  %v1044 = vld [vmem:[%s1036 + $0xc] sm:$0xf]
                  %1045 = vst [vmem:[%s1037 + $0x18] sm:$0xf] %v1044
                  %v1046 = vld [vmem:[%s1036 + $0x10] sm:$0xf]
                  %1047 = vst [vmem:[%s1037 + $0x20] sm:$0xf] %v1046
                  %v1048 = vld [vmem:[%s1036 + $0x14] sm:$0xf]
                  %1049 = vst [vmem:[%s1037 + $0x28] sm:$0xf] %v1048
                $region202: #{run.12} parent=189 // loop_footer
                  %s1035 = sadd.s32 1, %s1031
                $region203: #{run.12} parent=189 // loop_footer_branch
                  %1030 = sbr.rel target = $region199
                $region204: #{run.12} parent=189 // loop_exit
                  _
              $region190: #{run.12} parent=174 // pred_fallthru
                _
            $region175: #{run.12} parent=170 // pred_fallthru
              _
            // Predicated region
            $region176: #{run.12} parent=170 // pred_check
              _
            $region177: #{run.12} parent=170 // pred_check_branch
              %997 = sbr.rel (0) target = $region179
            $region178: #{run.12} parent=170 // pred_region
              loop: start=0, step=1, limit=1
              $region180: #{run.12} parent=178 // loop_pre_header
                _
              $region181: #{run.12} parent=178 // loop_header
                %s1000 = sphi 0, %s1004
                %p1001 = scmp.ge.s32.totalorder %s1000, 1
                %s1005 = sphi %s981, %s981
                %s1006 = sphi %s991, %s991
              $region182: #{run.12} parent=178 // loop_header_branch
                %1003 = sbr.rel (%p1001) target = $region186
              $region183: #{run.12} parent=178 // loop_body
                %v1007 = vld [vmem:[%s1005] sm:$0xf]
                %1008 = vst [vmem:[%s1006] sm:$0xf] %v1007
                %v1009 = vld [vmem:[%s1005 + $0x4] sm:$0xf]
                %1010 = vst [vmem:[%s1006 + $0x8] sm:$0xf] %v1009
                %v1011 = vld [vmem:[%s1005 + $0x8] sm:$0xf]
                %1012 = vst [vmem:[%s1006 + $0x10] sm:$0xf] %v1011
                %v1013 = vld [vmem:[%s1005 + $0xc] sm:$0xf]
                %1014 = vst [vmem:[%s1006 + $0x18] sm:$0xf] %v1013
                %v1015 = vld [vmem:[%s1005 + $0x10] sm:$0xf]
                %1016 = vst [vmem:[%s1006 + $0x20] sm:$0xf] %v1015
                %v1017 = vld [vmem:[%s1005 + $0x14] sm:$0xf]
                %1018 = vst [vmem:[%s1006 + $0x28] sm:$0xf] %v1017
              $region184: #{run.12} parent=178 // loop_footer
                %s1004 = sadd.s32 1, %s1000
              $region185: #{run.12} parent=178 // loop_footer_branch
                %999 = sbr.rel target = $region181
              $region186: #{run.12} parent=178 // loop_exit
                _
            $region179: #{run.12} parent=170 // pred_fallthru
              _
          $region171: #{run.12} parent=166 // pred_fallthru
            _
          %1050 = vnop
        $region167: #{run.12} parent=142 // pred_fallthru
          _
      $region143: #{run.12} parent=5 // pred_fallthru
        _
      %p1051 = scmp.le.s32.totalorder 2, %s9
      // Predicated region
      $region205: #{run.12} parent=5 // pred_check
        %p1052 = pneg %p1051
      $region206: #{run.12} parent=5 // pred_check_branch
        %1054 = sbr.rel (%p1052) target = $region208
      $region207: #{run.12} parent=5 // pred_region
        %s1055 = ssub.s32 %s9, 2
        // Predicated region
        $region209: #{run.12} parent=207 // pred_check
          %p1056 = pneg %p162
        $region210: #{run.12} parent=207 // pred_check_branch
          %1058 = sbr.rel (%p1056) target = $region212
        $region211: #{run.12} parent=207 // pred_region
          %s1059 = sand.u32 %s147, 1
          %s1060 = sand.u32 %s147, 1
          %s1061 = smul.addr %s1060, 24
          %s1062 = scalar_lea.vmem [#allocation8], %s1061
        $region212: #{run.12} parent=207 // pred_fallthru
          _
      $region208: #{run.12} parent=5 // pred_fallthru
        _
    $region6: #{run.12} parent=1 // loop_footer
      %s13 = sadd.s32 1, %s9
    $region7: #{run.12} parent=1 // loop_footer_branch
      %8 = sbr.rel target = $region3
    $region8: #{run.12} parent=1 // loop_exit
      _

// kernel: run.11
$region0: #{run.11}
  #allocation0 [shape = 'u32[]', space=smem, size = 0x4, offset = 0x4, fixed_abs, tag = 'smem constant byte address 0x4 - core index']
  #allocation1 [shape = 'u32[144,128]{1,0:T(1,128)}', space=vmem, size = 0x12000, scoped, tag = 'internal scratch']
  %s0 = inlined_call_operand.vmem [shape: bf16[2,48,256], index: 0, kind: input, shape index: {}]
  %s1 = inlined_call_operand.vmem [shape: f32[2,1,256], index: 1, kind: input, shape index: {}]
  %s2 = inlined_call_operand.vmem [shape: f32[2,1,256], index: 2, kind: input, shape index: {}]
  %s3 = inlined_call_operand.vmem [shape: bf16[256,768], index: 3, kind: input, shape index: {}]
  %s4 = inlined_call_operand.vmem [shape: f32[1,768], index: 4, kind: input, shape index: {}]
  %s5 = inlined_call_operand.vmem [shape: bf16[2,48,768], index: 5, kind: output, shape index: {}]
  %s6 = sld [smem:[#allocation0]]
  $region53: #{run.11} parent=0
    _
  %s8 = ssub.s32 1, %s6
  %s9 = scalar_select 0, %s8, %s6
  loop: start=0, step=1, limit=4
  $region2: #{run.11} parent=0 // loop_pre_header
    _
  $region3: #{run.11} parent=0 // loop_header
    %s11 = sphi 0, %s15
    %p12 = scmp.ge.s32.totalorder %s11, 4
    %s18 = sphi 0, %s37
    %s19 = sphi 0, %s33
    %s20 = sphi 0, %s29
    %s21 = sphi 0, %s18
    %s22 = sphi 0, %s19
    %s23 = sphi 0, %s20
    %s24 = sphi 0, %s21
    %s25 = sphi 0, %s22
    %s26 = sphi 0, %s23
    %s42 = sphi 0, %s44
    %s45 = sphi 0, %s42
    %s46 = sphi 0, %s45
    %s62 = sphi 0, %s46
    %s68 = sphi 0, %s70
    %s71 = sphi 0, %s68
    %s72 = sphi 0, %s71
    %s88 = sphi 0, %s72
    %s94 = sphi 0, %s96
    %s97 = sphi 0, %s94
    %s98 = sphi 0, %s97
    %s114 = sphi 0, %s98
    %s120 = sphi 0, %s122
    %s123 = sphi 0, %s120
    %s124 = sphi 0, %s123
    %s140 = sphi 0, %s124
    %s146 = sphi 0, %s148
    %s149 = sphi 0, %s146
    %s150 = sphi 0, %s149
    %s166 = sphi 0, %s150
    %s176 = sphi 0, %s178
    %s179 = sphi 0, %s176
    %s180 = sphi 0, %s179
    %s196 = sphi 0, %s180
  $region4: #{run.11} parent=0 // loop_header_branch
    %14 = sbr.rel (%p12) target = $region8
  $region5: #{run.11} parent=0 // loop_body
    %s16 = ssub.s32 %s11, 1
    %s17 = ssub.s32 %s11, 2
    %s27 = sadd.s32 1, %s20
    %p28 = scmp.ge.s32.totalorder %s27, 1
    %s29 = scalar_select %p28, 0, %s27
    %s30 = sadd.s32 1, %s19
    %s31 = scalar_select %p28, %s30, %s19
    %p32 = scmp.ge.s32.totalorder %s31, 1
    %s33 = scalar_select %p32, 0, %s31
    %s34 = sadd.s32 1, %s18
    %s35 = scalar_select %p32, %s34, %s18
    %p36 = scmp.ge.s32.totalorder %s35, 2
    %s37 = scalar_select %p36, 0, %s35
    %s38 = ssub.s32 %s18, %s37
    %s39 = ssub.s32 %s20, %s29
    %s40 = sor.u32 %s38, %s39
    %p41 = scmp.eq.s32.totalorder %s40, 0
    %s43 = sadd.s32 %s42, 1
    %s44 = scalar_select %p41, %s42, %s43
    %p47 = pneg %p41
    %p48 = scmp.eq.s32.totalorder %s11, 1
    %p49 = por %p47, %p48
    %p50 = scmp.ne.s32.totalorder %s42, %s45
    %p51 = scmp.eq.s32.totalorder %s11, 0
    %p52 = por %p50, %p51
    %p53 = scmp.ne.s32.totalorder %s42, %s45
    %p54 = scmp.eq.s32.totalorder %s16, 1
    %p55 = por %p53, %p54
    %p56 = scmp.ne.s32.totalorder %s45, %s46
    %p57 = scmp.eq.s32.totalorder %s16, 0
    %p58 = por %p56, %p57
    %p59 = scmp.ne.s32.totalorder %s45, %s46
    %p60 = scmp.eq.s32.totalorder %s17, 1
    %p61 = por %p59, %p60
    %p63 = scmp.ne.s32.totalorder %s46, %s62
    %p64 = scmp.eq.s32.totalorder %s17, 0
    %p65 = por %p63, %p64
    %s66 = ssub.s32 %s18, %s37
    %p67 = scmp.eq.s32.totalorder %s66, 0
    %s69 = sadd.s32 %s68, 1
    %s70 = scalar_select %p67, %s68, %s69
    %p73 = pneg %p67
    %p74 = scmp.eq.s32.totalorder %s11, 1
    %p75 = por %p73, %p74
    %p76 = scmp.ne.s32.totalorder %s68, %s71
    %p77 = scmp.eq.s32.totalorder %s11, 0
    %p78 = por %p76, %p77
    %p79 = scmp.ne.s32.totalorder %s68, %s71
    %p80 = scmp.eq.s32.totalorder %s16, 1
    %p81 = por %p79, %p80
    %p82 = scmp.ne.s32.totalorder %s71, %s72
    %p83 = scmp.eq.s32.totalorder %s16, 0
    %p84 = por %p82, %p83
    %p85 = scmp.ne.s32.totalorder %s71, %s72
    %p86 = scmp.eq.s32.totalorder %s17, 1
    %p87 = por %p85, %p86
    %p89 = scmp.ne.s32.totalorder %s72, %s88
    %p90 = scmp.eq.s32.totalorder %s17, 0
    %p91 = por %p89, %p90
    %s92 = ssub.s32 %s18, %s37
    %p93 = scmp.eq.s32.totalorder %s92, 0
    %s95 = sadd.s32 %s94, 1
    %s96 = scalar_select %p93, %s94, %s95
    %p99 = pneg %p93
    %p100 = scmp.eq.s32.totalorder %s11, 1
    %p101 = por %p99, %p100
    %p102 = scmp.ne.s32.totalorder %s94, %s97
    %p103 = scmp.eq.s32.totalorder %s11, 0
    %p104 = por %p102, %p103
    %p105 = scmp.ne.s32.totalorder %s94, %s97
    %p106 = scmp.eq.s32.totalorder %s16, 1
    %p107 = por %p105, %p106
    %p108 = scmp.ne.s32.totalorder %s97, %s98
    %p109 = scmp.eq.s32.totalorder %s16, 0
    %p110 = por %p108, %p109
    %p111 = scmp.ne.s32.totalorder %s97, %s98
    %p112 = scmp.eq.s32.totalorder %s17, 1
    %p113 = por %p111, %p112
    %p115 = scmp.ne.s32.totalorder %s98, %s114
    %p116 = scmp.eq.s32.totalorder %s17, 0
    %p117 = por %p115, %p116
    %s118 = ssub.s32 %s19, %s33
    %p119 = scmp.eq.s32.totalorder %s118, 0
    %s121 = sadd.s32 %s120, 1
    %s122 = scalar_select %p119, %s120, %s121
    %p125 = pneg %p119
    %p126 = scmp.eq.s32.totalorder %s11, 1
    %p127 = por %p125, %p126
    %p128 = scmp.ne.s32.totalorder %s120, %s123
    %p129 = scmp.eq.s32.totalorder %s11, 0
    %p130 = por %p128, %p129
    %p131 = scmp.ne.s32.totalorder %s120, %s123
    %p132 = scmp.eq.s32.totalorder %s16, 1
    %p133 = por %p131, %p132
    %p134 = scmp.ne.s32.totalorder %s123, %s124
    %p135 = scmp.eq.s32.totalorder %s16, 0
    %p136 = por %p134, %p135
    %p137 = scmp.ne.s32.totalorder %s123, %s124
    %p138 = scmp.eq.s32.totalorder %s17, 1
    %p139 = por %p137, %p138
    %p141 = scmp.ne.s32.totalorder %s124, %s140
    %p142 = scmp.eq.s32.totalorder %s17, 0
    %p143 = por %p141, %p142
    %s144 = ssub.s32 %s19, %s33
    %p145 = scmp.eq.s32.totalorder %s144, 0
    %s147 = sadd.s32 %s146, 1
    %s148 = scalar_select %p145, %s146, %s147
    %p151 = pneg %p145
    %p152 = scmp.eq.s32.totalorder %s11, 1
    %p153 = por %p151, %p152
    %p154 = scmp.ne.s32.totalorder %s146, %s149
    %p155 = scmp.eq.s32.totalorder %s11, 0
    %p156 = por %p154, %p155
    %p157 = scmp.ne.s32.totalorder %s146, %s149
    %p158 = scmp.eq.s32.totalorder %s16, 1
    %p159 = por %p157, %p158
    %p160 = scmp.ne.s32.totalorder %s149, %s150
    %p161 = scmp.eq.s32.totalorder %s16, 0
    %p162 = por %p160, %p161
    %p163 = scmp.ne.s32.totalorder %s149, %s150
    %p164 = scmp.eq.s32.totalorder %s17, 1
    %p165 = por %p163, %p164
    %p167 = scmp.ne.s32.totalorder %s150, %s166
    %p168 = scmp.eq.s32.totalorder %s17, 0
    %p169 = por %p167, %p168
    %s170 = ssub.s32 %s18, %s37
    %s171 = ssub.s32 %s20, %s29
    %s172 = sor.u32 %s170, %s171
    %s173 = ssub.s32 %s19, %s33
    %s174 = sor.u32 %s172, %s173
    %p175 = scmp.eq.s32.totalorder %s174, 0
    %s177 = sadd.s32 %s176, 1
    %s178 = scalar_select %p175, %s176, %s177
    %p181 = pneg %p175
    %p182 = scmp.eq.s32.totalorder %s11, 1
    %p183 = por %p181, %p182
    %p184 = scmp.ne.s32.totalorder %s176, %s179
    %p185 = scmp.eq.s32.totalorder %s11, 0
    %p186 = por %p184, %p185
    %p187 = scmp.ne.s32.totalorder %s176, %s179
    %p188 = scmp.eq.s32.totalorder %s16, 1
    %p189 = por %p187, %p188
    %p190 = scmp.ne.s32.totalorder %s179, %s180
    %p191 = scmp.eq.s32.totalorder %s16, 0
    %p192 = por %p190, %p191
    %p193 = scmp.ne.s32.totalorder %s179, %s180
    %p194 = scmp.eq.s32.totalorder %s17, 1
    %p195 = por %p193, %p194
    %p197 = scmp.ne.s32.totalorder %s180, %s196
    %p198 = scmp.eq.s32.totalorder %s17, 0
    %p199 = por %p197, %p198
    %p200 = scmp.le.s32.totalorder 1, %s11
    %p201 = scmp.lt.s32.totalorder %s11, 3
    %p202 = pnand %p200, %p201
    %p203 = pneg %p202
    // Predicated region
    $region9: #{run.11} parent=5 // pred_check
      _
    $region10: #{run.11} parent=5 // pred_check_branch
      %205 = sbr.rel (%p202) target = $region12
    $region11: #{run.11} parent=5 // pred_region
      %s206 = ssub.s32 %s11, 1
      // Predicated region
      $region13: #{run.11} parent=11 // pred_check
        %p207 = pneg %p136
      $region14: #{run.11} parent=11 // pred_check_branch
        %209 = sbr.rel (%p207) target = $region16
      $region15: #{run.11} parent=11 // pred_region
        %s210 = smul.u32 6, %s22
        %p211 = scmp.lt.s32.totalorder %s210, 5
        %s212 = scalar_select %p211, %s210, 5
        %s213 = smul.addr %s212, 4
        %s214 = scalar_lea.vmem %s3, %s213
        %s215 = smul.u32 6, %s22
      $region16: #{run.11} parent=11 // pred_fallthru
        _
      // Predicated region
      $region17: #{run.11} parent=11 // pred_check
        %p216 = pneg %p162
      $region18: #{run.11} parent=11 // pred_check_branch
        %218 = sbr.rel (%p216) target = $region20
      $region19: #{run.11} parent=11 // pred_region
        %s219 = smul.u32 6, %s22
        %p220 = scmp.lt.s32.totalorder %s219, 5
        %s221 = scalar_select %p220, %s219, 5
        %s222 = scalar_lea.vmem %s4, %s221
        %s223 = smul.u32 6, %s22
      $region20: #{run.11} parent=11 // pred_fallthru
        _
    $region12: #{run.11} parent=5 // pred_fallthru
      _
    %p224 = scmp.lt.s32.totalorder %s11, 2
    // Predicated region
    $region21: #{run.11} parent=5 // pred_check
      %p225 = pneg %p224
    $region22: #{run.11} parent=5 // pred_check_branch
      %227 = sbr.rel (%p225) target = $region24
    $region23: #{run.11} parent=5 // pred_region
      // Predicated region
      $region25: #{run.11} parent=23 // pred_check
        %p228 = pneg %p52
      $region26: #{run.11} parent=23 // pred_check_branch
        %230 = sbr.rel (%p228) target = $region28
      $region27: #{run.11} parent=23 // pred_region
        %s231 = smul.u32 6, %s20
        %p232 = scmp.lt.s32.totalorder %s18, 1
        %s233 = scalar_select %p232, %s18, 1
        %p234 = scmp.lt.s32.totalorder %s231, 5
        %s235 = scalar_select %p234, %s231, 5
        %s236 = smul.addr %s235, 2
        %s237 = smul.addr %s233, 12
        %s238 = sadd.s32 %s236, %s237
        %s239 = smul.addr %s238, 4
        %s240 = scalar_lea.vmem %s0, %s239
        %s241 = smul.u32 6, %s20
      $region28: #{run.11} parent=23 // pred_fallthru
        _
      // Predicated region
      $region29: #{run.11} parent=23 // pred_check
        %p242 = pneg %p78
      $region30: #{run.11} parent=23 // pred_check_branch
        %244 = sbr.rel (%p242) target = $region32
      $region31: #{run.11} parent=23 // pred_region
        %p245 = scmp.lt.s32.totalorder %s18, 1
        %s246 = scalar_select %p245, %s18, 1
        %s247 = smul.addr %s246, 2
        %s248 = scalar_lea.vmem %s1, %s247
      $region32: #{run.11} parent=23 // pred_fallthru
        _
      // Predicated region
      $region33: #{run.11} parent=23 // pred_check
        %p249 = pneg %p104
      $region34: #{run.11} parent=23 // pred_check_branch
        %251 = sbr.rel (%p249) target = $region36
      $region35: #{run.11} parent=23 // pred_region
        %p252 = scmp.lt.s32.totalorder %s18, 1
        %s253 = scalar_select %p252, %s18, 1
        %s254 = smul.addr %s253, 2
        %s255 = scalar_lea.vmem %s2, %s254
      $region36: #{run.11} parent=23 // pred_fallthru
        _
    $region24: #{run.11} parent=5 // pred_fallthru
      _
    %p256 = scmp.le.s32.totalorder 1, %s11
    %p257 = scmp.lt.s32.totalorder %s11, 3
    %p258 = pnand %p256, %p257
    %p259 = pneg %p258
    // Predicated region
    $region37: #{run.11} parent=5 // pred_check
      _
    $region38: #{run.11} parent=5 // pred_check_branch
      %261 = sbr.rel (%p258) target = $region40
    $region39: #{run.11} parent=5 // pred_region
      %s262 = ssub.s32 %s11, 1
      %s263 = smul.u32 6, %s23
      %p264 = scmp.lt.s32.totalorder %s21, 1
      %s265 = scalar_select %p264, %s21, 1
      %p266 = scmp.lt.s32.totalorder %s263, 5
      %s267 = scalar_select %p266, %s263, 5
      %s268 = smul.addr %s267, 2
      %s269 = smul.addr %s265, 12
      %s270 = sadd.s32 %s268, %s269
      %s271 = smul.addr %s270, 4
      %s272 = scalar_lea.vmem %s0, %s271
      %p273 = pneg %p58
      %p274 = pneg %p55
      %p275 = scmp.lt.s32.totalorder %s21, 1
      %s276 = scalar_select %p275, %s21, 1
      %s277 = smul.addr %s276, 2
      %s278 = scalar_lea.vmem %s1, %s277
      %p279 = pneg %p84
      %p280 = pneg %p81
      %p281 = scmp.lt.s32.totalorder %s21, 1
      %s282 = scalar_select %p281, %s21, 1
      %s283 = smul.addr %s282, 2
      %s284 = scalar_lea.vmem %s2, %s283
      %p285 = pneg %p110
      %p286 = pneg %p107
      %s287 = smul.u32 6, %s22
      %p288 = scmp.lt.s32.totalorder %s287, 5
      %s289 = scalar_select %p288, %s287, 5
      %s290 = smul.addr %s289, 4
      %s291 = scalar_lea.vmem %s3, %s290
      %p292 = pneg %p136
      %p293 = pneg %p133
      %s294 = smul.u32 6, %s22
      %p295 = scmp.lt.s32.totalorder %s294, 5
      %s296 = scalar_select %p295, %s294, 5
      %s297 = scalar_lea.vmem %s4, %s296
      %p298 = pneg %p162
      %p299 = pneg %p159
      %p300 = pneg %p192
      %p301 = pneg %p189
      %s302 = smul.u32 6, %s23
      %s303 = smul.u32 6, %s22
      %p304 = scmp.lt.s32.totalorder %s21, 1
      %s305 = scalar_select %p304, %s21, 1
      %p306 = scmp.lt.s32.totalorder %s302, 5
      %s307 = scalar_select %p306, %s302, 5
      %p308 = scmp.lt.s32.totalorder %s303, 5
      %s309 = scalar_select %p308, %s303, 5
      %s310 = smul.addr %s307, 6
      %s311 = sadd.s32 %s309, %s310
      %s312 = smul.addr %s305, 36
      %s313 = sadd.s32 %s311, %s312
      %s314 = smul.addr %s313, 4
      %s315 = scalar_lea.vmem %s5, %s314
      %s316 = smul.u32 6, %s23
      %p317 = scmp.lt.s32.totalorder %s21, 1
      %s318 = scalar_select %p317, %s21, 1
      %p319 = scmp.lt.s32.totalorder %s316, 5
      %s320 = scalar_select %p319, %s316, 5
      %s321 = smul.addr %s320, 2
      %s322 = smul.addr %s318, 12
      %s323 = sadd.s32 %s321, %s322
      %s324 = smul.addr %s323, 4
      %s325 = scalar_lea.vmem %s0, %s324
      %s326 = smul.u32 6, %s23
      %p327 = scmp.lt.s32.totalorder %s21, 1
      %s328 = scalar_select %p327, %s21, 1
      %s329 = smul.addr %s328, 2
      %s330 = scalar_lea.vmem %s1, %s329
      %p331 = scmp.lt.s32.totalorder %s21, 1
      %s332 = scalar_select %p331, %s21, 1
      %s333 = smul.addr %s332, 2
      %s334 = scalar_lea.vmem %s2, %s333
      %s335 = smul.u32 6, %s22
      %p336 = scmp.lt.s32.totalorder %s335, 5
      %s337 = scalar_select %p336, %s335, 5
      %s338 = smul.addr %s337, 4
      %s339 = scalar_lea.vmem %s3, %s338
      %s340 = smul.u32 6, %s22
      %s341 = smul.u32 6, %s22
      %p342 = scmp.lt.s32.totalorder %s341, 5
      %s343 = scalar_select %p342, %s341, 5
      %s344 = scalar_lea.vmem %s4, %s343
      %s345 = smul.u32 6, %s22
      %s346 = smul.u32 6, %s23
      %s347 = smul.u32 6, %s22
      %p348 = scmp.lt.s32.totalorder %s21, 1
      %s349 = scalar_select %p348, %s21, 1
      %p350 = scmp.lt.s32.totalorder %s346, 5
      %s351 = scalar_select %p350, %s346, 5
      %p352 = scmp.lt.s32.totalorder %s347, 5
      %s353 = scalar_select %p352, %s347, 5
      %s354 = smul.addr %s351, 6
      %s355 = sadd.s32 %s353, %s354
      %s356 = smul.addr %s349, 36
      %s357 = sadd.s32 %s355, %s356
      %s358 = smul.addr %s357, 4
      %s359 = scalar_lea.vmem %s5, %s358
      %s360 = smul.u32 6, %s23
      %s361 = smul.u32 6, %s22
      %v362 = vld [vmem:[%s325] sm:$0xff]
      %v363 = vld [vmem:[%s325 + $0x8] sm:$0xff]
      %v364 = vld [vmem:[%s325 + $0x10] sm:$0xff]
      %v365 = vld [vmem:[%s325 + $0x18] sm:$0xff]
      %v366 = vld [vmem:[%s325 + $0x20] sm:$0xff]
      %v367 = vld [vmem:[%s325 + $0x28] sm:$0xff]
      %v368 = vunpack.c.l.bf16 %v362
      %v369 = vunpack.c.h.bf16 %v362
      %v370 = vunpack.c.l.bf16 %v363
      %v371 = vunpack.c.h.bf16 %v363
      %v372 = vunpack.c.l.bf16 %v364
      %v373 = vunpack.c.h.bf16 %v364
      %v374 = vunpack.c.l.bf16 %v365
      %v375 = vunpack.c.h.bf16 %v365
      %v376 = vunpack.c.l.bf16 %v366
      %v377 = vunpack.c.h.bf16 %v366
      %v378 = vunpack.c.l.bf16 %v367
      %v379 = vunpack.c.h.bf16 %v367
      %v380 = vadd.f32 %v368, %v369
      %381 = vadd.xlane.f32.xlu0 %v380
      %v382 = vpop.xlane.xlu0 %381
      %v383 = vadd.f32 %v370, %v371
      %384 = vadd.xlane.f32.xlu0 %v383
      %v385 = vpop.xlane.xlu0 %384
      %v386 = vadd.f32 %v372, %v373
      %387 = vadd.xlane.f32.xlu0 %v386
      %v388 = vpop.xlane.xlu0 %387
      %v389 = vadd.f32 %v374, %v375
      %390 = vadd.xlane.f32.xlu0 %v389
      %v391 = vpop.xlane.xlu0 %390
      %v392 = vadd.f32 %v376, %v377
      %393 = vadd.xlane.f32.xlu0 %v392
      %v394 = vpop.xlane.xlu0 %393
      %v395 = vadd.f32 %v378, %v379
      %396 = vadd.xlane.f32.xlu0 %v395
      %v397 = vpop.xlane.xlu0 %396
      %v398 = vrcp.pop 256.0
      %v399 = vmul.f32 %v382, %v398
      %v400 = vmul.f32 %v385, %v398
      %v401 = vmul.f32 %v388, %v398
      %v402 = vmul.f32 %v391, %v398
      %v403 = vmul.f32 %v394, %v398
      %v404 = vmul.f32 %v397, %v398
      %v405 = vsub.f32 %v368, %v399
      %v406 = vsub.f32 %v369, %v399
      %v407 = vsub.f32 %v370, %v400
      %v408 = vsub.f32 %v371, %v400
      %v409 = vsub.f32 %v372, %v401
      %v410 = vsub.f32 %v373, %v401
      %v411 = vsub.f32 %v374, %v402
      %v412 = vsub.f32 %v375, %v402
      %v413 = vsub.f32 %v376, %v403
      %v414 = vsub.f32 %v377, %v403
      %v415 = vsub.f32 %v378, %v404
      %v416 = vsub.f32 %v379, %v404
      %v417 = vmul.f32 %v405, %v405
      %v418 = vmul.f32 %v406, %v406
      %v419 = vmul.f32 %v407, %v407
      %v420 = vmul.f32 %v408, %v408
      %v421 = vmul.f32 %v409, %v409
      %v422 = vmul.f32 %v410, %v410
      %v423 = vmul.f32 %v411, %v411
      %v424 = vmul.f32 %v412, %v412
      %v425 = vmul.f32 %v413, %v413
      %v426 = vmul.f32 %v414, %v414
      %v427 = vmul.f32 %v415, %v415
      %v428 = vmul.f32 %v416, %v416
      %v429 = vadd.f32 %v417, %v418
      %430 = vadd.xlane.f32.xlu0 %v429
      %v431 = vpop.xlane.xlu0 %430
      %v432 = vadd.f32 %v419, %v420
      %433 = vadd.xlane.f32.xlu0 %v432
      %v434 = vpop.xlane.xlu0 %433
      %v435 = vadd.f32 %v421, %v422
      %436 = vadd.xlane.f32.xlu0 %v435
      %v437 = vpop.xlane.xlu0 %436
      %v438 = vadd.f32 %v423, %v424
      %439 = vadd.xlane.f32.xlu0 %v438
      %v440 = vpop.xlane.xlu0 %439
      %v441 = vadd.f32 %v425, %v426
      %442 = vadd.xlane.f32.xlu0 %v441
      %v443 = vpop.xlane.xlu0 %442
      %v444 = vadd.f32 %v427, %v428
      %445 = vadd.xlane.f32.xlu0 %v444
      %v446 = vpop.xlane.xlu0 %445
      %v447 = vmul.f32 %v431, %v398
      %v448 = vmul.f32 %v434, %v398
      %v449 = vmul.f32 %v437, %v398
      %v450 = vmul.f32 %v440, %v398
      %v451 = vmul.f32 %v443, %v398
      %v452 = vmul.f32 %v446, %v398
      %v453 = vadd.f32 %v447, 1e-06
      %v454 = vadd.f32 %v448, 1e-06
      %v455 = vadd.f32 %v449, 1e-06
      %v456 = vadd.f32 %v450, 1e-06
      %v457 = vadd.f32 %v451, 1e-06
      %v458 = vadd.f32 %v452, 1e-06
      %v459 = vrsqrt.pop %v453
      %v460 = vrsqrt.pop %v454
      %v461 = vrsqrt.pop %v455
      %v462 = vrsqrt.pop %v456
      %v463 = vrsqrt.pop %v457
      %v464 = vrsqrt.pop %v458
      %v465 = vmul.f32 %v405, %v459
      %v466 = vmul.f32 %v406, %v459
      %v467 = vmul.f32 %v407, %v460
      %v468 = vmul.f32 %v408, %v460
      %v469 = vmul.f32 %v409, %v461
      %v470 = vmul.f32 %v410, %v461
      %v471 = vmul.f32 %v411, %v462
      %v472 = vmul.f32 %v412, %v462
      %v473 = vmul.f32 %v413, %v463
      %v474 = vmul.f32 %v414, %v463
      %v475 = vmul.f32 %v415, %v464
      %v476 = vmul.f32 %v416, %v464
      %v477 = vld [vmem:[%s334] sm:$0x3]
      %v478 = vadd.f32 %v477, 1.0
      %v480 = vlaneseq
      %v481 = vshrl.u32 %v480, 7
      %v482 = vsub.s32 0, %v481
      %v483 = vrot.slane %v478, %v482
      %v484 = vlaneseq
      %v485 = vshrl.u32 %v484, 7
      %v486 = vsub.s32 1, %v485
      %v487 = vrot.slane %v478, %v486
      %v490 = vmul.f32 %v465, %v483
      %v491 = vmul.f32 %v466, %v487
      %v492 = vmul.f32 %v467, %v483
      %v493 = vmul.f32 %v468, %v487
      %v494 = vmul.f32 %v469, %v483
      %v495 = vmul.f32 %v470, %v487
      %v496 = vmul.f32 %v471, %v483
      %v497 = vmul.f32 %v472, %v487
      %v498 = vmul.f32 %v473, %v483
      %v499 = vmul.f32 %v474, %v487
      %v500 = vmul.f32 %v475, %v483
      %v501 = vmul.f32 %v476, %v487
      %v502 = vld [vmem:[%s330] sm:$0x3]
      %v504 = vlaneseq
      %v505 = vshrl.u32 %v504, 7
      %v506 = vsub.s32 0, %v505
      %v507 = vrot.slane %v502, %v506
      %v508 = vlaneseq
      %v509 = vshrl.u32 %v508, 7
      %v510 = vsub.s32 1, %v509
      %v511 = vrot.slane %v502, %v510
      %v514 = vadd.f32 %v490, %v507
      %v515 = vadd.f32 %v491, %v511
      %v516 = vadd.f32 %v492, %v507
      %v517 = vadd.f32 %v493, %v511
      %v518 = vadd.f32 %v494, %v507
      %v519 = vadd.f32 %v495, %v511
      %v520 = vadd.f32 %v496, %v507
      %v521 = vadd.f32 %v497, %v511
      %v522 = vadd.f32 %v498, %v507
      %v523 = vadd.f32 %v499, %v511
      %v524 = vadd.f32 %v500, %v507
      %v525 = vadd.f32 %v501, %v511
      %v526 = vpack.c.bf16 %v516, %v514
      %v527 = vpack.c.bf16 %v517, %v515
      %v528 = vpack.c.bf16 %v520, %v518
      %v529 = vpack.c.bf16 %v521, %v519
      %v530 = vpack.c.bf16 %v524, %v522
      %v531 = vpack.c.bf16 %v525, %v523
      %v532 = vld [vmem:[%s339] sm:$0xff]
      %v533 = vld [vmem:[%s339 + $0x8] sm:$0xff]
      %v534 = vld [vmem:[%s339 + $0x10] sm:$0xff]
      %v535 = vld [vmem:[%s339 + $0x18] sm:$0xff]
      %v536 = vld [vmem:[%s339 + $0x20] sm:$0xff]
      %v537 = vld [vmem:[%s339 + $0x28] sm:$0xff]
      %v538 = vld [vmem:[%s339 + $0x30] sm:$0xff]
      %v539 = vld [vmem:[%s339 + $0x38] sm:$0xff]
      %v540 = vld [vmem:[%s339 + $0x40] sm:$0xff]
      %v541 = vld [vmem:[%s339 + $0x48] sm:$0xff]
      %v542 = vld [vmem:[%s339 + $0x50] sm:$0xff]
      %v543 = vld [vmem:[%s339 + $0x58] sm:$0xff]
      %v544 = vld [vmem:[%s339 + $0x60] sm:$0xff]
      %v545 = vld [vmem:[%s339 + $0x68] sm:$0xff]
      %v546 = vld [vmem:[%s339 + $0x70] sm:$0xff]
      %v547 = vld [vmem:[%s339 + $0x78] sm:$0xff]
      %v548 = vld [vmem:[%s339 + $0x80] sm:$0xff]
      %v549 = vld [vmem:[%s339 + $0x88] sm:$0xff]
      %v550 = vld [vmem:[%s339 + $0x90] sm:$0xff]
      %v551 = vld [vmem:[%s339 + $0x98] sm:$0xff]
      %v552 = vld [vmem:[%s339 + $0xa0] sm:$0xff]
      %v553 = vld [vmem:[%s339 + $0xa8] sm:$0xff]
      %v554 = vld [vmem:[%s339 + $0xb0] sm:$0xff]
      %v555 = vld [vmem:[%s339 + $0xb8] sm:$0xff]
      %v556 = vld [vmem:[%s339 + $0xc0] sm:$0xff]
      %v557 = vld [vmem:[%s339 + $0xc8] sm:$0xff]
      %v558 = vld [vmem:[%s339 + $0xd0] sm:$0xff]
      %v559 = vld [vmem:[%s339 + $0xd8] sm:$0xff]
      %v560 = vld [vmem:[%s339 + $0xe0] sm:$0xff]
      %v561 = vld [vmem:[%s339 + $0xe8] sm:$0xff]
      %v562 = vld [vmem:[%s339 + $0xf0] sm:$0xff]
      %v563 = vld [vmem:[%s339 + $0xf8] sm:$0xff]
      %v564 = vld [vmem:[%s339 + $0x100] sm:$0xff]
      %v565 = vld [vmem:[%s339 + $0x108] sm:$0xff]
      %v566 = vld [vmem:[%s339 + $0x110] sm:$0xff]
      %v567 = vld [vmem:[%s339 + $0x118] sm:$0xff]
      %v568 = vld [vmem:[%s339 + $0x120] sm:$0xff]
      %v569 = vld [vmem:[%s339 + $0x128] sm:$0xff]
      %v570 = vld [vmem:[%s339 + $0x130] sm:$0xff]
      %v571 = vld [vmem:[%s339 + $0x138] sm:$0xff]
      %v572 = vld [vmem:[%s339 + $0x140] sm:$0xff]
      %v573 = vld [vmem:[%s339 + $0x148] sm:$0xff]
      %v574 = vld [vmem:[%s339 + $0x150] sm:$0xff]
      %v575 = vld [vmem:[%s339 + $0x158] sm:$0xff]
      %v576 = vld [vmem:[%s339 + $0x160] sm:$0xff]
      %v577 = vld [vmem:[%s339 + $0x168] sm:$0xff]
      %v578 = vld [vmem:[%s339 + $0x170] sm:$0xff]
      %v579 = vld [vmem:[%s339 + $0x178] sm:$0xff]
      %v580 = vld [vmem:[%s339 + $0x180] sm:$0xff]
      %v581 = vld [vmem:[%s339 + $0x188] sm:$0xff]
      %v582 = vld [vmem:[%s339 + $0x190] sm:$0xff]
      %v583 = vld [vmem:[%s339 + $0x198] sm:$0xff]
      %v584 = vld [vmem:[%s339 + $0x1a0] sm:$0xff]
      %v585 = vld [vmem:[%s339 + $0x1a8] sm:$0xff]
      %v586 = vld [vmem:[%s339 + $0x1b0] sm:$0xff]
      %v587 = vld [vmem:[%s339 + $0x1b8] sm:$0xff]
      %v588 = vld [vmem:[%s339 + $0x1c0] sm:$0xff]
      %v589 = vld [vmem:[%s339 + $0x1c8] sm:$0xff]
      %v590 = vld [vmem:[%s339 + $0x1d0] sm:$0xff]
      %v591 = vld [vmem:[%s339 + $0x1d8] sm:$0xff]
      %v592 = vld [vmem:[%s339 + $0x1e0] sm:$0xff]
      %v593 = vld [vmem:[%s339 + $0x1e8] sm:$0xff]
      %v594 = vld [vmem:[%s339 + $0x1f0] sm:$0xff]
      %v595 = vld [vmem:[%s339 + $0x1f8] sm:$0xff]
      %v596 = vld [vmem:[%s339 + $0x200] sm:$0xff]
      %v597 = vld [vmem:[%s339 + $0x208] sm:$0xff]
      %v598 = vld [vmem:[%s339 + $0x210] sm:$0xff]
      %v599 = vld [vmem:[%s339 + $0x218] sm:$0xff]
      %v600 = vld [vmem:[%s339 + $0x220] sm:$0xff]
      %v601 = vld [vmem:[%s339 + $0x228] sm:$0xff]
      %v602 = vld [vmem:[%s339 + $0x230] sm:$0xff]
      %v603 = vld [vmem:[%s339 + $0x238] sm:$0xff]
      %v604 = vld [vmem:[%s339 + $0x240] sm:$0xff]
      %v605 = vld [vmem:[%s339 + $0x248] sm:$0xff]
      %v606 = vld [vmem:[%s339 + $0x250] sm:$0xff]
      %v607 = vld [vmem:[%s339 + $0x258] sm:$0xff]
      %v608 = vld [vmem:[%s339 + $0x260] sm:$0xff]
      %v609 = vld [vmem:[%s339 + $0x268] sm:$0xff]
      %v610 = vld [vmem:[%s339 + $0x270] sm:$0xff]
      %v611 = vld [vmem:[%s339 + $0x278] sm:$0xff]
      %v612 = vld [vmem:[%s339 + $0x280] sm:$0xff]
      %v613 = vld [vmem:[%s339 + $0x288] sm:$0xff]
      %v614 = vld [vmem:[%s339 + $0x290] sm:$0xff]
      %v615 = vld [vmem:[%s339 + $0x298] sm:$0xff]
      %v616 = vld [vmem:[%s339 + $0x2a0] sm:$0xff]
      %v617 = vld [vmem:[%s339 + $0x2a8] sm:$0xff]
      %v618 = vld [vmem:[%s339 + $0x2b0] sm:$0xff]
      %v619 = vld [vmem:[%s339 + $0x2b8] sm:$0xff]
      %v620 = vld [vmem:[%s339 + $0x2c0] sm:$0xff]
      %v621 = vld [vmem:[%s339 + $0x2c8] sm:$0xff]
      %v622 = vld [vmem:[%s339 + $0x2d0] sm:$0xff]
      %v623 = vld [vmem:[%s339 + $0x2d8] sm:$0xff]
      %v624 = vld [vmem:[%s339 + $0x2e0] sm:$0xff]
      %v625 = vld [vmem:[%s339 + $0x2e8] sm:$0xff]
      %v626 = vld [vmem:[%s339 + $0x2f0] sm:$0xff]
      %v627 = vld [vmem:[%s339 + $0x2f8] sm:$0xff]
      %v628 = vld [vmem:[%s344] sm:$0x3f]
      %v630 = vlaneseq
      %v631 = vshrl.u32 %v630, 7
      %v632 = vsub.s32 0, %v631
      %v633 = vrot.slane %v628, %v632
      %v634 = vlaneseq
      %v635 = vshrl.u32 %v634, 7
      %v636 = vsub.s32 1, %v635
      %v637 = vrot.slane %v628, %v636
      %v638 = vlaneseq
      %v639 = vshrl.u32 %v638, 7
      %v640 = vsub.s32 2, %v639
      %v641 = vrot.slane %v628, %v640
      %v642 = vlaneseq
      %v643 = vshrl.u32 %v642, 7
      %v644 = vsub.s32 3, %v643
      %v645 = vrot.slane %v628, %v644
      %v646 = vlaneseq
      %v647 = vshrl.u32 %v646, 7
      %v648 = vsub.s32 4, %v647
      %v649 = vrot.slane %v628, %v648
      %v650 = vlaneseq
      %v651 = vshrl.u32 %v650, 7
      %v652 = vsub.s32 5, %v651
      %v653 = vrot.slane %v628, %v652
      %v756 = vunpack.c.l.b16 %v532
      %v757 = vunpack.c.h.b16 %v532
      %v758 = vunpack.c.l.b16 %v533
      %v759 = vunpack.c.h.b16 %v533
      %v760 = vunpack.c.l.b16 %v534
      %v761 = vunpack.c.h.b16 %v534
      %v762 = vunpack.c.l.b16 %v535
      %v763 = vunpack.c.h.b16 %v535
      %v764 = vunpack.c.l.b16 %v536
      %v765 = vunpack.c.h.b16 %v536
      %v766 = vunpack.c.l.b16 %v537
      %v767 = vunpack.c.h.b16 %v537
      %v768 = vunpack.c.l.b16 %v538
      %v769 = vunpack.c.h.b16 %v538
      %v770 = vunpack.c.l.b16 %v539
      %v771 = vunpack.c.h.b16 %v539
      %v772 = vunpack.c.l.b16 %v540
      %v773 = vunpack.c.h.b16 %v540
      %v774 = vunpack.c.l.b16 %v541
      %v775 = vunpack.c.h.b16 %v541
      %v776 = vunpack.c.l.b16 %v542
      %v777 = vunpack.c.h.b16 %v542
      %v778 = vunpack.c.l.b16 %v543
      %v779 = vunpack.c.h.b16 %v543
      %v780 = vunpack.c.l.b16 %v544
      %v781 = vunpack.c.h.b16 %v544
      %v782 = vunpack.c.l.b16 %v545
      %v783 = vunpack.c.h.b16 %v545
      %v784 = vunpack.c.l.b16 %v546
      %v785 = vunpack.c.h.b16 %v546
      %v786 = vunpack.c.l.b16 %v547
      %v787 = vunpack.c.h.b16 %v547
      %v788 = vunpack.c.l.b16 %v548
      %v789 = vunpack.c.h.b16 %v548
      %v790 = vunpack.c.l.b16 %v549
      %v791 = vunpack.c.h.b16 %v549
      %v792 = vunpack.c.l.b16 %v550
      %v793 = vunpack.c.h.b16 %v550
      %v794 = vunpack.c.l.b16 %v551
      %v795 = vunpack.c.h.b16 %v551
      %v796 = vunpack.c.l.b16 %v552
      %v797 = vunpack.c.h.b16 %v552
      %v798 = vunpack.c.l.b16 %v553
      %v799 = vunpack.c.h.b16 %v553
      %v800 = vunpack.c.l.b16 %v554
      %v801 = vunpack.c.h.b16 %v554
      %v802 = vunpack.c.l.b16 %v555
      %v803 = vunpack.c.h.b16 %v555
      %v804 = vunpack.c.l.b16 %v556
      %v805 = vunpack.c.h.b16 %v556
      %v806 = vunpack.c.l.b16 %v557
      %v807 = vunpack.c.h.b16 %v557
      %v808 = vunpack.c.l.b16 %v558
      %v809 = vunpack.c.h.b16 %v558
      %v810 = vunpack.c.l.b16 %v559
      %v811 = vunpack.c.h.b16 %v559
      %v812 = vunpack.c.l.b16 %v560
      %v813 = vunpack.c.h.b16 %v560
      %v814 = vunpack.c.l.b16 %v561
      %v815 = vunpack.c.h.b16 %v561
      %v816 = vunpack.c.l.b16 %v562
      %v817 = vunpack.c.h.b16 %v562
      %v818 = vunpack.c.l.b16 %v563
      %v819 = vunpack.c.h.b16 %v563
      %v820 = vunpack.c.l.b16 %v564
      %v821 = vunpack.c.h.b16 %v564
      %v822 = vunpack.c.l.b16 %v565
      %v823 = vunpack.c.h.b16 %v565
      %v824 = vunpack.c.l.b16 %v566
      %v825 = vunpack.c.h.b16 %v566
      %v826 = vunpack.c.l.b16 %v567
      %v827 = vunpack.c.h.b16 %v567
      %v828 = vunpack.c.l.b16 %v568
      %v829 = vunpack.c.h.b16 %v568
      %v830 = vunpack.c.l.b16 %v569
      %v831 = vunpack.c.h.b16 %v569
      %v832 = vunpack.c.l.b16 %v570
      %v833 = vunpack.c.h.b16 %v570
      %v834 = vunpack.c.l.b16 %v571
      %v835 = vunpack.c.h.b16 %v571
      %v836 = vunpack.c.l.b16 %v572
      %v837 = vunpack.c.h.b16 %v572
      %v838 = vunpack.c.l.b16 %v573
      %v839 = vunpack.c.h.b16 %v573
      %v840 = vunpack.c.l.b16 %v574
      %v841 = vunpack.c.h.b16 %v574
      %v842 = vunpack.c.l.b16 %v575
      %v843 = vunpack.c.h.b16 %v575
      %v844 = vunpack.c.l.b16 %v576
      %v845 = vunpack.c.h.b16 %v576
      %v846 = vunpack.c.l.b16 %v577
      %v847 = vunpack.c.h.b16 %v577
      %v848 = vunpack.c.l.b16 %v578
      %v849 = vunpack.c.h.b16 %v578
      %v850 = vunpack.c.l.b16 %v579
      %v851 = vunpack.c.h.b16 %v579
      %v852 = vunpack.c.l.b16 %v580
      %v853 = vunpack.c.h.b16 %v580
      %v854 = vunpack.c.l.b16 %v581
      %v855 = vunpack.c.h.b16 %v581
      %v856 = vunpack.c.l.b16 %v582
      %v857 = vunpack.c.h.b16 %v582
      %v858 = vunpack.c.l.b16 %v583
      %v859 = vunpack.c.h.b16 %v583
      %v860 = vunpack.c.l.b16 %v584
      %v861 = vunpack.c.h.b16 %v584
      %v862 = vunpack.c.l.b16 %v585
      %v863 = vunpack.c.h.b16 %v585
      %v864 = vunpack.c.l.b16 %v586
      %v865 = vunpack.c.h.b16 %v586
      %v866 = vunpack.c.l.b16 %v587
      %v867 = vunpack.c.h.b16 %v587
      %v868 = vunpack.c.l.b16 %v588
      %v869 = vunpack.c.h.b16 %v588
      %v870 = vunpack.c.l.b16 %v589
      %v871 = vunpack.c.h.b16 %v589
      %v872 = vunpack.c.l.b16 %v590
      %v873 = vunpack.c.h.b16 %v590
      %v874 = vunpack.c.l.b16 %v591
      %v875 = vunpack.c.h.b16 %v591
      %v876 = vunpack.c.l.b16 %v592
      %v877 = vunpack.c.h.b16 %v592
      %v878 = vunpack.c.l.b16 %v593
      %v879 = vunpack.c.h.b16 %v593
      %v880 = vunpack.c.l.b16 %v594
      %v881 = vunpack.c.h.b16 %v594
      %v882 = vunpack.c.l.b16 %v595
      %v883 = vunpack.c.h.b16 %v595
      %v884 = vunpack.c.l.b16 %v596
      %v885 = vunpack.c.h.b16 %v596
      %v886 = vunpack.c.l.b16 %v597
      %v887 = vunpack.c.h.b16 %v597
      %v888 = vunpack.c.l.b16 %v598
      %v889 = vunpack.c.h.b16 %v598
      %v890 = vunpack.c.l.b16 %v599
      %v891 = vunpack.c.h.b16 %v599
      %v892 = vunpack.c.l.b16 %v600
      %v893 = vunpack.c.h.b16 %v600
      %v894 = vunpack.c.l.b16 %v601
      %v895 = vunpack.c.h.b16 %v601
      %v896 = vunpack.c.l.b16 %v602
      %v897 = vunpack.c.h.b16 %v602
      %v898 = vunpack.c.l.b16 %v603
      %v899 = vunpack.c.h.b16 %v603
      %v900 = vunpack.c.l.b16 %v604
      %v901 = vunpack.c.h.b16 %v604
      %v902 = vunpack.c.l.b16 %v605
      %v903 = vunpack.c.h.b16 %v605
      %v904 = vunpack.c.l.b16 %v606
      %v905 = vunpack.c.h.b16 %v606
      %v906 = vunpack.c.l.b16 %v607
      %v907 = vunpack.c.h.b16 %v607
      %v908 = vunpack.c.l.b16 %v608
      %v909 = vunpack.c.h.b16 %v608
      %v910 = vunpack.c.l.b16 %v609
      %v911 = vunpack.c.h.b16 %v609
      %v912 = vunpack.c.l.b16 %v610
      %v913 = vunpack.c.h.b16 %v610
      %v914 = vunpack.c.l.b16 %v611
      %v915 = vunpack.c.h.b16 %v611
      %v916 = vunpack.c.l.b16 %v612
      %v917 = vunpack.c.h.b16 %v612
      %v918 = vunpack.c.l.b16 %v613
      %v919 = vunpack.c.h.b16 %v613
      %v920 = vunpack.c.l.b16 %v614
      %v921 = vunpack.c.h.b16 %v614
      %v922 = vunpack.c.l.b16 %v615
      %v923 = vunpack.c.h.b16 %v615
      %v924 = vunpack.c.l.b16 %v616
      %v925 = vunpack.c.h.b16 %v616
      %v926 = vunpack.c.l.b16 %v617
      %v927 = vunpack.c.h.b16 %v617
      %v928 = vunpack.c.l.b16 %v618
      %v929 = vunpack.c.h.b16 %v618
      %v930 = vunpack.c.l.b16 %v619
      %v931 = vunpack.c.h.b16 %v619
      %v932 = vunpack.c.l.b16 %v620
      %v933 = vunpack.c.h.b16 %v620
      %v934 = vunpack.c.l.b16 %v621
      %v935 = vunpack.c.h.b16 %v621
      %v936 = vunpack.c.l.b16 %v622
      %v937 = vunpack.c.h.b16 %v622
      %v938 = vunpack.c.l.b16 %v623
      %v939 = vunpack.c.h.b16 %v623
      %v940 = vunpack.c.l.b16 %v624
      %v941 = vunpack.c.h.b16 %v624
      %v942 = vunpack.c.l.b16 %v625
      %v943 = vunpack.c.h.b16 %v625
      %v944 = vunpack.c.l.b16 %v626
      %v945 = vunpack.c.h.b16 %v626
      %v946 = vunpack.c.l.b16 %v627
      %v947 = vunpack.c.h.b16 %v627
      %v948 = vpack.c.b16 %v762, %v756
      %v949 = vpack.c.b16 %v763, %v757
      %v950 = vpack.c.b16 %v764, %v758
      %v951 = vpack.c.b16 %v765, %v759
      %v952 = vpack.c.b16 %v766, %v760
      %v953 = vpack.c.b16 %v767, %v761
      %v954 = vpack.c.b16 %v774, %v768
      %v955 = vpack.c.b16 %v775, %v769
      %v956 = vpack.c.b16 %v776, %v770
      %v957 = vpack.c.b16 %v777, %v771
      %v958 = vpack.c.b16 %v778, %v772
      %v959 = vpack.c.b16 %v779, %v773
      %v960 = vpack.c.b16 %v786, %v780
      %v961 = vpack.c.b16 %v787, %v781
      %v962 = vpack.c.b16 %v788, %v782
      %v963 = vpack.c.b16 %v789, %v783
      %v964 = vpack.c.b16 %v790, %v784
      %v965 = vpack.c.b16 %v791, %v785
      %v966 = vpack.c.b16 %v798, %v792
      %v967 = vpack.c.b16 %v799, %v793
      %v968 = vpack.c.b16 %v800, %v794
      %v969 = vpack.c.b16 %v801, %v795
      %v970 = vpack.c.b16 %v802, %v796
      %v971 = vpack.c.b16 %v803, %v797
      %v972 = vpack.c.b16 %v810, %v804
      %v973 = vpack.c.b16 %v811, %v805
      %v974 = vpack.c.b16 %v812, %v806
      %v975 = vpack.c.b16 %v813, %v807
      %v976 = vpack.c.b16 %v814, %v808
      %v977 = vpack.c.b16 %v815, %v809
      %v978 = vpack.c.b16 %v822, %v816
      %v979 = vpack.c.b16 %v823, %v817
      %v980 = vpack.c.b16 %v824, %v818
      %v981 = vpack.c.b16 %v825, %v819
      %v982 = vpack.c.b16 %v826, %v820
      %v983 = vpack.c.b16 %v827, %v821
      %v984 = vpack.c.b16 %v834, %v828
      %v985 = vpack.c.b16 %v835, %v829
      %v986 = vpack.c.b16 %v836, %v830
      %v987 = vpack.c.b16 %v837, %v831
      %v988 = vpack.c.b16 %v838, %v832
      %v989 = vpack.c.b16 %v839, %v833
      %v990 = vpack.c.b16 %v846, %v840
      %v991 = vpack.c.b16 %v847, %v841
      %v992 = vpack.c.b16 %v848, %v842
      %v993 = vpack.c.b16 %v849, %v843
      %v994 = vpack.c.b16 %v850, %v844
      %v995 = vpack.c.b16 %v851, %v845
      %v996 = vpack.c.b16 %v858, %v852
      %v997 = vpack.c.b16 %v859, %v853
      %v998 = vpack.c.b16 %v860, %v854
      %v999 = vpack.c.b16 %v861, %v855
      %v1000 = vpack.c.b16 %v862, %v856
      %v1001 = vpack.c.b16 %v863, %v857
      %v1002 = vpack.c.b16 %v870, %v864
      %v1003 = vpack.c.b16 %v871, %v865
      %v1004 = vpack.c.b16 %v872, %v866
      %v1005 = vpack.c.b16 %v873, %v867
      %v1006 = vpack.c.b16 %v874, %v868
      %v1007 = vpack.c.b16 %v875, %v869
      %v1008 = vpack.c.b16 %v882, %v876
      %v1009 = vpack.c.b16 %v883, %v877
      %v1010 = vpack.c.b16 %v884, %v878
      %v1011 = vpack.c.b16 %v885, %v879
      %v1012 = vpack.c.b16 %v886, %v880
      %v1013 = vpack.c.b16 %v887, %v881
      %v1014 = vpack.c.b16 %v894, %v888
      %v1015 = vpack.c.b16 %v895, %v889
      %v1016 = vpack.c.b16 %v896, %v890
      %v1017 = vpack.c.b16 %v897, %v891
      %v1018 = vpack.c.b16 %v898, %v892
      %v1019 = vpack.c.b16 %v899, %v893
      %v1020 = vpack.c.b16 %v906, %v900
      %v1021 = vpack.c.b16 %v907, %v901
      %v1022 = vpack.c.b16 %v908, %v902
      %v1023 = vpack.c.b16 %v909, %v903
      %v1024 = vpack.c.b16 %v910, %v904
      %v1025 = vpack.c.b16 %v911, %v905
      %v1026 = vpack.c.b16 %v918, %v912
      %v1027 = vpack.c.b16 %v919, %v913
      %v1028 = vpack.c.b16 %v920, %v914
      %v1029 = vpack.c.b16 %v921, %v915
      %v1030 = vpack.c.b16 %v922, %v916
      %v1031 = vpack.c.b16 %v923, %v917
      %v1032 = vpack.c.b16 %v930, %v924
      %v1033 = vpack.c.b16 %v931, %v925
      %v1034 = vpack.c.b16 %v932, %v926
      %v1035 = vpack.c.b16 %v933, %v927
      %v1036 = vpack.c.b16 %v934, %v928
      %v1037 = vpack.c.b16 %v935, %v929
      %v1038 = vpack.c.b16 %v942, %v936
      %v1039 = vpack.c.b16 %v943, %v937
      %v1040 = vpack.c.b16 %v944, %v938
      %v1041 = vpack.c.b16 %v945, %v939
      %v1042 = vpack.c.b16 %v946, %v940
      %v1043 = vpack.c.b16 %v947, %v941
      %1140 = vmatprep.subr.bf16.mxu0 %v949
      %1141 = vmatpush1.bf16.msra.mxu0 %v948
      %1142 = vmatprep.subr.bf16.mxu0 %v955
      %1143 = vmatpush1.bf16.msra.mxu0 %v954
      %1144 = vmatprep.subr.bf16.mxu0 %v961
      %1145 = vmatpush1.bf16.msra.mxu0 %v960
      %1146 = vmatprep.subr.bf16.mxu0 %v967
      %1147 = vmatpush1.bf16.msra.mxu0 %v966
      %1148 = vmatprep.subr.bf16.mxu0 %v973
      %1149 = vmatpush1.bf16.msra.mxu0 %v972
      %1150 = vmatprep.subr.bf16.mxu0 %v979
      %1151 = vmatpush1.bf16.msra.mxu0 %v978
      %1152 = vmatprep.subr.bf16.mxu0 %v985
      %1153 = vmatpush1.bf16.msra.mxu0 %v984
      %1154 = vmatprep.subr.bf16.mxu0 %v991
      %1155 = vmatpush1.bf16.msra.mxu0 %v990
      %1156 = vmatprep.subr.bf16.mxu0 %v997
      %1157 = vmatpush1.bf16.msra.mxu0 %v996
      %1158 = vmatprep.subr.bf16.mxu0 %v1003
      %1159 = vmatpush1.bf16.msra.mxu0 %v1002
      %1160 = vmatprep.subr.bf16.mxu0 %v1009
      %1161 = vmatpush1.bf16.msra.mxu0 %v1008
      %1162 = vmatprep.subr.bf16.mxu0 %v1015
      %1163 = vmatpush1.bf16.msra.mxu0 %v1014
      %1164 = vmatprep.subr.bf16.mxu0 %v1021
      %1165 = vmatpush1.bf16.msra.mxu0 %v1020
      %1166 = vmatprep.subr.bf16.mxu0 %v1027
      %1167 = vmatpush1.bf16.msra.mxu0 %v1026
      %1168 = vmatprep.subr.bf16.mxu0 %v1033
      %1169 = vmatpush1.bf16.msra.mxu0 %v1032
      %1170 = vmatprep.subr.bf16.mxu0 %v1039
      %1171 = vmatpush1.bf16.msra.mxu0 %v1038
      %1172 = vmatprep.mubr.bf16.mxu0 %v527
      %1173 = vmatmul.mubr.bf16.gmra.mrb[0].mxu0 %v526
      %v1174 = vpop.f32.mrb[0].mxu0
      %v1175 = vadd.f32 %v633, %v1174
      %v1176 = vpop.f32.mrb[0].mxu0
      %v1177 = vadd.f32 %v637, %v1176
      %v1178 = vpop.f32.mrb[0].mxu0
      %v1179 = vadd.f32 %v633, %v1178
      %v1180 = vpop.f32.mrb[0].mxu0
      %v1181 = vadd.f32 %v637, %v1180
      %1182 = vmatprep.mubr.bf16.mxu0 %v529
      %1183 = vmatmul.mubr.bf16.gmra.mrb[0].mxu0 %v528
      %v1184 = vpop.f32.mrb[0].mxu0
      %v1185 = vadd.f32 %v633, %v1184
      %v1186 = vpop.f32.mrb[0].mxu0
      %v1187 = vadd.f32 %v637, %v1186
      %v1188 = vpop.f32.mrb[0].mxu0
      %v1189 = vadd.f32 %v633, %v1188
      %v1190 = vpop.f32.mrb[0].mxu0
      %v1191 = vadd.f32 %v637, %v1190
      %1192 = vmatprep.mubr.bf16.mxu0 %v531
      %1193 = vmatmul.mubr.bf16.gmra.mrb[0].mxu0 %v530
      %v1194 = vpop.f32.mrb[0].mxu0
      %v1195 = vadd.f32 %v633, %v1194
      %v1196 = vpop.f32.mrb[0].mxu0
      %v1197 = vadd.f32 %v637, %v1196
      %v1198 = vpop.f32.mrb[0].mxu0
      %v1199 = vadd.f32 %v633, %v1198
      %v1200 = vpop.f32.mrb[0].mxu0
      %v1201 = vadd.f32 %v637, %v1200
      %1202 = vdwg.mxu0
      %1203 = vmatprep.subr.bf16.mxu0 %v951
      %1204 = vmatpush1.bf16.msra.mxu0 %v950
      %1205 = vmatprep.subr.bf16.mxu0 %v957
      %1206 = vmatpush1.bf16.msra.mxu0 %v956
      %1207 = vmatprep.subr.bf16.mxu0 %v963
      %1208 = vmatpush1.bf16.msra.mxu0 %v962
      %1209 = vmatprep.subr.bf16.mxu0 %v969
      %1210 = vmatpush1.bf16.msra.mxu0 %v968
      %1211 = vmatprep.subr.bf16.mxu0 %v975
      %1212 = vmatpush1.bf16.msra.mxu0 %v974
      %1213 = vmatprep.subr.bf16.mxu0 %v981
      %1214 = vmatpush1.bf16.msra.mxu0 %v980
      %1215 = vmatprep.subr.bf16.mxu0 %v987
      %1216 = vmatpush1.bf16.msra.mxu0 %v986
      %1217 = vmatprep.subr.bf16.mxu0 %v993
      %1218 = vmatpush1.bf16.msra.mxu0 %v992
      %1219 = vmatprep.subr.bf16.mxu0 %v999
      %1220 = vmatpush1.bf16.msra.mxu0 %v998
      %1221 = vmatprep.subr.bf16.mxu0 %v1005
      %1222 = vmatpush1.bf16.msra.mxu0 %v1004
      %1223 = vmatprep.subr.bf16.mxu0 %v1011
      %1224 = vmatpush1.bf16.msra.mxu0 %v1010
      %1225 = vmatprep.subr.bf16.mxu0 %v1017
      %1226 = vmatpush1.bf16.msra.mxu0 %v1016
      %1227 = vmatprep.subr.bf16.mxu0 %v1023
      %1228 = vmatpush1.bf16.msra.mxu0 %v1022
      %1229 = vmatprep.subr.bf16.mxu0 %v1029
      %1230 = vmatpush1.bf16.msra.mxu0 %v1028
      %1231 = vmatprep.subr.bf16.mxu0 %v1035
      %1232 = vmatpush1.bf16.msra.mxu0 %v1034
      %1233 = vmatprep.subr.bf16.mxu0 %v1041
      %1234 = vmatpush1.bf16.msra.mxu0 %v1040
      %1235 = vmatprep.mubr.bf16.mxu0 %v527
      %1236 = vmatmul.mubr.bf16.gmra.mrb[0].mxu0 %v526
      %v1237 = vpop.f32.mrb[0].mxu0
      %v1238 = vadd.f32 %v641, %v1237
      %v1239 = vpop.f32.mrb[0].mxu0
      %v1240 = vadd.f32 %v645, %v1239
      %v1241 = vpop.f32.mrb[0].mxu0
      %v1242 = vadd.f32 %v641, %v1241
      %v1243 = vpop.f32.mrb[0].mxu0
      %v1244 = vadd.f32 %v645, %v1243
      %1245 = vmatprep.mubr.bf16.mxu0 %v529
      %1246 = vmatmul.mubr.bf16.gmra.mrb[0].mxu0 %v528
      %v1247 = vpop.f32.mrb[0].mxu0
      %v1248 = vadd.f32 %v641, %v1247
      %v1249 = vpop.f32.mrb[0].mxu0
      %v1250 = vadd.f32 %v645, %v1249
      %v1251 = vpop.f32.mrb[0].mxu0
      %v1252 = vadd.f32 %v641, %v1251
      %v1253 = vpop.f32.mrb[0].mxu0
      %v1254 = vadd.f32 %v645, %v1253
      %1255 = vmatprep.mubr.bf16.mxu0 %v531
      %1256 = vmatmul.mubr.bf16.gmra.mrb[0].mxu0 %v530
      %v1257 = vpop.f32.mrb[0].mxu0
      %v1258 = vadd.f32 %v641, %v1257
      %v1259 = vpop.f32.mrb[0].mxu0
      %v1260 = vadd.f32 %v645, %v1259
      %v1261 = vpop.f32.mrb[0].mxu0
      %v1262 = vadd.f32 %v641, %v1261
      %v1263 = vpop.f32.mrb[0].mxu0
      %v1264 = vadd.f32 %v645, %v1263
      %1265 = vdwg.mxu0
      %1266 = vmatprep.subr.bf16.mxu0 %v953
      %1267 = vmatpush1.bf16.msra.mxu0 %v952
      %1268 = vmatprep.subr.bf16.mxu0 %v959
      %1269 = vmatpush1.bf16.msra.mxu0 %v958
      %1270 = vmatprep.subr.bf16.mxu0 %v965
      %1271 = vmatpush1.bf16.msra.mxu0 %v964
      %1272 = vmatprep.subr.bf16.mxu0 %v971
      %1273 = vmatpush1.bf16.msra.mxu0 %v970
      %1274 = vmatprep.subr.bf16.mxu0 %v977
      %1275 = vmatpush1.bf16.msra.mxu0 %v976
      %1276 = vmatprep.subr.bf16.mxu0 %v983
      %1277 = vmatpush1.bf16.msra.mxu0 %v982
      %1278 = vmatprep.subr.bf16.mxu0 %v989
      %1279 = vmatpush1.bf16.msra.mxu0 %v988
      %1280 = vmatprep.subr.bf16.mxu0 %v995
      %1281 = vmatpush1.bf16.msra.mxu0 %v994
      %1282 = vmatprep.subr.bf16.mxu0 %v1001
      %1283 = vmatpush1.bf16.msra.mxu0 %v1000
      %1284 = vmatprep.subr.bf16.mxu0 %v1007
      %1285 = vmatpush1.bf16.msra.mxu0 %v1006
      %1286 = vmatprep.subr.bf16.mxu0 %v1013
      %1287 = vmatpush1.bf16.msra.mxu0 %v1012
      %1288 = vmatprep.subr.bf16.mxu0 %v1019
      %1289 = vmatpush1.bf16.msra.mxu0 %v1018
      %1290 = vmatprep.subr.bf16.mxu0 %v1025
      %1291 = vmatpush1.bf16.msra.mxu0 %v1024
      %1292 = vmatprep.subr.bf16.mxu0 %v1031
      %1293 = vmatpush1.bf16.msra.mxu0 %v1030
      %1294 = vmatprep.subr.bf16.mxu0 %v1037
      %1295 = vmatpush1.bf16.msra.mxu0 %v1036
      %1296 = vmatprep.subr.bf16.mxu0 %v1043
      %1297 = vmatpush1.bf16.msra.mxu0 %v1042
      %1298 = vmatprep.mubr.bf16.mxu0 %v527
      %1299 = vmatmul.mubr.bf16.gmra.mrb[0].mxu0 %v526
      %v1300 = vpop.f32.mrb[0].mxu0
      %v1301 = vadd.f32 %v649, %v1300
      %v1302 = vpop.f32.mrb[0].mxu0
      %v1303 = vadd.f32 %v653, %v1302
      %v1304 = vpop.f32.mrb[0].mxu0
      %v1305 = vadd.f32 %v649, %v1304
      %v1306 = vpop.f32.mrb[0].mxu0
      %v1307 = vadd.f32 %v653, %v1306
      %1308 = vmatprep.mubr.bf16.mxu0 %v529
      %1309 = vmatmul.mubr.bf16.gmra.mrb[0].mxu0 %v528
      %v1310 = vpop.f32.mrb[0].mxu0
      %v1311 = vadd.f32 %v649, %v1310
      %v1312 = vpop.f32.mrb[0].mxu0
      %v1313 = vadd.f32 %v653, %v1312
      %v1314 = vpop.f32.mrb[0].mxu0
      %v1315 = vadd.f32 %v649, %v1314
      %v1316 = vpop.f32.mrb[0].mxu0
      %v1317 = vadd.f32 %v653, %v1316
      %1318 = vmatprep.mubr.bf16.mxu0 %v531
      %1319 = vmatmul.mubr.bf16.gmra.mrb[0].mxu0 %v530
      %v1320 = vpop.f32.mrb[0].mxu0
      %v1321 = vadd.f32 %v649, %v1320
      %v1322 = vpop.f32.mrb[0].mxu0
      %v1323 = vadd.f32 %v653, %v1322
      %v1324 = vpop.f32.mrb[0].mxu0
      %v1325 = vadd.f32 %v649, %v1324
      %v1326 = vpop.f32.mrb[0].mxu0
      %v1327 = vadd.f32 %v653, %v1326
      %1328 = vdwg.mxu0
      %v1329 = vpack.c.bf16 %v1179, %v1175
      %v1330 = vpack.c.bf16 %v1181, %v1177
      %v1331 = vpack.c.bf16 %v1242, %v1238
      %v1332 = vpack.c.bf16 %v1244, %v1240
      %v1333 = vpack.c.bf16 %v1305, %v1301
      %v1334 = vpack.c.bf16 %v1307, %v1303
      %v1335 = vpack.c.bf16 %v1189, %v1185
      %v1336 = vpack.c.bf16 %v1191, %v1187
      %v1337 = vpack.c.bf16 %v1252, %v1248
      %v1338 = vpack.c.bf16 %v1254, %v1250
      %v1339 = vpack.c.bf16 %v1315, %v1311
      %v1340 = vpack.c.bf16 %v1317, %v1313
      %v1341 = vpack.c.bf16 %v1199, %v1195
      %v1342 = vpack.c.bf16 %v1201, %v1197
      %v1343 = vpack.c.bf16 %v1262, %v1258
      %v1344 = vpack.c.bf16 %v1264, %v1260
      %v1345 = vpack.c.bf16 %v1325, %v1321
      %v1346 = vpack.c.bf16 %v1327, %v1323
      %v1365 = vunpack.c.l.b16 %v1329
      %v1366 = vunpack.c.l.b16 %v1330
      %v1367 = vunpack.c.l.b16 %v1331
      %v1368 = vunpack.c.l.b16 %v1332
      %v1369 = vunpack.c.l.b16 %v1333
      %v1370 = vunpack.c.l.b16 %v1334
      %v1371 = vunpack.c.h.b16 %v1329
      %v1372 = vunpack.c.h.b16 %v1330
      %v1373 = vunpack.c.h.b16 %v1331
      %v1374 = vunpack.c.h.b16 %v1332
      %v1375 = vunpack.c.h.b16 %v1333
      %v1376 = vunpack.c.h.b16 %v1334
      %v1377 = vunpack.c.l.b16 %v1335
      %v1378 = vunpack.c.l.b16 %v1336
      %v1379 = vunpack.c.l.b16 %v1337
      %v1380 = vunpack.c.l.b16 %v1338
      %v1381 = vunpack.c.l.b16 %v1339
      %v1382 = vunpack.c.l.b16 %v1340
      %v1383 = vunpack.c.h.b16 %v1335
      %v1384 = vunpack.c.h.b16 %v1336
      %v1385 = vunpack.c.h.b16 %v1337
      %v1386 = vunpack.c.h.b16 %v1338
      %v1387 = vunpack.c.h.b16 %v1339
      %v1388 = vunpack.c.h.b16 %v1340
      %v1389 = vunpack.c.l.b16 %v1341
      %v1390 = vunpack.c.l.b16 %v1342
      %v1391 = vunpack.c.l.b16 %v1343
      %v1392 = vunpack.c.l.b16 %v1344
      %v1393 = vunpack.c.l.b16 %v1345
      %v1394 = vunpack.c.l.b16 %v1346
      %v1395 = vunpack.c.h.b16 %v1341
      %v1396 = vunpack.c.h.b16 %v1342
      %v1397 = vunpack.c.h.b16 %v1343
      %v1398 = vunpack.c.h.b16 %v1344
      %v1399 = vunpack.c.h.b16 %v1345
      %v1400 = vunpack.c.h.b16 %v1346
      %v1401 = vpack.c.b16 %v1366, %v1365
      %v1402 = vpack.c.b16 %v1368, %v1367
      %v1403 = vpack.c.b16 %v1370, %v1369
      %v1404 = vpack.c.b16 %v1372, %v1371
      %v1405 = vpack.c.b16 %v1374, %v1373
      %v1406 = vpack.c.b16 %v1376, %v1375
      %v1407 = vpack.c.b16 %v1378, %v1377
      %v1408 = vpack.c.b16 %v1380, %v1379
      %v1409 = vpack.c.b16 %v1382, %v1381
      %v1410 = vpack.c.b16 %v1384, %v1383
      %v1411 = vpack.c.b16 %v1386, %v1385
      %v1412 = vpack.c.b16 %v1388, %v1387
      %v1413 = vpack.c.b16 %v1390, %v1389
      %v1414 = vpack.c.b16 %v1392, %v1391
      %v1415 = vpack.c.b16 %v1394, %v1393
      %v1416 = vpack.c.b16 %v1396, %v1395
      %v1417 = vpack.c.b16 %v1398, %v1397
      %v1418 = vpack.c.b16 %v1400, %v1399
      %1437 = vst [vmem:[%s359] sm:$0xff] %v1401
      %1438 = vst [vmem:[%s359 + $0x8] sm:$0xff] %v1402
      %1439 = vst [vmem:[%s359 + $0x10] sm:$0xff] %v1403
      %1440 = vst [vmem:[%s359 + $0x18] sm:$0xff] %v1404
      %1441 = vst [vmem:[%s359 + $0x20] sm:$0xff] %v1405
      %1442 = vst [vmem:[%s359 + $0x28] sm:$0xff] %v1406
      %1443 = vst [vmem:[%s359 + $0x30] sm:$0xff] %v1407
      %1444 = vst [vmem:[%s359 + $0x38] sm:$0xff] %v1408
      %1445 = vst [vmem:[%s359 + $0x40] sm:$0xff] %v1409
      %1446 = vst [vmem:[%s359 + $0x48] sm:$0xff] %v1410
      %1447 = vst [vmem:[%s359 + $0x50] sm:$0xff] %v1411
      %1448 = vst [vmem:[%s359 + $0x58] sm:$0xff] %v1412
      %1449 = vst [vmem:[%s359 + $0x60] sm:$0xff] %v1413
      %1450 = vst [vmem:[%s359 + $0x68] sm:$0xff] %v1414
      %1451 = vst [vmem:[%s359 + $0x70] sm:$0xff] %v1415
      %1452 = vst [vmem:[%s359 + $0x78] sm:$0xff] %v1416
      %1453 = vst [vmem:[%s359 + $0x80] sm:$0xff] %v1417
      %1454 = vst [vmem:[%s359 + $0x88] sm:$0xff] %v1418
      %s1455 = smul.u32 6, %s23
      %s1456 = smul.u32 6, %s22
      %p1457 = scmp.lt.s32.totalorder %s21, 1
      %s1458 = scalar_select %p1457, %s21, 1
      %p1459 = scmp.lt.s32.totalorder %s1455, 5
      %s1460 = scalar_select %p1459, %s1455, 5
      %p1461 = scmp.lt.s32.totalorder %s1456, 5
      %s1462 = scalar_select %p1461, %s1456, 5
      %s1463 = smul.addr %s1460, 6
      %s1464 = sadd.s32 %s1462, %s1463
      %s1465 = smul.addr %s1458, 36
      %s1466 = sadd.s32 %s1464, %s1465
      %s1467 = smul.addr %s1466, 4
      %s1468 = scalar_lea.vmem %s5, %s1467
      // Predicated region
      $region41: #{run.11} parent=39 // pred_check
        %p1469 = pneg %p189
      $region42: #{run.11} parent=39 // pred_check_branch
        %1471 = sbr.rel (%p1469) target = $region44
      $region43: #{run.11} parent=39 // pred_region
        %s1472 = smul.u32 6, %s23
        %s1473 = smul.u32 6, %s22
      $region44: #{run.11} parent=39 // pred_fallthru
        _
    $region40: #{run.11} parent=5 // pred_fallthru
      _
    %p1474 = scmp.le.s32.totalorder 2, %s11
    // Predicated region
    $region45: #{run.11} parent=5 // pred_check
      %p1475 = pneg %p1474
    $region46: #{run.11} parent=5 // pred_check_branch
      %1477 = sbr.rel (%p1475) target = $region48
    $region47: #{run.11} parent=5 // pred_region
      %s1478 = ssub.s32 %s11, 2
      // Predicated region
      $region49: #{run.11} parent=47 // pred_check
        %p1479 = pneg %p195
      $region50: #{run.11} parent=47 // pred_check_branch
        %1481 = sbr.rel (%p1479) target = $region52
      $region51: #{run.11} parent=47 // pred_region
        %s1482 = smul.u32 6, %s26
        %s1483 = smul.u32 6, %s25
        %p1484 = scmp.lt.s32.totalorder %s24, 1
        %s1485 = scalar_select %p1484, %s24, 1
        %p1486 = scmp.lt.s32.totalorder %s1482, 5
        %s1487 = scalar_select %p1486, %s1482, 5
        %p1488 = scmp.lt.s32.totalorder %s1483, 5
        %s1489 = scalar_select %p1488, %s1483, 5
        %s1490 = smul.addr %s1487, 6
        %s1491 = sadd.s32 %s1489, %s1490
        %s1492 = smul.addr %s1485, 36
        %s1493 = sadd.s32 %s1491, %s1492
        %s1494 = smul.addr %s1493, 4
        %s1495 = scalar_lea.vmem %s5, %s1494
      $region52: #{run.11} parent=47 // pred_fallthru
        _
    $region48: #{run.11} parent=5 // pred_fallthru
      _
  $region6: #{run.11} parent=0 // loop_footer
    %s15 = sadd.s32 1, %s11
  $region7: #{run.11} parent=0 // loop_footer_branch
    %10 = sbr.rel target = $region3
  $region8: #{run.11} parent=0 // loop_exit
    _

// kernel: run.13
$region0: #{run.13}
  #allocation0 [shape = 'u32[]', space=smem, size = 0x4, offset = 0x4, fixed_abs, tag = 'smem constant byte address 0x4 - core index']
  #allocation1 [shape = 'u32[144,128]{1,0:T(1,128)}', space=vmem, size = 0x12000, scoped, tag = 'internal scratch']
  %s0 = inlined_call_operand.vmem [shape: bf16[2,48,256], index: 0, kind: input, shape index: {}]
  %s1 = inlined_call_operand.vmem [shape: bf16[256,256], index: 1, kind: input, shape index: {}]
  %s2 = inlined_call_operand.vmem [shape: f32[1,256], index: 2, kind: input, shape index: {}]
  %s3 = inlined_call_operand.vmem [shape: f32[2,1,256], index: 3, kind: input, shape index: {}]
  %s4 = inlined_call_operand.vmem [shape: bf16[2,48,256], index: 4, kind: input, shape index: {}]
  %s5 = inlined_call_operand.vmem [shape: bf16[2,48,256], index: 5, kind: output, shape index: {}]
  %s6 = sld [smem:[#allocation0]]
  $region53: #{run.13} parent=0
    _
  %s8 = ssub.s32 1, %s6
  %s9 = scalar_select 0, %s8, %s6
  loop: start=0, step=1, limit=4
  $region2: #{run.13} parent=0 // loop_pre_header
    _
  $region3: #{run.13} parent=0 // loop_header
    %s11 = sphi 0, %s15
    %p12 = scmp.ge.s32.totalorder %s11, 4
    %s18 = sphi 0, %s37
    %s19 = sphi 0, %s33
    %s20 = sphi 0, %s29
    %s21 = sphi 0, %s18
    %s22 = sphi 0, %s19
    %s23 = sphi 0, %s20
    %s24 = sphi 0, %s21
    %s25 = sphi 0, %s22
    %s26 = sphi 0, %s23
    %s42 = sphi 0, %s44
    %s45 = sphi 0, %s42
    %s46 = sphi 0, %s45
    %s62 = sphi 0, %s46
    %s68 = sphi 0, %s70
    %s71 = sphi 0, %s68
    %s72 = sphi 0, %s71
    %s88 = sphi 0, %s72
    %s94 = sphi 0, %s96
    %s97 = sphi 0, %s94
    %s98 = sphi 0, %s97
    %s114 = sphi 0, %s98
    %s122 = sphi 0, %s124
    %s125 = sphi 0, %s122
    %s126 = sphi 0, %s125
    %s142 = sphi 0, %s126
    %s152 = sphi 0, %s154
    %s155 = sphi 0, %s152
    %s156 = sphi 0, %s155
    %s172 = sphi 0, %s156
    %s182 = sphi 0, %s184
    %s185 = sphi 0, %s182
    %s186 = sphi 0, %s185
    %s202 = sphi 0, %s186
  $region4: #{run.13} parent=0 // loop_header_branch
    %14 = sbr.rel (%p12) target = $region8
  $region5: #{run.13} parent=0 // loop_body
    %s16 = ssub.s32 %s11, 1
    %s17 = ssub.s32 %s11, 2
    %s27 = sadd.s32 1, %s20
    %p28 = scmp.ge.s32.totalorder %s27, 1
    %s29 = scalar_select %p28, 0, %s27
    %s30 = sadd.s32 1, %s19
    %s31 = scalar_select %p28, %s30, %s19
    %p32 = scmp.ge.s32.totalorder %s31, 1
    %s33 = scalar_select %p32, 0, %s31
    %s34 = sadd.s32 1, %s18
    %s35 = scalar_select %p32, %s34, %s18
    %p36 = scmp.ge.s32.totalorder %s35, 2
    %s37 = scalar_select %p36, 0, %s35
    %s38 = ssub.s32 %s18, %s37
    %s39 = ssub.s32 %s20, %s29
    %s40 = sor.u32 %s38, %s39
    %p41 = scmp.eq.s32.totalorder %s40, 0
    %s43 = sadd.s32 %s42, 1
    %s44 = scalar_select %p41, %s42, %s43
    %p47 = pneg %p41
    %p48 = scmp.eq.s32.totalorder %s11, 1
    %p49 = por %p47, %p48
    %p50 = scmp.ne.s32.totalorder %s42, %s45
    %p51 = scmp.eq.s32.totalorder %s11, 0
    %p52 = por %p50, %p51
    %p53 = scmp.ne.s32.totalorder %s42, %s45
    %p54 = scmp.eq.s32.totalorder %s16, 1
    %p55 = por %p53, %p54
    %p56 = scmp.ne.s32.totalorder %s45, %s46
    %p57 = scmp.eq.s32.totalorder %s16, 0
    %p58 = por %p56, %p57
    %p59 = scmp.ne.s32.totalorder %s45, %s46
    %p60 = scmp.eq.s32.totalorder %s17, 1
    %p61 = por %p59, %p60
    %p63 = scmp.ne.s32.totalorder %s46, %s62
    %p64 = scmp.eq.s32.totalorder %s17, 0
    %p65 = por %p63, %p64
    %s66 = ssub.s32 %s19, %s33
    %p67 = scmp.eq.s32.totalorder %s66, 0
    %s69 = sadd.s32 %s68, 1
    %s70 = scalar_select %p67, %s68, %s69
    %p73 = pneg %p67
    %p74 = scmp.eq.s32.totalorder %s11, 1
    %p75 = por %p73, %p74
    %p76 = scmp.ne.s32.totalorder %s68, %s71
    %p77 = scmp.eq.s32.totalorder %s11, 0
    %p78 = por %p76, %p77
    %p79 = scmp.ne.s32.totalorder %s68, %s71
    %p80 = scmp.eq.s32.totalorder %s16, 1
    %p81 = por %p79, %p80
    %p82 = scmp.ne.s32.totalorder %s71, %s72
    %p83 = scmp.eq.s32.totalorder %s16, 0
    %p84 = por %p82, %p83
    %p85 = scmp.ne.s32.totalorder %s71, %s72
    %p86 = scmp.eq.s32.totalorder %s17, 1
    %p87 = por %p85, %p86
    %p89 = scmp.ne.s32.totalorder %s72, %s88
    %p90 = scmp.eq.s32.totalorder %s17, 0
    %p91 = por %p89, %p90
    %s92 = ssub.s32 %s19, %s33
    %p93 = scmp.eq.s32.totalorder %s92, 0
    %s95 = sadd.s32 %s94, 1
    %s96 = scalar_select %p93, %s94, %s95
    %p99 = pneg %p93
    %p100 = scmp.eq.s32.totalorder %s11, 1
    %p101 = por %p99, %p100
    %p102 = scmp.ne.s32.totalorder %s94, %s97
    %p103 = scmp.eq.s32.totalorder %s11, 0
    %p104 = por %p102, %p103
    %p105 = scmp.ne.s32.totalorder %s94, %s97
    %p106 = scmp.eq.s32.totalorder %s16, 1
    %p107 = por %p105, %p106
    %p108 = scmp.ne.s32.totalorder %s97, %s98
    %p109 = scmp.eq.s32.totalorder %s16, 0
    %p110 = por %p108, %p109
    %p111 = scmp.ne.s32.totalorder %s97, %s98
    %p112 = scmp.eq.s32.totalorder %s17, 1
    %p113 = por %p111, %p112
    %p115 = scmp.ne.s32.totalorder %s98, %s114
    %p116 = scmp.eq.s32.totalorder %s17, 0
    %p117 = por %p115, %p116
    %s118 = ssub.s32 %s18, %s37
    %s119 = ssub.s32 %s19, %s33
    %s120 = sor.u32 %s118, %s119
    %p121 = scmp.eq.s32.totalorder %s120, 0
    %s123 = sadd.s32 %s122, 1
    %s124 = scalar_select %p121, %s122, %s123
    %p127 = pneg %p121
    %p128 = scmp.eq.s32.totalorder %s11, 1
    %p129 = por %p127, %p128
    %p130 = scmp.ne.s32.totalorder %s122, %s125
    %p131 = scmp.eq.s32.totalorder %s11, 0
    %p132 = por %p130, %p131
    %p133 = scmp.ne.s32.totalorder %s122, %s125
    %p134 = scmp.eq.s32.totalorder %s16, 1
    %p135 = por %p133, %p134
    %p136 = scmp.ne.s32.totalorder %s125, %s126
    %p137 = scmp.eq.s32.totalorder %s16, 0
    %p138 = por %p136, %p137
    %p139 = scmp.ne.s32.totalorder %s125, %s126
    %p140 = scmp.eq.s32.totalorder %s17, 1
    %p141 = por %p139, %p140
    %p143 = scmp.ne.s32.totalorder %s126, %s142
    %p144 = scmp.eq.s32.totalorder %s17, 0
    %p145 = por %p143, %p144
    %s146 = ssub.s32 %s18, %s37
    %s147 = ssub.s32 %s20, %s29
    %s148 = sor.u32 %s146, %s147
    %s149 = ssub.s32 %s19, %s33
    %s150 = sor.u32 %s148, %s149
    %p151 = scmp.eq.s32.totalorder %s150, 0
    %s153 = sadd.s32 %s152, 1
    %s154 = scalar_select %p151, %s152, %s153
    %p157 = pneg %p151
    %p158 = scmp.eq.s32.totalorder %s11, 1
    %p159 = por %p157, %p158
    %p160 = scmp.ne.s32.totalorder %s152, %s155
    %p161 = scmp.eq.s32.totalorder %s11, 0
    %p162 = por %p160, %p161
    %p163 = scmp.ne.s32.totalorder %s152, %s155
    %p164 = scmp.eq.s32.totalorder %s16, 1
    %p165 = por %p163, %p164
    %p166 = scmp.ne.s32.totalorder %s155, %s156
    %p167 = scmp.eq.s32.totalorder %s16, 0
    %p168 = por %p166, %p167
    %p169 = scmp.ne.s32.totalorder %s155, %s156
    %p170 = scmp.eq.s32.totalorder %s17, 1
    %p171 = por %p169, %p170
    %p173 = scmp.ne.s32.totalorder %s156, %s172
    %p174 = scmp.eq.s32.totalorder %s17, 0
    %p175 = por %p173, %p174
    %s176 = ssub.s32 %s18, %s37
    %s177 = ssub.s32 %s20, %s29
    %s178 = sor.u32 %s176, %s177
    %s179 = ssub.s32 %s19, %s33
    %s180 = sor.u32 %s178, %s179
    %p181 = scmp.eq.s32.totalorder %s180, 0
    %s183 = sadd.s32 %s182, 1
    %s184 = scalar_select %p181, %s182, %s183
    %p187 = pneg %p181
    %p188 = scmp.eq.s32.totalorder %s11, 1
    %p189 = por %p187, %p188
    %p190 = scmp.ne.s32.totalorder %s182, %s185
    %p191 = scmp.eq.s32.totalorder %s11, 0
    %p192 = por %p190, %p191
    %p193 = scmp.ne.s32.totalorder %s182, %s185
    %p194 = scmp.eq.s32.totalorder %s16, 1
    %p195 = por %p193, %p194
    %p196 = scmp.ne.s32.totalorder %s185, %s186
    %p197 = scmp.eq.s32.totalorder %s16, 0
    %p198 = por %p196, %p197
    %p199 = scmp.ne.s32.totalorder %s185, %s186
    %p200 = scmp.eq.s32.totalorder %s17, 1
    %p201 = por %p199, %p200
    %p203 = scmp.ne.s32.totalorder %s186, %s202
    %p204 = scmp.eq.s32.totalorder %s17, 0
    %p205 = por %p203, %p204
    %p206 = scmp.le.s32.totalorder 1, %s11
    %p207 = scmp.lt.s32.totalorder %s11, 3
    %p208 = pnand %p206, %p207
    %p209 = pneg %p208
    // Predicated region
    $region9: #{run.13} parent=5 // pred_check
      _
    $region10: #{run.13} parent=5 // pred_check_branch
      %211 = sbr.rel (%p208) target = $region12
    $region11: #{run.13} parent=5 // pred_region
      %s212 = ssub.s32 %s11, 1
      // Predicated region
      $region13: #{run.13} parent=11 // pred_check
        %p213 = pneg %p84
      $region14: #{run.13} parent=11 // pred_check_branch
        %215 = sbr.rel (%p213) target = $region16
      $region15: #{run.13} parent=11 // pred_region
        %s216 = smul.u32 2, %s22
        %p217 = scmp.lt.s32.totalorder %s216, 1
        %s218 = scalar_select %p217, %s216, 1
        %s219 = smul.addr %s218, 4
        %s220 = scalar_lea.vmem %s1, %s219
        %s221 = smul.u32 2, %s22
      $region16: #{run.13} parent=11 // pred_fallthru
        _
      // Predicated region
      $region17: #{run.13} parent=11 // pred_check
        %p222 = pneg %p110
      $region18: #{run.13} parent=11 // pred_check_branch
        %224 = sbr.rel (%p222) target = $region20
      $region19: #{run.13} parent=11 // pred_region
        %s225 = smul.u32 2, %s22
        %p226 = scmp.lt.s32.totalorder %s225, 1
        %s227 = scalar_select %p226, %s225, 1
        %s228 = scalar_lea.vmem %s2, %s227
        %s229 = smul.u32 2, %s22
      $region20: #{run.13} parent=11 // pred_fallthru
        _
    $region12: #{run.13} parent=5 // pred_fallthru
      _
    %p230 = scmp.lt.s32.totalorder %s11, 2
    // Predicated region
    $region21: #{run.13} parent=5 // pred_check
      %p231 = pneg %p230
    $region22: #{run.13} parent=5 // pred_check_branch
      %233 = sbr.rel (%p231) target = $region24
    $region23: #{run.13} parent=5 // pred_region
      // Predicated region
      $region25: #{run.13} parent=23 // pred_check
        %p234 = pneg %p52
      $region26: #{run.13} parent=23 // pred_check_branch
        %236 = sbr.rel (%p234) target = $region28
      $region27: #{run.13} parent=23 // pred_region
        %s237 = smul.u32 6, %s20
        %p238 = scmp.lt.s32.totalorder %s18, 1
        %s239 = scalar_select %p238, %s18, 1
        %p240 = scmp.lt.s32.totalorder %s237, 5
        %s241 = scalar_select %p240, %s237, 5
        %s242 = smul.addr %s241, 2
        %s243 = smul.addr %s239, 12
        %s244 = sadd.s32 %s242, %s243
        %s245 = smul.addr %s244, 4
        %s246 = scalar_lea.vmem %s0, %s245
        %s247 = smul.u32 6, %s20
      $region28: #{run.13} parent=23 // pred_fallthru
        _
      // Predicated region
      $region29: #{run.13} parent=23 // pred_check
        %p248 = pneg %p132
      $region30: #{run.13} parent=23 // pred_check_branch
        %250 = sbr.rel (%p248) target = $region32
      $region31: #{run.13} parent=23 // pred_region
        %s251 = smul.u32 2, %s19
        %p252 = scmp.lt.s32.totalorder %s18, 1
        %s253 = scalar_select %p252, %s18, 1
        %p254 = scmp.lt.s32.totalorder %s251, 1
        %s255 = scalar_select %p254, %s251, 1
        %s256 = smul.addr %s253, 2
        %s257 = sadd.s32 %s255, %s256
        %s258 = scalar_lea.vmem %s3, %s257
        %s259 = smul.u32 2, %s19
      $region32: #{run.13} parent=23 // pred_fallthru
        _
      // Predicated region
      $region33: #{run.13} parent=23 // pred_check
        %p260 = pneg %p162
      $region34: #{run.13} parent=23 // pred_check_branch
        %262 = sbr.rel (%p260) target = $region36
      $region35: #{run.13} parent=23 // pred_region
        %s263 = smul.u32 6, %s20
        %s264 = smul.u32 2, %s19
        %p265 = scmp.lt.s32.totalorder %s18, 1
        %s266 = scalar_select %p265, %s18, 1
        %p267 = scmp.lt.s32.totalorder %s263, 5
        %s268 = scalar_select %p267, %s263, 5
        %p269 = scmp.lt.s32.totalorder %s264, 1
        %s270 = scalar_select %p269, %s264, 1
        %s271 = smul.addr %s268, 2
        %s272 = sadd.s32 %s270, %s271
        %s273 = smul.addr %s266, 12
        %s274 = sadd.s32 %s272, %s273
        %s275 = smul.addr %s274, 4
        %s276 = scalar_lea.vmem %s4, %s275
        %s277 = smul.u32 6, %s20
        %s278 = smul.u32 2, %s19
      $region36: #{run.13} parent=23 // pred_fallthru
        _
    $region24: #{run.13} parent=5 // pred_fallthru
      _
    %p279 = scmp.le.s32.totalorder 1, %s11
    %p280 = scmp.lt.s32.totalorder %s11, 3
    %p281 = pnand %p279, %p280
    %p282 = pneg %p281
    // Predicated region
    $region37: #{run.13} parent=5 // pred_check
      _
    $region38: #{run.13} parent=5 // pred_check_branch
      %284 = sbr.rel (%p281) target = $region40
    $region39: #{run.13} parent=5 // pred_region
      %s285 = ssub.s32 %s11, 1
      %s286 = smul.u32 6, %s23
      %p287 = scmp.lt.s32.totalorder %s21, 1
      %s288 = scalar_select %p287, %s21, 1
      %p289 = scmp.lt.s32.totalorder %s286, 5
      %s290 = scalar_select %p289, %s286, 5
      %s291 = smul.addr %s290, 2
      %s292 = smul.addr %s288, 12
      %s293 = sadd.s32 %s291, %s292
      %s294 = smul.addr %s293, 4
      %s295 = scalar_lea.vmem %s0, %s294
      %p296 = pneg %p58
      %p297 = pneg %p55
      %s298 = smul.u32 2, %s22
      %p299 = scmp.lt.s32.totalorder %s298, 1
      %s300 = scalar_select %p299, %s298, 1
      %s301 = smul.addr %s300, 4
      %s302 = scalar_lea.vmem %s1, %s301
      %p303 = pneg %p84
      %p304 = pneg %p81
      %s305 = smul.u32 2, %s22
      %p306 = scmp.lt.s32.totalorder %s305, 1
      %s307 = scalar_select %p306, %s305, 1
      %s308 = scalar_lea.vmem %s2, %s307
      %p309 = pneg %p110
      %p310 = pneg %p107
      %s311 = smul.u32 2, %s22
      %p312 = scmp.lt.s32.totalorder %s21, 1
      %s313 = scalar_select %p312, %s21, 1
      %p314 = scmp.lt.s32.totalorder %s311, 1
      %s315 = scalar_select %p314, %s311, 1
      %s316 = smul.addr %s313, 2
      %s317 = sadd.s32 %s315, %s316
      %s318 = scalar_lea.vmem %s3, %s317
      %p319 = pneg %p138
      %p320 = pneg %p135
      %s321 = smul.u32 6, %s23
      %s322 = smul.u32 2, %s22
      %p323 = scmp.lt.s32.totalorder %s21, 1
      %s324 = scalar_select %p323, %s21, 1
      %p325 = scmp.lt.s32.totalorder %s321, 5
      %s326 = scalar_select %p325, %s321, 5
      %p327 = scmp.lt.s32.totalorder %s322, 1
      %s328 = scalar_select %p327, %s322, 1
      %s329 = smul.addr %s326, 2
      %s330 = sadd.s32 %s328, %s329
      %s331 = smul.addr %s324, 12
      %s332 = sadd.s32 %s330, %s331
      %s333 = smul.addr %s332, 4
      %s334 = scalar_lea.vmem %s4, %s333
      %p335 = pneg %p168
      %p336 = pneg %p165
      %p337 = pneg %p198
      %p338 = pneg %p195
      %s339 = smul.u32 6, %s23
      %s340 = smul.u32 2, %s22
      %p341 = scmp.lt.s32.totalorder %s21, 1
      %s342 = scalar_select %p341, %s21, 1
      %p343 = scmp.lt.s32.totalorder %s339, 5
      %s344 = scalar_select %p343, %s339, 5
      %p345 = scmp.lt.s32.totalorder %s340, 1
      %s346 = scalar_select %p345, %s340, 1
      %s347 = smul.addr %s344, 2
      %s348 = sadd.s32 %s346, %s347
      %s349 = smul.addr %s342, 12
      %s350 = sadd.s32 %s348, %s349
      %s351 = smul.addr %s350, 4
      %s352 = scalar_lea.vmem %s5, %s351
      %s353 = smul.u32 6, %s23
      %p354 = scmp.lt.s32.totalorder %s21, 1
      %s355 = scalar_select %p354, %s21, 1
      %p356 = scmp.lt.s32.totalorder %s353, 5
      %s357 = scalar_select %p356, %s353, 5
      %s358 = smul.addr %s357, 2
      %s359 = smul.addr %s355, 12
      %s360 = sadd.s32 %s358, %s359
      %s361 = smul.addr %s360, 4
      %s362 = scalar_lea.vmem %s0, %s361
      %s363 = smul.u32 6, %s23
      %s364 = smul.u32 2, %s22
      %p365 = scmp.lt.s32.totalorder %s364, 1
      %s366 = scalar_select %p365, %s364, 1
      %s367 = smul.addr %s366, 4
      %s368 = scalar_lea.vmem %s1, %s367
      %s369 = smul.u32 2, %s22
      %s370 = smul.u32 2, %s22
      %p371 = scmp.lt.s32.totalorder %s370, 1
      %s372 = scalar_select %p371, %s370, 1
      %s373 = scalar_lea.vmem %s2, %s372
      %s374 = smul.u32 2, %s22
      %s375 = smul.u32 2, %s22
      %p376 = scmp.lt.s32.totalorder %s21, 1
      %s377 = scalar_select %p376, %s21, 1
      %p378 = scmp.lt.s32.totalorder %s375, 1
      %s379 = scalar_select %p378, %s375, 1
      %s380 = smul.addr %s377, 2
      %s381 = sadd.s32 %s379, %s380
      %s382 = scalar_lea.vmem %s3, %s381
      %s383 = smul.u32 2, %s22
      %s384 = smul.u32 6, %s23
      %s385 = smul.u32 2, %s22
      %p386 = scmp.lt.s32.totalorder %s21, 1
      %s387 = scalar_select %p386, %s21, 1
      %p388 = scmp.lt.s32.totalorder %s384, 5
      %s389 = scalar_select %p388, %s384, 5
      %p390 = scmp.lt.s32.totalorder %s385, 1
      %s391 = scalar_select %p390, %s385, 1
      %s392 = smul.addr %s389, 2
      %s393 = sadd.s32 %s391, %s392
      %s394 = smul.addr %s387, 12
      %s395 = sadd.s32 %s393, %s394
      %s396 = smul.addr %s395, 4
      %s397 = scalar_lea.vmem %s4, %s396
      %s398 = smul.u32 6, %s23
      %s399 = smul.u32 2, %s22
      %s400 = smul.u32 6, %s23
      %s401 = smul.u32 2, %s22
      %p402 = scmp.lt.s32.totalorder %s21, 1
      %s403 = scalar_select %p402, %s21, 1
      %p404 = scmp.lt.s32.totalorder %s400, 5
      %s405 = scalar_select %p404, %s400, 5
      %p406 = scmp.lt.s32.totalorder %s401, 1
      %s407 = scalar_select %p406, %s401, 1
      %s408 = smul.addr %s405, 2
      %s409 = sadd.s32 %s407, %s408
      %s410 = smul.addr %s403, 12
      %s411 = sadd.s32 %s409, %s410
      %s412 = smul.addr %s411, 4
      %s413 = scalar_lea.vmem %s5, %s412
      %s414 = smul.u32 6, %s23
      %s415 = smul.u32 2, %s22
      %v416 = vld [vmem:[%s362] sm:$0xff]
      %v417 = vld [vmem:[%s362 + $0x8] sm:$0xff]
      %v418 = vld [vmem:[%s362 + $0x10] sm:$0xff]
      %v419 = vld [vmem:[%s362 + $0x18] sm:$0xff]
      %v420 = vld [vmem:[%s362 + $0x20] sm:$0xff]
      %v421 = vld [vmem:[%s362 + $0x28] sm:$0xff]
      %v422 = vld [vmem:[%s368] sm:$0xff]
      %v423 = vld [vmem:[%s368 + $0x8] sm:$0xff]
      %v424 = vld [vmem:[%s368 + $0x10] sm:$0xff]
      %v425 = vld [vmem:[%s368 + $0x18] sm:$0xff]
      %v426 = vld [vmem:[%s368 + $0x20] sm:$0xff]
      %v427 = vld [vmem:[%s368 + $0x28] sm:$0xff]
      %v428 = vld [vmem:[%s368 + $0x30] sm:$0xff]
      %v429 = vld [vmem:[%s368 + $0x38] sm:$0xff]
      %v430 = vld [vmem:[%s368 + $0x40] sm:$0xff]
      %v431 = vld [vmem:[%s368 + $0x48] sm:$0xff]
      %v432 = vld [vmem:[%s368 + $0x50] sm:$0xff]
      %v433 = vld [vmem:[%s368 + $0x58] sm:$0xff]
      %v434 = vld [vmem:[%s368 + $0x60] sm:$0xff]
      %v435 = vld [vmem:[%s368 + $0x68] sm:$0xff]
      %v436 = vld [vmem:[%s368 + $0x70] sm:$0xff]
      %v437 = vld [vmem:[%s368 + $0x78] sm:$0xff]
      %v438 = vld [vmem:[%s368 + $0x80] sm:$0xff]
      %v439 = vld [vmem:[%s368 + $0x88] sm:$0xff]
      %v440 = vld [vmem:[%s368 + $0x90] sm:$0xff]
      %v441 = vld [vmem:[%s368 + $0x98] sm:$0xff]
      %v442 = vld [vmem:[%s368 + $0xa0] sm:$0xff]
      %v443 = vld [vmem:[%s368 + $0xa8] sm:$0xff]
      %v444 = vld [vmem:[%s368 + $0xb0] sm:$0xff]
      %v445 = vld [vmem:[%s368 + $0xb8] sm:$0xff]
      %v446 = vld [vmem:[%s368 + $0xc0] sm:$0xff]
      %v447 = vld [vmem:[%s368 + $0xc8] sm:$0xff]
      %v448 = vld [vmem:[%s368 + $0xd0] sm:$0xff]
      %v449 = vld [vmem:[%s368 + $0xd8] sm:$0xff]
      %v450 = vld [vmem:[%s368 + $0xe0] sm:$0xff]
      %v451 = vld [vmem:[%s368 + $0xe8] sm:$0xff]
      %v452 = vld [vmem:[%s368 + $0xf0] sm:$0xff]
      %v453 = vld [vmem:[%s368 + $0xf8] sm:$0xff]
      %v454 = vld [vmem:[%s373] sm:$0x3]
      %v456 = vlaneseq
      %v457 = vshrl.u32 %v456, 7
      %v458 = vsub.s32 0, %v457
      %v459 = vrot.slane %v454, %v458
      %v460 = vlaneseq
      %v461 = vshrl.u32 %v460, 7
      %v462 = vsub.s32 1, %v461
      %v463 = vrot.slane %v454, %v462
      %v472 = vunpack.c.l.b16 %v416
      %v473 = vunpack.c.h.b16 %v416
      %v474 = vunpack.c.l.b16 %v417
      %v475 = vunpack.c.h.b16 %v417
      %v476 = vunpack.c.l.b16 %v418
      %v477 = vunpack.c.h.b16 %v418
      %v478 = vunpack.c.l.b16 %v419
      %v479 = vunpack.c.h.b16 %v419
      %v480 = vunpack.c.l.b16 %v420
      %v481 = vunpack.c.h.b16 %v420
      %v482 = vunpack.c.l.b16 %v421
      %v483 = vunpack.c.h.b16 %v421
      %v484 = vpack.c.b16 %v474, %v472
      %v485 = vpack.c.b16 %v475, %v473
      %v486 = vpack.c.b16 %v478, %v476
      %v487 = vpack.c.b16 %v479, %v477
      %v488 = vpack.c.b16 %v482, %v480
      %v489 = vpack.c.b16 %v483, %v481
      %v528 = vunpack.c.l.b16 %v422
      %v529 = vunpack.c.h.b16 %v422
      %v530 = vunpack.c.l.b16 %v423
      %v531 = vunpack.c.h.b16 %v423
      %v532 = vunpack.c.l.b16 %v424
      %v533 = vunpack.c.h.b16 %v424
      %v534 = vunpack.c.l.b16 %v425
      %v535 = vunpack.c.h.b16 %v425
      %v536 = vunpack.c.l.b16 %v426
      %v537 = vunpack.c.h.b16 %v426
      %v538 = vunpack.c.l.b16 %v427
      %v539 = vunpack.c.h.b16 %v427
      %v540 = vunpack.c.l.b16 %v428
      %v541 = vunpack.c.h.b16 %v428
      %v542 = vunpack.c.l.b16 %v429
      %v543 = vunpack.c.h.b16 %v429
      %v544 = vunpack.c.l.b16 %v430
      %v545 = vunpack.c.h.b16 %v430
      %v546 = vunpack.c.l.b16 %v431
      %v547 = vunpack.c.h.b16 %v431
      %v548 = vunpack.c.l.b16 %v432
      %v549 = vunpack.c.h.b16 %v432
      %v550 = vunpack.c.l.b16 %v433
      %v551 = vunpack.c.h.b16 %v433
      %v552 = vunpack.c.l.b16 %v434
      %v553 = vunpack.c.h.b16 %v434
      %v554 = vunpack.c.l.b16 %v435
      %v555 = vunpack.c.h.b16 %v435
      %v556 = vunpack.c.l.b16 %v436
      %v557 = vunpack.c.h.b16 %v436
      %v558 = vunpack.c.l.b16 %v437
      %v559 = vunpack.c.h.b16 %v437
      %v560 = vunpack.c.l.b16 %v438
      %v561 = vunpack.c.h.b16 %v438
      %v562 = vunpack.c.l.b16 %v439
      %v563 = vunpack.c.h.b16 %v439
      %v564 = vunpack.c.l.b16 %v440
      %v565 = vunpack.c.h.b16 %v440
      %v566 = vunpack.c.l.b16 %v441
      %v567 = vunpack.c.h.b16 %v441
      %v568 = vunpack.c.l.b16 %v442
      %v569 = vunpack.c.h.b16 %v442
      %v570 = vunpack.c.l.b16 %v443
      %v571 = vunpack.c.h.b16 %v443
      %v572 = vunpack.c.l.b16 %v444
      %v573 = vunpack.c.h.b16 %v444
      %v574 = vunpack.c.l.b16 %v445
      %v575 = vunpack.c.h.b16 %v445
      %v576 = vunpack.c.l.b16 %v446
      %v577 = vunpack.c.h.b16 %v446
      %v578 = vunpack.c.l.b16 %v447
      %v579 = vunpack.c.h.b16 %v447
      %v580 = vunpack.c.l.b16 %v448
      %v581 = vunpack.c.h.b16 %v448
      %v582 = vunpack.c.l.b16 %v449
      %v583 = vunpack.c.h.b16 %v449
      %v584 = vunpack.c.l.b16 %v450
      %v585 = vunpack.c.h.b16 %v450
      %v586 = vunpack.c.l.b16 %v451
      %v587 = vunpack.c.h.b16 %v451
      %v588 = vunpack.c.l.b16 %v452
      %v589 = vunpack.c.h.b16 %v452
      %v590 = vunpack.c.l.b16 %v453
      %v591 = vunpack.c.h.b16 %v453
      %v592 = vpack.c.b16 %v530, %v528
      %v593 = vpack.c.b16 %v531, %v529
      %v594 = vpack.c.b16 %v534, %v532
      %v595 = vpack.c.b16 %v535, %v533
      %v596 = vpack.c.b16 %v538, %v536
      %v597 = vpack.c.b16 %v539, %v537
      %v598 = vpack.c.b16 %v542, %v540
      %v599 = vpack.c.b16 %v543, %v541
      %v600 = vpack.c.b16 %v546, %v544
      %v601 = vpack.c.b16 %v547, %v545
      %v602 = vpack.c.b16 %v550, %v548
      %v603 = vpack.c.b16 %v551, %v549
      %v604 = vpack.c.b16 %v554, %v552
      %v605 = vpack.c.b16 %v555, %v553
      %v606 = vpack.c.b16 %v558, %v556
      %v607 = vpack.c.b16 %v559, %v557
      %v608 = vpack.c.b16 %v562, %v560
      %v609 = vpack.c.b16 %v563, %v561
      %v610 = vpack.c.b16 %v566, %v564
      %v611 = vpack.c.b16 %v567, %v565
      %v612 = vpack.c.b16 %v570, %v568
      %v613 = vpack.c.b16 %v571, %v569
      %v614 = vpack.c.b16 %v574, %v572
      %v615 = vpack.c.b16 %v575, %v573
      %v616 = vpack.c.b16 %v578, %v576
      %v617 = vpack.c.b16 %v579, %v577
      %v618 = vpack.c.b16 %v582, %v580
      %v619 = vpack.c.b16 %v583, %v581
      %v620 = vpack.c.b16 %v586, %v584
      %v621 = vpack.c.b16 %v587, %v585
      %v622 = vpack.c.b16 %v590, %v588
      %v623 = vpack.c.b16 %v591, %v589
      %656 = vmatprep.subr.bf16.mxu0 %v593
      %657 = vmatpush1.bf16.msra.mxu0 %v592
      %658 = vmatprep.subr.bf16.mxu0 %v595
      %659 = vmatpush1.bf16.msra.mxu0 %v594
      %660 = vmatprep.subr.bf16.mxu0 %v597
      %661 = vmatpush1.bf16.msra.mxu0 %v596
      %662 = vmatprep.subr.bf16.mxu0 %v599
      %663 = vmatpush1.bf16.msra.mxu0 %v598
      %664 = vmatprep.subr.bf16.mxu0 %v601
      %665 = vmatpush1.bf16.msra.mxu0 %v600
      %666 = vmatprep.subr.bf16.mxu0 %v603
      %667 = vmatpush1.bf16.msra.mxu0 %v602
      %668 = vmatprep.subr.bf16.mxu0 %v605
      %669 = vmatpush1.bf16.msra.mxu0 %v604
      %670 = vmatprep.subr.bf16.mxu0 %v607
      %671 = vmatpush1.bf16.msra.mxu0 %v606
      %672 = vmatprep.subr.bf16.mxu0 %v609
      %673 = vmatpush1.bf16.msra.mxu0 %v608
      %674 = vmatprep.subr.bf16.mxu0 %v611
      %675 = vmatpush1.bf16.msra.mxu0 %v610
      %676 = vmatprep.subr.bf16.mxu0 %v613
      %677 = vmatpush1.bf16.msra.mxu0 %v612
      %678 = vmatprep.subr.bf16.mxu0 %v615
      %679 = vmatpush1.bf16.msra.mxu0 %v614
      %680 = vmatprep.subr.bf16.mxu0 %v617
      %681 = vmatpush1.bf16.msra.mxu0 %v616
      %682 = vmatprep.subr.bf16.mxu0 %v619
      %683 = vmatpush1.bf16.msra.mxu0 %v618
      %684 = vmatprep.subr.bf16.mxu0 %v621
      %685 = vmatpush1.bf16.msra.mxu0 %v620
      %686 = vmatprep.subr.bf16.mxu0 %v623
      %687 = vmatpush1.bf16.msra.mxu0 %v622
      %688 = vmatprep.mubr.bf16.mxu0 %v485
      %689 = vmatmul.mubr.bf16.gmra.mrb[0].mxu0 %v484
      %v690 = vpop.f32.mrb[0].mxu0
      %v691 = vadd.f32 %v459, %v690
      %v692 = vpop.f32.mrb[0].mxu0
      %v693 = vadd.f32 %v463, %v692
      %v694 = vpop.f32.mrb[0].mxu0
      %v695 = vadd.f32 %v459, %v694
      %v696 = vpop.f32.mrb[0].mxu0
      %v697 = vadd.f32 %v463, %v696
      %698 = vmatprep.mubr.bf16.mxu0 %v487
      %699 = vmatmul.mubr.bf16.gmra.mrb[0].mxu0 %v486
      %v700 = vpop.f32.mrb[0].mxu0
      %v701 = vadd.f32 %v459, %v700
      %v702 = vpop.f32.mrb[0].mxu0
      %v703 = vadd.f32 %v463, %v702
      %v704 = vpop.f32.mrb[0].mxu0
      %v705 = vadd.f32 %v459, %v704
      %v706 = vpop.f32.mrb[0].mxu0
      %v707 = vadd.f32 %v463, %v706
      %708 = vmatprep.mubr.bf16.mxu0 %v489
      %709 = vmatmul.mubr.bf16.gmra.mrb[0].mxu0 %v488
      %v710 = vpop.f32.mrb[0].mxu0
      %v711 = vadd.f32 %v459, %v710
      %v712 = vpop.f32.mrb[0].mxu0
      %v713 = vadd.f32 %v463, %v712
      %v714 = vpop.f32.mrb[0].mxu0
      %v715 = vadd.f32 %v459, %v714
      %v716 = vpop.f32.mrb[0].mxu0
      %v717 = vadd.f32 %v463, %v716
      %718 = vdwg.mxu0
      %v719 = vld [vmem:[%s397] sm:$0xff]
      %v720 = vld [vmem:[%s397 + $0x8] sm:$0xff]
      %v721 = vld [vmem:[%s397 + $0x10] sm:$0xff]
      %v722 = vld [vmem:[%s397 + $0x18] sm:$0xff]
      %v723 = vld [vmem:[%s397 + $0x20] sm:$0xff]
      %v724 = vld [vmem:[%s397 + $0x28] sm:$0xff]
      %v725 = vunpack.c.l.bf16 %v719
      %v726 = vunpack.c.h.bf16 %v719
      %v727 = vunpack.c.l.bf16 %v720
      %v728 = vunpack.c.h.bf16 %v720
      %v729 = vunpack.c.l.bf16 %v721
      %v730 = vunpack.c.h.bf16 %v721
      %v731 = vunpack.c.l.bf16 %v722
      %v732 = vunpack.c.h.bf16 %v722
      %v733 = vunpack.c.l.bf16 %v723
      %v734 = vunpack.c.h.bf16 %v723
      %v735 = vunpack.c.l.bf16 %v724
      %v736 = vunpack.c.h.bf16 %v724
      %v737 = vld [vmem:[%s382] sm:$0x3]
      %v739 = vlaneseq
      %v740 = vshrl.u32 %v739, 7
      %v741 = vsub.s32 0, %v740
      %v742 = vrot.slane %v737, %v741
      %v743 = vlaneseq
      %v744 = vshrl.u32 %v743, 7
      %v745 = vsub.s32 1, %v744
      %v746 = vrot.slane %v737, %v745
      %v749 = vmul.f32 %v742, %v691
      %v750 = vmul.f32 %v746, %v693
      %v751 = vmul.f32 %v742, %v695
      %v752 = vmul.f32 %v746, %v697
      %v753 = vmul.f32 %v742, %v701
      %v754 = vmul.f32 %v746, %v703
      %v755 = vmul.f32 %v742, %v705
      %v756 = vmul.f32 %v746, %v707
      %v757 = vmul.f32 %v742, %v711
      %v758 = vmul.f32 %v746, %v713
      %v759 = vmul.f32 %v742, %v715
      %v760 = vmul.f32 %v746, %v717
      %v761 = vadd.f32 %v725, %v749
      %v762 = vadd.f32 %v726, %v750
      %v763 = vadd.f32 %v727, %v751
      %v764 = vadd.f32 %v728, %v752
      %v765 = vadd.f32 %v729, %v753
      %v766 = vadd.f32 %v730, %v754
      %v767 = vadd.f32 %v731, %v755
      %v768 = vadd.f32 %v732, %v756
      %v769 = vadd.f32 %v733, %v757
      %v770 = vadd.f32 %v734, %v758
      %v771 = vadd.f32 %v735, %v759
      %v772 = vadd.f32 %v736, %v760
      %v773 = vpack.c.bf16 %v763, %v761
      %v774 = vpack.c.bf16 %v764, %v762
      %v775 = vpack.c.bf16 %v767, %v765
      %v776 = vpack.c.bf16 %v768, %v766
      %v777 = vpack.c.bf16 %v771, %v769
      %v778 = vpack.c.bf16 %v772, %v770
      %v785 = vunpack.c.l.b16 %v773
      %v786 = vunpack.c.l.b16 %v774
      %v787 = vunpack.c.h.b16 %v773
      %v788 = vunpack.c.h.b16 %v774
      %v789 = vunpack.c.l.b16 %v775
      %v790 = vunpack.c.l.b16 %v776
      %v791 = vunpack.c.h.b16 %v775
      %v792 = vunpack.c.h.b16 %v776
      %v793 = vunpack.c.l.b16 %v777
      %v794 = vunpack.c.l.b16 %v778
      %v795 = vunpack.c.h.b16 %v777
      %v796 = vunpack.c.h.b16 %v778
      %v797 = vpack.c.b16 %v786, %v785
      %v798 = vpack.c.b16 %v788, %v787
      %v799 = vpack.c.b16 %v790, %v789
      %v800 = vpack.c.b16 %v792, %v791
      %v801 = vpack.c.b16 %v794, %v793
      %v802 = vpack.c.b16 %v796, %v795
      %809 = vst [vmem:[%s413] sm:$0xff] %v797
      %810 = vst [vmem:[%s413 + $0x8] sm:$0xff] %v798
      %811 = vst [vmem:[%s413 + $0x10] sm:$0xff] %v799
      %812 = vst [vmem:[%s413 + $0x18] sm:$0xff] %v800
      %813 = vst [vmem:[%s413 + $0x20] sm:$0xff] %v801
      %814 = vst [vmem:[%s413 + $0x28] sm:$0xff] %v802
      %s815 = smul.u32 6, %s23
      %s816 = smul.u32 2, %s22
      %p817 = scmp.lt.s32.totalorder %s21, 1
      %s818 = scalar_select %p817, %s21, 1
      %p819 = scmp.lt.s32.totalorder %s815, 5
      %s820 = scalar_select %p819, %s815, 5
      %p821 = scmp.lt.s32.totalorder %s816, 1
      %s822 = scalar_select %p821, %s816, 1
      %s823 = smul.addr %s820, 2
      %s824 = sadd.s32 %s822, %s823
      %s825 = smul.addr %s818, 12
      %s826 = sadd.s32 %s824, %s825
      %s827 = smul.addr %s826, 4
      %s828 = scalar_lea.vmem %s5, %s827
      // Predicated region
      $region41: #{run.13} parent=39 // pred_check
        %p829 = pneg %p195
      $region42: #{run.13} parent=39 // pred_check_branch
        %831 = sbr.rel (%p829) target = $region44
      $region43: #{run.13} parent=39 // pred_region
        %s832 = smul.u32 6, %s23
        %s833 = smul.u32 2, %s22
      $region44: #{run.13} parent=39 // pred_fallthru
        _
    $region40: #{run.13} parent=5 // pred_fallthru
      _
    %p834 = scmp.le.s32.totalorder 2, %s11
    // Predicated region
    $region45: #{run.13} parent=5 // pred_check
      %p835 = pneg %p834
    $region46: #{run.13} parent=5 // pred_check_branch
      %837 = sbr.rel (%p835) target = $region48
    $region47: #{run.13} parent=5 // pred_region
      %s838 = ssub.s32 %s11, 2
      // Predicated region
      $region49: #{run.13} parent=47 // pred_check
        %p839 = pneg %p201
      $region50: #{run.13} parent=47 // pred_check_branch
        %841 = sbr.rel (%p839) target = $region52
      $region51: #{run.13} parent=47 // pred_region
        %s842 = smul.u32 6, %s26
        %s843 = smul.u32 2, %s25
        %p844 = scmp.lt.s32.totalorder %s24, 1
        %s845 = scalar_select %p844, %s24, 1
        %p846 = scmp.lt.s32.totalorder %s842, 5
        %s847 = scalar_select %p846, %s842, 5
        %p848 = scmp.lt.s32.totalorder %s843, 1
        %s849 = scalar_select %p848, %s843, 1
        %s850 = smul.addr %s847, 2
        %s851 = sadd.s32 %s849, %s850
        %s852 = smul.addr %s845, 12
        %s853 = sadd.s32 %s851, %s852
        %s854 = smul.addr %s853, 4
        %s855 = scalar_lea.vmem %s5, %s854
      $region52: #{run.13} parent=47 // pred_fallthru
        _
    $region48: #{run.13} parent=5 // pred_fallthru
      _
  $region6: #{run.13} parent=0 // loop_footer
    %s15 = sadd.s32 1, %s11
  $region7: #{run.13} parent=0 // loop_footer_branch
    %10 = sbr.rel target = $region3
  $region8: #{run.13} parent=0 // loop_exit
    _

// kernel: run.15
$region0: #{run.15}
  #allocation0 [shape = 'u32[]', space=smem, size = 0x4, offset = 0x4, fixed_abs, tag = 'smem constant byte address 0x4 - core index']
  #allocation1 [shape = 'u32[144,128]{1,0:T(1,128)}', space=vmem, size = 0x12000, scoped, tag = 'internal scratch']
  %s0 = inlined_call_operand.vmem [shape: bf16[2,48,1024], index: 0, kind: input, shape index: {}]
  %s1 = inlined_call_operand.vmem [shape: bf16[1024,256], index: 1, kind: input, shape index: {}]
  %s2 = inlined_call_operand.vmem [shape: f32[1,256], index: 2, kind: input, shape index: {}]
  %s3 = inlined_call_operand.vmem [shape: f32[2,1,256], index: 3, kind: input, shape index: {}]
  %s4 = inlined_call_operand.vmem [shape: bf16[2,48,256], index: 4, kind: input, shape index: {}]
  %s5 = inlined_call_operand.vmem [shape: bf16[2,48,256], index: 5, kind: output, shape index: {}]
  %s6 = sld [smem:[#allocation0]]
  $region53: #{run.15} parent=0
    _
  %s8 = ssub.s32 1, %s6
  %s9 = scalar_select 0, %s8, %s6
  loop: start=0, step=1, limit=4
  $region2: #{run.15} parent=0 // loop_pre_header
    _
  $region3: #{run.15} parent=0 // loop_header
    %s11 = sphi 0, %s15
    %p12 = scmp.ge.s32.totalorder %s11, 4
    %s18 = sphi 0, %s37
    %s19 = sphi 0, %s33
    %s20 = sphi 0, %s29
    %s21 = sphi 0, %s18
    %s22 = sphi 0, %s19
    %s23 = sphi 0, %s20
    %s24 = sphi 0, %s21
    %s25 = sphi 0, %s22
    %s26 = sphi 0, %s23
    %s42 = sphi 0, %s44
    %s45 = sphi 0, %s42
    %s46 = sphi 0, %s45
    %s62 = sphi 0, %s46
    %s68 = sphi 0, %s70
    %s71 = sphi 0, %s68
    %s72 = sphi 0, %s71
    %s88 = sphi 0, %s72
    %s94 = sphi 0, %s96
    %s97 = sphi 0, %s94
    %s98 = sphi 0, %s97
    %s114 = sphi 0, %s98
    %s122 = sphi 0, %s124
    %s125 = sphi 0, %s122
    %s126 = sphi 0, %s125
    %s142 = sphi 0, %s126
    %s152 = sphi 0, %s154
    %s155 = sphi 0, %s152
    %s156 = sphi 0, %s155
    %s172 = sphi 0, %s156
    %s182 = sphi 0, %s184
    %s185 = sphi 0, %s182
    %s186 = sphi 0, %s185
    %s202 = sphi 0, %s186
  $region4: #{run.15} parent=0 // loop_header_branch
    %14 = sbr.rel (%p12) target = $region8
  $region5: #{run.15} parent=0 // loop_body
    %s16 = ssub.s32 %s11, 1
    %s17 = ssub.s32 %s11, 2
    %s27 = sadd.s32 1, %s20
    %p28 = scmp.ge.s32.totalorder %s27, 1
    %s29 = scalar_select %p28, 0, %s27
    %s30 = sadd.s32 1, %s19
    %s31 = scalar_select %p28, %s30, %s19
    %p32 = scmp.ge.s32.totalorder %s31, 1
    %s33 = scalar_select %p32, 0, %s31
    %s34 = sadd.s32 1, %s18
    %s35 = scalar_select %p32, %s34, %s18
    %p36 = scmp.ge.s32.totalorder %s35, 2
    %s37 = scalar_select %p36, 0, %s35
    %s38 = ssub.s32 %s18, %s37
    %s39 = ssub.s32 %s20, %s29
    %s40 = sor.u32 %s38, %s39
    %p41 = scmp.eq.s32.totalorder %s40, 0
    %s43 = sadd.s32 %s42, 1
    %s44 = scalar_select %p41, %s42, %s43
    %p47 = pneg %p41
    %p48 = scmp.eq.s32.totalorder %s11, 1
    %p49 = por %p47, %p48
    %p50 = scmp.ne.s32.totalorder %s42, %s45
    %p51 = scmp.eq.s32.totalorder %s11, 0
    %p52 = por %p50, %p51
    %p53 = scmp.ne.s32.totalorder %s42, %s45
    %p54 = scmp.eq.s32.totalorder %s16, 1
    %p55 = por %p53, %p54
    %p56 = scmp.ne.s32.totalorder %s45, %s46
    %p57 = scmp.eq.s32.totalorder %s16, 0
    %p58 = por %p56, %p57
    %p59 = scmp.ne.s32.totalorder %s45, %s46
    %p60 = scmp.eq.s32.totalorder %s17, 1
    %p61 = por %p59, %p60
    %p63 = scmp.ne.s32.totalorder %s46, %s62
    %p64 = scmp.eq.s32.totalorder %s17, 0
    %p65 = por %p63, %p64
    %s66 = ssub.s32 %s19, %s33
    %p67 = scmp.eq.s32.totalorder %s66, 0
    %s69 = sadd.s32 %s68, 1
    %s70 = scalar_select %p67, %s68, %s69
    %p73 = pneg %p67
    %p74 = scmp.eq.s32.totalorder %s11, 1
    %p75 = por %p73, %p74
    %p76 = scmp.ne.s32.totalorder %s68, %s71
    %p77 = scmp.eq.s32.totalorder %s11, 0
    %p78 = por %p76, %p77
    %p79 = scmp.ne.s32.totalorder %s68, %s71
    %p80 = scmp.eq.s32.totalorder %s16, 1
    %p81 = por %p79, %p80
    %p82 = scmp.ne.s32.totalorder %s71, %s72
    %p83 = scmp.eq.s32.totalorder %s16, 0
    %p84 = por %p82, %p83
    %p85 = scmp.ne.s32.totalorder %s71, %s72
    %p86 = scmp.eq.s32.totalorder %s17, 1
    %p87 = por %p85, %p86
    %p89 = scmp.ne.s32.totalorder %s72, %s88
    %p90 = scmp.eq.s32.totalorder %s17, 0
    %p91 = por %p89, %p90
    %s92 = ssub.s32 %s19, %s33
    %p93 = scmp.eq.s32.totalorder %s92, 0
    %s95 = sadd.s32 %s94, 1
    %s96 = scalar_select %p93, %s94, %s95
    %p99 = pneg %p93
    %p100 = scmp.eq.s32.totalorder %s11, 1
    %p101 = por %p99, %p100
    %p102 = scmp.ne.s32.totalorder %s94, %s97
    %p103 = scmp.eq.s32.totalorder %s11, 0
    %p104 = por %p102, %p103
    %p105 = scmp.ne.s32.totalorder %s94, %s97
    %p106 = scmp.eq.s32.totalorder %s16, 1
    %p107 = por %p105, %p106
    %p108 = scmp.ne.s32.totalorder %s97, %s98
    %p109 = scmp.eq.s32.totalorder %s16, 0
    %p110 = por %p108, %p109
    %p111 = scmp.ne.s32.totalorder %s97, %s98
    %p112 = scmp.eq.s32.totalorder %s17, 1
    %p113 = por %p111, %p112
    %p115 = scmp.ne.s32.totalorder %s98, %s114
    %p116 = scmp.eq.s32.totalorder %s17, 0
    %p117 = por %p115, %p116
    %s118 = ssub.s32 %s18, %s37
    %s119 = ssub.s32 %s19, %s33
    %s120 = sor.u32 %s118, %s119
    %p121 = scmp.eq.s32.totalorder %s120, 0
    %s123 = sadd.s32 %s122, 1
    %s124 = scalar_select %p121, %s122, %s123
    %p127 = pneg %p121
    %p128 = scmp.eq.s32.totalorder %s11, 1
    %p129 = por %p127, %p128
    %p130 = scmp.ne.s32.totalorder %s122, %s125
    %p131 = scmp.eq.s32.totalorder %s11, 0
    %p132 = por %p130, %p131
    %p133 = scmp.ne.s32.totalorder %s122, %s125
    %p134 = scmp.eq.s32.totalorder %s16, 1
    %p135 = por %p133, %p134
    %p136 = scmp.ne.s32.totalorder %s125, %s126
    %p137 = scmp.eq.s32.totalorder %s16, 0
    %p138 = por %p136, %p137
    %p139 = scmp.ne.s32.totalorder %s125, %s126
    %p140 = scmp.eq.s32.totalorder %s17, 1
    %p141 = por %p139, %p140
    %p143 = scmp.ne.s32.totalorder %s126, %s142
    %p144 = scmp.eq.s32.totalorder %s17, 0
    %p145 = por %p143, %p144
    %s146 = ssub.s32 %s18, %s37
    %s147 = ssub.s32 %s20, %s29
    %s148 = sor.u32 %s146, %s147
    %s149 = ssub.s32 %s19, %s33
    %s150 = sor.u32 %s148, %s149
    %p151 = scmp.eq.s32.totalorder %s150, 0
    %s153 = sadd.s32 %s152, 1
    %s154 = scalar_select %p151, %s152, %s153
    %p157 = pneg %p151
    %p158 = scmp.eq.s32.totalorder %s11, 1
    %p159 = por %p157, %p158
    %p160 = scmp.ne.s32.totalorder %s152, %s155
    %p161 = scmp.eq.s32.totalorder %s11, 0
    %p162 = por %p160, %p161
    %p163 = scmp.ne.s32.totalorder %s152, %s155
    %p164 = scmp.eq.s32.totalorder %s16, 1
    %p165 = por %p163, %p164
    %p166 = scmp.ne.s32.totalorder %s155, %s156
    %p167 = scmp.eq.s32.totalorder %s16, 0
    %p168 = por %p166, %p167
    %p169 = scmp.ne.s32.totalorder %s155, %s156
    %p170 = scmp.eq.s32.totalorder %s17, 1
    %p171 = por %p169, %p170
    %p173 = scmp.ne.s32.totalorder %s156, %s172
    %p174 = scmp.eq.s32.totalorder %s17, 0
    %p175 = por %p173, %p174
    %s176 = ssub.s32 %s18, %s37
    %s177 = ssub.s32 %s20, %s29
    %s178 = sor.u32 %s176, %s177
    %s179 = ssub.s32 %s19, %s33
    %s180 = sor.u32 %s178, %s179
    %p181 = scmp.eq.s32.totalorder %s180, 0
    %s183 = sadd.s32 %s182, 1
    %s184 = scalar_select %p181, %s182, %s183
    %p187 = pneg %p181
    %p188 = scmp.eq.s32.totalorder %s11, 1
    %p189 = por %p187, %p188
    %p190 = scmp.ne.s32.totalorder %s182, %s185
    %p191 = scmp.eq.s32.totalorder %s11, 0
    %p192 = por %p190, %p191
    %p193 = scmp.ne.s32.totalorder %s182, %s185
    %p194 = scmp.eq.s32.totalorder %s16, 1
    %p195 = por %p193, %p194
    %p196 = scmp.ne.s32.totalorder %s185, %s186
    %p197 = scmp.eq.s32.totalorder %s16, 0
    %p198 = por %p196, %p197
    %p199 = scmp.ne.s32.totalorder %s185, %s186
    %p200 = scmp.eq.s32.totalorder %s17, 1
    %p201 = por %p199, %p200
    %p203 = scmp.ne.s32.totalorder %s186, %s202
    %p204 = scmp.eq.s32.totalorder %s17, 0
    %p205 = por %p203, %p204
    %p206 = scmp.le.s32.totalorder 1, %s11
    %p207 = scmp.lt.s32.totalorder %s11, 3
    %p208 = pnand %p206, %p207
    %p209 = pneg %p208
    // Predicated region
    $region9: #{run.15} parent=5 // pred_check
      _
    $region10: #{run.15} parent=5 // pred_check_branch
      %211 = sbr.rel (%p208) target = $region12
    $region11: #{run.15} parent=5 // pred_region
      %s212 = ssub.s32 %s11, 1
      // Predicated region
      $region13: #{run.15} parent=11 // pred_check
        %p213 = pneg %p84
      $region14: #{run.15} parent=11 // pred_check_branch
        %215 = sbr.rel (%p213) target = $region16
      $region15: #{run.15} parent=11 // pred_region
        %s216 = smul.u32 2, %s22
        %p217 = scmp.lt.s32.totalorder %s216, 1
        %s218 = scalar_select %p217, %s216, 1
        %s219 = smul.addr %s218, 4
        %s220 = scalar_lea.vmem %s1, %s219
        %s221 = smul.u32 2, %s22
      $region16: #{run.15} parent=11 // pred_fallthru
        _
      // Predicated region
      $region17: #{run.15} parent=11 // pred_check
        %p222 = pneg %p110
      $region18: #{run.15} parent=11 // pred_check_branch
        %224 = sbr.rel (%p222) target = $region20
      $region19: #{run.15} parent=11 // pred_region
        %s225 = smul.u32 2, %s22
        %p226 = scmp.lt.s32.totalorder %s225, 1
        %s227 = scalar_select %p226, %s225, 1
        %s228 = scalar_lea.vmem %s2, %s227
        %s229 = smul.u32 2, %s22
      $region20: #{run.15} parent=11 // pred_fallthru
        _
    $region12: #{run.15} parent=5 // pred_fallthru
      _
    %p230 = scmp.lt.s32.totalorder %s11, 2
    // Predicated region
    $region21: #{run.15} parent=5 // pred_check
      %p231 = pneg %p230
    $region22: #{run.15} parent=5 // pred_check_branch
      %233 = sbr.rel (%p231) target = $region24
    $region23: #{run.15} parent=5 // pred_region
      // Predicated region
      $region25: #{run.15} parent=23 // pred_check
        %p234 = pneg %p52
      $region26: #{run.15} parent=23 // pred_check_branch
        %236 = sbr.rel (%p234) target = $region28
      $region27: #{run.15} parent=23 // pred_region
        %s237 = smul.u32 6, %s20
        %p238 = scmp.lt.s32.totalorder %s18, 1
        %s239 = scalar_select %p238, %s18, 1
        %p240 = scmp.lt.s32.totalorder %s237, 5
        %s241 = scalar_select %p240, %s237, 5
        %s242 = smul.addr %s241, 8
        %s243 = smul.addr %s239, 48
        %s244 = sadd.s32 %s242, %s243
        %s245 = smul.addr %s244, 4
        %s246 = scalar_lea.vmem %s0, %s245
        %s247 = smul.u32 6, %s20
      $region28: #{run.15} parent=23 // pred_fallthru
        _
      // Predicated region
      $region29: #{run.15} parent=23 // pred_check
        %p248 = pneg %p132
      $region30: #{run.15} parent=23 // pred_check_branch
        %250 = sbr.rel (%p248) target = $region32
      $region31: #{run.15} parent=23 // pred_region
        %s251 = smul.u32 2, %s19
        %p252 = scmp.lt.s32.totalorder %s18, 1
        %s253 = scalar_select %p252, %s18, 1
        %p254 = scmp.lt.s32.totalorder %s251, 1
        %s255 = scalar_select %p254, %s251, 1
        %s256 = smul.addr %s253, 2
        %s257 = sadd.s32 %s255, %s256
        %s258 = scalar_lea.vmem %s3, %s257
        %s259 = smul.u32 2, %s19
      $region32: #{run.15} parent=23 // pred_fallthru
        _
      // Predicated region
      $region33: #{run.15} parent=23 // pred_check
        %p260 = pneg %p162
      $region34: #{run.15} parent=23 // pred_check_branch
        %262 = sbr.rel (%p260) target = $region36
      $region35: #{run.15} parent=23 // pred_region
        %s263 = smul.u32 6, %s20
        %s264 = smul.u32 2, %s19
        %p265 = scmp.lt.s32.totalorder %s18, 1
        %s266 = scalar_select %p265, %s18, 1
        %p267 = scmp.lt.s32.totalorder %s263, 5
        %s268 = scalar_select %p267, %s263, 5
        %p269 = scmp.lt.s32.totalorder %s264, 1
        %s270 = scalar_select %p269, %s264, 1
        %s271 = smul.addr %s268, 2
        %s272 = sadd.s32 %s270, %s271
        %s273 = smul.addr %s266, 12
        %s274 = sadd.s32 %s272, %s273
        %s275 = smul.addr %s274, 4
        %s276 = scalar_lea.vmem %s4, %s275
        %s277 = smul.u32 6, %s20
        %s278 = smul.u32 2, %s19
      $region36: #{run.15} parent=23 // pred_fallthru
        _
    $region24: #{run.15} parent=5 // pred_fallthru
      _
    %p279 = scmp.le.s32.totalorder 1, %s11
    %p280 = scmp.lt.s32.totalorder %s11, 3
    %p281 = pnand %p279, %p280
    %p282 = pneg %p281
    // Predicated region
    $region37: #{run.15} parent=5 // pred_check
      _
    $region38: #{run.15} parent=5 // pred_check_branch
      %284 = sbr.rel (%p281) target = $region40
    $region39: #{run.15} parent=5 // pred_region
      %s285 = ssub.s32 %s11, 1
      %s286 = smul.u32 6, %s23
      %p287 = scmp.lt.s32.totalorder %s21, 1
      %s288 = scalar_select %p287, %s21, 1
      %p289 = scmp.lt.s32.totalorder %s286, 5
      %s290 = scalar_select %p289, %s286, 5
      %s291 = smul.addr %s290, 8
      %s292 = smul.addr %s288, 48
      %s293 = sadd.s32 %s291, %s292
      %s294 = smul.addr %s293, 4
      %s295 = scalar_lea.vmem %s0, %s294
      %p296 = pneg %p58
      %p297 = pneg %p55
      %s298 = smul.u32 2, %s22
      %p299 = scmp.lt.s32.totalorder %s298, 1
      %s300 = scalar_select %p299, %s298, 1
      %s301 = smul.addr %s300, 4
      %s302 = scalar_lea.vmem %s1, %s301
      %p303 = pneg %p84
      %p304 = pneg %p81
      %s305 = smul.u32 2, %s22
      %p306 = scmp.lt.s32.totalorder %s305, 1
      %s307 = scalar_select %p306, %s305, 1
      %s308 = scalar_lea.vmem %s2, %s307
      %p309 = pneg %p110
      %p310 = pneg %p107
      %s311 = smul.u32 2, %s22
      %p312 = scmp.lt.s32.totalorder %s21, 1
      %s313 = scalar_select %p312, %s21, 1
      %p314 = scmp.lt.s32.totalorder %s311, 1
      %s315 = scalar_select %p314, %s311, 1
      %s316 = smul.addr %s313, 2
      %s317 = sadd.s32 %s315, %s316
      %s318 = scalar_lea.vmem %s3, %s317
      %p319 = pneg %p138
      %p320 = pneg %p135
      %s321 = smul.u32 6, %s23
      %s322 = smul.u32 2, %s22
      %p323 = scmp.lt.s32.totalorder %s21, 1
      %s324 = scalar_select %p323, %s21, 1
      %p325 = scmp.lt.s32.totalorder %s321, 5
      %s326 = scalar_select %p325, %s321, 5
      %p327 = scmp.lt.s32.totalorder %s322, 1
      %s328 = scalar_select %p327, %s322, 1
      %s329 = smul.addr %s326, 2
      %s330 = sadd.s32 %s328, %s329
      %s331 = smul.addr %s324, 12
      %s332 = sadd.s32 %s330, %s331
      %s333 = smul.addr %s332, 4
      %s334 = scalar_lea.vmem %s4, %s333
      %p335 = pneg %p168
      %p336 = pneg %p165
      %p337 = pneg %p198
      %p338 = pneg %p195
      %s339 = smul.u32 6, %s23
      %s340 = smul.u32 2, %s22
      %p341 = scmp.lt.s32.totalorder %s21, 1
      %s342 = scalar_select %p341, %s21, 1
      %p343 = scmp.lt.s32.totalorder %s339, 5
      %s344 = scalar_select %p343, %s339, 5
      %p345 = scmp.lt.s32.totalorder %s340, 1
      %s346 = scalar_select %p345, %s340, 1
      %s347 = smul.addr %s344, 2
      %s348 = sadd.s32 %s346, %s347
      %s349 = smul.addr %s342, 12
      %s350 = sadd.s32 %s348, %s349
      %s351 = smul.addr %s350, 4
      %s352 = scalar_lea.vmem %s5, %s351
      %s353 = smul.u32 6, %s23
      %p354 = scmp.lt.s32.totalorder %s21, 1
      %s355 = scalar_select %p354, %s21, 1
      %p356 = scmp.lt.s32.totalorder %s353, 5
      %s357 = scalar_select %p356, %s353, 5
      %s358 = smul.addr %s357, 8
      %s359 = smul.addr %s355, 48
      %s360 = sadd.s32 %s358, %s359
      %s361 = smul.addr %s360, 4
      %s362 = scalar_lea.vmem %s0, %s361
      %s363 = smul.u32 6, %s23
      %s364 = smul.u32 2, %s22
      %p365 = scmp.lt.s32.totalorder %s364, 1
      %s366 = scalar_select %p365, %s364, 1
      %s367 = smul.addr %s366, 4
      %s368 = scalar_lea.vmem %s1, %s367
      %s369 = smul.u32 2, %s22
      %s370 = smul.u32 2, %s22
      %p371 = scmp.lt.s32.totalorder %s370, 1
      %s372 = scalar_select %p371, %s370, 1
      %s373 = scalar_lea.vmem %s2, %s372
      %s374 = smul.u32 2, %s22
      %s375 = smul.u32 2, %s22
      %p376 = scmp.lt.s32.totalorder %s21, 1
      %s377 = scalar_select %p376, %s21, 1
      %p378 = scmp.lt.s32.totalorder %s375, 1
      %s379 = scalar_select %p378, %s375, 1
      %s380 = smul.addr %s377, 2
      %s381 = sadd.s32 %s379, %s380
      %s382 = scalar_lea.vmem %s3, %s381
      %s383 = smul.u32 2, %s22
      %s384 = smul.u32 6, %s23
      %s385 = smul.u32 2, %s22
      %p386 = scmp.lt.s32.totalorder %s21, 1
      %s387 = scalar_select %p386, %s21, 1
      %p388 = scmp.lt.s32.totalorder %s384, 5
      %s389 = scalar_select %p388, %s384, 5
      %p390 = scmp.lt.s32.totalorder %s385, 1
      %s391 = scalar_select %p390, %s385, 1
      %s392 = smul.addr %s389, 2
      %s393 = sadd.s32 %s391, %s392
      %s394 = smul.addr %s387, 12
      %s395 = sadd.s32 %s393, %s394
      %s396 = smul.addr %s395, 4
      %s397 = scalar_lea.vmem %s4, %s396
      %s398 = smul.u32 6, %s23
      %s399 = smul.u32 2, %s22
      %s400 = smul.u32 6, %s23
      %s401 = smul.u32 2, %s22
      %p402 = scmp.lt.s32.totalorder %s21, 1
      %s403 = scalar_select %p402, %s21, 1
      %p404 = scmp.lt.s32.totalorder %s400, 5
      %s405 = scalar_select %p404, %s400, 5
      %p406 = scmp.lt.s32.totalorder %s401, 1
      %s407 = scalar_select %p406, %s401, 1
      %s408 = smul.addr %s405, 2
      %s409 = sadd.s32 %s407, %s408
      %s410 = smul.addr %s403, 12
      %s411 = sadd.s32 %s409, %s410
      %s412 = smul.addr %s411, 4
      %s413 = scalar_lea.vmem %s5, %s412
      %s414 = smul.u32 6, %s23
      %s415 = smul.u32 2, %s22
      %v416 = vld [vmem:[%s362] sm:$0xff]
      %v417 = vld [vmem:[%s362 + $0x8] sm:$0xff]
      %v418 = vld [vmem:[%s362 + $0x10] sm:$0xff]
      %v419 = vld [vmem:[%s362 + $0x18] sm:$0xff]
      %v420 = vld [vmem:[%s362 + $0x20] sm:$0xff]
      %v421 = vld [vmem:[%s362 + $0x28] sm:$0xff]
      %v422 = vld [vmem:[%s362 + $0x30] sm:$0xff]
      %v423 = vld [vmem:[%s362 + $0x38] sm:$0xff]
      %v424 = vld [vmem:[%s362 + $0x40] sm:$0xff]
      %v425 = vld [vmem:[%s362 + $0x48] sm:$0xff]
      %v426 = vld [vmem:[%s362 + $0x50] sm:$0xff]
      %v427 = vld [vmem:[%s362 + $0x58] sm:$0xff]
      %v428 = vld [vmem:[%s362 + $0x60] sm:$0xff]
      %v429 = vld [vmem:[%s362 + $0x68] sm:$0xff]
      %v430 = vld [vmem:[%s362 + $0x70] sm:$0xff]
      %v431 = vld [vmem:[%s362 + $0x78] sm:$0xff]
      %v432 = vld [vmem:[%s362 + $0x80] sm:$0xff]
      %v433 = vld [vmem:[%s362 + $0x88] sm:$0xff]
      %v434 = vld [vmem:[%s362 + $0x90] sm:$0xff]
      %v435 = vld [vmem:[%s362 + $0x98] sm:$0xff]
      %v436 = vld [vmem:[%s362 + $0xa0] sm:$0xff]
      %v437 = vld [vmem:[%s362 + $0xa8] sm:$0xff]
      %v438 = vld [vmem:[%s362 + $0xb0] sm:$0xff]
      %v439 = vld [vmem:[%s362 + $0xb8] sm:$0xff]
      %v440 = vld [vmem:[%s368] sm:$0xff]
      %v441 = vld [vmem:[%s368 + $0x8] sm:$0xff]
      %v442 = vld [vmem:[%s368 + $0x10] sm:$0xff]
      %v443 = vld [vmem:[%s368 + $0x18] sm:$0xff]
      %v444 = vld [vmem:[%s368 + $0x20] sm:$0xff]
      %v445 = vld [vmem:[%s368 + $0x28] sm:$0xff]
      %v446 = vld [vmem:[%s368 + $0x30] sm:$0xff]
      %v447 = vld [vmem:[%s368 + $0x38] sm:$0xff]
      %v448 = vld [vmem:[%s368 + $0x40] sm:$0xff]
      %v449 = vld [vmem:[%s368 + $0x48] sm:$0xff]
      %v450 = vld [vmem:[%s368 + $0x50] sm:$0xff]
      %v451 = vld [vmem:[%s368 + $0x58] sm:$0xff]
      %v452 = vld [vmem:[%s368 + $0x60] sm:$0xff]
      %v453 = vld [vmem:[%s368 + $0x68] sm:$0xff]
      %v454 = vld [vmem:[%s368 + $0x70] sm:$0xff]
      %v455 = vld [vmem:[%s368 + $0x78] sm:$0xff]
      %v456 = vld [vmem:[%s368 + $0x80] sm:$0xff]
      %v457 = vld [vmem:[%s368 + $0x88] sm:$0xff]
      %v458 = vld [vmem:[%s368 + $0x90] sm:$0xff]
      %v459 = vld [vmem:[%s368 + $0x98] sm:$0xff]
      %v460 = vld [vmem:[%s368 + $0xa0] sm:$0xff]
      %v461 = vld [vmem:[%s368 + $0xa8] sm:$0xff]
      %v462 = vld [vmem:[%s368 + $0xb0] sm:$0xff]
      %v463 = vld [vmem:[%s368 + $0xb8] sm:$0xff]
      %v464 = vld [vmem:[%s368 + $0xc0] sm:$0xff]
      %v465 = vld [vmem:[%s368 + $0xc8] sm:$0xff]
      %v466 = vld [vmem:[%s368 + $0xd0] sm:$0xff]
      %v467 = vld [vmem:[%s368 + $0xd8] sm:$0xff]
      %v468 = vld [vmem:[%s368 + $0xe0] sm:$0xff]
      %v469 = vld [vmem:[%s368 + $0xe8] sm:$0xff]
      %v470 = vld [vmem:[%s368 + $0xf0] sm:$0xff]
      %v471 = vld [vmem:[%s368 + $0xf8] sm:$0xff]
      %v472 = vld [vmem:[%s368 + $0x100] sm:$0xff]
      %v473 = vld [vmem:[%s368 + $0x108] sm:$0xff]
      %v474 = vld [vmem:[%s368 + $0x110] sm:$0xff]
      %v475 = vld [vmem:[%s368 + $0x118] sm:$0xff]
      %v476 = vld [vmem:[%s368 + $0x120] sm:$0xff]
      %v477 = vld [vmem:[%s368 + $0x128] sm:$0xff]
      %v478 = vld [vmem:[%s368 + $0x130] sm:$0xff]
      %v479 = vld [vmem:[%s368 + $0x138] sm:$0xff]
      %v480 = vld [vmem:[%s368 + $0x140] sm:$0xff]
      %v481 = vld [vmem:[%s368 + $0x148] sm:$0xff]
      %v482 = vld [vmem:[%s368 + $0x150] sm:$0xff]
      %v483 = vld [vmem:[%s368 + $0x158] sm:$0xff]
      %v484 = vld [vmem:[%s368 + $0x160] sm:$0xff]
      %v485 = vld [vmem:[%s368 + $0x168] sm:$0xff]
      %v486 = vld [vmem:[%s368 + $0x170] sm:$0xff]
      %v487 = vld [vmem:[%s368 + $0x178] sm:$0xff]
      %v488 = vld [vmem:[%s368 + $0x180] sm:$0xff]
      %v489 = vld [vmem:[%s368 + $0x188] sm:$0xff]
      %v490 = vld [vmem:[%s368 + $0x190] sm:$0xff]
      %v491 = vld [vmem:[%s368 + $0x198] sm:$0xff]
      %v492 = vld [vmem:[%s368 + $0x1a0] sm:$0xff]
      %v493 = vld [vmem:[%s368 + $0x1a8] sm:$0xff]
      %v494 = vld [vmem:[%s368 + $0x1b0] sm:$0xff]
      %v495 = vld [vmem:[%s368 + $0x1b8] sm:$0xff]
      %v496 = vld [vmem:[%s368 + $0x1c0] sm:$0xff]
      %v497 = vld [vmem:[%s368 + $0x1c8] sm:$0xff]
      %v498 = vld [vmem:[%s368 + $0x1d0] sm:$0xff]
      %v499 = vld [vmem:[%s368 + $0x1d8] sm:$0xff]
      %v500 = vld [vmem:[%s368 + $0x1e0] sm:$0xff]
      %v501 = vld [vmem:[%s368 + $0x1e8] sm:$0xff]
      %v502 = vld [vmem:[%s368 + $0x1f0] sm:$0xff]
      %v503 = vld [vmem:[%s368 + $0x1f8] sm:$0xff]
      %v504 = vld [vmem:[%s368 + $0x200] sm:$0xff]
      %v505 = vld [vmem:[%s368 + $0x208] sm:$0xff]
      %v506 = vld [vmem:[%s368 + $0x210] sm:$0xff]
      %v507 = vld [vmem:[%s368 + $0x218] sm:$0xff]
      %v508 = vld [vmem:[%s368 + $0x220] sm:$0xff]
      %v509 = vld [vmem:[%s368 + $0x228] sm:$0xff]
      %v510 = vld [vmem:[%s368 + $0x230] sm:$0xff]
      %v511 = vld [vmem:[%s368 + $0x238] sm:$0xff]
      %v512 = vld [vmem:[%s368 + $0x240] sm:$0xff]
      %v513 = vld [vmem:[%s368 + $0x248] sm:$0xff]
      %v514 = vld [vmem:[%s368 + $0x250] sm:$0xff]
      %v515 = vld [vmem:[%s368 + $0x258] sm:$0xff]
      %v516 = vld [vmem:[%s368 + $0x260] sm:$0xff]
      %v517 = vld [vmem:[%s368 + $0x268] sm:$0xff]
      %v518 = vld [vmem:[%s368 + $0x270] sm:$0xff]
      %v519 = vld [vmem:[%s368 + $0x278] sm:$0xff]
      %v520 = vld [vmem:[%s368 + $0x280] sm:$0xff]
      %v521 = vld [vmem:[%s368 + $0x288] sm:$0xff]
      %v522 = vld [vmem:[%s368 + $0x290] sm:$0xff]
      %v523 = vld [vmem:[%s368 + $0x298] sm:$0xff]
      %v524 = vld [vmem:[%s368 + $0x2a0] sm:$0xff]
      %v525 = vld [vmem:[%s368 + $0x2a8] sm:$0xff]
      %v526 = vld [vmem:[%s368 + $0x2b0] sm:$0xff]
      %v527 = vld [vmem:[%s368 + $0x2b8] sm:$0xff]
      %v528 = vld [vmem:[%s368 + $0x2c0] sm:$0xff]
      %v529 = vld [vmem:[%s368 + $0x2c8] sm:$0xff]
      %v530 = vld [vmem:[%s368 + $0x2d0] sm:$0xff]
      %v531 = vld [vmem:[%s368 + $0x2d8] sm:$0xff]
      %v532 = vld [vmem:[%s368 + $0x2e0] sm:$0xff]
      %v533 = vld [vmem:[%s368 + $0x2e8] sm:$0xff]
      %v534 = vld [vmem:[%s368 + $0x2f0] sm:$0xff]
      %v535 = vld [vmem:[%s368 + $0x2f8] sm:$0xff]
      %v536 = vld [vmem:[%s368 + $0x300] sm:$0xff]
      %v537 = vld [vmem:[%s368 + $0x308] sm:$0xff]
      %v538 = vld [vmem:[%s368 + $0x310] sm:$0xff]
      %v539 = vld [vmem:[%s368 + $0x318] sm:$0xff]
      %v540 = vld [vmem:[%s368 + $0x320] sm:$0xff]
      %v541 = vld [vmem:[%s368 + $0x328] sm:$0xff]
      %v542 = vld [vmem:[%s368 + $0x330] sm:$0xff]
      %v543 = vld [vmem:[%s368 + $0x338] sm:$0xff]
      %v544 = vld [vmem:[%s368 + $0x340] sm:$0xff]
      %v545 = vld [vmem:[%s368 + $0x348] sm:$0xff]
      %v546 = vld [vmem:[%s368 + $0x350] sm:$0xff]
      %v547 = vld [vmem:[%s368 + $0x358] sm:$0xff]
      %v548 = vld [vmem:[%s368 + $0x360] sm:$0xff]
      %v549 = vld [vmem:[%s368 + $0x368] sm:$0xff]
      %v550 = vld [vmem:[%s368 + $0x370] sm:$0xff]
      %v551 = vld [vmem:[%s368 + $0x378] sm:$0xff]
      %v552 = vld [vmem:[%s368 + $0x380] sm:$0xff]
      %v553 = vld [vmem:[%s368 + $0x388] sm:$0xff]
      %v554 = vld [vmem:[%s368 + $0x390] sm:$0xff]
      %v555 = vld [vmem:[%s368 + $0x398] sm:$0xff]
      %v556 = vld [vmem:[%s368 + $0x3a0] sm:$0xff]
      %v557 = vld [vmem:[%s368 + $0x3a8] sm:$0xff]
      %v558 = vld [vmem:[%s368 + $0x3b0] sm:$0xff]
      %v559 = vld [vmem:[%s368 + $0x3b8] sm:$0xff]
      %v560 = vld [vmem:[%s368 + $0x3c0] sm:$0xff]
      %v561 = vld [vmem:[%s368 + $0x3c8] sm:$0xff]
      %v562 = vld [vmem:[%s368 + $0x3d0] sm:$0xff]
      %v563 = vld [vmem:[%s368 + $0x3d8] sm:$0xff]
      %v564 = vld [vmem:[%s368 + $0x3e0] sm:$0xff]
      %v565 = vld [vmem:[%s368 + $0x3e8] sm:$0xff]
      %v566 = vld [vmem:[%s368 + $0x3f0] sm:$0xff]
      %v567 = vld [vmem:[%s368 + $0x3f8] sm:$0xff]
      %v568 = vld [vmem:[%s373] sm:$0x3]
      %v570 = vlaneseq
      %v571 = vshrl.u32 %v570, 7
      %v572 = vsub.s32 0, %v571
      %v573 = vrot.slane %v568, %v572
      %v574 = vlaneseq
      %v575 = vshrl.u32 %v574, 7
      %v576 = vsub.s32 1, %v575
      %v577 = vrot.slane %v568, %v576
      %v604 = vunpack.c.l.b16 %v416
      %v605 = vunpack.c.h.b16 %v416
      %v606 = vunpack.c.l.b16 %v417
      %v607 = vunpack.c.h.b16 %v417
      %v608 = vunpack.c.l.b16 %v418
      %v609 = vunpack.c.h.b16 %v418
      %v610 = vunpack.c.l.b16 %v419
      %v611 = vunpack.c.h.b16 %v419
      %v612 = vunpack.c.l.b16 %v420
      %v613 = vunpack.c.h.b16 %v420
      %v614 = vunpack.c.l.b16 %v421
      %v615 = vunpack.c.h.b16 %v421
      %v616 = vunpack.c.l.b16 %v422
      %v617 = vunpack.c.h.b16 %v422
      %v618 = vunpack.c.l.b16 %v423
      %v619 = vunpack.c.h.b16 %v423
      %v620 = vunpack.c.l.b16 %v424
      %v621 = vunpack.c.h.b16 %v424
      %v622 = vunpack.c.l.b16 %v425
      %v623 = vunpack.c.h.b16 %v425
      %v624 = vunpack.c.l.b16 %v426
      %v625 = vunpack.c.h.b16 %v426
      %v626 = vunpack.c.l.b16 %v427
      %v627 = vunpack.c.h.b16 %v427
      %v628 = vunpack.c.l.b16 %v428
      %v629 = vunpack.c.h.b16 %v428
      %v630 = vunpack.c.l.b16 %v429
      %v631 = vunpack.c.h.b16 %v429
      %v632 = vunpack.c.l.b16 %v430
      %v633 = vunpack.c.h.b16 %v430
      %v634 = vunpack.c.l.b16 %v431
      %v635 = vunpack.c.h.b16 %v431
      %v636 = vunpack.c.l.b16 %v432
      %v637 = vunpack.c.h.b16 %v432
      %v638 = vunpack.c.l.b16 %v433
      %v639 = vunpack.c.h.b16 %v433
      %v640 = vunpack.c.l.b16 %v434
      %v641 = vunpack.c.h.b16 %v434
      %v642 = vunpack.c.l.b16 %v435
      %v643 = vunpack.c.h.b16 %v435
      %v644 = vunpack.c.l.b16 %v436
      %v645 = vunpack.c.h.b16 %v436
      %v646 = vunpack.c.l.b16 %v437
      %v647 = vunpack.c.h.b16 %v437
      %v648 = vunpack.c.l.b16 %v438
      %v649 = vunpack.c.h.b16 %v438
      %v650 = vunpack.c.l.b16 %v439
      %v651 = vunpack.c.h.b16 %v439
      %v652 = vpack.c.b16 %v612, %v604
      %v653 = vpack.c.b16 %v613, %v605
      %v654 = vpack.c.b16 %v614, %v606
      %v655 = vpack.c.b16 %v615, %v607
      %v656 = vpack.c.b16 %v616, %v608
      %v657 = vpack.c.b16 %v617, %v609
      %v658 = vpack.c.b16 %v618, %v610
      %v659 = vpack.c.b16 %v619, %v611
      %v660 = vpack.c.b16 %v628, %v620
      %v661 = vpack.c.b16 %v629, %v621
      %v662 = vpack.c.b16 %v630, %v622
      %v663 = vpack.c.b16 %v631, %v623
      %v664 = vpack.c.b16 %v632, %v624
      %v665 = vpack.c.b16 %v633, %v625
      %v666 = vpack.c.b16 %v634, %v626
      %v667 = vpack.c.b16 %v635, %v627
      %v668 = vpack.c.b16 %v644, %v636
      %v669 = vpack.c.b16 %v645, %v637
      %v670 = vpack.c.b16 %v646, %v638
      %v671 = vpack.c.b16 %v647, %v639
      %v672 = vpack.c.b16 %v648, %v640
      %v673 = vpack.c.b16 %v649, %v641
      %v674 = vpack.c.b16 %v650, %v642
      %v675 = vpack.c.b16 %v651, %v643
      %v828 = vunpack.c.l.b16 %v440
      %v829 = vunpack.c.h.b16 %v440
      %v830 = vunpack.c.l.b16 %v441
      %v831 = vunpack.c.h.b16 %v441
      %v832 = vunpack.c.l.b16 %v442
      %v833 = vunpack.c.h.b16 %v442
      %v834 = vunpack.c.l.b16 %v443
      %v835 = vunpack.c.h.b16 %v443
      %v836 = vunpack.c.l.b16 %v444
      %v837 = vunpack.c.h.b16 %v444
      %v838 = vunpack.c.l.b16 %v445
      %v839 = vunpack.c.h.b16 %v445
      %v840 = vunpack.c.l.b16 %v446
      %v841 = vunpack.c.h.b16 %v446
      %v842 = vunpack.c.l.b16 %v447
      %v843 = vunpack.c.h.b16 %v447
      %v844 = vunpack.c.l.b16 %v448
      %v845 = vunpack.c.h.b16 %v448
      %v846 = vunpack.c.l.b16 %v449
      %v847 = vunpack.c.h.b16 %v449
      %v848 = vunpack.c.l.b16 %v450
      %v849 = vunpack.c.h.b16 %v450
      %v850 = vunpack.c.l.b16 %v451
      %v851 = vunpack.c.h.b16 %v451
      %v852 = vunpack.c.l.b16 %v452
      %v853 = vunpack.c.h.b16 %v452
      %v854 = vunpack.c.l.b16 %v453
      %v855 = vunpack.c.h.b16 %v453
      %v856 = vunpack.c.l.b16 %v454
      %v857 = vunpack.c.h.b16 %v454
      %v858 = vunpack.c.l.b16 %v455
      %v859 = vunpack.c.h.b16 %v455
      %v860 = vunpack.c.l.b16 %v456
      %v861 = vunpack.c.h.b16 %v456
      %v862 = vunpack.c.l.b16 %v457
      %v863 = vunpack.c.h.b16 %v457
      %v864 = vunpack.c.l.b16 %v458
      %v865 = vunpack.c.h.b16 %v458
      %v866 = vunpack.c.l.b16 %v459
      %v867 = vunpack.c.h.b16 %v459
      %v868 = vunpack.c.l.b16 %v460
      %v869 = vunpack.c.h.b16 %v460
      %v870 = vunpack.c.l.b16 %v461
      %v871 = vunpack.c.h.b16 %v461
      %v872 = vunpack.c.l.b16 %v462
      %v873 = vunpack.c.h.b16 %v462
      %v874 = vunpack.c.l.b16 %v463
      %v875 = vunpack.c.h.b16 %v463
      %v876 = vunpack.c.l.b16 %v464
      %v877 = vunpack.c.h.b16 %v464
      %v878 = vunpack.c.l.b16 %v465
      %v879 = vunpack.c.h.b16 %v465
      %v880 = vunpack.c.l.b16 %v466
      %v881 = vunpack.c.h.b16 %v466
      %v882 = vunpack.c.l.b16 %v467
      %v883 = vunpack.c.h.b16 %v467
      %v884 = vunpack.c.l.b16 %v468
      %v885 = vunpack.c.h.b16 %v468
      %v886 = vunpack.c.l.b16 %v469
      %v887 = vunpack.c.h.b16 %v469
      %v888 = vunpack.c.l.b16 %v470
      %v889 = vunpack.c.h.b16 %v470
      %v890 = vunpack.c.l.b16 %v471
      %v891 = vunpack.c.h.b16 %v471
      %v892 = vunpack.c.l.b16 %v472
      %v893 = vunpack.c.h.b16 %v472
      %v894 = vunpack.c.l.b16 %v473
      %v895 = vunpack.c.h.b16 %v473
      %v896 = vunpack.c.l.b16 %v474
      %v897 = vunpack.c.h.b16 %v474
      %v898 = vunpack.c.l.b16 %v475
      %v899 = vunpack.c.h.b16 %v475
      %v900 = vunpack.c.l.b16 %v476
      %v901 = vunpack.c.h.b16 %v476
      %v902 = vunpack.c.l.b16 %v477
      %v903 = vunpack.c.h.b16 %v477
      %v904 = vunpack.c.l.b16 %v478
      %v905 = vunpack.c.h.b16 %v478
      %v906 = vunpack.c.l.b16 %v479
      %v907 = vunpack.c.h.b16 %v479
      %v908 = vunpack.c.l.b16 %v480
      %v909 = vunpack.c.h.b16 %v480
      %v910 = vunpack.c.l.b16 %v481
      %v911 = vunpack.c.h.b16 %v481
      %v912 = vunpack.c.l.b16 %v482
      %v913 = vunpack.c.h.b16 %v482
      %v914 = vunpack.c.l.b16 %v483
      %v915 = vunpack.c.h.b16 %v483
      %v916 = vunpack.c.l.b16 %v484
      %v917 = vunpack.c.h.b16 %v484
      %v918 = vunpack.c.l.b16 %v485
      %v919 = vunpack.c.h.b16 %v485
      %v920 = vunpack.c.l.b16 %v486
      %v921 = vunpack.c.h.b16 %v486
      %v922 = vunpack.c.l.b16 %v487
      %v923 = vunpack.c.h.b16 %v487
      %v924 = vunpack.c.l.b16 %v488
      %v925 = vunpack.c.h.b16 %v488
      %v926 = vunpack.c.l.b16 %v489
      %v927 = vunpack.c.h.b16 %v489
      %v928 = vunpack.c.l.b16 %v490
      %v929 = vunpack.c.h.b16 %v490
      %v930 = vunpack.c.l.b16 %v491
      %v931 = vunpack.c.h.b16 %v491
      %v932 = vunpack.c.l.b16 %v492
      %v933 = vunpack.c.h.b16 %v492
      %v934 = vunpack.c.l.b16 %v493
      %v935 = vunpack.c.h.b16 %v493
      %v936 = vunpack.c.l.b16 %v494
      %v937 = vunpack.c.h.b16 %v494
      %v938 = vunpack.c.l.b16 %v495
      %v939 = vunpack.c.h.b16 %v495
      %v940 = vunpack.c.l.b16 %v496
      %v941 = vunpack.c.h.b16 %v496
      %v942 = vunpack.c.l.b16 %v497
      %v943 = vunpack.c.h.b16 %v497
      %v944 = vunpack.c.l.b16 %v498
      %v945 = vunpack.c.h.b16 %v498
      %v946 = vunpack.c.l.b16 %v499
      %v947 = vunpack.c.h.b16 %v499
      %v948 = vunpack.c.l.b16 %v500
      %v949 = vunpack.c.h.b16 %v500
      %v950 = vunpack.c.l.b16 %v501
      %v951 = vunpack.c.h.b16 %v501
      %v952 = vunpack.c.l.b16 %v502
      %v953 = vunpack.c.h.b16 %v502
      %v954 = vunpack.c.l.b16 %v503
      %v955 = vunpack.c.h.b16 %v503
      %v956 = vunpack.c.l.b16 %v504
      %v957 = vunpack.c.h.b16 %v504
      %v958 = vunpack.c.l.b16 %v505
      %v959 = vunpack.c.h.b16 %v505
      %v960 = vunpack.c.l.b16 %v506
      %v961 = vunpack.c.h.b16 %v506
      %v962 = vunpack.c.l.b16 %v507
      %v963 = vunpack.c.h.b16 %v507
      %v964 = vunpack.c.l.b16 %v508
      %v965 = vunpack.c.h.b16 %v508
      %v966 = vunpack.c.l.b16 %v509
      %v967 = vunpack.c.h.b16 %v509
      %v968 = vunpack.c.l.b16 %v510
      %v969 = vunpack.c.h.b16 %v510
      %v970 = vunpack.c.l.b16 %v511
      %v971 = vunpack.c.h.b16 %v511
      %v972 = vunpack.c.l.b16 %v512
      %v973 = vunpack.c.h.b16 %v512
      %v974 = vunpack.c.l.b16 %v513
      %v975 = vunpack.c.h.b16 %v513
      %v976 = vunpack.c.l.b16 %v514
      %v977 = vunpack.c.h.b16 %v514
      %v978 = vunpack.c.l.b16 %v515
      %v979 = vunpack.c.h.b16 %v515
      %v980 = vunpack.c.l.b16 %v516
      %v981 = vunpack.c.h.b16 %v516
      %v982 = vunpack.c.l.b16 %v517
      %v983 = vunpack.c.h.b16 %v517
      %v984 = vunpack.c.l.b16 %v518
      %v985 = vunpack.c.h.b16 %v518
      %v986 = vunpack.c.l.b16 %v519
      %v987 = vunpack.c.h.b16 %v519
      %v988 = vunpack.c.l.b16 %v520
      %v989 = vunpack.c.h.b16 %v520
      %v990 = vunpack.c.l.b16 %v521
      %v991 = vunpack.c.h.b16 %v521
      %v992 = vunpack.c.l.b16 %v522
      %v993 = vunpack.c.h.b16 %v522
      %v994 = vunpack.c.l.b16 %v523
      %v995 = vunpack.c.h.b16 %v523
      %v996 = vunpack.c.l.b16 %v524
      %v997 = vunpack.c.h.b16 %v524
      %v998 = vunpack.c.l.b16 %v525
      %v999 = vunpack.c.h.b16 %v525
      %v1000 = vunpack.c.l.b16 %v526
      %v1001 = vunpack.c.h.b16 %v526
      %v1002 = vunpack.c.l.b16 %v527
      %v1003 = vunpack.c.h.b16 %v527
      %v1004 = vunpack.c.l.b16 %v528
      %v1005 = vunpack.c.h.b16 %v528
      %v1006 = vunpack.c.l.b16 %v529
      %v1007 = vunpack.c.h.b16 %v529
      %v1008 = vunpack.c.l.b16 %v530
      %v1009 = vunpack.c.h.b16 %v530
      %v1010 = vunpack.c.l.b16 %v531
      %v1011 = vunpack.c.h.b16 %v531
      %v1012 = vunpack.c.l.b16 %v532
      %v1013 = vunpack.c.h.b16 %v532
      %v1014 = vunpack.c.l.b16 %v533
      %v1015 = vunpack.c.h.b16 %v533
      %v1016 = vunpack.c.l.b16 %v534
      %v1017 = vunpack.c.h.b16 %v534
      %v1018 = vunpack.c.l.b16 %v535
      %v1019 = vunpack.c.h.b16 %v535
      %v1020 = vunpack.c.l.b16 %v536
      %v1021 = vunpack.c.h.b16 %v536
      %v1022 = vunpack.c.l.b16 %v537
      %v1023 = vunpack.c.h.b16 %v537
      %v1024 = vunpack.c.l.b16 %v538
      %v1025 = vunpack.c.h.b16 %v538
      %v1026 = vunpack.c.l.b16 %v539
      %v1027 = vunpack.c.h.b16 %v539
      %v1028 = vunpack.c.l.b16 %v540
      %v1029 = vunpack.c.h.b16 %v540
      %v1030 = vunpack.c.l.b16 %v541
      %v1031 = vunpack.c.h.b16 %v541
      %v1032 = vunpack.c.l.b16 %v542
      %v1033 = vunpack.c.h.b16 %v542
      %v1034 = vunpack.c.l.b16 %v543
      %v1035 = vunpack.c.h.b16 %v543
      %v1036 = vunpack.c.l.b16 %v544
      %v1037 = vunpack.c.h.b16 %v544
      %v1038 = vunpack.c.l.b16 %v545
      %v1039 = vunpack.c.h.b16 %v545
      %v1040 = vunpack.c.l.b16 %v546
      %v1041 = vunpack.c.h.b16 %v546
      %v1042 = vunpack.c.l.b16 %v547
      %v1043 = vunpack.c.h.b16 %v547
      %v1044 = vunpack.c.l.b16 %v548
      %v1045 = vunpack.c.h.b16 %v548
      %v1046 = vunpack.c.l.b16 %v549
      %v1047 = vunpack.c.h.b16 %v549
      %v1048 = vunpack.c.l.b16 %v550
      %v1049 = vunpack.c.h.b16 %v550
      %v1050 = vunpack.c.l.b16 %v551
      %v1051 = vunpack.c.h.b16 %v551
      %v1052 = vunpack.c.l.b16 %v552
      %v1053 = vunpack.c.h.b16 %v552
      %v1054 = vunpack.c.l.b16 %v553
      %v1055 = vunpack.c.h.b16 %v553
      %v1056 = vunpack.c.l.b16 %v554
      %v1057 = vunpack.c.h.b16 %v554
      %v1058 = vunpack.c.l.b16 %v555
      %v1059 = vunpack.c.h.b16 %v555
      %v1060 = vunpack.c.l.b16 %v556
      %v1061 = vunpack.c.h.b16 %v556
      %v1062 = vunpack.c.l.b16 %v557
      %v1063 = vunpack.c.h.b16 %v557
      %v1064 = vunpack.c.l.b16 %v558
      %v1065 = vunpack.c.h.b16 %v558
      %v1066 = vunpack.c.l.b16 %v559
      %v1067 = vunpack.c.h.b16 %v559
      %v1068 = vunpack.c.l.b16 %v560
      %v1069 = vunpack.c.h.b16 %v560
      %v1070 = vunpack.c.l.b16 %v561
      %v1071 = vunpack.c.h.b16 %v561
      %v1072 = vunpack.c.l.b16 %v562
      %v1073 = vunpack.c.h.b16 %v562
      %v1074 = vunpack.c.l.b16 %v563
      %v1075 = vunpack.c.h.b16 %v563
      %v1076 = vunpack.c.l.b16 %v564
      %v1077 = vunpack.c.h.b16 %v564
      %v1078 = vunpack.c.l.b16 %v565
      %v1079 = vunpack.c.h.b16 %v565
      %v1080 = vunpack.c.l.b16 %v566
      %v1081 = vunpack.c.h.b16 %v566
      %v1082 = vunpack.c.l.b16 %v567
      %v1083 = vunpack.c.h.b16 %v567
      %v1084 = vpack.c.b16 %v830, %v828
      %v1085 = vpack.c.b16 %v831, %v829
      %v1086 = vpack.c.b16 %v834, %v832
      %v1087 = vpack.c.b16 %v835, %v833
      %v1088 = vpack.c.b16 %v838, %v836
      %v1089 = vpack.c.b16 %v839, %v837
      %v1090 = vpack.c.b16 %v842, %v840
      %v1091 = vpack.c.b16 %v843, %v841
      %v1092 = vpack.c.b16 %v846, %v844
      %v1093 = vpack.c.b16 %v847, %v845
      %v1094 = vpack.c.b16 %v850, %v848
      %v1095 = vpack.c.b16 %v851, %v849
      %v1096 = vpack.c.b16 %v854, %v852
      %v1097 = vpack.c.b16 %v855, %v853
      %v1098 = vpack.c.b16 %v858, %v856
      %v1099 = vpack.c.b16 %v859, %v857
      %v1100 = vpack.c.b16 %v862, %v860
      %v1101 = vpack.c.b16 %v863, %v861
      %v1102 = vpack.c.b16 %v866, %v864
      %v1103 = vpack.c.b16 %v867, %v865
      %v1104 = vpack.c.b16 %v870, %v868
      %v1105 = vpack.c.b16 %v871, %v869
      %v1106 = vpack.c.b16 %v874, %v872
      %v1107 = vpack.c.b16 %v875, %v873
      %v1108 = vpack.c.b16 %v878, %v876
      %v1109 = vpack.c.b16 %v879, %v877
      %v1110 = vpack.c.b16 %v882, %v880
      %v1111 = vpack.c.b16 %v883, %v881
      %v1112 = vpack.c.b16 %v886, %v884
      %v1113 = vpack.c.b16 %v887, %v885
      %v1114 = vpack.c.b16 %v890, %v888
      %v1115 = vpack.c.b16 %v891, %v889
      %v1116 = vpack.c.b16 %v894, %v892
      %v1117 = vpack.c.b16 %v895, %v893
      %v1118 = vpack.c.b16 %v898, %v896
      %v1119 = vpack.c.b16 %v899, %v897
      %v1120 = vpack.c.b16 %v902, %v900
      %v1121 = vpack.c.b16 %v903, %v901
      %v1122 = vpack.c.b16 %v906, %v904
      %v1123 = vpack.c.b16 %v907, %v905
      %v1124 = vpack.c.b16 %v910, %v908
      %v1125 = vpack.c.b16 %v911, %v909
      %v1126 = vpack.c.b16 %v914, %v912
      %v1127 = vpack.c.b16 %v915, %v913
      %v1128 = vpack.c.b16 %v918, %v916
      %v1129 = vpack.c.b16 %v919, %v917
      %v1130 = vpack.c.b16 %v922, %v920
      %v1131 = vpack.c.b16 %v923, %v921
      %v1132 = vpack.c.b16 %v926, %v924
      %v1133 = vpack.c.b16 %v927, %v925
      %v1134 = vpack.c.b16 %v930, %v928
      %v1135 = vpack.c.b16 %v931, %v929
      %v1136 = vpack.c.b16 %v934, %v932
      %v1137 = vpack.c.b16 %v935, %v933
      %v1138 = vpack.c.b16 %v938, %v936
      %v1139 = vpack.c.b16 %v939, %v937
      %v1140 = vpack.c.b16 %v942, %v940
      %v1141 = vpack.c.b16 %v943, %v941
      %v1142 = vpack.c.b16 %v946, %v944
      %v1143 = vpack.c.b16 %v947, %v945
      %v1144 = vpack.c.b16 %v950, %v948
      %v1145 = vpack.c.b16 %v951, %v949
      %v1146 = vpack.c.b16 %v954, %v952
      %v1147 = vpack.c.b16 %v955, %v953
      %v1148 = vpack.c.b16 %v958, %v956
      %v1149 = vpack.c.b16 %v959, %v957
      %v1150 = vpack.c.b16 %v962, %v960
      %v1151 = vpack.c.b16 %v963, %v961
      %v1152 = vpack.c.b16 %v966, %v964
      %v1153 = vpack.c.b16 %v967, %v965
      %v1154 = vpack.c.b16 %v970, %v968
      %v1155 = vpack.c.b16 %v971, %v969
      %v1156 = vpack.c.b16 %v974, %v972
      %v1157 = vpack.c.b16 %v975, %v973
      %v1158 = vpack.c.b16 %v978, %v976
      %v1159 = vpack.c.b16 %v979, %v977
      %v1160 = vpack.c.b16 %v982, %v980
      %v1161 = vpack.c.b16 %v983, %v981
      %v1162 = vpack.c.b16 %v986, %v984
      %v1163 = vpack.c.b16 %v987, %v985
      %v1164 = vpack.c.b16 %v990, %v988
      %v1165 = vpack.c.b16 %v991, %v989
      %v1166 = vpack.c.b16 %v994, %v992
      %v1167 = vpack.c.b16 %v995, %v993
      %v1168 = vpack.c.b16 %v998, %v996
      %v1169 = vpack.c.b16 %v999, %v997
      %v1170 = vpack.c.b16 %v1002, %v1000
      %v1171 = vpack.c.b16 %v1003, %v1001
      %v1172 = vpack.c.b16 %v1006, %v1004
      %v1173 = vpack.c.b16 %v1007, %v1005
      %v1174 = vpack.c.b16 %v1010, %v1008
      %v1175 = vpack.c.b16 %v1011, %v1009
      %v1176 = vpack.c.b16 %v1014, %v1012
      %v1177 = vpack.c.b16 %v1015, %v1013
      %v1178 = vpack.c.b16 %v1018, %v1016
      %v1179 = vpack.c.b16 %v1019, %v1017
      %v1180 = vpack.c.b16 %v1022, %v1020
      %v1181 = vpack.c.b16 %v1023, %v1021
      %v1182 = vpack.c.b16 %v1026, %v1024
      %v1183 = vpack.c.b16 %v1027, %v1025
      %v1184 = vpack.c.b16 %v1030, %v1028
      %v1185 = vpack.c.b16 %v1031, %v1029
      %v1186 = vpack.c.b16 %v1034, %v1032
      %v1187 = vpack.c.b16 %v1035, %v1033
      %v1188 = vpack.c.b16 %v1038, %v1036
      %v1189 = vpack.c.b16 %v1039, %v1037
      %v1190 = vpack.c.b16 %v1042, %v1040
      %v1191 = vpack.c.b16 %v1043, %v1041
      %v1192 = vpack.c.b16 %v1046, %v1044
      %v1193 = vpack.c.b16 %v1047, %v1045
      %v1194 = vpack.c.b16 %v1050, %v1048
      %v1195 = vpack.c.b16 %v1051, %v1049
      %v1196 = vpack.c.b16 %v1054, %v1052
      %v1197 = vpack.c.b16 %v1055, %v1053
      %v1198 = vpack.c.b16 %v1058, %v1056
      %v1199 = vpack.c.b16 %v1059, %v1057
      %v1200 = vpack.c.b16 %v1062, %v1060
      %v1201 = vpack.c.b16 %v1063, %v1061
      %v1202 = vpack.c.b16 %v1066, %v1064
      %v1203 = vpack.c.b16 %v1067, %v1065
      %v1204 = vpack.c.b16 %v1070, %v1068
      %v1205 = vpack.c.b16 %v1071, %v1069
      %v1206 = vpack.c.b16 %v1074, %v1072
      %v1207 = vpack.c.b16 %v1075, %v1073
      %v1208 = vpack.c.b16 %v1078, %v1076
      %v1209 = vpack.c.b16 %v1079, %v1077
      %v1210 = vpack.c.b16 %v1082, %v1080
      %v1211 = vpack.c.b16 %v1083, %v1081
      %1340 = vmatprep.subr.bf16.mxu0 %v1085
      %1341 = vmatpush1.bf16.msra.mxu0 %v1084
      %1342 = vmatprep.subr.bf16.mxu0 %v1087
      %1343 = vmatpush1.bf16.msra.mxu0 %v1086
      %1344 = vmatprep.subr.bf16.mxu0 %v1089
      %1345 = vmatpush1.bf16.msra.mxu0 %v1088
      %1346 = vmatprep.subr.bf16.mxu0 %v1091
      %1347 = vmatpush1.bf16.msra.mxu0 %v1090
      %1348 = vmatprep.subr.bf16.mxu0 %v1093
      %1349 = vmatpush1.bf16.msra.mxu0 %v1092
      %1350 = vmatprep.subr.bf16.mxu0 %v1095
      %1351 = vmatpush1.bf16.msra.mxu0 %v1094
      %1352 = vmatprep.subr.bf16.mxu0 %v1097
      %1353 = vmatpush1.bf16.msra.mxu0 %v1096
      %1354 = vmatprep.subr.bf16.mxu0 %v1099
      %1355 = vmatpush1.bf16.msra.mxu0 %v1098
      %1356 = vmatprep.subr.bf16.mxu0 %v1101
      %1357 = vmatpush1.bf16.msra.mxu0 %v1100
      %1358 = vmatprep.subr.bf16.mxu0 %v1103
      %1359 = vmatpush1.bf16.msra.mxu0 %v1102
      %1360 = vmatprep.subr.bf16.mxu0 %v1105
      %1361 = vmatpush1.bf16.msra.mxu0 %v1104
      %1362 = vmatprep.subr.bf16.mxu0 %v1107
      %1363 = vmatpush1.bf16.msra.mxu0 %v1106
      %1364 = vmatprep.subr.bf16.mxu0 %v1109
      %1365 = vmatpush1.bf16.msra.mxu0 %v1108
      %1366 = vmatprep.subr.bf16.mxu0 %v1111
      %1367 = vmatpush1.bf16.msra.mxu0 %v1110
      %1368 = vmatprep.subr.bf16.mxu0 %v1113
      %1369 = vmatpush1.bf16.msra.mxu0 %v1112
      %1370 = vmatprep.subr.bf16.mxu0 %v1115
      %1371 = vmatpush1.bf16.msra.mxu0 %v1114
      %1372 = vmatprep.mubr.bf16.mxu0 %v653
      %1373 = vmatmul.mubr.bf16.gmra.mrb[0].mxu0 %v652
      %v1374 = vpop.f32.mrb[0].mxu0
      %v1375 = vadd.f32 %v573, %v1374
      %v1376 = vpop.f32.mrb[0].mxu0
      %v1377 = vadd.f32 %v577, %v1376
      %v1378 = vpop.f32.mrb[0].mxu0
      %v1379 = vadd.f32 %v573, %v1378
      %v1380 = vpop.f32.mrb[0].mxu0
      %v1381 = vadd.f32 %v577, %v1380
      %1382 = vmatprep.mubr.bf16.mxu0 %v661
      %1383 = vmatmul.mubr.bf16.gmra.mrb[0].mxu0 %v660
      %v1384 = vpop.f32.mrb[0].mxu0
      %v1385 = vadd.f32 %v573, %v1384
      %v1386 = vpop.f32.mrb[0].mxu0
      %v1387 = vadd.f32 %v577, %v1386
      %v1388 = vpop.f32.mrb[0].mxu0
      %v1389 = vadd.f32 %v573, %v1388
      %v1390 = vpop.f32.mrb[0].mxu0
      %v1391 = vadd.f32 %v577, %v1390
      %1392 = vmatprep.mubr.bf16.mxu0 %v669
      %1393 = vmatmul.mubr.bf16.gmra.mrb[0].mxu0 %v668
      %v1394 = vpop.f32.mrb[0].mxu0
      %v1395 = vadd.f32 %v573, %v1394
      %v1396 = vpop.f32.mrb[0].mxu0
      %v1397 = vadd.f32 %v577, %v1396
      %v1398 = vpop.f32.mrb[0].mxu0
      %v1399 = vadd.f32 %v573, %v1398
      %v1400 = vpop.f32.mrb[0].mxu0
      %v1401 = vadd.f32 %v577, %v1400
      %1402 = vdwg.mxu0
      %1403 = vmatprep.subr.bf16.mxu0 %v1117
      %1404 = vmatpush1.bf16.msra.mxu0 %v1116
      %1405 = vmatprep.subr.bf16.mxu0 %v1119
      %1406 = vmatpush1.bf16.msra.mxu0 %v1118
      %1407 = vmatprep.subr.bf16.mxu0 %v1121
      %1408 = vmatpush1.bf16.msra.mxu0 %v1120
      %1409 = vmatprep.subr.bf16.mxu0 %v1123
      %1410 = vmatpush1.bf16.msra.mxu0 %v1122
      %1411 = vmatprep.subr.bf16.mxu0 %v1125
      %1412 = vmatpush1.bf16.msra.mxu0 %v1124
      %1413 = vmatprep.subr.bf16.mxu0 %v1127
      %1414 = vmatpush1.bf16.msra.mxu0 %v1126
      %1415 = vmatprep.subr.bf16.mxu0 %v1129
      %1416 = vmatpush1.bf16.msra.mxu0 %v1128
      %1417 = vmatprep.subr.bf16.mxu0 %v1131
      %1418 = vmatpush1.bf16.msra.mxu0 %v1130
      %1419 = vmatprep.subr.bf16.mxu0 %v1133
      %1420 = vmatpush1.bf16.msra.mxu0 %v1132
      %1421 = vmatprep.subr.bf16.mxu0 %v1135
      %1422 = vmatpush1.bf16.msra.mxu0 %v1134
      %1423 = vmatprep.subr.bf16.mxu0 %v1137
      %1424 = vmatpush1.bf16.msra.mxu0 %v1136
      %1425 = vmatprep.subr.bf16.mxu0 %v1139
      %1426 = vmatpush1.bf16.msra.mxu0 %v1138
      %1427 = vmatprep.subr.bf16.mxu0 %v1141
      %1428 = vmatpush1.bf16.msra.mxu0 %v1140
      %1429 = vmatprep.subr.bf16.mxu0 %v1143
      %1430 = vmatpush1.bf16.msra.mxu0 %v1142
      %1431 = vmatprep.subr.bf16.mxu0 %v1145
      %1432 = vmatpush1.bf16.msra.mxu0 %v1144
      %1433 = vmatprep.subr.bf16.mxu0 %v1147
      %1434 = vmatpush1.bf16.msra.mxu0 %v1146
      %1435 = vmatprep.mubr.bf16.mxu0 %v655
      %1436 = vmatmul.mubr.bf16.gmra.mrb[0].mxu0 %v654
      %v1437 = vpop.f32.mrb[0].mxu0
      %v1438 = vadd.f32 %v1375, %v1437
      %v1439 = vpop.f32.mrb[0].mxu0
      %v1440 = vadd.f32 %v1377, %v1439
      %v1441 = vpop.f32.mrb[0].mxu0
      %v1442 = vadd.f32 %v1379, %v1441
      %v1443 = vpop.f32.mrb[0].mxu0
      %v1444 = vadd.f32 %v1381, %v1443
      %1445 = vmatprep.mubr.bf16.mxu0 %v663
      %1446 = vmatmul.mubr.bf16.gmra.mrb[0].mxu0 %v662
      %v1447 = vpop.f32.mrb[0].mxu0
      %v1448 = vadd.f32 %v1385, %v1447
      %v1449 = vpop.f32.mrb[0].mxu0
      %v1450 = vadd.f32 %v1387, %v1449
      %v1451 = vpop.f32.mrb[0].mxu0
      %v1452 = vadd.f32 %v1389, %v1451
      %v1453 = vpop.f32.mrb[0].mxu0
      %v1454 = vadd.f32 %v1391, %v1453
      %1455 = vmatprep.mubr.bf16.mxu0 %v671
      %1456 = vmatmul.mubr.bf16.gmra.mrb[0].mxu0 %v670
      %v1457 = vpop.f32.mrb[0].mxu0
      %v1458 = vadd.f32 %v1395, %v1457
      %v1459 = vpop.f32.mrb[0].mxu0
      %v1460 = vadd.f32 %v1397, %v1459
      %v1461 = vpop.f32.mrb[0].mxu0
      %v1462 = vadd.f32 %v1399, %v1461
      %v1463 = vpop.f32.mrb[0].mxu0
      %v1464 = vadd.f32 %v1401, %v1463
      %1465 = vdwg.mxu0
      %1466 = vmatprep.subr.bf16.mxu0 %v1149
      %1467 = vmatpush1.bf16.msra.mxu0 %v1148
      %1468 = vmatprep.subr.bf16.mxu0 %v1151
      %1469 = vmatpush1.bf16.msra.mxu0 %v1150
      %1470 = vmatprep.subr.bf16.mxu0 %v1153
      %1471 = vmatpush1.bf16.msra.mxu0 %v1152
      %1472 = vmatprep.subr.bf16.mxu0 %v1155
      %1473 = vmatpush1.bf16.msra.mxu0 %v1154
      %1474 = vmatprep.subr.bf16.mxu0 %v1157
      %1475 = vmatpush1.bf16.msra.mxu0 %v1156
      %1476 = vmatprep.subr.bf16.mxu0 %v1159
      %1477 = vmatpush1.bf16.msra.mxu0 %v1158
      %1478 = vmatprep.subr.bf16.mxu0 %v1161
      %1479 = vmatpush1.bf16.msra.mxu0 %v1160
      %1480 = vmatprep.subr.bf16.mxu0 %v1163
      %1481 = vmatpush1.bf16.msra.mxu0 %v1162
      %1482 = vmatprep.subr.bf16.mxu0 %v1165
      %1483 = vmatpush1.bf16.msra.mxu0 %v1164
      %1484 = vmatprep.subr.bf16.mxu0 %v1167
      %1485 = vmatpush1.bf16.msra.mxu0 %v1166
      %1486 = vmatprep.subr.bf16.mxu0 %v1169
      %1487 = vmatpush1.bf16.msra.mxu0 %v1168
      %1488 = vmatprep.subr.bf16.mxu0 %v1171
      %1489 = vmatpush1.bf16.msra.mxu0 %v1170
      %1490 = vmatprep.subr.bf16.mxu0 %v1173
      %1491 = vmatpush1.bf16.msra.mxu0 %v1172
      %1492 = vmatprep.subr.bf16.mxu0 %v1175
      %1493 = vmatpush1.bf16.msra.mxu0 %v1174
      %1494 = vmatprep.subr.bf16.mxu0 %v1177
      %1495 = vmatpush1.bf16.msra.mxu0 %v1176
      %1496 = vmatprep.subr.bf16.mxu0 %v1179
      %1497 = vmatpush1.bf16.msra.mxu0 %v1178
      %1498 = vmatprep.mubr.bf16.mxu0 %v657
      %1499 = vmatmul.mubr.bf16.gmra.mrb[0].mxu0 %v656
      %v1500 = vpop.f32.mrb[0].mxu0
      %v1501 = vadd.f32 %v1438, %v1500
      %v1502 = vpop.f32.mrb[0].mxu0
      %v1503 = vadd.f32 %v1440, %v1502
      %v1504 = vpop.f32.mrb[0].mxu0
      %v1505 = vadd.f32 %v1442, %v1504
      %v1506 = vpop.f32.mrb[0].mxu0
      %v1507 = vadd.f32 %v1444, %v1506
      %1508 = vmatprep.mubr.bf16.mxu0 %v665
      %1509 = vmatmul.mubr.bf16.gmra.mrb[0].mxu0 %v664
      %v1510 = vpop.f32.mrb[0].mxu0
      %v1511 = vadd.f32 %v1448, %v1510
      %v1512 = vpop.f32.mrb[0].mxu0
      %v1513 = vadd.f32 %v1450, %v1512
      %v1514 = vpop.f32.mrb[0].mxu0
      %v1515 = vadd.f32 %v1452, %v1514
      %v1516 = vpop.f32.mrb[0].mxu0
      %v1517 = vadd.f32 %v1454, %v1516
      %1518 = vmatprep.mubr.bf16.mxu0 %v673
      %1519 = vmatmul.mubr.bf16.gmra.mrb[0].mxu0 %v672
      %v1520 = vpop.f32.mrb[0].mxu0
      %v1521 = vadd.f32 %v1458, %v1520
      %v1522 = vpop.f32.mrb[0].mxu0
      %v1523 = vadd.f32 %v1460, %v1522
      %v1524 = vpop.f32.mrb[0].mxu0
      %v1525 = vadd.f32 %v1462, %v1524
      %v1526 = vpop.f32.mrb[0].mxu0
      %v1527 = vadd.f32 %v1464, %v1526
      %1528 = vdwg.mxu0
      %1529 = vmatprep.subr.bf16.mxu0 %v1181
      %1530 = vmatpush1.bf16.msra.mxu0 %v1180
      %1531 = vmatprep.subr.bf16.mxu0 %v1183
      %1532 = vmatpush1.bf16.msra.mxu0 %v1182
      %1533 = vmatprep.subr.bf16.mxu0 %v1185
      %1534 = vmatpush1.bf16.msra.mxu0 %v1184
      %1535 = vmatprep.subr.bf16.mxu0 %v1187
      %1536 = vmatpush1.bf16.msra.mxu0 %v1186
      %1537 = vmatprep.subr.bf16.mxu0 %v1189
      %1538 = vmatpush1.bf16.msra.mxu0 %v1188
      %1539 = vmatprep.subr.bf16.mxu0 %v1191
      %1540 = vmatpush1.bf16.msra.mxu0 %v1190
      %1541 = vmatprep.subr.bf16.mxu0 %v1193
      %1542 = vmatpush1.bf16.msra.mxu0 %v1192
      %1543 = vmatprep.subr.bf16.mxu0 %v1195
      %1544 = vmatpush1.bf16.msra.mxu0 %v1194
      %1545 = vmatprep.subr.bf16.mxu0 %v1197
      %1546 = vmatpush1.bf16.msra.mxu0 %v1196
      %1547 = vmatprep.subr.bf16.mxu0 %v1199
      %1548 = vmatpush1.bf16.msra.mxu0 %v1198
      %1549 = vmatprep.subr.bf16.mxu0 %v1201
      %1550 = vmatpush1.bf16.msra.mxu0 %v1200
      %1551 = vmatprep.subr.bf16.mxu0 %v1203
      %1552 = vmatpush1.bf16.msra.mxu0 %v1202
      %1553 = vmatprep.subr.bf16.mxu0 %v1205
      %1554 = vmatpush1.bf16.msra.mxu0 %v1204
      %1555 = vmatprep.subr.bf16.mxu0 %v1207
      %1556 = vmatpush1.bf16.msra.mxu0 %v1206
      %1557 = vmatprep.subr.bf16.mxu0 %v1209
      %1558 = vmatpush1.bf16.msra.mxu0 %v1208
      %1559 = vmatprep.subr.bf16.mxu0 %v1211
      %1560 = vmatpush1.bf16.msra.mxu0 %v1210
      %1561 = vmatprep.mubr.bf16.mxu0 %v659
      %1562 = vmatmul.mubr.bf16.gmra.mrb[0].mxu0 %v658
      %v1563 = vpop.f32.mrb[0].mxu0
      %v1564 = vadd.f32 %v1501, %v1563
      %v1565 = vpop.f32.mrb[0].mxu0
      %v1566 = vadd.f32 %v1503, %v1565
      %v1567 = vpop.f32.mrb[0].mxu0
      %v1568 = vadd.f32 %v1505, %v1567
      %v1569 = vpop.f32.mrb[0].mxu0
      %v1570 = vadd.f32 %v1507, %v1569
      %1571 = vmatprep.mubr.bf16.mxu0 %v667
      %1572 = vmatmul.mubr.bf16.gmra.mrb[0].mxu0 %v666
      %v1573 = vpop.f32.mrb[0].mxu0
      %v1574 = vadd.f32 %v1511, %v1573
      %v1575 = vpop.f32.mrb[0].mxu0
      %v1576 = vadd.f32 %v1513, %v1575
      %v1577 = vpop.f32.mrb[0].mxu0
      %v1578 = vadd.f32 %v1515, %v1577
      %v1579 = vpop.f32.mrb[0].mxu0
      %v1580 = vadd.f32 %v1517, %v1579
      %1581 = vmatprep.mubr.bf16.mxu0 %v675
      %1582 = vmatmul.mubr.bf16.gmra.mrb[0].mxu0 %v674
      %v1583 = vpop.f32.mrb[0].mxu0
      %v1584 = vadd.f32 %v1521, %v1583
      %v1585 = vpop.f32.mrb[0].mxu0
      %v1586 = vadd.f32 %v1523, %v1585
      %v1587 = vpop.f32.mrb[0].mxu0
      %v1588 = vadd.f32 %v1525, %v1587
      %v1589 = vpop.f32.mrb[0].mxu0
      %v1590 = vadd.f32 %v1527, %v1589
      %1591 = vdwg.mxu0
      %v1592 = vld [vmem:[%s397] sm:$0xff]
      %v1593 = vld [vmem:[%s397 + $0x8] sm:$0xff]
      %v1594 = vld [vmem:[%s397 + $0x10] sm:$0xff]
      %v1595 = vld [vmem:[%s397 + $0x18] sm:$0xff]
      %v1596 = vld [vmem:[%s397 + $0x20] sm:$0xff]
      %v1597 = vld [vmem:[%s397 + $0x28] sm:$0xff]
      %v1598 = vunpack.c.l.bf16 %v1592
      %v1599 = vunpack.c.h.bf16 %v1592
      %v1600 = vunpack.c.l.bf16 %v1593
      %v1601 = vunpack.c.h.bf16 %v1593
      %v1602 = vunpack.c.l.bf16 %v1594
      %v1603 = vunpack.c.h.bf16 %v1594
      %v1604 = vunpack.c.l.bf16 %v1595
      %v1605 = vunpack.c.h.bf16 %v1595
      %v1606 = vunpack.c.l.bf16 %v1596
      %v1607 = vunpack.c.h.bf16 %v1596
      %v1608 = vunpack.c.l.bf16 %v1597
      %v1609 = vunpack.c.h.bf16 %v1597
      %v1610 = vld [vmem:[%s382] sm:$0x3]
      %v1612 = vlaneseq
      %v1613 = vshrl.u32 %v1612, 7
      %v1614 = vsub.s32 0, %v1613
      %v1615 = vrot.slane %v1610, %v1614
      %v1616 = vlaneseq
      %v1617 = vshrl.u32 %v1616, 7
      %v1618 = vsub.s32 1, %v1617
      %v1619 = vrot.slane %v1610, %v1618
      %v1622 = vmul.f32 %v1615, %v1564
      %v1623 = vmul.f32 %v1619, %v1566
      %v1624 = vmul.f32 %v1615, %v1568
      %v1625 = vmul.f32 %v1619, %v1570
      %v1626 = vmul.f32 %v1615, %v1574
      %v1627 = vmul.f32 %v1619, %v1576
      %v1628 = vmul.f32 %v1615, %v1578
      %v1629 = vmul.f32 %v1619, %v1580
      %v1630 = vmul.f32 %v1615, %v1584
      %v1631 = vmul.f32 %v1619, %v1586
      %v1632 = vmul.f32 %v1615, %v1588
      %v1633 = vmul.f32 %v1619, %v1590
      %v1634 = vadd.f32 %v1598, %v1622
      %v1635 = vadd.f32 %v1599, %v1623
      %v1636 = vadd.f32 %v1600, %v1624
      %v1637 = vadd.f32 %v1601, %v1625
      %v1638 = vadd.f32 %v1602, %v1626
      %v1639 = vadd.f32 %v1603, %v1627
      %v1640 = vadd.f32 %v1604, %v1628
      %v1641 = vadd.f32 %v1605, %v1629
      %v1642 = vadd.f32 %v1606, %v1630
      %v1643 = vadd.f32 %v1607, %v1631
      %v1644 = vadd.f32 %v1608, %v1632
      %v1645 = vadd.f32 %v1609, %v1633
      %v1646 = vpack.c.bf16 %v1636, %v1634
      %v1647 = vpack.c.bf16 %v1637, %v1635
      %v1648 = vpack.c.bf16 %v1640, %v1638
      %v1649 = vpack.c.bf16 %v1641, %v1639
      %v1650 = vpack.c.bf16 %v1644, %v1642
      %v1651 = vpack.c.bf16 %v1645, %v1643
      %v1658 = vunpack.c.l.b16 %v1646
      %v1659 = vunpack.c.l.b16 %v1647
      %v1660 = vunpack.c.h.b16 %v1646
      %v1661 = vunpack.c.h.b16 %v1647
      %v1662 = vunpack.c.l.b16 %v1648
      %v1663 = vunpack.c.l.b16 %v1649
      %v1664 = vunpack.c.h.b16 %v1648
      %v1665 = vunpack.c.h.b16 %v1649
      %v1666 = vunpack.c.l.b16 %v1650
      %v1667 = vunpack.c.l.b16 %v1651
      %v1668 = vunpack.c.h.b16 %v1650
      %v1669 = vunpack.c.h.b16 %v1651
      %v1670 = vpack.c.b16 %v1659, %v1658
      %v1671 = vpack.c.b16 %v1661, %v1660
      %v1672 = vpack.c.b16 %v1663, %v1662
      %v1673 = vpack.c.b16 %v1665, %v1664
      %v1674 = vpack.c.b16 %v1667, %v1666
      %v1675 = vpack.c.b16 %v1669, %v1668
      %1682 = vst [vmem:[%s413] sm:$0xff] %v1670
      %1683 = vst [vmem:[%s413 + $0x8] sm:$0xff] %v1671
      %1684 = vst [vmem:[%s413 + $0x10] sm:$0xff] %v1672
      %1685 = vst [vmem:[%s413 + $0x18] sm:$0xff] %v1673
      %1686 = vst [vmem:[%s413 + $0x20] sm:$0xff] %v1674
      %1687 = vst [vmem:[%s413 + $0x28] sm:$0xff] %v1675
      %s1688 = smul.u32 6, %s23
      %s1689 = smul.u32 2, %s22
      %p1690 = scmp.lt.s32.totalorder %s21, 1
      %s1691 = scalar_select %p1690, %s21, 1
      %p1692 = scmp.lt.s32.totalorder %s1688, 5
      %s1693 = scalar_select %p1692, %s1688, 5
      %p1694 = scmp.lt.s32.totalorder %s1689, 1
      %s1695 = scalar_select %p1694, %s1689, 1
      %s1696 = smul.addr %s1693, 2
      %s1697 = sadd.s32 %s1695, %s1696
      %s1698 = smul.addr %s1691, 12
      %s1699 = sadd.s32 %s1697, %s1698
      %s1700 = smul.addr %s1699, 4
      %s1701 = scalar_lea.vmem %s5, %s1700
      // Predicated region
      $region41: #{run.15} parent=39 // pred_check
        %p1702 = pneg %p195
      $region42: #{run.15} parent=39 // pred_check_branch
        %1704 = sbr.rel (%p1702) target = $region44
      $region43: #{run.15} parent=39 // pred_region
        %s1705 = smul.u32 6, %s23
        %s1706 = smul.u32 2, %s22
      $region44: #{run.15} parent=39 // pred_fallthru
        _
    $region40: #{run.15} parent=5 // pred_fallthru
      _
    %p1707 = scmp.le.s32.totalorder 2, %s11
    // Predicated region
    $region45: #{run.15} parent=5 // pred_check
      %p1708 = pneg %p1707
    $region46: #{run.15} parent=5 // pred_check_branch
      %1710 = sbr.rel (%p1708) target = $region48
    $region47: #{run.15} parent=5 // pred_region
      %s1711 = ssub.s32 %s11, 2
      // Predicated region
      $region49: #{run.15} parent=47 // pred_check
        %p1712 = pneg %p201
      $region50: #{run.15} parent=47 // pred_check_branch
        %1714 = sbr.rel (%p1712) target = $region52
      $region51: #{run.15} parent=47 // pred_region
        %s1715 = smul.u32 6, %s26
        %s1716 = smul.u32 2, %s25
        %p1717 = scmp.lt.s32.totalorder %s24, 1
        %s1718 = scalar_select %p1717, %s24, 1
        %p1719 = scmp.lt.s32.totalorder %s1715, 5
        %s1720 = scalar_select %p1719, %s1715, 5
        %p1721 = scmp.lt.s32.totalorder %s1716, 1
        %s1722 = scalar_select %p1721, %s1716, 1
        %s1723 = smul.addr %s1720, 2
        %s1724 = sadd.s32 %s1722, %s1723
        %s1725 = smul.addr %s1718, 12
        %s1726 = sadd.s32 %s1724, %s1725
        %s1727 = smul.addr %s1726, 4
        %s1728 = scalar_lea.vmem %s5, %s1727
      $region52: #{run.15} parent=47 // pred_fallthru
        _
    $region48: #{run.15} parent=5 // pred_fallthru
      _
  $region6: #{run.15} parent=0 // loop_footer
    %s15 = sadd.s32 1, %s11
  $region7: #{run.15} parent=0 // loop_footer_branch
    %10 = sbr.rel target = $region3
  $region8: #{run.15} parent=0 // loop_exit
    _

// kernel: run.14
$region0: #{run.14}
  #allocation0 [shape = 'u32[]', space=smem, size = 0x4, offset = 0x4, fixed_abs, tag = 'smem constant byte address 0x4 - core index']
  #allocation1 [shape = 'u32[144,128]{1,0:T(1,128)}', space=vmem, size = 0x12000, scoped, tag = 'internal scratch']
  %s0 = inlined_call_operand.vmem [shape: bf16[2,48,256], index: 0, kind: input, shape index: {}]
  %s1 = inlined_call_operand.vmem [shape: f32[2,1,256], index: 1, kind: input, shape index: {}]
  %s2 = inlined_call_operand.vmem [shape: f32[2,1,256], index: 2, kind: input, shape index: {}]
  %s3 = inlined_call_operand.vmem [shape: bf16[256,1024], index: 3, kind: input, shape index: {}]
  %s4 = inlined_call_operand.vmem [shape: f32[1,1024], index: 4, kind: input, shape index: {}]
  %s5 = inlined_call_operand.vmem [shape: bf16[2,48,1024], index: 5, kind: output, shape index: {}]
  %s6 = sld [smem:[#allocation0]]
  $region53: #{run.14} parent=0
    _
  %s8 = ssub.s32 1, %s6
  %s9 = scalar_select 0, %s8, %s6
  loop: start=0, step=1, limit=4
  $region2: #{run.14} parent=0 // loop_pre_header
    _
  $region3: #{run.14} parent=0 // loop_header
    %s11 = sphi 0, %s15
    %p12 = scmp.ge.s32.totalorder %s11, 4
    %s18 = sphi 0, %s37
    %s19 = sphi 0, %s33
    %s20 = sphi 0, %s29
    %s21 = sphi 0, %s18
    %s22 = sphi 0, %s19
    %s23 = sphi 0, %s20
    %s24 = sphi 0, %s21
    %s25 = sphi 0, %s22
    %s26 = sphi 0, %s23
    %s42 = sphi 0, %s44
    %s45 = sphi 0, %s42
    %s46 = sphi 0, %s45
    %s62 = sphi 0, %s46
    %s68 = sphi 0, %s70
    %s71 = sphi 0, %s68
    %s72 = sphi 0, %s71
    %s88 = sphi 0, %s72
    %s94 = sphi 0, %s96
    %s97 = sphi 0, %s94
    %s98 = sphi 0, %s97
    %s114 = sphi 0, %s98
    %s120 = sphi 0, %s122
    %s123 = sphi 0, %s120
    %s124 = sphi 0, %s123
    %s140 = sphi 0, %s124
    %s146 = sphi 0, %s148
    %s149 = sphi 0, %s146
    %s150 = sphi 0, %s149
    %s166 = sphi 0, %s150
    %s176 = sphi 0, %s178
    %s179 = sphi 0, %s176
    %s180 = sphi 0, %s179
    %s196 = sphi 0, %s180
  $region4: #{run.14} parent=0 // loop_header_branch
    %14 = sbr.rel (%p12) target = $region8
  $region5: #{run.14} parent=0 // loop_body
    %s16 = ssub.s32 %s11, 1
    %s17 = ssub.s32 %s11, 2
    %s27 = sadd.s32 1, %s20
    %p28 = scmp.ge.s32.totalorder %s27, 1
    %s29 = scalar_select %p28, 0, %s27
    %s30 = sadd.s32 1, %s19
    %s31 = scalar_select %p28, %s30, %s19
    %p32 = scmp.ge.s32.totalorder %s31, 1
    %s33 = scalar_select %p32, 0, %s31
    %s34 = sadd.s32 1, %s18
    %s35 = scalar_select %p32, %s34, %s18
    %p36 = scmp.ge.s32.totalorder %s35, 2
    %s37 = scalar_select %p36, 0, %s35
    %s38 = ssub.s32 %s18, %s37
    %s39 = ssub.s32 %s20, %s29
    %s40 = sor.u32 %s38, %s39
    %p41 = scmp.eq.s32.totalorder %s40, 0
    %s43 = sadd.s32 %s42, 1
    %s44 = scalar_select %p41, %s42, %s43
    %p47 = pneg %p41
    %p48 = scmp.eq.s32.totalorder %s11, 1
    %p49 = por %p47, %p48
    %p50 = scmp.ne.s32.totalorder %s42, %s45
    %p51 = scmp.eq.s32.totalorder %s11, 0
    %p52 = por %p50, %p51
    %p53 = scmp.ne.s32.totalorder %s42, %s45
    %p54 = scmp.eq.s32.totalorder %s16, 1
    %p55 = por %p53, %p54
    %p56 = scmp.ne.s32.totalorder %s45, %s46
    %p57 = scmp.eq.s32.totalorder %s16, 0
    %p58 = por %p56, %p57
    %p59 = scmp.ne.s32.totalorder %s45, %s46
    %p60 = scmp.eq.s32.totalorder %s17, 1
    %p61 = por %p59, %p60
    %p63 = scmp.ne.s32.totalorder %s46, %s62
    %p64 = scmp.eq.s32.totalorder %s17, 0
    %p65 = por %p63, %p64
    %s66 = ssub.s32 %s18, %s37
    %p67 = scmp.eq.s32.totalorder %s66, 0
    %s69 = sadd.s32 %s68, 1
    %s70 = scalar_select %p67, %s68, %s69
    %p73 = pneg %p67
    %p74 = scmp.eq.s32.totalorder %s11, 1
    %p75 = por %p73, %p74
    %p76 = scmp.ne.s32.totalorder %s68, %s71
    %p77 = scmp.eq.s32.totalorder %s11, 0
    %p78 = por %p76, %p77
    %p79 = scmp.ne.s32.totalorder %s68, %s71
    %p80 = scmp.eq.s32.totalorder %s16, 1
    %p81 = por %p79, %p80
    %p82 = scmp.ne.s32.totalorder %s71, %s72
    %p83 = scmp.eq.s32.totalorder %s16, 0
    %p84 = por %p82, %p83
    %p85 = scmp.ne.s32.totalorder %s71, %s72
    %p86 = scmp.eq.s32.totalorder %s17, 1
    %p87 = por %p85, %p86
    %p89 = scmp.ne.s32.totalorder %s72, %s88
    %p90 = scmp.eq.s32.totalorder %s17, 0
    %p91 = por %p89, %p90
    %s92 = ssub.s32 %s18, %s37
    %p93 = scmp.eq.s32.totalorder %s92, 0
    %s95 = sadd.s32 %s94, 1
    %s96 = scalar_select %p93, %s94, %s95
    %p99 = pneg %p93
    %p100 = scmp.eq.s32.totalorder %s11, 1
    %p101 = por %p99, %p100
    %p102 = scmp.ne.s32.totalorder %s94, %s97
    %p103 = scmp.eq.s32.totalorder %s11, 0
    %p104 = por %p102, %p103
    %p105 = scmp.ne.s32.totalorder %s94, %s97
    %p106 = scmp.eq.s32.totalorder %s16, 1
    %p107 = por %p105, %p106
    %p108 = scmp.ne.s32.totalorder %s97, %s98
    %p109 = scmp.eq.s32.totalorder %s16, 0
    %p110 = por %p108, %p109
    %p111 = scmp.ne.s32.totalorder %s97, %s98
    %p112 = scmp.eq.s32.totalorder %s17, 1
    %p113 = por %p111, %p112
    %p115 = scmp.ne.s32.totalorder %s98, %s114
    %p116 = scmp.eq.s32.totalorder %s17, 0
    %p117 = por %p115, %p116
    %s118 = ssub.s32 %s19, %s33
    %p119 = scmp.eq.s32.totalorder %s118, 0
    %s121 = sadd.s32 %s120, 1
    %s122 = scalar_select %p119, %s120, %s121
    %p125 = pneg %p119
    %p126 = scmp.eq.s32.totalorder %s11, 1
    %p127 = por %p125, %p126
    %p128 = scmp.ne.s32.totalorder %s120, %s123
    %p129 = scmp.eq.s32.totalorder %s11, 0
    %p130 = por %p128, %p129
    %p131 = scmp.ne.s32.totalorder %s120, %s123
    %p132 = scmp.eq.s32.totalorder %s16, 1
    %p133 = por %p131, %p132
    %p134 = scmp.ne.s32.totalorder %s123, %s124
    %p135 = scmp.eq.s32.totalorder %s16, 0
    %p136 = por %p134, %p135
    %p137 = scmp.ne.s32.totalorder %s123, %s124
    %p138 = scmp.eq.s32.totalorder %s17, 1
    %p139 = por %p137, %p138
    %p141 = scmp.ne.s32.totalorder %s124, %s140
    %p142 = scmp.eq.s32.totalorder %s17, 0
    %p143 = por %p141, %p142
    %s144 = ssub.s32 %s19, %s33
    %p145 = scmp.eq.s32.totalorder %s144, 0
    %s147 = sadd.s32 %s146, 1
    %s148 = scalar_select %p145, %s146, %s147
    %p151 = pneg %p145
    %p152 = scmp.eq.s32.totalorder %s11, 1
    %p153 = por %p151, %p152
    %p154 = scmp.ne.s32.totalorder %s146, %s149
    %p155 = scmp.eq.s32.totalorder %s11, 0
    %p156 = por %p154, %p155
    %p157 = scmp.ne.s32.totalorder %s146, %s149
    %p158 = scmp.eq.s32.totalorder %s16, 1
    %p159 = por %p157, %p158
    %p160 = scmp.ne.s32.totalorder %s149, %s150
    %p161 = scmp.eq.s32.totalorder %s16, 0
    %p162 = por %p160, %p161
    %p163 = scmp.ne.s32.totalorder %s149, %s150
    %p164 = scmp.eq.s32.totalorder %s17, 1
    %p165 = por %p163, %p164
    %p167 = scmp.ne.s32.totalorder %s150, %s166
    %p168 = scmp.eq.s32.totalorder %s17, 0
    %p169 = por %p167, %p168
    %s170 = ssub.s32 %s18, %s37
    %s171 = ssub.s32 %s20, %s29
    %s172 = sor.u32 %s170, %s171
    %s173 = ssub.s32 %s19, %s33
    %s174 = sor.u32 %s172, %s173
    %p175 = scmp.eq.s32.totalorder %s174, 0
    %s177 = sadd.s32 %s176, 1
    %s178 = scalar_select %p175, %s176, %s177
    %p181 = pneg %p175
    %p182 = scmp.eq.s32.totalorder %s11, 1
    %p183 = por %p181, %p182
    %p184 = scmp.ne.s32.totalorder %s176, %s179
    %p185 = scmp.eq.s32.totalorder %s11, 0
    %p186 = por %p184, %p185
    %p187 = scmp.ne.s32.totalorder %s176, %s179
    %p188 = scmp.eq.s32.totalorder %s16, 1
    %p189 = por %p187, %p188
    %p190 = scmp.ne.s32.totalorder %s179, %s180
    %p191 = scmp.eq.s32.totalorder %s16, 0
    %p192 = por %p190, %p191
    %p193 = scmp.ne.s32.totalorder %s179, %s180
    %p194 = scmp.eq.s32.totalorder %s17, 1
    %p195 = por %p193, %p194
    %p197 = scmp.ne.s32.totalorder %s180, %s196
    %p198 = scmp.eq.s32.totalorder %s17, 0
    %p199 = por %p197, %p198
    %p200 = scmp.le.s32.totalorder 1, %s11
    %p201 = scmp.lt.s32.totalorder %s11, 3
    %p202 = pnand %p200, %p201
    %p203 = pneg %p202
    // Predicated region
    $region9: #{run.14} parent=5 // pred_check
      _
    $region10: #{run.14} parent=5 // pred_check_branch
      %205 = sbr.rel (%p202) target = $region12
    $region11: #{run.14} parent=5 // pred_region
      %s206 = ssub.s32 %s11, 1
      // Predicated region
      $region13: #{run.14} parent=11 // pred_check
        %p207 = pneg %p136
      $region14: #{run.14} parent=11 // pred_check_branch
        %209 = sbr.rel (%p207) target = $region16
      $region15: #{run.14} parent=11 // pred_region
        %s210 = smul.u32 8, %s22
        %p211 = scmp.lt.s32.totalorder %s210, 7
        %s212 = scalar_select %p211, %s210, 7
        %s213 = smul.addr %s212, 4
        %s214 = scalar_lea.vmem %s3, %s213
        %s215 = smul.u32 8, %s22
      $region16: #{run.14} parent=11 // pred_fallthru
        _
      // Predicated region
      $region17: #{run.14} parent=11 // pred_check
        %p216 = pneg %p162
      $region18: #{run.14} parent=11 // pred_check_branch
        %218 = sbr.rel (%p216) target = $region20
      $region19: #{run.14} parent=11 // pred_region
        %s219 = smul.u32 8, %s22
        %p220 = scmp.lt.s32.totalorder %s219, 7
        %s221 = scalar_select %p220, %s219, 7
        %s222 = scalar_lea.vmem %s4, %s221
        %s223 = smul.u32 8, %s22
      $region20: #{run.14} parent=11 // pred_fallthru
        _
    $region12: #{run.14} parent=5 // pred_fallthru
      _
    %p224 = scmp.lt.s32.totalorder %s11, 2
    // Predicated region
    $region21: #{run.14} parent=5 // pred_check
      %p225 = pneg %p224
    $region22: #{run.14} parent=5 // pred_check_branch
      %227 = sbr.rel (%p225) target = $region24
    $region23: #{run.14} parent=5 // pred_region
      // Predicated region
      $region25: #{run.14} parent=23 // pred_check
        %p228 = pneg %p52
      $region26: #{run.14} parent=23 // pred_check_branch
        %230 = sbr.rel (%p228) target = $region28
      $region27: #{run.14} parent=23 // pred_region
        %s231 = smul.u32 6, %s20
        %p232 = scmp.lt.s32.totalorder %s18, 1
        %s233 = scalar_select %p232, %s18, 1
        %p234 = scmp.lt.s32.totalorder %s231, 5
        %s235 = scalar_select %p234, %s231, 5
        %s236 = smul.addr %s235, 2
        %s237 = smul.addr %s233, 12
        %s238 = sadd.s32 %s236, %s237
        %s239 = smul.addr %s238, 4
        %s240 = scalar_lea.vmem %s0, %s239
        %s241 = smul.u32 6, %s20
      $region28: #{run.14} parent=23 // pred_fallthru
        _
      // Predicated region
      $region29: #{run.14} parent=23 // pred_check
        %p242 = pneg %p78
      $region30: #{run.14} parent=23 // pred_check_branch
        %244 = sbr.rel (%p242) target = $region32
      $region31: #{run.14} parent=23 // pred_region
        %p245 = scmp.lt.s32.totalorder %s18, 1
        %s246 = scalar_select %p245, %s18, 1
        %s247 = smul.addr %s246, 2
        %s248 = scalar_lea.vmem %s1, %s247
      $region32: #{run.14} parent=23 // pred_fallthru
        _
      // Predicated region
      $region33: #{run.14} parent=23 // pred_check
        %p249 = pneg %p104
      $region34: #{run.14} parent=23 // pred_check_branch
        %251 = sbr.rel (%p249) target = $region36
      $region35: #{run.14} parent=23 // pred_region
        %p252 = scmp.lt.s32.totalorder %s18, 1
        %s253 = scalar_select %p252, %s18, 1
        %s254 = smul.addr %s253, 2
        %s255 = scalar_lea.vmem %s2, %s254
      $region36: #{run.14} parent=23 // pred_fallthru
        _
    $region24: #{run.14} parent=5 // pred_fallthru
      _
    %p256 = scmp.le.s32.totalorder 1, %s11
    %p257 = scmp.lt.s32.totalorder %s11, 3
    %p258 = pnand %p256, %p257
    %p259 = pneg %p258
    // Predicated region
    $region37: #{run.14} parent=5 // pred_check
      _
    $region38: #{run.14} parent=5 // pred_check_branch
      %261 = sbr.rel (%p258) target = $region40
    $region39: #{run.14} parent=5 // pred_region
      %s262 = ssub.s32 %s11, 1
      %s263 = smul.u32 6, %s23
      %p264 = scmp.lt.s32.totalorder %s21, 1
      %s265 = scalar_select %p264, %s21, 1
      %p266 = scmp.lt.s32.totalorder %s263, 5
      %s267 = scalar_select %p266, %s263, 5
      %s268 = smul.addr %s267, 2
      %s269 = smul.addr %s265, 12
      %s270 = sadd.s32 %s268, %s269
      %s271 = smul.addr %s270, 4
      %s272 = scalar_lea.vmem %s0, %s271
      %p273 = pneg %p58
      %p274 = pneg %p55
      %p275 = scmp.lt.s32.totalorder %s21, 1
      %s276 = scalar_select %p275, %s21, 1
      %s277 = smul.addr %s276, 2
      %s278 = scalar_lea.vmem %s1, %s277
      %p279 = pneg %p84
      %p280 = pneg %p81
      %p281 = scmp.lt.s32.totalorder %s21, 1
      %s282 = scalar_select %p281, %s21, 1
      %s283 = smul.addr %s282, 2
      %s284 = scalar_lea.vmem %s2, %s283
      %p285 = pneg %p110
      %p286 = pneg %p107
      %s287 = smul.u32 8, %s22
      %p288 = scmp.lt.s32.totalorder %s287, 7
      %s289 = scalar_select %p288, %s287, 7
      %s290 = smul.addr %s289, 4
      %s291 = scalar_lea.vmem %s3, %s290
      %p292 = pneg %p136
      %p293 = pneg %p133
      %s294 = smul.u32 8, %s22
      %p295 = scmp.lt.s32.totalorder %s294, 7
      %s296 = scalar_select %p295, %s294, 7
      %s297 = scalar_lea.vmem %s4, %s296
      %p298 = pneg %p162
      %p299 = pneg %p159
      %p300 = pneg %p192
      %p301 = pneg %p189
      %s302 = smul.u32 6, %s23
      %s303 = smul.u32 8, %s22
      %p304 = scmp.lt.s32.totalorder %s21, 1
      %s305 = scalar_select %p304, %s21, 1
      %p306 = scmp.lt.s32.totalorder %s302, 5
      %s307 = scalar_select %p306, %s302, 5
      %p308 = scmp.lt.s32.totalorder %s303, 7
      %s309 = scalar_select %p308, %s303, 7
      %s310 = smul.addr %s307, 8
      %s311 = sadd.s32 %s309, %s310
      %s312 = smul.addr %s305, 48
      %s313 = sadd.s32 %s311, %s312
      %s314 = smul.addr %s313, 4
      %s315 = scalar_lea.vmem %s5, %s314
      %s316 = smul.u32 6, %s23
      %p317 = scmp.lt.s32.totalorder %s21, 1
      %s318 = scalar_select %p317, %s21, 1
      %p319 = scmp.lt.s32.totalorder %s316, 5
      %s320 = scalar_select %p319, %s316, 5
      %s321 = smul.addr %s320, 2
      %s322 = smul.addr %s318, 12
      %s323 = sadd.s32 %s321, %s322
      %s324 = smul.addr %s323, 4
      %s325 = scalar_lea.vmem %s0, %s324
      %s326 = smul.u32 6, %s23
      %p327 = scmp.lt.s32.totalorder %s21, 1
      %s328 = scalar_select %p327, %s21, 1
      %s329 = smul.addr %s328, 2
      %s330 = scalar_lea.vmem %s1, %s329
      %p331 = scmp.lt.s32.totalorder %s21, 1
      %s332 = scalar_select %p331, %s21, 1
      %s333 = smul.addr %s332, 2
      %s334 = scalar_lea.vmem %s2, %s333
      %s335 = smul.u32 8, %s22
      %p336 = scmp.lt.s32.totalorder %s335, 7
      %s337 = scalar_select %p336, %s335, 7
      %s338 = smul.addr %s337, 4
      %s339 = scalar_lea.vmem %s3, %s338
      %s340 = smul.u32 8, %s22
      %s341 = smul.u32 8, %s22
      %p342 = scmp.lt.s32.totalorder %s341, 7
      %s343 = scalar_select %p342, %s341, 7
      %s344 = scalar_lea.vmem %s4, %s343
      %s345 = smul.u32 8, %s22
      %s346 = smul.u32 6, %s23
      %s347 = smul.u32 8, %s22
      %p348 = scmp.lt.s32.totalorder %s21, 1
      %s349 = scalar_select %p348, %s21, 1
      %p350 = scmp.lt.s32.totalorder %s346, 5
      %s351 = scalar_select %p350, %s346, 5
      %p352 = scmp.lt.s32.totalorder %s347, 7
      %s353 = scalar_select %p352, %s347, 7
      %s354 = smul.addr %s351, 8
      %s355 = sadd.s32 %s353, %s354
      %s356 = smul.addr %s349, 48
      %s357 = sadd.s32 %s355, %s356
      %s358 = smul.addr %s357, 4
      %s359 = scalar_lea.vmem %s5, %s358
      %s360 = smul.u32 6, %s23
      %s361 = smul.u32 8, %s22
      %v362 = vld [vmem:[%s325] sm:$0xff]
      %v363 = vld [vmem:[%s325 + $0x8] sm:$0xff]
      %v364 = vld [vmem:[%s325 + $0x10] sm:$0xff]
      %v365 = vld [vmem:[%s325 + $0x18] sm:$0xff]
      %v366 = vld [vmem:[%s325 + $0x20] sm:$0xff]
      %v367 = vld [vmem:[%s325 + $0x28] sm:$0xff]
      %v368 = vunpack.c.l.bf16 %v362
      %v369 = vunpack.c.h.bf16 %v362
      %v370 = vunpack.c.l.bf16 %v363
      %v371 = vunpack.c.h.bf16 %v363
      %v372 = vunpack.c.l.bf16 %v364
      %v373 = vunpack.c.h.bf16 %v364
      %v374 = vunpack.c.l.bf16 %v365
      %v375 = vunpack.c.h.bf16 %v365
      %v376 = vunpack.c.l.bf16 %v366
      %v377 = vunpack.c.h.bf16 %v366
      %v378 = vunpack.c.l.bf16 %v367
      %v379 = vunpack.c.h.bf16 %v367
      %v380 = vadd.f32 %v368, %v369
      %381 = vadd.xlane.f32.xlu0 %v380
      %v382 = vpop.xlane.xlu0 %381
      %v383 = vadd.f32 %v370, %v371
      %384 = vadd.xlane.f32.xlu0 %v383
      %v385 = vpop.xlane.xlu0 %384
      %v386 = vadd.f32 %v372, %v373
      %387 = vadd.xlane.f32.xlu0 %v386
      %v388 = vpop.xlane.xlu0 %387
      %v389 = vadd.f32 %v374, %v375
      %390 = vadd.xlane.f32.xlu0 %v389
      %v391 = vpop.xlane.xlu0 %390
      %v392 = vadd.f32 %v376, %v377
      %393 = vadd.xlane.f32.xlu0 %v392
      %v394 = vpop.xlane.xlu0 %393
      %v395 = vadd.f32 %v378, %v379
      %396 = vadd.xlane.f32.xlu0 %v395
      %v397 = vpop.xlane.xlu0 %396
      %v398 = vrcp.pop 256.0
      %v399 = vmul.f32 %v382, %v398
      %v400 = vmul.f32 %v385, %v398
      %v401 = vmul.f32 %v388, %v398
      %v402 = vmul.f32 %v391, %v398
      %v403 = vmul.f32 %v394, %v398
      %v404 = vmul.f32 %v397, %v398
      %v405 = vsub.f32 %v368, %v399
      %v406 = vsub.f32 %v369, %v399
      %v407 = vsub.f32 %v370, %v400
      %v408 = vsub.f32 %v371, %v400
      %v409 = vsub.f32 %v372, %v401
      %v410 = vsub.f32 %v373, %v401
      %v411 = vsub.f32 %v374, %v402
      %v412 = vsub.f32 %v375, %v402
      %v413 = vsub.f32 %v376, %v403
      %v414 = vsub.f32 %v377, %v403
      %v415 = vsub.f32 %v378, %v404
      %v416 = vsub.f32 %v379, %v404
      %v417 = vmul.f32 %v405, %v405
      %v418 = vmul.f32 %v406, %v406
      %v419 = vmul.f32 %v407, %v407
      %v420 = vmul.f32 %v408, %v408
      %v421 = vmul.f32 %v409, %v409
      %v422 = vmul.f32 %v410, %v410
      %v423 = vmul.f32 %v411, %v411
      %v424 = vmul.f32 %v412, %v412
      %v425 = vmul.f32 %v413, %v413
      %v426 = vmul.f32 %v414, %v414
      %v427 = vmul.f32 %v415, %v415
      %v428 = vmul.f32 %v416, %v416
      %v429 = vadd.f32 %v417, %v418
      %430 = vadd.xlane.f32.xlu0 %v429
      %v431 = vpop.xlane.xlu0 %430
      %v432 = vadd.f32 %v419, %v420
      %433 = vadd.xlane.f32.xlu0 %v432
      %v434 = vpop.xlane.xlu0 %433
      %v435 = vadd.f32 %v421, %v422
      %436 = vadd.xlane.f32.xlu0 %v435
      %v437 = vpop.xlane.xlu0 %436
      %v438 = vadd.f32 %v423, %v424
      %439 = vadd.xlane.f32.xlu0 %v438
      %v440 = vpop.xlane.xlu0 %439
      %v441 = vadd.f32 %v425, %v426
      %442 = vadd.xlane.f32.xlu0 %v441
      %v443 = vpop.xlane.xlu0 %442
      %v444 = vadd.f32 %v427, %v428
      %445 = vadd.xlane.f32.xlu0 %v444
      %v446 = vpop.xlane.xlu0 %445
      %v447 = vmul.f32 %v431, %v398
      %v448 = vmul.f32 %v434, %v398
      %v449 = vmul.f32 %v437, %v398
      %v450 = vmul.f32 %v440, %v398
      %v451 = vmul.f32 %v443, %v398
      %v452 = vmul.f32 %v446, %v398
      %v453 = vadd.f32 %v447, 1e-06
      %v454 = vadd.f32 %v448, 1e-06
      %v455 = vadd.f32 %v449, 1e-06
      %v456 = vadd.f32 %v450, 1e-06
      %v457 = vadd.f32 %v451, 1e-06
      %v458 = vadd.f32 %v452, 1e-06
      %v459 = vrsqrt.pop %v453
      %v460 = vrsqrt.pop %v454
      %v461 = vrsqrt.pop %v455
      %v462 = vrsqrt.pop %v456
      %v463 = vrsqrt.pop %v457
      %v464 = vrsqrt.pop %v458
      %v465 = vmul.f32 %v405, %v459
      %v466 = vmul.f32 %v406, %v459
      %v467 = vmul.f32 %v407, %v460
      %v468 = vmul.f32 %v408, %v460
      %v469 = vmul.f32 %v409, %v461
      %v470 = vmul.f32 %v410, %v461
      %v471 = vmul.f32 %v411, %v462
      %v472 = vmul.f32 %v412, %v462
      %v473 = vmul.f32 %v413, %v463
      %v474 = vmul.f32 %v414, %v463
      %v475 = vmul.f32 %v415, %v464
      %v476 = vmul.f32 %v416, %v464
      %v477 = vld [vmem:[%s334] sm:$0x3]
      %v478 = vadd.f32 %v477, 1.0
      %v480 = vlaneseq
      %v481 = vshrl.u32 %v480, 7
      %v482 = vsub.s32 0, %v481
      %v483 = vrot.slane %v478, %v482
      %v484 = vlaneseq
      %v485 = vshrl.u32 %v484, 7
      %v486 = vsub.s32 1, %v485
      %v487 = vrot.slane %v478, %v486
      %v490 = vmul.f32 %v465, %v483
      %v491 = vmul.f32 %v466, %v487
      %v492 = vmul.f32 %v467, %v483
      %v493 = vmul.f32 %v468, %v487
      %v494 = vmul.f32 %v469, %v483
      %v495 = vmul.f32 %v470, %v487
      %v496 = vmul.f32 %v471, %v483
      %v497 = vmul.f32 %v472, %v487
      %v498 = vmul.f32 %v473, %v483
      %v499 = vmul.f32 %v474, %v487
      %v500 = vmul.f32 %v475, %v483
      %v501 = vmul.f32 %v476, %v487
      %v502 = vld [vmem:[%s330] sm:$0x3]
      %v504 = vlaneseq
      %v505 = vshrl.u32 %v504, 7
      %v506 = vsub.s32 0, %v505
      %v507 = vrot.slane %v502, %v506
      %v508 = vlaneseq
      %v509 = vshrl.u32 %v508, 7
      %v510 = vsub.s32 1, %v509
      %v511 = vrot.slane %v502, %v510
      %v514 = vadd.f32 %v490, %v507
      %v515 = vadd.f32 %v491, %v511
      %v516 = vadd.f32 %v492, %v507
      %v517 = vadd.f32 %v493, %v511
      %v518 = vadd.f32 %v494, %v507
      %v519 = vadd.f32 %v495, %v511
      %v520 = vadd.f32 %v496, %v507
      %v521 = vadd.f32 %v497, %v511
      %v522 = vadd.f32 %v498, %v507
      %v523 = vadd.f32 %v499, %v511
      %v524 = vadd.f32 %v500, %v507
      %v525 = vadd.f32 %v501, %v511
      %v526 = vpack.c.bf16 %v516, %v514
      %v527 = vpack.c.bf16 %v517, %v515
      %v528 = vpack.c.bf16 %v520, %v518
      %v529 = vpack.c.bf16 %v521, %v519
      %v530 = vpack.c.bf16 %v524, %v522
      %v531 = vpack.c.bf16 %v525, %v523
      %v532 = vld [vmem:[%s339] sm:$0xff]
      %v533 = vld [vmem:[%s339 + $0x8] sm:$0xff]
      %v534 = vld [vmem:[%s339 + $0x10] sm:$0xff]
      %v535 = vld [vmem:[%s339 + $0x18] sm:$0xff]
      %v536 = vld [vmem:[%s339 + $0x20] sm:$0xff]
      %v537 = vld [vmem:[%s339 + $0x28] sm:$0xff]
      %v538 = vld [vmem:[%s339 + $0x30] sm:$0xff]
      %v539 = vld [vmem:[%s339 + $0x38] sm:$0xff]
      %v540 = vld [vmem:[%s339 + $0x40] sm:$0xff]
      %v541 = vld [vmem:[%s339 + $0x48] sm:$0xff]
      %v542 = vld [vmem:[%s339 + $0x50] sm:$0xff]
      %v543 = vld [vmem:[%s339 + $0x58] sm:$0xff]
      %v544 = vld [vmem:[%s339 + $0x60] sm:$0xff]
      %v545 = vld [vmem:[%s339 + $0x68] sm:$0xff]
      %v546 = vld [vmem:[%s339 + $0x70] sm:$0xff]
      %v547 = vld [vmem:[%s339 + $0x78] sm:$0xff]
      %v548 = vld [vmem:[%s339 + $0x80] sm:$0xff]
      %v549 = vld [vmem:[%s339 + $0x88] sm:$0xff]
      %v550 = vld [vmem:[%s339 + $0x90] sm:$0xff]
      %v551 = vld [vmem:[%s339 + $0x98] sm:$0xff]
      %v552 = vld [vmem:[%s339 + $0xa0] sm:$0xff]
      %v553 = vld [vmem:[%s339 + $0xa8] sm:$0xff]
      %v554 = vld [vmem:[%s339 + $0xb0] sm:$0xff]
      %v555 = vld [vmem:[%s339 + $0xb8] sm:$0xff]
      %v556 = vld [vmem:[%s339 + $0xc0] sm:$0xff]
      %v557 = vld [vmem:[%s339 + $0xc8] sm:$0xff]
      %v558 = vld [vmem:[%s339 + $0xd0] sm:$0xff]
      %v559 = vld [vmem:[%s339 + $0xd8] sm:$0xff]
      %v560 = vld [vmem:[%s339 + $0xe0] sm:$0xff]
      %v561 = vld [vmem:[%s339 + $0xe8] sm:$0xff]
      %v562 = vld [vmem:[%s339 + $0xf0] sm:$0xff]
      %v563 = vld [vmem:[%s339 + $0xf8] sm:$0xff]
      %v564 = vld [vmem:[%s339 + $0x100] sm:$0xff]
      %v565 = vld [vmem:[%s339 + $0x108] sm:$0xff]
      %v566 = vld [vmem:[%s339 + $0x110] sm:$0xff]
      %v567 = vld [vmem:[%s339 + $0x118] sm:$0xff]
      %v568 = vld [vmem:[%s339 + $0x120] sm:$0xff]
      %v569 = vld [vmem:[%s339 + $0x128] sm:$0xff]
      %v570 = vld [vmem:[%s339 + $0x130] sm:$0xff]
      %v571 = vld [vmem:[%s339 + $0x138] sm:$0xff]
      %v572 = vld [vmem:[%s339 + $0x140] sm:$0xff]
      %v573 = vld [vmem:[%s339 + $0x148] sm:$0xff]
      %v574 = vld [vmem:[%s339 + $0x150] sm:$0xff]
      %v575 = vld [vmem:[%s339 + $0x158] sm:$0xff]
      %v576 = vld [vmem:[%s339 + $0x160] sm:$0xff]
      %v577 = vld [vmem:[%s339 + $0x168] sm:$0xff]
      %v578 = vld [vmem:[%s339 + $0x170] sm:$0xff]
      %v579 = vld [vmem:[%s339 + $0x178] sm:$0xff]
      %v580 = vld [vmem:[%s339 + $0x180] sm:$0xff]
      %v581 = vld [vmem:[%s339 + $0x188] sm:$0xff]
      %v582 = vld [vmem:[%s339 + $0x190] sm:$0xff]
      %v583 = vld [vmem:[%s339 + $0x198] sm:$0xff]
      %v584 = vld [vmem:[%s339 + $0x1a0] sm:$0xff]
      %v585 = vld [vmem:[%s339 + $0x1a8] sm:$0xff]
      %v586 = vld [vmem:[%s339 + $0x1b0] sm:$0xff]
      %v587 = vld [vmem:[%s339 + $0x1b8] sm:$0xff]
      %v588 = vld [vmem:[%s339 + $0x1c0] sm:$0xff]
      %v589 = vld [vmem:[%s339 + $0x1c8] sm:$0xff]
      %v590 = vld [vmem:[%s339 + $0x1d0] sm:$0xff]
      %v591 = vld [vmem:[%s339 + $0x1d8] sm:$0xff]
      %v592 = vld [vmem:[%s339 + $0x1e0] sm:$0xff]
      %v593 = vld [vmem:[%s339 + $0x1e8] sm:$0xff]
      %v594 = vld [vmem:[%s339 + $0x1f0] sm:$0xff]
      %v595 = vld [vmem:[%s339 + $0x1f8] sm:$0xff]
      %v596 = vld [vmem:[%s339 + $0x200] sm:$0xff]
      %v597 = vld [vmem:[%s339 + $0x208] sm:$0xff]
      %v598 = vld [vmem:[%s339 + $0x210] sm:$0xff]
      %v599 = vld [vmem:[%s339 + $0x218] sm:$0xff]
      %v600 = vld [vmem:[%s339 + $0x220] sm:$0xff]
      %v601 = vld [vmem:[%s339 + $0x228] sm:$0xff]
      %v602 = vld [vmem:[%s339 + $0x230] sm:$0xff]
      %v603 = vld [vmem:[%s339 + $0x238] sm:$0xff]
      %v604 = vld [vmem:[%s339 + $0x240] sm:$0xff]
      %v605 = vld [vmem:[%s339 + $0x248] sm:$0xff]
      %v606 = vld [vmem:[%s339 + $0x250] sm:$0xff]
      %v607 = vld [vmem:[%s339 + $0x258] sm:$0xff]
      %v608 = vld [vmem:[%s339 + $0x260] sm:$0xff]
      %v609 = vld [vmem:[%s339 + $0x268] sm:$0xff]
      %v610 = vld [vmem:[%s339 + $0x270] sm:$0xff]
      %v611 = vld [vmem:[%s339 + $0x278] sm:$0xff]
      %v612 = vld [vmem:[%s339 + $0x280] sm:$0xff]
      %v613 = vld [vmem:[%s339 + $0x288] sm:$0xff]
      %v614 = vld [vmem:[%s339 + $0x290] sm:$0xff]
      %v615 = vld [vmem:[%s339 + $0x298] sm:$0xff]
      %v616 = vld [vmem:[%s339 + $0x2a0] sm:$0xff]
      %v617 = vld [vmem:[%s339 + $0x2a8] sm:$0xff]
      %v618 = vld [vmem:[%s339 + $0x2b0] sm:$0xff]
      %v619 = vld [vmem:[%s339 + $0x2b8] sm:$0xff]
      %v620 = vld [vmem:[%s339 + $0x2c0] sm:$0xff]
      %v621 = vld [vmem:[%s339 + $0x2c8] sm:$0xff]
      %v622 = vld [vmem:[%s339 + $0x2d0] sm:$0xff]
      %v623 = vld [vmem:[%s339 + $0x2d8] sm:$0xff]
      %v624 = vld [vmem:[%s339 + $0x2e0] sm:$0xff]
      %v625 = vld [vmem:[%s339 + $0x2e8] sm:$0xff]
      %v626 = vld [vmem:[%s339 + $0x2f0] sm:$0xff]
      %v627 = vld [vmem:[%s339 + $0x2f8] sm:$0xff]
      %v628 = vld [vmem:[%s339 + $0x300] sm:$0xff]
      %v629 = vld [vmem:[%s339 + $0x308] sm:$0xff]
      %v630 = vld [vmem:[%s339 + $0x310] sm:$0xff]
      %v631 = vld [vmem:[%s339 + $0x318] sm:$0xff]
      %v632 = vld [vmem:[%s339 + $0x320] sm:$0xff]
      %v633 = vld [vmem:[%s339 + $0x328] sm:$0xff]
      %v634 = vld [vmem:[%s339 + $0x330] sm:$0xff]
      %v635 = vld [vmem:[%s339 + $0x338] sm:$0xff]
      %v636 = vld [vmem:[%s339 + $0x340] sm:$0xff]
      %v637 = vld [vmem:[%s339 + $0x348] sm:$0xff]
      %v638 = vld [vmem:[%s339 + $0x350] sm:$0xff]
      %v639 = vld [vmem:[%s339 + $0x358] sm:$0xff]
      %v640 = vld [vmem:[%s339 + $0x360] sm:$0xff]
      %v641 = vld [vmem:[%s339 + $0x368] sm:$0xff]
      %v642 = vld [vmem:[%s339 + $0x370] sm:$0xff]
      %v643 = vld [vmem:[%s339 + $0x378] sm:$0xff]
      %v644 = vld [vmem:[%s339 + $0x380] sm:$0xff]
      %v645 = vld [vmem:[%s339 + $0x388] sm:$0xff]
      %v646 = vld [vmem:[%s339 + $0x390] sm:$0xff]
      %v647 = vld [vmem:[%s339 + $0x398] sm:$0xff]
      %v648 = vld [vmem:[%s339 + $0x3a0] sm:$0xff]
      %v649 = vld [vmem:[%s339 + $0x3a8] sm:$0xff]
      %v650 = vld [vmem:[%s339 + $0x3b0] sm:$0xff]
      %v651 = vld [vmem:[%s339 + $0x3b8] sm:$0xff]
      %v652 = vld [vmem:[%s339 + $0x3c0] sm:$0xff]
      %v653 = vld [vmem:[%s339 + $0x3c8] sm:$0xff]
      %v654 = vld [vmem:[%s339 + $0x3d0] sm:$0xff]
      %v655 = vld [vmem:[%s339 + $0x3d8] sm:$0xff]
      %v656 = vld [vmem:[%s339 + $0x3e0] sm:$0xff]
      %v657 = vld [vmem:[%s339 + $0x3e8] sm:$0xff]
      %v658 = vld [vmem:[%s339 + $0x3f0] sm:$0xff]
      %v659 = vld [vmem:[%s339 + $0x3f8] sm:$0xff]
      %v660 = vld [vmem:[%s344] sm:$0xff]
      %v662 = vlaneseq
      %v663 = vshrl.u32 %v662, 7
      %v664 = vsub.s32 0, %v663
      %v665 = vrot.slane %v660, %v664
      %v666 = vlaneseq
      %v667 = vshrl.u32 %v666, 7
      %v668 = vsub.s32 1, %v667
      %v669 = vrot.slane %v660, %v668
      %v670 = vlaneseq
      %v671 = vshrl.u32 %v670, 7
      %v672 = vsub.s32 2, %v671
      %v673 = vrot.slane %v660, %v672
      %v674 = vlaneseq
      %v675 = vshrl.u32 %v674, 7
      %v676 = vsub.s32 3, %v675
      %v677 = vrot.slane %v660, %v676
      %v678 = vlaneseq
      %v679 = vshrl.u32 %v678, 7
      %v680 = vsub.s32 4, %v679
      %v681 = vrot.slane %v660, %v680
      %v682 = vlaneseq
      %v683 = vshrl.u32 %v682, 7
      %v684 = vsub.s32 5, %v683
      %v685 = vrot.slane %v660, %v684
      %v686 = vlaneseq
      %v687 = vshrl.u32 %v686, 7
      %v688 = vsub.s32 6, %v687
      %v689 = vrot.slane %v660, %v688
      %v690 = vlaneseq
      %v691 = vshrl.u32 %v690, 7
      %v692 = vsub.s32 7, %v691
      %v693 = vrot.slane %v660, %v692
      %v830 = vunpack.c.l.b16 %v532
      %v831 = vunpack.c.h.b16 %v532
      %v832 = vunpack.c.l.b16 %v533
      %v833 = vunpack.c.h.b16 %v533
      %v834 = vunpack.c.l.b16 %v534
      %v835 = vunpack.c.h.b16 %v534
      %v836 = vunpack.c.l.b16 %v535
      %v837 = vunpack.c.h.b16 %v535
      %v838 = vunpack.c.l.b16 %v536
      %v839 = vunpack.c.h.b16 %v536
      %v840 = vunpack.c.l.b16 %v537
      %v841 = vunpack.c.h.b16 %v537
      %v842 = vunpack.c.l.b16 %v538
      %v843 = vunpack.c.h.b16 %v538
      %v844 = vunpack.c.l.b16 %v539
      %v845 = vunpack.c.h.b16 %v539
      %v846 = vunpack.c.l.b16 %v540
      %v847 = vunpack.c.h.b16 %v540
      %v848 = vunpack.c.l.b16 %v541
      %v849 = vunpack.c.h.b16 %v541
      %v850 = vunpack.c.l.b16 %v542
      %v851 = vunpack.c.h.b16 %v542
      %v852 = vunpack.c.l.b16 %v543
      %v853 = vunpack.c.h.b16 %v543
      %v854 = vunpack.c.l.b16 %v544
      %v855 = vunpack.c.h.b16 %v544
      %v856 = vunpack.c.l.b16 %v545
      %v857 = vunpack.c.h.b16 %v545
      %v858 = vunpack.c.l.b16 %v546
      %v859 = vunpack.c.h.b16 %v546
      %v860 = vunpack.c.l.b16 %v547
      %v861 = vunpack.c.h.b16 %v547
      %v862 = vunpack.c.l.b16 %v548
      %v863 = vunpack.c.h.b16 %v548
      %v864 = vunpack.c.l.b16 %v549
      %v865 = vunpack.c.h.b16 %v549
      %v866 = vunpack.c.l.b16 %v550
      %v867 = vunpack.c.h.b16 %v550
      %v868 = vunpack.c.l.b16 %v551
      %v869 = vunpack.c.h.b16 %v551
      %v870 = vunpack.c.l.b16 %v552
      %v871 = vunpack.c.h.b16 %v552
      %v872 = vunpack.c.l.b16 %v553
      %v873 = vunpack.c.h.b16 %v553
      %v874 = vunpack.c.l.b16 %v554
      %v875 = vunpack.c.h.b16 %v554
      %v876 = vunpack.c.l.b16 %v555
      %v877 = vunpack.c.h.b16 %v555
      %v878 = vunpack.c.l.b16 %v556
      %v879 = vunpack.c.h.b16 %v556
      %v880 = vunpack.c.l.b16 %v557
      %v881 = vunpack.c.h.b16 %v557
      %v882 = vunpack.c.l.b16 %v558
      %v883 = vunpack.c.h.b16 %v558
      %v884 = vunpack.c.l.b16 %v559
      %v885 = vunpack.c.h.b16 %v559
      %v886 = vunpack.c.l.b16 %v560
      %v887 = vunpack.c.h.b16 %v560
      %v888 = vunpack.c.l.b16 %v561
      %v889 = vunpack.c.h.b16 %v561
      %v890 = vunpack.c.l.b16 %v562
      %v891 = vunpack.c.h.b16 %v562
      %v892 = vunpack.c.l.b16 %v563
      %v893 = vunpack.c.h.b16 %v563
      %v894 = vunpack.c.l.b16 %v564
      %v895 = vunpack.c.h.b16 %v564
      %v896 = vunpack.c.l.b16 %v565
      %v897 = vunpack.c.h.b16 %v565
      %v898 = vunpack.c.l.b16 %v566
      %v899 = vunpack.c.h.b16 %v566
      %v900 = vunpack.c.l.b16 %v567
      %v901 = vunpack.c.h.b16 %v567
      %v902 = vunpack.c.l.b16 %v568
      %v903 = vunpack.c.h.b16 %v568
      %v904 = vunpack.c.l.b16 %v569
      %v905 = vunpack.c.h.b16 %v569
      %v906 = vunpack.c.l.b16 %v570
      %v907 = vunpack.c.h.b16 %v570
      %v908 = vunpack.c.l.b16 %v571
      %v909 = vunpack.c.h.b16 %v571
      %v910 = vunpack.c.l.b16 %v572
      %v911 = vunpack.c.h.b16 %v572
      %v912 = vunpack.c.l.b16 %v573
      %v913 = vunpack.c.h.b16 %v573
      %v914 = vunpack.c.l.b16 %v574
      %v915 = vunpack.c.h.b16 %v574
      %v916 = vunpack.c.l.b16 %v575
      %v917 = vunpack.c.h.b16 %v575
      %v918 = vunpack.c.l.b16 %v576
      %v919 = vunpack.c.h.b16 %v576
      %v920 = vunpack.c.l.b16 %v577
      %v921 = vunpack.c.h.b16 %v577
      %v922 = vunpack.c.l.b16 %v578
      %v923 = vunpack.c.h.b16 %v578
      %v924 = vunpack.c.l.b16 %v579
      %v925 = vunpack.c.h.b16 %v579
      %v926 = vunpack.c.l.b16 %v580
      %v927 = vunpack.c.h.b16 %v580
      %v928 = vunpack.c.l.b16 %v581
      %v929 = vunpack.c.h.b16 %v581
      %v930 = vunpack.c.l.b16 %v582
      %v931 = vunpack.c.h.b16 %v582
      %v932 = vunpack.c.l.b16 %v583
      %v933 = vunpack.c.h.b16 %v583
      %v934 = vunpack.c.l.b16 %v584
      %v935 = vunpack.c.h.b16 %v584
      %v936 = vunpack.c.l.b16 %v585
      %v937 = vunpack.c.h.b16 %v585
      %v938 = vunpack.c.l.b16 %v586
      %v939 = vunpack.c.h.b16 %v586
      %v940 = vunpack.c.l.b16 %v587
      %v941 = vunpack.c.h.b16 %v587
      %v942 = vunpack.c.l.b16 %v588
      %v943 = vunpack.c.h.b16 %v588
      %v944 = vunpack.c.l.b16 %v589
      %v945 = vunpack.c.h.b16 %v589
      %v946 = vunpack.c.l.b16 %v590
      %v947 = vunpack.c.h.b16 %v590
      %v948 = vunpack.c.l.b16 %v591
      %v949 = vunpack.c.h.b16 %v591
      %v950 = vunpack.c.l.b16 %v592
      %v951 = vunpack.c.h.b16 %v592
      %v952 = vunpack.c.l.b16 %v593
      %v953 = vunpack.c.h.b16 %v593
      %v954 = vunpack.c.l.b16 %v594
      %v955 = vunpack.c.h.b16 %v594
      %v956 = vunpack.c.l.b16 %v595
      %v957 = vunpack.c.h.b16 %v595
      %v958 = vunpack.c.l.b16 %v596
      %v959 = vunpack.c.h.b16 %v596
      %v960 = vunpack.c.l.b16 %v597
      %v961 = vunpack.c.h.b16 %v597
      %v962 = vunpack.c.l.b16 %v598
      %v963 = vunpack.c.h.b16 %v598
      %v964 = vunpack.c.l.b16 %v599
      %v965 = vunpack.c.h.b16 %v599
      %v966 = vunpack.c.l.b16 %v600
      %v967 = vunpack.c.h.b16 %v600
      %v968 = vunpack.c.l.b16 %v601
      %v969 = vunpack.c.h.b16 %v601
      %v970 = vunpack.c.l.b16 %v602
      %v971 = vunpack.c.h.b16 %v602
      %v972 = vunpack.c.l.b16 %v603
      %v973 = vunpack.c.h.b16 %v603
      %v974 = vunpack.c.l.b16 %v604
      %v975 = vunpack.c.h.b16 %v604
      %v976 = vunpack.c.l.b16 %v605
      %v977 = vunpack.c.h.b16 %v605
      %v978 = vunpack.c.l.b16 %v606
      %v979 = vunpack.c.h.b16 %v606
      %v980 = vunpack.c.l.b16 %v607
      %v981 = vunpack.c.h.b16 %v607
      %v982 = vunpack.c.l.b16 %v608
      %v983 = vunpack.c.h.b16 %v608
      %v984 = vunpack.c.l.b16 %v609
      %v985 = vunpack.c.h.b16 %v609
      %v986 = vunpack.c.l.b16 %v610
      %v987 = vunpack.c.h.b16 %v610
      %v988 = vunpack.c.l.b16 %v611
      %v989 = vunpack.c.h.b16 %v611
      %v990 = vunpack.c.l.b16 %v612
      %v991 = vunpack.c.h.b16 %v612
      %v992 = vunpack.c.l.b16 %v613
      %v993 = vunpack.c.h.b16 %v613
      %v994 = vunpack.c.l.b16 %v614
      %v995 = vunpack.c.h.b16 %v614
      %v996 = vunpack.c.l.b16 %v615
      %v997 = vunpack.c.h.b16 %v615
      %v998 = vunpack.c.l.b16 %v616
      %v999 = vunpack.c.h.b16 %v616
      %v1000 = vunpack.c.l.b16 %v617
      %v1001 = vunpack.c.h.b16 %v617
      %v1002 = vunpack.c.l.b16 %v618
      %v1003 = vunpack.c.h.b16 %v618
      %v1004 = vunpack.c.l.b16 %v619
      %v1005 = vunpack.c.h.b16 %v619
      %v1006 = vunpack.c.l.b16 %v620
      %v1007 = vunpack.c.h.b16 %v620
      %v1008 = vunpack.c.l.b16 %v621
      %v1009 = vunpack.c.h.b16 %v621
      %v1010 = vunpack.c.l.b16 %v622
      %v1011 = vunpack.c.h.b16 %v622
      %v1012 = vunpack.c.l.b16 %v623
      %v1013 = vunpack.c.h.b16 %v623
      %v1014 = vunpack.c.l.b16 %v624
      %v1015 = vunpack.c.h.b16 %v624
      %v1016 = vunpack.c.l.b16 %v625
      %v1017 = vunpack.c.h.b16 %v625
      %v1018 = vunpack.c.l.b16 %v626
      %v1019 = vunpack.c.h.b16 %v626
      %v1020 = vunpack.c.l.b16 %v627
      %v1021 = vunpack.c.h.b16 %v627
      %v1022 = vunpack.c.l.b16 %v628
      %v1023 = vunpack.c.h.b16 %v628
      %v1024 = vunpack.c.l.b16 %v629
      %v1025 = vunpack.c.h.b16 %v629
      %v1026 = vunpack.c.l.b16 %v630
      %v1027 = vunpack.c.h.b16 %v630
      %v1028 = vunpack.c.l.b16 %v631
      %v1029 = vunpack.c.h.b16 %v631
      %v1030 = vunpack.c.l.b16 %v632
      %v1031 = vunpack.c.h.b16 %v632
      %v1032 = vunpack.c.l.b16 %v633
      %v1033 = vunpack.c.h.b16 %v633
      %v1034 = vunpack.c.l.b16 %v634
      %v1035 = vunpack.c.h.b16 %v634
      %v1036 = vunpack.c.l.b16 %v635
      %v1037 = vunpack.c.h.b16 %v635
      %v1038 = vunpack.c.l.b16 %v636
      %v1039 = vunpack.c.h.b16 %v636
      %v1040 = vunpack.c.l.b16 %v637
      %v1041 = vunpack.c.h.b16 %v637
      %v1042 = vunpack.c.l.b16 %v638
      %v1043 = vunpack.c.h.b16 %v638
      %v1044 = vunpack.c.l.b16 %v639
      %v1045 = vunpack.c.h.b16 %v639
      %v1046 = vunpack.c.l.b16 %v640
      %v1047 = vunpack.c.h.b16 %v640
      %v1048 = vunpack.c.l.b16 %v641
      %v1049 = vunpack.c.h.b16 %v641
      %v1050 = vunpack.c.l.b16 %v642
      %v1051 = vunpack.c.h.b16 %v642
      %v1052 = vunpack.c.l.b16 %v643
      %v1053 = vunpack.c.h.b16 %v643
      %v1054 = vunpack.c.l.b16 %v644
      %v1055 = vunpack.c.h.b16 %v644
      %v1056 = vunpack.c.l.b16 %v645
      %v1057 = vunpack.c.h.b16 %v645
      %v1058 = vunpack.c.l.b16 %v646
      %v1059 = vunpack.c.h.b16 %v646
      %v1060 = vunpack.c.l.b16 %v647
      %v1061 = vunpack.c.h.b16 %v647
      %v1062 = vunpack.c.l.b16 %v648
      %v1063 = vunpack.c.h.b16 %v648
      %v1064 = vunpack.c.l.b16 %v649
      %v1065 = vunpack.c.h.b16 %v649
      %v1066 = vunpack.c.l.b16 %v650
      %v1067 = vunpack.c.h.b16 %v650
      %v1068 = vunpack.c.l.b16 %v651
      %v1069 = vunpack.c.h.b16 %v651
      %v1070 = vunpack.c.l.b16 %v652
      %v1071 = vunpack.c.h.b16 %v652
      %v1072 = vunpack.c.l.b16 %v653
      %v1073 = vunpack.c.h.b16 %v653
      %v1074 = vunpack.c.l.b16 %v654
      %v1075 = vunpack.c.h.b16 %v654
      %v1076 = vunpack.c.l.b16 %v655
      %v1077 = vunpack.c.h.b16 %v655
      %v1078 = vunpack.c.l.b16 %v656
      %v1079 = vunpack.c.h.b16 %v656
      %v1080 = vunpack.c.l.b16 %v657
      %v1081 = vunpack.c.h.b16 %v657
      %v1082 = vunpack.c.l.b16 %v658
      %v1083 = vunpack.c.h.b16 %v658
      %v1084 = vunpack.c.l.b16 %v659
      %v1085 = vunpack.c.h.b16 %v659
      %v1086 = vpack.c.b16 %v838, %v830
      %v1087 = vpack.c.b16 %v839, %v831
      %v1088 = vpack.c.b16 %v840, %v832
      %v1089 = vpack.c.b16 %v841, %v833
      %v1090 = vpack.c.b16 %v842, %v834
      %v1091 = vpack.c.b16 %v843, %v835
      %v1092 = vpack.c.b16 %v844, %v836
      %v1093 = vpack.c.b16 %v845, %v837
      %v1094 = vpack.c.b16 %v854, %v846
      %v1095 = vpack.c.b16 %v855, %v847
      %v1096 = vpack.c.b16 %v856, %v848
      %v1097 = vpack.c.b16 %v857, %v849
      %v1098 = vpack.c.b16 %v858, %v850
      %v1099 = vpack.c.b16 %v859, %v851
      %v1100 = vpack.c.b16 %v860, %v852
      %v1101 = vpack.c.b16 %v861, %v853
      %v1102 = vpack.c.b16 %v870, %v862
      %v1103 = vpack.c.b16 %v871, %v863
      %v1104 = vpack.c.b16 %v872, %v864
      %v1105 = vpack.c.b16 %v873, %v865
      %v1106 = vpack.c.b16 %v874, %v866
      %v1107 = vpack.c.b16 %v875, %v867
      %v1108 = vpack.c.b16 %v876, %v868
      %v1109 = vpack.c.b16 %v877, %v869
      %v1110 = vpack.c.b16 %v886, %v878
      %v1111 = vpack.c.b16 %v887, %v879
      %v1112 = vpack.c.b16 %v888, %v880
      %v1113 = vpack.c.b16 %v889, %v881
      %v1114 = vpack.c.b16 %v890, %v882
      %v1115 = vpack.c.b16 %v891, %v883
      %v1116 = vpack.c.b16 %v892, %v884
      %v1117 = vpack.c.b16 %v893, %v885
      %v1118 = vpack.c.b16 %v902, %v894
      %v1119 = vpack.c.b16 %v903, %v895
      %v1120 = vpack.c.b16 %v904, %v896
      %v1121 = vpack.c.b16 %v905, %v897
      %v1122 = vpack.c.b16 %v906, %v898
      %v1123 = vpack.c.b16 %v907, %v899
      %v1124 = vpack.c.b16 %v908, %v900
      %v1125 = vpack.c.b16 %v909, %v901
      %v1126 = vpack.c.b16 %v918, %v910
      %v1127 = vpack.c.b16 %v919, %v911
      %v1128 = vpack.c.b16 %v920, %v912
      %v1129 = vpack.c.b16 %v921, %v913
      %v1130 = vpack.c.b16 %v922, %v914
      %v1131 = vpack.c.b16 %v923, %v915
      %v1132 = vpack.c.b16 %v924, %v916
      %v1133 = vpack.c.b16 %v925, %v917
      %v1134 = vpack.c.b16 %v934, %v926
      %v1135 = vpack.c.b16 %v935, %v927
      %v1136 = vpack.c.b16 %v936, %v928
      %v1137 = vpack.c.b16 %v937, %v929
      %v1138 = vpack.c.b16 %v938, %v930
      %v1139 = vpack.c.b16 %v939, %v931
      %v1140 = vpack.c.b16 %v940, %v932
      %v1141 = vpack.c.b16 %v941, %v933
      %v1142 = vpack.c.b16 %v950, %v942
      %v1143 = vpack.c.b16 %v951, %v943
      %v1144 = vpack.c.b16 %v952, %v944
      %v1145 = vpack.c.b16 %v953, %v945
      %v1146 = vpack.c.b16 %v954, %v946
      %v1147 = vpack.c.b16 %v955, %v947
      %v1148 = vpack.c.b16 %v956, %v948
      %v1149 = vpack.c.b16 %v957, %v949
      %v1150 = vpack.c.b16 %v966, %v958
      %v1151 = vpack.c.b16 %v967, %v959
      %v1152 = vpack.c.b16 %v968, %v960
      %v1153 = vpack.c.b16 %v969, %v961
      %v1154 = vpack.c.b16 %v970, %v962
      %v1155 = vpack.c.b16 %v971, %v963
      %v1156 = vpack.c.b16 %v972, %v964
      %v1157 = vpack.c.b16 %v973, %v965
      %v1158 = vpack.c.b16 %v982, %v974
      %v1159 = vpack.c.b16 %v983, %v975
      %v1160 = vpack.c.b16 %v984, %v976
      %v1161 = vpack.c.b16 %v985, %v977
      %v1162 = vpack.c.b16 %v986, %v978
      %v1163 = vpack.c.b16 %v987, %v979
      %v1164 = vpack.c.b16 %v988, %v980
      %v1165 = vpack.c.b16 %v989, %v981
      %v1166 = vpack.c.b16 %v998, %v990
      %v1167 = vpack.c.b16 %v999, %v991
      %v1168 = vpack.c.b16 %v1000, %v992
      %v1169 = vpack.c.b16 %v1001, %v993
      %v1170 = vpack.c.b16 %v1002, %v994
      %v1171 = vpack.c.b16 %v1003, %v995
      %v1172 = vpack.c.b16 %v1004, %v996
      %v1173 = vpack.c.b16 %v1005, %v997
      %v1174 = vpack.c.b16 %v1014, %v1006
      %v1175 = vpack.c.b16 %v1015, %v1007
      %v1176 = vpack.c.b16 %v1016, %v1008
      %v1177 = vpack.c.b16 %v1017, %v1009
      %v1178 = vpack.c.b16 %v1018, %v1010
      %v1179 = vpack.c.b16 %v1019, %v1011
      %v1180 = vpack.c.b16 %v1020, %v1012
      %v1181 = vpack.c.b16 %v1021, %v1013
      %v1182 = vpack.c.b16 %v1030, %v1022
      %v1183 = vpack.c.b16 %v1031, %v1023
      %v1184 = vpack.c.b16 %v1032, %v1024
      %v1185 = vpack.c.b16 %v1033, %v1025
      %v1186 = vpack.c.b16 %v1034, %v1026
      %v1187 = vpack.c.b16 %v1035, %v1027
      %v1188 = vpack.c.b16 %v1036, %v1028
      %v1189 = vpack.c.b16 %v1037, %v1029
      %v1190 = vpack.c.b16 %v1046, %v1038
      %v1191 = vpack.c.b16 %v1047, %v1039
      %v1192 = vpack.c.b16 %v1048, %v1040
      %v1193 = vpack.c.b16 %v1049, %v1041
      %v1194 = vpack.c.b16 %v1050, %v1042
      %v1195 = vpack.c.b16 %v1051, %v1043
      %v1196 = vpack.c.b16 %v1052, %v1044
      %v1197 = vpack.c.b16 %v1053, %v1045
      %v1198 = vpack.c.b16 %v1062, %v1054
      %v1199 = vpack.c.b16 %v1063, %v1055
      %v1200 = vpack.c.b16 %v1064, %v1056
      %v1201 = vpack.c.b16 %v1065, %v1057
      %v1202 = vpack.c.b16 %v1066, %v1058
      %v1203 = vpack.c.b16 %v1067, %v1059
      %v1204 = vpack.c.b16 %v1068, %v1060
      %v1205 = vpack.c.b16 %v1069, %v1061
      %v1206 = vpack.c.b16 %v1078, %v1070
      %v1207 = vpack.c.b16 %v1079, %v1071
      %v1208 = vpack.c.b16 %v1080, %v1072
      %v1209 = vpack.c.b16 %v1081, %v1073
      %v1210 = vpack.c.b16 %v1082, %v1074
      %v1211 = vpack.c.b16 %v1083, %v1075
      %v1212 = vpack.c.b16 %v1084, %v1076
      %v1213 = vpack.c.b16 %v1085, %v1077
      %1342 = vmatprep.subr.bf16.mxu0 %v1087
      %1343 = vmatpush1.bf16.msra.mxu0 %v1086
      %1344 = vmatprep.subr.bf16.mxu0 %v1095
      %1345 = vmatpush1.bf16.msra.mxu0 %v1094
      %1346 = vmatprep.subr.bf16.mxu0 %v1103
      %1347 = vmatpush1.bf16.msra.mxu0 %v1102
      %1348 = vmatprep.subr.bf16.mxu0 %v1111
      %1349 = vmatpush1.bf16.msra.mxu0 %v1110
      %1350 = vmatprep.subr.bf16.mxu0 %v1119
      %1351 = vmatpush1.bf16.msra.mxu0 %v1118
      %1352 = vmatprep.subr.bf16.mxu0 %v1127
      %1353 = vmatpush1.bf16.msra.mxu0 %v1126
      %1354 = vmatprep.subr.bf16.mxu0 %v1135
      %1355 = vmatpush1.bf16.msra.mxu0 %v1134
      %1356 = vmatprep.subr.bf16.mxu0 %v1143
      %1357 = vmatpush1.bf16.msra.mxu0 %v1142
      %1358 = vmatprep.subr.bf16.mxu0 %v1151
      %1359 = vmatpush1.bf16.msra.mxu0 %v1150
      %1360 = vmatprep.subr.bf16.mxu0 %v1159
      %1361 = vmatpush1.bf16.msra.mxu0 %v1158
      %1362 = vmatprep.subr.bf16.mxu0 %v1167
      %1363 = vmatpush1.bf16.msra.mxu0 %v1166
      %1364 = vmatprep.subr.bf16.mxu0 %v1175
      %1365 = vmatpush1.bf16.msra.mxu0 %v1174
      %1366 = vmatprep.subr.bf16.mxu0 %v1183
      %1367 = vmatpush1.bf16.msra.mxu0 %v1182
      %1368 = vmatprep.subr.bf16.mxu0 %v1191
      %1369 = vmatpush1.bf16.msra.mxu0 %v1190
      %1370 = vmatprep.subr.bf16.mxu0 %v1199
      %1371 = vmatpush1.bf16.msra.mxu0 %v1198
      %1372 = vmatprep.subr.bf16.mxu0 %v1207
      %1373 = vmatpush1.bf16.msra.mxu0 %v1206
      %1374 = vmatprep.mubr.bf16.mxu0 %v527
      %1375 = vmatmul.mubr.bf16.gmra.mrb[0].mxu0 %v526
      %v1376 = vpop.f32.mrb[0].mxu0
      %v1377 = vadd.f32 %v665, %v1376
      %v1378 = vpop.f32.mrb[0].mxu0
      %v1379 = vadd.f32 %v669, %v1378
      %v1380 = vpop.f32.mrb[0].mxu0
      %v1381 = vadd.f32 %v665, %v1380
      %v1382 = vpop.f32.mrb[0].mxu0
      %v1383 = vadd.f32 %v669, %v1382
      %1384 = vmatprep.mubr.bf16.mxu0 %v529
      %1385 = vmatmul.mubr.bf16.gmra.mrb[0].mxu0 %v528
      %v1386 = vpop.f32.mrb[0].mxu0
      %v1387 = vadd.f32 %v665, %v1386
      %v1388 = vpop.f32.mrb[0].mxu0
      %v1389 = vadd.f32 %v669, %v1388
      %v1390 = vpop.f32.mrb[0].mxu0
      %v1391 = vadd.f32 %v665, %v1390
      %v1392 = vpop.f32.mrb[0].mxu0
      %v1393 = vadd.f32 %v669, %v1392
      %1394 = vmatprep.mubr.bf16.mxu0 %v531
      %1395 = vmatmul.mubr.bf16.gmra.mrb[0].mxu0 %v530
      %v1396 = vpop.f32.mrb[0].mxu0
      %v1397 = vadd.f32 %v665, %v1396
      %v1398 = vpop.f32.mrb[0].mxu0
      %v1399 = vadd.f32 %v669, %v1398
      %v1400 = vpop.f32.mrb[0].mxu0
      %v1401 = vadd.f32 %v665, %v1400
      %v1402 = vpop.f32.mrb[0].mxu0
      %v1403 = vadd.f32 %v669, %v1402
      %1404 = vdwg.mxu0
      %1405 = vmatprep.subr.bf16.mxu0 %v1089
      %1406 = vmatpush1.bf16.msra.mxu0 %v1088
      %1407 = vmatprep.subr.bf16.mxu0 %v1097
      %1408 = vmatpush1.bf16.msra.mxu0 %v1096
      %1409 = vmatprep.subr.bf16.mxu0 %v1105
      %1410 = vmatpush1.bf16.msra.mxu0 %v1104
      %1411 = vmatprep.subr.bf16.mxu0 %v1113
      %1412 = vmatpush1.bf16.msra.mxu0 %v1112
      %1413 = vmatprep.subr.bf16.mxu0 %v1121
      %1414 = vmatpush1.bf16.msra.mxu0 %v1120
      %1415 = vmatprep.subr.bf16.mxu0 %v1129
      %1416 = vmatpush1.bf16.msra.mxu0 %v1128
      %1417 = vmatprep.subr.bf16.mxu0 %v1137
      %1418 = vmatpush1.bf16.msra.mxu0 %v1136
      %1419 = vmatprep.subr.bf16.mxu0 %v1145
      %1420 = vmatpush1.bf16.msra.mxu0 %v1144
      %1421 = vmatprep.subr.bf16.mxu0 %v1153
      %1422 = vmatpush1.bf16.msra.mxu0 %v1152
      %1423 = vmatprep.subr.bf16.mxu0 %v1161
      %1424 = vmatpush1.bf16.msra.mxu0 %v1160
      %1425 = vmatprep.subr.bf16.mxu0 %v1169
      %1426 = vmatpush1.bf16.msra.mxu0 %v1168
      %1427 = vmatprep.subr.bf16.mxu0 %v1177
      %1428 = vmatpush1.bf16.msra.mxu0 %v1176
      %1429 = vmatprep.subr.bf16.mxu0 %v1185
      %1430 = vmatpush1.bf16.msra.mxu0 %v1184
      %1431 = vmatprep.subr.bf16.mxu0 %v1193
      %1432 = vmatpush1.bf16.msra.mxu0 %v1192
      %1433 = vmatprep.subr.bf16.mxu0 %v1201
      %1434 = vmatpush1.bf16.msra.mxu0 %v1200
      %1435 = vmatprep.subr.bf16.mxu0 %v1209
      %1436 = vmatpush1.bf16.msra.mxu0 %v1208
      %1437 = vmatprep.mubr.bf16.mxu0 %v527
      %1438 = vmatmul.mubr.bf16.gmra.mrb[0].mxu0 %v526
      %v1439 = vpop.f32.mrb[0].mxu0
      %v1440 = vadd.f32 %v673, %v1439
      %v1441 = vpop.f32.mrb[0].mxu0
      %v1442 = vadd.f32 %v677, %v1441
      %v1443 = vpop.f32.mrb[0].mxu0
      %v1444 = vadd.f32 %v673, %v1443
      %v1445 = vpop.f32.mrb[0].mxu0
      %v1446 = vadd.f32 %v677, %v1445
      %1447 = vmatprep.mubr.bf16.mxu0 %v529
      %1448 = vmatmul.mubr.bf16.gmra.mrb[0].mxu0 %v528
      %v1449 = vpop.f32.mrb[0].mxu0
      %v1450 = vadd.f32 %v673, %v1449
      %v1451 = vpop.f32.mrb[0].mxu0
      %v1452 = vadd.f32 %v677, %v1451
      %v1453 = vpop.f32.mrb[0].mxu0
      %v1454 = vadd.f32 %v673, %v1453
      %v1455 = vpop.f32.mrb[0].mxu0
      %v1456 = vadd.f32 %v677, %v1455
      %1457 = vmatprep.mubr.bf16.mxu0 %v531
      %1458 = vmatmul.mubr.bf16.gmra.mrb[0].mxu0 %v530
      %v1459 = vpop.f32.mrb[0].mxu0
      %v1460 = vadd.f32 %v673, %v1459
      %v1461 = vpop.f32.mrb[0].mxu0
      %v1462 = vadd.f32 %v677, %v1461
      %v1463 = vpop.f32.mrb[0].mxu0
      %v1464 = vadd.f32 %v673, %v1463
      %v1465 = vpop.f32.mrb[0].mxu0
      %v1466 = vadd.f32 %v677, %v1465
      %1467 = vdwg.mxu0
      %1468 = vmatprep.subr.bf16.mxu0 %v1091
      %1469 = vmatpush1.bf16.msra.mxu0 %v1090
      %1470 = vmatprep.subr.bf16.mxu0 %v1099
      %1471 = vmatpush1.bf16.msra.mxu0 %v1098
      %1472 = vmatprep.subr.bf16.mxu0 %v1107
      %1473 = vmatpush1.bf16.msra.mxu0 %v1106
      %1474 = vmatprep.subr.bf16.mxu0 %v1115
      %1475 = vmatpush1.bf16.msra.mxu0 %v1114
      %1476 = vmatprep.subr.bf16.mxu0 %v1123
      %1477 = vmatpush1.bf16.msra.mxu0 %v1122
      %1478 = vmatprep.subr.bf16.mxu0 %v1131
      %1479 = vmatpush1.bf16.msra.mxu0 %v1130
      %1480 = vmatprep.subr.bf16.mxu0 %v1139
      %1481 = vmatpush1.bf16.msra.mxu0 %v1138
      %1482 = vmatprep.subr.bf16.mxu0 %v1147
      %1483 = vmatpush1.bf16.msra.mxu0 %v1146
      %1484 = vmatprep.subr.bf16.mxu0 %v1155
      %1485 = vmatpush1.bf16.msra.mxu0 %v1154
      %1486 = vmatprep.subr.bf16.mxu0 %v1163
      %1487 = vmatpush1.bf16.msra.mxu0 %v1162
      %1488 = vmatprep.subr.bf16.mxu0 %v1171
      %1489 = vmatpush1.bf16.msra.mxu0 %v1170
      %1490 = vmatprep.subr.bf16.mxu0 %v1179
      %1491 = vmatpush1.bf16.msra.mxu0 %v1178
      %1492 = vmatprep.subr.bf16.mxu0 %v1187
      %1493 = vmatpush1.bf16.msra.mxu0 %v1186
      %1494 = vmatprep.subr.bf16.mxu0 %v1195
      %1495 = vmatpush1.bf16.msra.mxu0 %v1194
      %1496 = vmatprep.subr.bf16.mxu0 %v1203
      %1497 = vmatpush1.bf16.msra.mxu0 %v1202
      %1498 = vmatprep.subr.bf16.mxu0 %v1211
      %1499 = vmatpush1.bf16.msra.mxu0 %v1210
      %1500 = vmatprep.mubr.bf16.mxu0 %v527
      %1501 = vmatmul.mubr.bf16.gmra.mrb[0].mxu0 %v526
      %v1502 = vpop.f32.mrb[0].mxu0
      %v1503 = vadd.f32 %v681, %v1502
      %v1504 = vpop.f32.mrb[0].mxu0
      %v1505 = vadd.f32 %v685, %v1504
      %v1506 = vpop.f32.mrb[0].mxu0
      %v1507 = vadd.f32 %v681, %v1506
      %v1508 = vpop.f32.mrb[0].mxu0
      %v1509 = vadd.f32 %v685, %v1508
      %1510 = vmatprep.mubr.bf16.mxu0 %v529
      %1511 = vmatmul.mubr.bf16.gmra.mrb[0].mxu0 %v528
      %v1512 = vpop.f32.mrb[0].mxu0
      %v1513 = vadd.f32 %v681, %v1512
      %v1514 = vpop.f32.mrb[0].mxu0
      %v1515 = vadd.f32 %v685, %v1514
      %v1516 = vpop.f32.mrb[0].mxu0
      %v1517 = vadd.f32 %v681, %v1516
      %v1518 = vpop.f32.mrb[0].mxu0
      %v1519 = vadd.f32 %v685, %v1518
      %1520 = vmatprep.mubr.bf16.mxu0 %v531
      %1521 = vmatmul.mubr.bf16.gmra.mrb[0].mxu0 %v530
      %v1522 = vpop.f32.mrb[0].mxu0
      %v1523 = vadd.f32 %v681, %v1522
      %v1524 = vpop.f32.mrb[0].mxu0
      %v1525 = vadd.f32 %v685, %v1524
      %v1526 = vpop.f32.mrb[0].mxu0
      %v1527 = vadd.f32 %v681, %v1526
      %v1528 = vpop.f32.mrb[0].mxu0
      %v1529 = vadd.f32 %v685, %v1528
      %1530 = vdwg.mxu0
      %1531 = vmatprep.subr.bf16.mxu0 %v1093
      %1532 = vmatpush1.bf16.msra.mxu0 %v1092
      %1533 = vmatprep.subr.bf16.mxu0 %v1101
      %1534 = vmatpush1.bf16.msra.mxu0 %v1100
      %1535 = vmatprep.subr.bf16.mxu0 %v1109
      %1536 = vmatpush1.bf16.msra.mxu0 %v1108
      %1537 = vmatprep.subr.bf16.mxu0 %v1117
      %1538 = vmatpush1.bf16.msra.mxu0 %v1116
      %1539 = vmatprep.subr.bf16.mxu0 %v1125
      %1540 = vmatpush1.bf16.msra.mxu0 %v1124
      %1541 = vmatprep.subr.bf16.mxu0 %v1133
      %1542 = vmatpush1.bf16.msra.mxu0 %v1132
      %1543 = vmatprep.subr.bf16.mxu0 %v1141
      %1544 = vmatpush1.bf16.msra.mxu0 %v1140
      %1545 = vmatprep.subr.bf16.mxu0 %v1149
      %1546 = vmatpush1.bf16.msra.mxu0 %v1148
      %1547 = vmatprep.subr.bf16.mxu0 %v1157
      %1548 = vmatpush1.bf16.msra.mxu0 %v1156
      %1549 = vmatprep.subr.bf16.mxu0 %v1165
      %1550 = vmatpush1.bf16.msra.mxu0 %v1164
      %1551 = vmatprep.subr.bf16.mxu0 %v1173
      %1552 = vmatpush1.bf16.msra.mxu0 %v1172
      %1553 = vmatprep.subr.bf16.mxu0 %v1181
      %1554 = vmatpush1.bf16.msra.mxu0 %v1180
      %1555 = vmatprep.subr.bf16.mxu0 %v1189
      %1556 = vmatpush1.bf16.msra.mxu0 %v1188
      %1557 = vmatprep.subr.bf16.mxu0 %v1197
      %1558 = vmatpush1.bf16.msra.mxu0 %v1196
      %1559 = vmatprep.subr.bf16.mxu0 %v1205
      %1560 = vmatpush1.bf16.msra.mxu0 %v1204
      %1561 = vmatprep.subr.bf16.mxu0 %v1213
      %1562 = vmatpush1.bf16.msra.mxu0 %v1212
      %1563 = vmatprep.mubr.bf16.mxu0 %v527
      %1564 = vmatmul.mubr.bf16.gmra.mrb[0].mxu0 %v526
      %v1565 = vpop.f32.mrb[0].mxu0
      %v1566 = vadd.f32 %v689, %v1565
      %v1567 = vpop.f32.mrb[0].mxu0
      %v1568 = vadd.f32 %v693, %v1567
      %v1569 = vpop.f32.mrb[0].mxu0
      %v1570 = vadd.f32 %v689, %v1569
      %v1571 = vpop.f32.mrb[0].mxu0
      %v1572 = vadd.f32 %v693, %v1571
      %1573 = vmatprep.mubr.bf16.mxu0 %v529
      %1574 = vmatmul.mubr.bf16.gmra.mrb[0].mxu0 %v528
      %v1575 = vpop.f32.mrb[0].mxu0
      %v1576 = vadd.f32 %v689, %v1575
      %v1577 = vpop.f32.mrb[0].mxu0
      %v1578 = vadd.f32 %v693, %v1577
      %v1579 = vpop.f32.mrb[0].mxu0
      %v1580 = vadd.f32 %v689, %v1579
      %v1581 = vpop.f32.mrb[0].mxu0
      %v1582 = vadd.f32 %v693, %v1581
      %1583 = vmatprep.mubr.bf16.mxu0 %v531
      %1584 = vmatmul.mubr.bf16.gmra.mrb[0].mxu0 %v530
      %v1585 = vpop.f32.mrb[0].mxu0
      %v1586 = vadd.f32 %v689, %v1585
      %v1587 = vpop.f32.mrb[0].mxu0
      %v1588 = vadd.f32 %v693, %v1587
      %v1589 = vpop.f32.mrb[0].mxu0
      %v1590 = vadd.f32 %v689, %v1589
      %v1591 = vpop.f32.mrb[0].mxu0
      %v1592 = vadd.f32 %v693, %v1591
      %1593 = vdwg.mxu0
      %v1594 = vmul.f32 %v1377, %v1377
      %v1595 = vmul.f32 %v1379, %v1379
      %v1596 = vmul.f32 %v1440, %v1440
      %v1597 = vmul.f32 %v1442, %v1442
      %v1598 = vmul.f32 %v1503, %v1503
      %v1599 = vmul.f32 %v1505, %v1505
      %v1600 = vmul.f32 %v1566, %v1566
      %v1601 = vmul.f32 %v1568, %v1568
      %v1602 = vmul.f32 %v1381, %v1381
      %v1603 = vmul.f32 %v1383, %v1383
      %v1604 = vmul.f32 %v1444, %v1444
      %v1605 = vmul.f32 %v1446, %v1446
      %v1606 = vmul.f32 %v1507, %v1507
      %v1607 = vmul.f32 %v1509, %v1509
      %v1608 = vmul.f32 %v1570, %v1570
      %v1609 = vmul.f32 %v1572, %v1572
      %v1610 = vmul.f32 %v1387, %v1387
      %v1611 = vmul.f32 %v1389, %v1389
      %v1612 = vmul.f32 %v1450, %v1450
      %v1613 = vmul.f32 %v1452, %v1452
      %v1614 = vmul.f32 %v1513, %v1513
      %v1615 = vmul.f32 %v1515, %v1515
      %v1616 = vmul.f32 %v1576, %v1576
      %v1617 = vmul.f32 %v1578, %v1578
      %v1618 = vmul.f32 %v1391, %v1391
      %v1619 = vmul.f32 %v1393, %v1393
      %v1620 = vmul.f32 %v1454, %v1454
      %v1621 = vmul.f32 %v1456, %v1456
      %v1622 = vmul.f32 %v1517, %v1517
      %v1623 = vmul.f32 %v1519, %v1519
      %v1624 = vmul.f32 %v1580, %v1580
      %v1625 = vmul.f32 %v1582, %v1582
      %v1626 = vmul.f32 %v1397, %v1397
      %v1627 = vmul.f32 %v1399, %v1399
      %v1628 = vmul.f32 %v1460, %v1460
      %v1629 = vmul.f32 %v1462, %v1462
      %v1630 = vmul.f32 %v1523, %v1523
      %v1631 = vmul.f32 %v1525, %v1525
      %v1632 = vmul.f32 %v1586, %v1586
      %v1633 = vmul.f32 %v1588, %v1588
      %v1634 = vmul.f32 %v1401, %v1401
      %v1635 = vmul.f32 %v1403, %v1403
      %v1636 = vmul.f32 %v1464, %v1464
      %v1637 = vmul.f32 %v1466, %v1466
      %v1638 = vmul.f32 %v1527, %v1527
      %v1639 = vmul.f32 %v1529, %v1529
      %v1640 = vmul.f32 %v1590, %v1590
      %v1641 = vmul.f32 %v1592, %v1592
      %v1642 = vmul.f32 %v1377, %v1594
      %v1643 = vmul.f32 %v1379, %v1595
      %v1644 = vmul.f32 %v1440, %v1596
      %v1645 = vmul.f32 %v1442, %v1597
      %v1646 = vmul.f32 %v1503, %v1598
      %v1647 = vmul.f32 %v1505, %v1599
      %v1648 = vmul.f32 %v1566, %v1600
      %v1649 = vmul.f32 %v1568, %v1601
      %v1650 = vmul.f32 %v1381, %v1602
      %v1651 = vmul.f32 %v1383, %v1603
      %v1652 = vmul.f32 %v1444, %v1604
      %v1653 = vmul.f32 %v1446, %v1605
      %v1654 = vmul.f32 %v1507, %v1606
      %v1655 = vmul.f32 %v1509, %v1607
      %v1656 = vmul.f32 %v1570, %v1608
      %v1657 = vmul.f32 %v1572, %v1609
      %v1658 = vmul.f32 %v1387, %v1610
      %v1659 = vmul.f32 %v1389, %v1611
      %v1660 = vmul.f32 %v1450, %v1612
      %v1661 = vmul.f32 %v1452, %v1613
      %v1662 = vmul.f32 %v1513, %v1614
      %v1663 = vmul.f32 %v1515, %v1615
      %v1664 = vmul.f32 %v1576, %v1616
      %v1665 = vmul.f32 %v1578, %v1617
      %v1666 = vmul.f32 %v1391, %v1618
      %v1667 = vmul.f32 %v1393, %v1619
      %v1668 = vmul.f32 %v1454, %v1620
      %v1669 = vmul.f32 %v1456, %v1621
      %v1670 = vmul.f32 %v1517, %v1622
      %v1671 = vmul.f32 %v1519, %v1623
      %v1672 = vmul.f32 %v1580, %v1624
      %v1673 = vmul.f32 %v1582, %v1625
      %v1674 = vmul.f32 %v1397, %v1626
      %v1675 = vmul.f32 %v1399, %v1627
      %v1676 = vmul.f32 %v1460, %v1628
      %v1677 = vmul.f32 %v1462, %v1629
      %v1678 = vmul.f32 %v1523, %v1630
      %v1679 = vmul.f32 %v1525, %v1631
      %v1680 = vmul.f32 %v1586, %v1632
      %v1681 = vmul.f32 %v1588, %v1633
      %v1682 = vmul.f32 %v1401, %v1634
      %v1683 = vmul.f32 %v1403, %v1635
      %v1684 = vmul.f32 %v1464, %v1636
      %v1685 = vmul.f32 %v1466, %v1637
      %v1686 = vmul.f32 %v1527, %v1638
      %v1687 = vmul.f32 %v1529, %v1639
      %v1688 = vmul.f32 %v1590, %v1640
      %v1689 = vmul.f32 %v1592, %v1641
      %v1690 = vmul.f32 %v1642, 0.044715
      %v1691 = vmul.f32 %v1643, 0.044715
      %v1692 = vmul.f32 %v1644, 0.044715
      %v1693 = vmul.f32 %v1645, 0.044715
      %v1694 = vmul.f32 %v1646, 0.044715
      %v1695 = vmul.f32 %v1647, 0.044715
      %v1696 = vmul.f32 %v1648, 0.044715
      %v1697 = vmul.f32 %v1649, 0.044715
      %v1698 = vmul.f32 %v1650, 0.044715
      %v1699 = vmul.f32 %v1651, 0.044715
      %v1700 = vmul.f32 %v1652, 0.044715
      %v1701 = vmul.f32 %v1653, 0.044715
      %v1702 = vmul.f32 %v1654, 0.044715
      %v1703 = vmul.f32 %v1655, 0.044715
      %v1704 = vmul.f32 %v1656, 0.044715
      %v1705 = vmul.f32 %v1657, 0.044715
      %v1706 = vmul.f32 %v1658, 0.044715
      %v1707 = vmul.f32 %v1659, 0.044715
      %v1708 = vmul.f32 %v1660, 0.044715
      %v1709 = vmul.f32 %v1661, 0.044715
      %v1710 = vmul.f32 %v1662, 0.044715
      %v1711 = vmul.f32 %v1663, 0.044715
      %v1712 = vmul.f32 %v1664, 0.044715
      %v1713 = vmul.f32 %v1665, 0.044715
      %v1714 = vmul.f32 %v1666, 0.044715
      %v1715 = vmul.f32 %v1667, 0.044715
      %v1716 = vmul.f32 %v1668, 0.044715
      %v1717 = vmul.f32 %v1669, 0.044715
      %v1718 = vmul.f32 %v1670, 0.044715
      %v1719 = vmul.f32 %v1671, 0.044715
      %v1720 = vmul.f32 %v1672, 0.044715
      %v1721 = vmul.f32 %v1673, 0.044715
      %v1722 = vmul.f32 %v1674, 0.044715
      %v1723 = vmul.f32 %v1675, 0.044715
      %v1724 = vmul.f32 %v1676, 0.044715
      %v1725 = vmul.f32 %v1677, 0.044715
      %v1726 = vmul.f32 %v1678, 0.044715
      %v1727 = vmul.f32 %v1679, 0.044715
      %v1728 = vmul.f32 %v1680, 0.044715
      %v1729 = vmul.f32 %v1681, 0.044715
      %v1730 = vmul.f32 %v1682, 0.044715
      %v1731 = vmul.f32 %v1683, 0.044715
      %v1732 = vmul.f32 %v1684, 0.044715
      %v1733 = vmul.f32 %v1685, 0.044715
      %v1734 = vmul.f32 %v1686, 0.044715
      %v1735 = vmul.f32 %v1687, 0.044715
      %v1736 = vmul.f32 %v1688, 0.044715
      %v1737 = vmul.f32 %v1689, 0.044715
      %v1738 = vadd.f32 %v1377, %v1690
      %v1739 = vadd.f32 %v1379, %v1691
      %v1740 = vadd.f32 %v1440, %v1692
      %v1741 = vadd.f32 %v1442, %v1693
      %v1742 = vadd.f32 %v1503, %v1694
      %v1743 = vadd.f32 %v1505, %v1695
      %v1744 = vadd.f32 %v1566, %v1696
      %v1745 = vadd.f32 %v1568, %v1697
      %v1746 = vadd.f32 %v1381, %v1698
      %v1747 = vadd.f32 %v1383, %v1699
      %v1748 = vadd.f32 %v1444, %v1700
      %v1749 = vadd.f32 %v1446, %v1701
      %v1750 = vadd.f32 %v1507, %v1702
      %v1751 = vadd.f32 %v1509, %v1703
      %v1752 = vadd.f32 %v1570, %v1704
      %v1753 = vadd.f32 %v1572, %v1705
      %v1754 = vadd.f32 %v1387, %v1706
      %v1755 = vadd.f32 %v1389, %v1707
      %v1756 = vadd.f32 %v1450, %v1708
      %v1757 = vadd.f32 %v1452, %v1709
      %v1758 = vadd.f32 %v1513, %v1710
      %v1759 = vadd.f32 %v1515, %v1711
      %v1760 = vadd.f32 %v1576, %v1712
      %v1761 = vadd.f32 %v1578, %v1713
      %v1762 = vadd.f32 %v1391, %v1714
      %v1763 = vadd.f32 %v1393, %v1715
      %v1764 = vadd.f32 %v1454, %v1716
      %v1765 = vadd.f32 %v1456, %v1717
      %v1766 = vadd.f32 %v1517, %v1718
      %v1767 = vadd.f32 %v1519, %v1719
      %v1768 = vadd.f32 %v1580, %v1720
      %v1769 = vadd.f32 %v1582, %v1721
      %v1770 = vadd.f32 %v1397, %v1722
      %v1771 = vadd.f32 %v1399, %v1723
      %v1772 = vadd.f32 %v1460, %v1724
      %v1773 = vadd.f32 %v1462, %v1725
      %v1774 = vadd.f32 %v1523, %v1726
      %v1775 = vadd.f32 %v1525, %v1727
      %v1776 = vadd.f32 %v1586, %v1728
      %v1777 = vadd.f32 %v1588, %v1729
      %v1778 = vadd.f32 %v1401, %v1730
      %v1779 = vadd.f32 %v1403, %v1731
      %v1780 = vadd.f32 %v1464, %v1732
      %v1781 = vadd.f32 %v1466, %v1733
      %v1782 = vadd.f32 %v1527, %v1734
      %v1783 = vadd.f32 %v1529, %v1735
      %v1784 = vadd.f32 %v1590, %v1736
      %v1785 = vadd.f32 %v1592, %v1737
      %v1786 = vmul.f32 %v1738, 0.7978846
      %v1787 = vmul.f32 %v1739, 0.7978846
      %v1788 = vmul.f32 %v1740, 0.7978846
      %v1789 = vmul.f32 %v1741, 0.7978846
      %v1790 = vmul.f32 %v1742, 0.7978846
      %v1791 = vmul.f32 %v1743, 0.7978846
      %v1792 = vmul.f32 %v1744, 0.7978846
      %v1793 = vmul.f32 %v1745, 0.7978846
      %v1794 = vmul.f32 %v1746, 0.7978846
      %v1795 = vmul.f32 %v1747, 0.7978846
      %v1796 = vmul.f32 %v1748, 0.7978846
      %v1797 = vmul.f32 %v1749, 0.7978846
      %v1798 = vmul.f32 %v1750, 0.7978846
      %v1799 = vmul.f32 %v1751, 0.7978846
      %v1800 = vmul.f32 %v1752, 0.7978846
      %v1801 = vmul.f32 %v1753, 0.7978846
      %v1802 = vmul.f32 %v1754, 0.7978846
      %v1803 = vmul.f32 %v1755, 0.7978846
      %v1804 = vmul.f32 %v1756, 0.7978846
      %v1805 = vmul.f32 %v1757, 0.7978846
      %v1806 = vmul.f32 %v1758, 0.7978846
      %v1807 = vmul.f32 %v1759, 0.7978846
      %v1808 = vmul.f32 %v1760, 0.7978846
      %v1809 = vmul.f32 %v1761, 0.7978846
      %v1810 = vmul.f32 %v1762, 0.7978846
      %v1811 = vmul.f32 %v1763, 0.7978846
      %v1812 = vmul.f32 %v1764, 0.7978846
      %v1813 = vmul.f32 %v1765, 0.7978846
      %v1814 = vmul.f32 %v1766, 0.7978846
      %v1815 = vmul.f32 %v1767, 0.7978846
      %v1816 = vmul.f32 %v1768, 0.7978846
      %v1817 = vmul.f32 %v1769, 0.7978846
      %v1818 = vmul.f32 %v1770, 0.7978846
      %v1819 = vmul.f32 %v1771, 0.7978846
      %v1820 = vmul.f32 %v1772, 0.7978846
      %v1821 = vmul.f32 %v1773, 0.7978846
      %v1822 = vmul.f32 %v1774, 0.7978846
      %v1823 = vmul.f32 %v1775, 0.7978846
      %v1824 = vmul.f32 %v1776, 0.7978846
      %v1825 = vmul.f32 %v1777, 0.7978846
      %v1826 = vmul.f32 %v1778, 0.7978846
      %v1827 = vmul.f32 %v1779, 0.7978846
      %v1828 = vmul.f32 %v1780, 0.7978846
      %v1829 = vmul.f32 %v1781, 0.7978846
      %v1830 = vmul.f32 %v1782, 0.7978846
      %v1831 = vmul.f32 %v1783, 0.7978846
      %v1832 = vmul.f32 %v1784, 0.7978846
      %v1833 = vmul.f32 %v1785, 0.7978846
      %v1834 = vtanh.pop %v1786
      %v1835 = vtanh.pop %v1787
      %v1836 = vtanh.pop %v1788
      %v1837 = vtanh.pop %v1789
      %v1838 = vtanh.pop %v1790
      %v1839 = vtanh.pop %v1791
      %v1840 = vtanh.pop %v1792
      %v1841 = vtanh.pop %v1793
      %v1842 = vtanh.pop %v1794
      %v1843 = vtanh.pop %v1795
      %v1844 = vtanh.pop %v1796
      %v1845 = vtanh.pop %v1797
      %v1846 = vtanh.pop %v1798
      %v1847 = vtanh.pop %v1799
      %v1848 = vtanh.pop %v1800
      %v1849 = vtanh.pop %v1801
      %v1850 = vtanh.pop %v1802
      %v1851 = vtanh.pop %v1803
      %v1852 = vtanh.pop %v1804
      %v1853 = vtanh.pop %v1805
      %v1854 = vtanh.pop %v1806
      %v1855 = vtanh.pop %v1807
      %v1856 = vtanh.pop %v1808
      %v1857 = vtanh.pop %v1809
      %v1858 = vtanh.pop %v1810
      %v1859 = vtanh.pop %v1811
      %v1860 = vtanh.pop %v1812
      %v1861 = vtanh.pop %v1813
      %v1862 = vtanh.pop %v1814
      %v1863 = vtanh.pop %v1815
      %v1864 = vtanh.pop %v1816
      %v1865 = vtanh.pop %v1817
      %v1866 = vtanh.pop %v1818
      %v1867 = vtanh.pop %v1819
      %v1868 = vtanh.pop %v1820
      %v1869 = vtanh.pop %v1821
      %v1870 = vtanh.pop %v1822
      %v1871 = vtanh.pop %v1823
      %v1872 = vtanh.pop %v1824
      %v1873 = vtanh.pop %v1825
      %v1874 = vtanh.pop %v1826
      %v1875 = vtanh.pop %v1827
      %v1876 = vtanh.pop %v1828
      %v1877 = vtanh.pop %v1829
      %v1878 = vtanh.pop %v1830
      %v1879 = vtanh.pop %v1831
      %v1880 = vtanh.pop %v1832
      %v1881 = vtanh.pop %v1833
      %v1882 = vadd.f32 %v1834, 1.0
      %v1883 = vadd.f32 %v1835, 1.0
      %v1884 = vadd.f32 %v1836, 1.0
      %v1885 = vadd.f32 %v1837, 1.0
      %v1886 = vadd.f32 %v1838, 1.0
      %v1887 = vadd.f32 %v1839, 1.0
      %v1888 = vadd.f32 %v1840, 1.0
      %v1889 = vadd.f32 %v1841, 1.0
      %v1890 = vadd.f32 %v1842, 1.0
      %v1891 = vadd.f32 %v1843, 1.0
      %v1892 = vadd.f32 %v1844, 1.0
      %v1893 = vadd.f32 %v1845, 1.0
      %v1894 = vadd.f32 %v1846, 1.0
      %v1895 = vadd.f32 %v1847, 1.0
      %v1896 = vadd.f32 %v1848, 1.0
      %v1897 = vadd.f32 %v1849, 1.0
      %v1898 = vadd.f32 %v1850, 1.0
      %v1899 = vadd.f32 %v1851, 1.0
      %v1900 = vadd.f32 %v1852, 1.0
      %v1901 = vadd.f32 %v1853, 1.0
      %v1902 = vadd.f32 %v1854, 1.0
      %v1903 = vadd.f32 %v1855, 1.0
      %v1904 = vadd.f32 %v1856, 1.0
      %v1905 = vadd.f32 %v1857, 1.0
      %v1906 = vadd.f32 %v1858, 1.0
      %v1907 = vadd.f32 %v1859, 1.0
      %v1908 = vadd.f32 %v1860, 1.0
      %v1909 = vadd.f32 %v1861, 1.0
      %v1910 = vadd.f32 %v1862, 1.0
      %v1911 = vadd.f32 %v1863, 1.0
      %v1912 = vadd.f32 %v1864, 1.0
      %v1913 = vadd.f32 %v1865, 1.0
      %v1914 = vadd.f32 %v1866, 1.0
      %v1915 = vadd.f32 %v1867, 1.0
      %v1916 = vadd.f32 %v1868, 1.0
      %v1917 = vadd.f32 %v1869, 1.0
      %v1918 = vadd.f32 %v1870, 1.0
      %v1919 = vadd.f32 %v1871, 1.0
      %v1920 = vadd.f32 %v1872, 1.0
      %v1921 = vadd.f32 %v1873, 1.0
      %v1922 = vadd.f32 %v1874, 1.0
      %v1923 = vadd.f32 %v1875, 1.0
      %v1924 = vadd.f32 %v1876, 1.0
      %v1925 = vadd.f32 %v1877, 1.0
      %v1926 = vadd.f32 %v1878, 1.0
      %v1927 = vadd.f32 %v1879, 1.0
      %v1928 = vadd.f32 %v1880, 1.0
      %v1929 = vadd.f32 %v1881, 1.0
      %v1930 = vmul.f32 %v1882, 0.5
      %v1931 = vmul.f32 %v1883, 0.5
      %v1932 = vmul.f32 %v1884, 0.5
      %v1933 = vmul.f32 %v1885, 0.5
      %v1934 = vmul.f32 %v1886, 0.5
      %v1935 = vmul.f32 %v1887, 0.5
      %v1936 = vmul.f32 %v1888, 0.5
      %v1937 = vmul.f32 %v1889, 0.5
      %v1938 = vmul.f32 %v1890, 0.5
      %v1939 = vmul.f32 %v1891, 0.5
      %v1940 = vmul.f32 %v1892, 0.5
      %v1941 = vmul.f32 %v1893, 0.5
      %v1942 = vmul.f32 %v1894, 0.5
      %v1943 = vmul.f32 %v1895, 0.5
      %v1944 = vmul.f32 %v1896, 0.5
      %v1945 = vmul.f32 %v1897, 0.5
      %v1946 = vmul.f32 %v1898, 0.5
      %v1947 = vmul.f32 %v1899, 0.5
      %v1948 = vmul.f32 %v1900, 0.5
      %v1949 = vmul.f32 %v1901, 0.5
      %v1950 = vmul.f32 %v1902, 0.5
      %v1951 = vmul.f32 %v1903, 0.5
      %v1952 = vmul.f32 %v1904, 0.5
      %v1953 = vmul.f32 %v1905, 0.5
      %v1954 = vmul.f32 %v1906, 0.5
      %v1955 = vmul.f32 %v1907, 0.5
      %v1956 = vmul.f32 %v1908, 0.5
      %v1957 = vmul.f32 %v1909, 0.5
      %v1958 = vmul.f32 %v1910, 0.5
      %v1959 = vmul.f32 %v1911, 0.5
      %v1960 = vmul.f32 %v1912, 0.5
      %v1961 = vmul.f32 %v1913, 0.5
      %v1962 = vmul.f32 %v1914, 0.5
      %v1963 = vmul.f32 %v1915, 0.5
      %v1964 = vmul.f32 %v1916, 0.5
      %v1965 = vmul.f32 %v1917, 0.5
      %v1966 = vmul.f32 %v1918, 0.5
      %v1967 = vmul.f32 %v1919, 0.5
      %v1968 = vmul.f32 %v1920, 0.5
      %v1969 = vmul.f32 %v1921, 0.5
      %v1970 = vmul.f32 %v1922, 0.5
      %v1971 = vmul.f32 %v1923, 0.5
      %v1972 = vmul.f32 %v1924, 0.5
      %v1973 = vmul.f32 %v1925, 0.5
      %v1974 = vmul.f32 %v1926, 0.5
      %v1975 = vmul.f32 %v1927, 0.5
      %v1976 = vmul.f32 %v1928, 0.5
      %v1977 = vmul.f32 %v1929, 0.5
      %v1978 = vmul.f32 %v1377, %v1930
      %v1979 = vmul.f32 %v1379, %v1931
      %v1980 = vmul.f32 %v1440, %v1932
      %v1981 = vmul.f32 %v1442, %v1933
      %v1982 = vmul.f32 %v1503, %v1934
      %v1983 = vmul.f32 %v1505, %v1935
      %v1984 = vmul.f32 %v1566, %v1936
      %v1985 = vmul.f32 %v1568, %v1937
      %v1986 = vmul.f32 %v1381, %v1938
      %v1987 = vmul.f32 %v1383, %v1939
      %v1988 = vmul.f32 %v1444, %v1940
      %v1989 = vmul.f32 %v1446, %v1941
      %v1990 = vmul.f32 %v1507, %v1942
      %v1991 = vmul.f32 %v1509, %v1943
      %v1992 = vmul.f32 %v1570, %v1944
      %v1993 = vmul.f32 %v1572, %v1945
      %v1994 = vmul.f32 %v1387, %v1946
      %v1995 = vmul.f32 %v1389, %v1947
      %v1996 = vmul.f32 %v1450, %v1948
      %v1997 = vmul.f32 %v1452, %v1949
      %v1998 = vmul.f32 %v1513, %v1950
      %v1999 = vmul.f32 %v1515, %v1951
      %v2000 = vmul.f32 %v1576, %v1952
      %v2001 = vmul.f32 %v1578, %v1953
      %v2002 = vmul.f32 %v1391, %v1954
      %v2003 = vmul.f32 %v1393, %v1955
      %v2004 = vmul.f32 %v1454, %v1956
      %v2005 = vmul.f32 %v1456, %v1957
      %v2006 = vmul.f32 %v1517, %v1958
      %v2007 = vmul.f32 %v1519, %v1959
      %v2008 = vmul.f32 %v1580, %v1960
      %v2009 = vmul.f32 %v1582, %v1961
      %v2010 = vmul.f32 %v1397, %v1962
      %v2011 = vmul.f32 %v1399, %v1963
      %v2012 = vmul.f32 %v1460, %v1964
      %v2013 = vmul.f32 %v1462, %v1965
      %v2014 = vmul.f32 %v1523, %v1966
      %v2015 = vmul.f32 %v1525, %v1967
      %v2016 = vmul.f32 %v1586, %v1968
      %v2017 = vmul.f32 %v1588, %v1969
      %v2018 = vmul.f32 %v1401, %v1970
      %v2019 = vmul.f32 %v1403, %v1971
      %v2020 = vmul.f32 %v1464, %v1972
      %v2021 = vmul.f32 %v1466, %v1973
      %v2022 = vmul.f32 %v1527, %v1974
      %v2023 = vmul.f32 %v1529, %v1975
      %v2024 = vmul.f32 %v1590, %v1976
      %v2025 = vmul.f32 %v1592, %v1977
      %v2026 = vpack.c.bf16 %v1986, %v1978
      %v2027 = vpack.c.bf16 %v1987, %v1979
      %v2028 = vpack.c.bf16 %v1988, %v1980
      %v2029 = vpack.c.bf16 %v1989, %v1981
      %v2030 = vpack.c.bf16 %v1990, %v1982
      %v2031 = vpack.c.bf16 %v1991, %v1983
      %v2032 = vpack.c.bf16 %v1992, %v1984
      %v2033 = vpack.c.bf16 %v1993, %v1985
      %v2034 = vpack.c.bf16 %v2002, %v1994
      %v2035 = vpack.c.bf16 %v2003, %v1995
      %v2036 = vpack.c.bf16 %v2004, %v1996
      %v2037 = vpack.c.bf16 %v2005, %v1997
      %v2038 = vpack.c.bf16 %v2006, %v1998
      %v2039 = vpack.c.bf16 %v2007, %v1999
      %v2040 = vpack.c.bf16 %v2008, %v2000
      %v2041 = vpack.c.bf16 %v2009, %v2001
      %v2042 = vpack.c.bf16 %v2018, %v2010
      %v2043 = vpack.c.bf16 %v2019, %v2011
      %v2044 = vpack.c.bf16 %v2020, %v2012
      %v2045 = vpack.c.bf16 %v2021, %v2013
      %v2046 = vpack.c.bf16 %v2022, %v2014
      %v2047 = vpack.c.bf16 %v2023, %v2015
      %v2048 = vpack.c.bf16 %v2024, %v2016
      %v2049 = vpack.c.bf16 %v2025, %v2017
      %v2074 = vunpack.c.l.b16 %v2026
      %v2075 = vunpack.c.l.b16 %v2027
      %v2076 = vunpack.c.l.b16 %v2028
      %v2077 = vunpack.c.l.b16 %v2029
      %v2078 = vunpack.c.l.b16 %v2030
      %v2079 = vunpack.c.l.b16 %v2031
      %v2080 = vunpack.c.l.b16 %v2032
      %v2081 = vunpack.c.l.b16 %v2033
      %v2082 = vunpack.c.h.b16 %v2026
      %v2083 = vunpack.c.h.b16 %v2027
      %v2084 = vunpack.c.h.b16 %v2028
      %v2085 = vunpack.c.h.b16 %v2029
      %v2086 = vunpack.c.h.b16 %v2030
      %v2087 = vunpack.c.h.b16 %v2031
      %v2088 = vunpack.c.h.b16 %v2032
      %v2089 = vunpack.c.h.b16 %v2033
      %v2090 = vunpack.c.l.b16 %v2034
      %v2091 = vunpack.c.l.b16 %v2035
      %v2092 = vunpack.c.l.b16 %v2036
      %v2093 = vunpack.c.l.b16 %v2037
      %v2094 = vunpack.c.l.b16 %v2038
      %v2095 = vunpack.c.l.b16 %v2039
      %v2096 = vunpack.c.l.b16 %v2040
      %v2097 = vunpack.c.l.b16 %v2041
      %v2098 = vunpack.c.h.b16 %v2034
      %v2099 = vunpack.c.h.b16 %v2035
      %v2100 = vunpack.c.h.b16 %v2036
      %v2101 = vunpack.c.h.b16 %v2037
      %v2102 = vunpack.c.h.b16 %v2038
      %v2103 = vunpack.c.h.b16 %v2039
      %v2104 = vunpack.c.h.b16 %v2040
      %v2105 = vunpack.c.h.b16 %v2041
      %v2106 = vunpack.c.l.b16 %v2042
      %v2107 = vunpack.c.l.b16 %v2043
      %v2108 = vunpack.c.l.b16 %v2044
      %v2109 = vunpack.c.l.b16 %v2045
      %v2110 = vunpack.c.l.b16 %v2046
      %v2111 = vunpack.c.l.b16 %v2047
      %v2112 = vunpack.c.l.b16 %v2048
      %v2113 = vunpack.c.l.b16 %v2049
      %v2114 = vunpack.c.h.b16 %v2042
      %v2115 = vunpack.c.h.b16 %v2043
      %v2116 = vunpack.c.h.b16 %v2044
      %v2117 = vunpack.c.h.b16 %v2045
      %v2118 = vunpack.c.h.b16 %v2046
      %v2119 = vunpack.c.h.b16 %v2047
      %v2120 = vunpack.c.h.b16 %v2048
      %v2121 = vunpack.c.h.b16 %v2049
      %v2122 = vpack.c.b16 %v2075, %v2074
      %v2123 = vpack.c.b16 %v2077, %v2076
      %v2124 = vpack.c.b16 %v2079, %v2078
      %v2125 = vpack.c.b16 %v2081, %v2080
      %v2126 = vpack.c.b16 %v2083, %v2082
      %v2127 = vpack.c.b16 %v2085, %v2084
      %v2128 = vpack.c.b16 %v2087, %v2086
      %v2129 = vpack.c.b16 %v2089, %v2088
      %v2130 = vpack.c.b16 %v2091, %v2090
      %v2131 = vpack.c.b16 %v2093, %v2092
      %v2132 = vpack.c.b16 %v2095, %v2094
      %v2133 = vpack.c.b16 %v2097, %v2096
      %v2134 = vpack.c.b16 %v2099, %v2098
      %v2135 = vpack.c.b16 %v2101, %v2100
      %v2136 = vpack.c.b16 %v2103, %v2102
      %v2137 = vpack.c.b16 %v2105, %v2104
      %v2138 = vpack.c.b16 %v2107, %v2106
      %v2139 = vpack.c.b16 %v2109, %v2108
      %v2140 = vpack.c.b16 %v2111, %v2110
      %v2141 = vpack.c.b16 %v2113, %v2112
      %v2142 = vpack.c.b16 %v2115, %v2114
      %v2143 = vpack.c.b16 %v2117, %v2116
      %v2144 = vpack.c.b16 %v2119, %v2118
      %v2145 = vpack.c.b16 %v2121, %v2120
      %2170 = vst [vmem:[%s359] sm:$0xff] %v2122
      %2171 = vst [vmem:[%s359 + $0x8] sm:$0xff] %v2123
      %2172 = vst [vmem:[%s359 + $0x10] sm:$0xff] %v2124
      %2173 = vst [vmem:[%s359 + $0x18] sm:$0xff] %v2125
      %2174 = vst [vmem:[%s359 + $0x20] sm:$0xff] %v2126
      %2175 = vst [vmem:[%s359 + $0x28] sm:$0xff] %v2127
      %2176 = vst [vmem:[%s359 + $0x30] sm:$0xff] %v2128
      %2177 = vst [vmem:[%s359 + $0x38] sm:$0xff] %v2129
      %2178 = vst [vmem:[%s359 + $0x40] sm:$0xff] %v2130
      %2179 = vst [vmem:[%s359 + $0x48] sm:$0xff] %v2131
      %2180 = vst [vmem:[%s359 + $0x50] sm:$0xff] %v2132
      %2181 = vst [vmem:[%s359 + $0x58] sm:$0xff] %v2133
      %2182 = vst [vmem:[%s359 + $0x60] sm:$0xff] %v2134
      %2183 = vst [vmem:[%s359 + $0x68] sm:$0xff] %v2135
      %2184 = vst [vmem:[%s359 + $0x70] sm:$0xff] %v2136
      %2185 = vst [vmem:[%s359 + $0x78] sm:$0xff] %v2137
      %2186 = vst [vmem:[%s359 + $0x80] sm:$0xff] %v2138
      %2187 = vst [vmem:[%s359 + $0x88] sm:$0xff] %v2139
      %2188 = vst [vmem:[%s359 + $0x90] sm:$0xff] %v2140
      %2189 = vst [vmem:[%s359 + $0x98] sm:$0xff] %v2141
      %2190 = vst [vmem:[%s359 + $0xa0] sm:$0xff] %v2142
      %2191 = vst [vmem:[%s359 + $0xa8] sm:$0xff] %v2143
      %2192 = vst [vmem:[%s359 + $0xb0] sm:$0xff] %v2144
      %2193 = vst [vmem:[%s359 + $0xb8] sm:$0xff] %v2145
      %s2194 = smul.u32 6, %s23
      %s2195 = smul.u32 8, %s22
      %p2196 = scmp.lt.s32.totalorder %s21, 1
      %s2197 = scalar_select %p2196, %s21, 1
      %p2198 = scmp.lt.s32.totalorder %s2194, 5
      %s2199 = scalar_select %p2198, %s2194, 5
      %p2200 = scmp.lt.s32.totalorder %s2195, 7
      %s2201 = scalar_select %p2200, %s2195, 7
      %s2202 = smul.addr %s2199, 8
      %s2203 = sadd.s32 %s2201, %s2202
      %s2204 = smul.addr %s2197, 48
      %s2205 = sadd.s32 %s2203, %s2204
      %s2206 = smul.addr %s2205, 4
      %s2207 = scalar_lea.vmem %s5, %s2206
      // Predicated region
      $region41: #{run.14} parent=39 // pred_check
        %p2208 = pneg %p189
      $region42: #{run.14} parent=39 // pred_check_branch
        %2210 = sbr.rel (%p2208) target = $region44
      $region43: #{run.14} parent=39 // pred_region
        %s2211 = smul.u32 6, %s23
        %s2212 = smul.u32 8, %s22
      $region44: #{run.14} parent=39 // pred_fallthru
        _
    $region40: #{run.14} parent=5 // pred_fallthru
      _
    %p2213 = scmp.le.s32.totalorder 2, %s11
    // Predicated region
    $region45: #{run.14} parent=5 // pred_check
      %p2214 = pneg %p2213
    $region46: #{run.14} parent=5 // pred_check_branch
      %2216 = sbr.rel (%p2214) target = $region48
    $region47: #{run.14} parent=5 // pred_region
      %s2217 = ssub.s32 %s11, 2
      // Predicated region
      $region49: #{run.14} parent=47 // pred_check
        %p2218 = pneg %p195
      $region50: #{run.14} parent=47 // pred_check_branch
        %2220 = sbr.rel (%p2218) target = $region52
      $region51: #{run.14} parent=47 // pred_region
        %s2221 = smul.u32 6, %s26
        %s2222 = smul.u32 8, %s25
        %p2223 = scmp.lt.s32.totalorder %s24, 1
        %s2224 = scalar_select %p2223, %s24, 1
        %p2225 = scmp.lt.s32.totalorder %s2221, 5
        %s2226 = scalar_select %p2225, %s2221, 5
        %p2227 = scmp.lt.s32.totalorder %s2222, 7
        %s2228 = scalar_select %p2227, %s2222, 7
        %s2229 = smul.addr %s2226, 8
        %s2230 = sadd.s32 %s2228, %s2229
        %s2231 = smul.addr %s2224, 48
        %s2232 = sadd.s32 %s2230, %s2231
        %s2233 = smul.addr %s2232, 4
        %s2234 = scalar_lea.vmem %s5, %s2233
      $region52: #{run.14} parent=47 // pred_fallthru
        _
    $region48: #{run.14} parent=5 // pred_fallthru
      _
  $region6: #{run.14} parent=0 // loop_footer
    %s15 = sadd.s32 1, %s11
  $region7: #{run.14} parent=0 // loop_footer_branch
    %10 = sbr.rel target = $region3
  $region8: #{run.14} parent=0 // loop_exit
    _

// kernel: run.21
$region0: #{run.21}
  #allocation0 [shape = 'u32[]', space=smem, size = 0x4, offset = 0x4, fixed_abs, tag = 'smem constant byte address 0x4 - core index']
  #allocation1 [shape = 'u32[144,128]{1,0:T(1,128)}', space=vmem, size = 0x12000, scoped, tag = 'internal scratch']
  %s0 = inlined_call_operand.vmem [shape: bf16[2,32,256], index: 0, kind: input, shape index: {}]
  %s1 = inlined_call_operand.vmem [shape: f32[2,1,256], index: 1, kind: input, shape index: {}]
  %s2 = inlined_call_operand.vmem [shape: f32[2,1,256], index: 2, kind: input, shape index: {}]
  %s3 = inlined_call_operand.vmem [shape: f32[2,32,256], index: 3, kind: output, shape index: {}]
  %s4 = sld [smem:[#allocation0]]
  $region45: #{run.21} parent=0
    _
  %s6 = ssub.s32 1, %s4
  %s7 = scalar_select 0, %s6, %s4
  loop: start=0, step=1, limit=4
  $region2: #{run.21} parent=0 // loop_pre_header
    _
  $region3: #{run.21} parent=0 // loop_header
    %s9 = sphi 0, %s13
    %p10 = scmp.ge.s32.totalorder %s9, 4
    %s16 = sphi 0, %s28
    %s17 = sphi 0, %s24
    %s18 = sphi 0, %s16
    %s19 = sphi 0, %s17
    %s20 = sphi 0, %s18
    %s21 = sphi 0, %s19
    %s33 = sphi 0, %s35
    %s36 = sphi 0, %s33
    %s37 = sphi 0, %s36
    %s53 = sphi 0, %s37
    %s59 = sphi 0, %s61
    %s62 = sphi 0, %s59
    %s63 = sphi 0, %s62
    %s79 = sphi 0, %s63
    %s85 = sphi 0, %s87
    %s88 = sphi 0, %s85
    %s89 = sphi 0, %s88
    %s105 = sphi 0, %s89
    %s113 = sphi 0, %s115
    %s116 = sphi 0, %s113
    %s117 = sphi 0, %s116
    %s133 = sphi 0, %s117
  $region4: #{run.21} parent=0 // loop_header_branch
    %12 = sbr.rel (%p10) target = $region8
  $region5: #{run.21} parent=0 // loop_body
    %s14 = ssub.s32 %s9, 1
    %s15 = ssub.s32 %s9, 2
    %s22 = sadd.s32 1, %s17
    %p23 = scmp.ge.s32.totalorder %s22, 1
    %s24 = scalar_select %p23, 0, %s22
    %s25 = sadd.s32 1, %s16
    %s26 = scalar_select %p23, %s25, %s16
    %p27 = scmp.ge.s32.totalorder %s26, 2
    %s28 = scalar_select %p27, 0, %s26
    %s29 = ssub.s32 %s16, %s28
    %s30 = ssub.s32 %s17, %s24
    %s31 = sor.u32 %s29, %s30
    %p32 = scmp.eq.s32.totalorder %s31, 0
    %s34 = sadd.s32 %s33, 1
    %s35 = scalar_select %p32, %s33, %s34
    %p38 = pneg %p32
    %p39 = scmp.eq.s32.totalorder %s9, 1
    %p40 = por %p38, %p39
    %p41 = scmp.ne.s32.totalorder %s33, %s36
    %p42 = scmp.eq.s32.totalorder %s9, 0
    %p43 = por %p41, %p42
    %p44 = scmp.ne.s32.totalorder %s33, %s36
    %p45 = scmp.eq.s32.totalorder %s14, 1
    %p46 = por %p44, %p45
    %p47 = scmp.ne.s32.totalorder %s36, %s37
    %p48 = scmp.eq.s32.totalorder %s14, 0
    %p49 = por %p47, %p48
    %p50 = scmp.ne.s32.totalorder %s36, %s37
    %p51 = scmp.eq.s32.totalorder %s15, 1
    %p52 = por %p50, %p51
    %p54 = scmp.ne.s32.totalorder %s37, %s53
    %p55 = scmp.eq.s32.totalorder %s15, 0
    %p56 = por %p54, %p55
    %s57 = ssub.s32 %s16, %s28
    %p58 = scmp.eq.s32.totalorder %s57, 0
    %s60 = sadd.s32 %s59, 1
    %s61 = scalar_select %p58, %s59, %s60
    %p64 = pneg %p58
    %p65 = scmp.eq.s32.totalorder %s9, 1
    %p66 = por %p64, %p65
    %p67 = scmp.ne.s32.totalorder %s59, %s62
    %p68 = scmp.eq.s32.totalorder %s9, 0
    %p69 = por %p67, %p68
    %p70 = scmp.ne.s32.totalorder %s59, %s62
    %p71 = scmp.eq.s32.totalorder %s14, 1
    %p72 = por %p70, %p71
    %p73 = scmp.ne.s32.totalorder %s62, %s63
    %p74 = scmp.eq.s32.totalorder %s14, 0
    %p75 = por %p73, %p74
    %p76 = scmp.ne.s32.totalorder %s62, %s63
    %p77 = scmp.eq.s32.totalorder %s15, 1
    %p78 = por %p76, %p77
    %p80 = scmp.ne.s32.totalorder %s63, %s79
    %p81 = scmp.eq.s32.totalorder %s15, 0
    %p82 = por %p80, %p81
    %s83 = ssub.s32 %s16, %s28
    %p84 = scmp.eq.s32.totalorder %s83, 0
    %s86 = sadd.s32 %s85, 1
    %s87 = scalar_select %p84, %s85, %s86
    %p90 = pneg %p84
    %p91 = scmp.eq.s32.totalorder %s9, 1
    %p92 = por %p90, %p91
    %p93 = scmp.ne.s32.totalorder %s85, %s88
    %p94 = scmp.eq.s32.totalorder %s9, 0
    %p95 = por %p93, %p94
    %p96 = scmp.ne.s32.totalorder %s85, %s88
    %p97 = scmp.eq.s32.totalorder %s14, 1
    %p98 = por %p96, %p97
    %p99 = scmp.ne.s32.totalorder %s88, %s89
    %p100 = scmp.eq.s32.totalorder %s14, 0
    %p101 = por %p99, %p100
    %p102 = scmp.ne.s32.totalorder %s88, %s89
    %p103 = scmp.eq.s32.totalorder %s15, 1
    %p104 = por %p102, %p103
    %p106 = scmp.ne.s32.totalorder %s89, %s105
    %p107 = scmp.eq.s32.totalorder %s15, 0
    %p108 = por %p106, %p107
    %s109 = ssub.s32 %s16, %s28
    %s110 = ssub.s32 %s17, %s24
    %s111 = sor.u32 %s109, %s110
    %p112 = scmp.eq.s32.totalorder %s111, 0
    %s114 = sadd.s32 %s113, 1
    %s115 = scalar_select %p112, %s113, %s114
    %p118 = pneg %p112
    %p119 = scmp.eq.s32.totalorder %s9, 1
    %p120 = por %p118, %p119
    %p121 = scmp.ne.s32.totalorder %s113, %s116
    %p122 = scmp.eq.s32.totalorder %s9, 0
    %p123 = por %p121, %p122
    %p124 = scmp.ne.s32.totalorder %s113, %s116
    %p125 = scmp.eq.s32.totalorder %s14, 1
    %p126 = por %p124, %p125
    %p127 = scmp.ne.s32.totalorder %s116, %s117
    %p128 = scmp.eq.s32.totalorder %s14, 0
    %p129 = por %p127, %p128
    %p130 = scmp.ne.s32.totalorder %s116, %s117
    %p131 = scmp.eq.s32.totalorder %s15, 1
    %p132 = por %p130, %p131
    %p134 = scmp.ne.s32.totalorder %s117, %s133
    %p135 = scmp.eq.s32.totalorder %s15, 0
    %p136 = por %p134, %p135
    %p137 = scmp.le.s32.totalorder 1, %s9
    %p138 = scmp.lt.s32.totalorder %s9, 3
    %p139 = pnand %p137, %p138
    %p140 = pneg %p139
    // Predicated region
    $region9: #{run.21} parent=5 // pred_check
      _
    $region10: #{run.21} parent=5 // pred_check_branch
      %142 = sbr.rel (%p139) target = $region12
    $region11: #{run.21} parent=5 // pred_region
      %s143 = ssub.s32 %s9, 1
    $region12: #{run.21} parent=5 // pred_fallthru
      _
    %p144 = scmp.lt.s32.totalorder %s9, 2
    // Predicated region
    $region13: #{run.21} parent=5 // pred_check
      %p145 = pneg %p144
    $region14: #{run.21} parent=5 // pred_check_branch
      %147 = sbr.rel (%p145) target = $region16
    $region15: #{run.21} parent=5 // pred_region
      // Predicated region
      $region17: #{run.21} parent=15 // pred_check
        %p148 = pneg %p43
      $region18: #{run.21} parent=15 // pred_check_branch
        %150 = sbr.rel (%p148) target = $region20
      $region19: #{run.21} parent=15 // pred_region
        %s151 = smul.u32 4, %s17
        %p152 = scmp.lt.s32.totalorder %s16, 1
        %s153 = scalar_select %p152, %s16, 1
        %p154 = scmp.lt.s32.totalorder %s151, 3
        %s155 = scalar_select %p154, %s151, 3
        %s156 = smul.addr %s155, 2
        %s157 = smul.addr %s153, 8
        %s158 = sadd.s32 %s156, %s157
        %s159 = smul.addr %s158, 4
        %s160 = scalar_lea.vmem %s0, %s159
        %s161 = smul.u32 4, %s17
      $region20: #{run.21} parent=15 // pred_fallthru
        _
      // Predicated region
      $region21: #{run.21} parent=15 // pred_check
        %p162 = pneg %p69
      $region22: #{run.21} parent=15 // pred_check_branch
        %164 = sbr.rel (%p162) target = $region24
      $region23: #{run.21} parent=15 // pred_region
        %p165 = scmp.lt.s32.totalorder %s16, 1
        %s166 = scalar_select %p165, %s16, 1
        %s167 = smul.addr %s166, 2
        %s168 = scalar_lea.vmem %s1, %s167
      $region24: #{run.21} parent=15 // pred_fallthru
        _
      // Predicated region
      $region25: #{run.21} parent=15 // pred_check
        %p169 = pneg %p95
      $region26: #{run.21} parent=15 // pred_check_branch
        %171 = sbr.rel (%p169) target = $region28
      $region27: #{run.21} parent=15 // pred_region
        %p172 = scmp.lt.s32.totalorder %s16, 1
        %s173 = scalar_select %p172, %s16, 1
        %s174 = smul.addr %s173, 2
        %s175 = scalar_lea.vmem %s2, %s174
      $region28: #{run.21} parent=15 // pred_fallthru
        _
    $region16: #{run.21} parent=5 // pred_fallthru
      _
    %p176 = scmp.le.s32.totalorder 1, %s9
    %p177 = scmp.lt.s32.totalorder %s9, 3
    %p178 = pnand %p176, %p177
    %p179 = pneg %p178
    // Predicated region
    $region29: #{run.21} parent=5 // pred_check
      _
    $region30: #{run.21} parent=5 // pred_check_branch
      %181 = sbr.rel (%p178) target = $region32
    $region31: #{run.21} parent=5 // pred_region
      %s182 = ssub.s32 %s9, 1
      %s183 = smul.u32 4, %s19
      %p184 = scmp.lt.s32.totalorder %s18, 1
      %s185 = scalar_select %p184, %s18, 1
      %p186 = scmp.lt.s32.totalorder %s183, 3
      %s187 = scalar_select %p186, %s183, 3
      %s188 = smul.addr %s187, 2
      %s189 = smul.addr %s185, 8
      %s190 = sadd.s32 %s188, %s189
      %s191 = smul.addr %s190, 4
      %s192 = scalar_lea.vmem %s0, %s191
      %p193 = pneg %p49
      %p194 = pneg %p46
      %p195 = scmp.lt.s32.totalorder %s18, 1
      %s196 = scalar_select %p195, %s18, 1
      %s197 = smul.addr %s196, 2
      %s198 = scalar_lea.vmem %s1, %s197
      %p199 = pneg %p75
      %p200 = pneg %p72
      %p201 = scmp.lt.s32.totalorder %s18, 1
      %s202 = scalar_select %p201, %s18, 1
      %s203 = smul.addr %s202, 2
      %s204 = scalar_lea.vmem %s2, %s203
      %p205 = pneg %p101
      %p206 = pneg %p98
      %p207 = pneg %p129
      %p208 = pneg %p126
      %s209 = smul.u32 4, %s19
      %p210 = scmp.lt.s32.totalorder %s18, 1
      %s211 = scalar_select %p210, %s18, 1
      %p212 = scmp.lt.s32.totalorder %s209, 3
      %s213 = scalar_select %p212, %s209, 3
      %s214 = smul.addr %s213, 2
      %s215 = smul.addr %s211, 8
      %s216 = sadd.s32 %s214, %s215
      %s217 = smul.addr %s216, 8
      %s218 = scalar_lea.vmem %s3, %s217
      %s219 = smul.u32 4, %s19
      %p220 = scmp.lt.s32.totalorder %s18, 1
      %s221 = scalar_select %p220, %s18, 1
      %p222 = scmp.lt.s32.totalorder %s219, 3
      %s223 = scalar_select %p222, %s219, 3
      %s224 = smul.addr %s223, 2
      %s225 = smul.addr %s221, 8
      %s226 = sadd.s32 %s224, %s225
      %s227 = smul.addr %s226, 4
      %s228 = scalar_lea.vmem %s0, %s227
      %s229 = smul.u32 4, %s19
      %p230 = scmp.lt.s32.totalorder %s18, 1
      %s231 = scalar_select %p230, %s18, 1
      %s232 = smul.addr %s231, 2
      %s233 = scalar_lea.vmem %s1, %s232
      %p234 = scmp.lt.s32.totalorder %s18, 1
      %s235 = scalar_select %p234, %s18, 1
      %s236 = smul.addr %s235, 2
      %s237 = scalar_lea.vmem %s2, %s236
      %s238 = smul.u32 4, %s19
      %p239 = scmp.lt.s32.totalorder %s18, 1
      %s240 = scalar_select %p239, %s18, 1
      %p241 = scmp.lt.s32.totalorder %s238, 3
      %s242 = scalar_select %p241, %s238, 3
      %s243 = smul.addr %s242, 2
      %s244 = smul.addr %s240, 8
      %s245 = sadd.s32 %s243, %s244
      %s246 = smul.addr %s245, 8
      %s247 = scalar_lea.vmem %s3, %s246
      %s248 = smul.u32 4, %s19
      %v249 = vld [vmem:[%s228] sm:$0xff]
      %v250 = vld [vmem:[%s228 + $0x8] sm:$0xff]
      %v251 = vld [vmem:[%s228 + $0x10] sm:$0xff]
      %v252 = vld [vmem:[%s228 + $0x18] sm:$0xff]
      %v253 = vunpack.c.l.bf16 %v249
      %v254 = vunpack.c.h.bf16 %v249
      %v255 = vunpack.c.l.bf16 %v250
      %v256 = vunpack.c.h.bf16 %v250
      %v257 = vunpack.c.l.bf16 %v251
      %v258 = vunpack.c.h.bf16 %v251
      %v259 = vunpack.c.l.bf16 %v252
      %v260 = vunpack.c.h.bf16 %v252
      %v261 = vadd.f32 %v253, %v254
      %262 = vadd.xlane.f32.xlu0 %v261
      %v263 = vpop.xlane.xlu0 %262
      %v264 = vadd.f32 %v255, %v256
      %265 = vadd.xlane.f32.xlu0 %v264
      %v266 = vpop.xlane.xlu0 %265
      %v267 = vadd.f32 %v257, %v258
      %268 = vadd.xlane.f32.xlu0 %v267
      %v269 = vpop.xlane.xlu0 %268
      %v270 = vadd.f32 %v259, %v260
      %271 = vadd.xlane.f32.xlu0 %v270
      %v272 = vpop.xlane.xlu0 %271
      %v273 = vrcp.pop 256.0
      %v274 = vmul.f32 %v263, %v273
      %v275 = vmul.f32 %v266, %v273
      %v276 = vmul.f32 %v269, %v273
      %v277 = vmul.f32 %v272, %v273
      %v278 = vsub.f32 %v253, %v274
      %v279 = vsub.f32 %v254, %v274
      %v280 = vsub.f32 %v255, %v275
      %v281 = vsub.f32 %v256, %v275
      %v282 = vsub.f32 %v257, %v276
      %v283 = vsub.f32 %v258, %v276
      %v284 = vsub.f32 %v259, %v277
      %v285 = vsub.f32 %v260, %v277
      %v286 = vmul.f32 %v278, %v278
      %v287 = vmul.f32 %v279, %v279
      %v288 = vmul.f32 %v280, %v280
      %v289 = vmul.f32 %v281, %v281
      %v290 = vmul.f32 %v282, %v282
      %v291 = vmul.f32 %v283, %v283
      %v292 = vmul.f32 %v284, %v284
      %v293 = vmul.f32 %v285, %v285
      %v294 = vadd.f32 %v286, %v287
      %295 = vadd.xlane.f32.xlu0 %v294
      %v296 = vpop.xlane.xlu0 %295
      %v297 = vadd.f32 %v288, %v289
      %298 = vadd.xlane.f32.xlu0 %v297
      %v299 = vpop.xlane.xlu0 %298
      %v300 = vadd.f32 %v290, %v291
      %301 = vadd.xlane.f32.xlu0 %v300
      %v302 = vpop.xlane.xlu0 %301
      %v303 = vadd.f32 %v292, %v293
      %304 = vadd.xlane.f32.xlu0 %v303
      %v305 = vpop.xlane.xlu0 %304
      %v306 = vmul.f32 %v296, %v273
      %v307 = vmul.f32 %v299, %v273
      %v308 = vmul.f32 %v302, %v273
      %v309 = vmul.f32 %v305, %v273
      %v310 = vadd.f32 %v306, 1e-06
      %v311 = vadd.f32 %v307, 1e-06
      %v312 = vadd.f32 %v308, 1e-06
      %v313 = vadd.f32 %v309, 1e-06
      %v314 = vrsqrt.pop %v310
      %v315 = vrsqrt.pop %v311
      %v316 = vrsqrt.pop %v312
      %v317 = vrsqrt.pop %v313
      %v318 = vmul.f32 %v278, %v314
      %v319 = vmul.f32 %v279, %v314
      %v320 = vmul.f32 %v280, %v315
      %v321 = vmul.f32 %v281, %v315
      %v322 = vmul.f32 %v282, %v316
      %v323 = vmul.f32 %v283, %v316
      %v324 = vmul.f32 %v284, %v317
      %v325 = vmul.f32 %v285, %v317
      %v326 = vld [vmem:[%s237] sm:$0x3]
      %v327 = vadd.f32 %v326, 1.0
      %v329 = vlaneseq
      %v330 = vshrl.u32 %v329, 7
      %v331 = vsub.s32 0, %v330
      %v332 = vrot.slane %v327, %v331
      %v333 = vlaneseq
      %v334 = vshrl.u32 %v333, 7
      %v335 = vsub.s32 1, %v334
      %v336 = vrot.slane %v327, %v335
      %v339 = vmul.f32 %v318, %v332
      %v340 = vmul.f32 %v319, %v336
      %v341 = vmul.f32 %v320, %v332
      %v342 = vmul.f32 %v321, %v336
      %v343 = vmul.f32 %v322, %v332
      %v344 = vmul.f32 %v323, %v336
      %v345 = vmul.f32 %v324, %v332
      %v346 = vmul.f32 %v325, %v336
      %v347 = vld [vmem:[%s233] sm:$0x3]
      %v349 = vlaneseq
      %v350 = vshrl.u32 %v349, 7
      %v351 = vsub.s32 0, %v350
      %v352 = vrot.slane %v347, %v351
      %v353 = vlaneseq
      %v354 = vshrl.u32 %v353, 7
      %v355 = vsub.s32 1, %v354
      %v356 = vrot.slane %v347, %v355
      %v359 = vadd.f32 %v339, %v352
      %v360 = vadd.f32 %v340, %v356
      %v361 = vadd.f32 %v341, %v352
      %v362 = vadd.f32 %v342, %v356
      %v363 = vadd.f32 %v343, %v352
      %v364 = vadd.f32 %v344, %v356
      %v365 = vadd.f32 %v345, %v352
      %v366 = vadd.f32 %v346, %v356
      %367 = vst [vmem:[%s247] sm:$0xff] %v359
      %368 = vst [vmem:[%s247 + $0x8] sm:$0xff] %v360
      %369 = vst [vmem:[%s247 + $0x10] sm:$0xff] %v361
      %370 = vst [vmem:[%s247 + $0x18] sm:$0xff] %v362
      %371 = vst [vmem:[%s247 + $0x20] sm:$0xff] %v363
      %372 = vst [vmem:[%s247 + $0x28] sm:$0xff] %v364
      %373 = vst [vmem:[%s247 + $0x30] sm:$0xff] %v365
      %374 = vst [vmem:[%s247 + $0x38] sm:$0xff] %v366
      %s375 = smul.u32 4, %s19
      %p376 = scmp.lt.s32.totalorder %s18, 1
      %s377 = scalar_select %p376, %s18, 1
      %p378 = scmp.lt.s32.totalorder %s375, 3
      %s379 = scalar_select %p378, %s375, 3
      %s380 = smul.addr %s379, 2
      %s381 = smul.addr %s377, 8
      %s382 = sadd.s32 %s380, %s381
      %s383 = smul.addr %s382, 8
      %s384 = scalar_lea.vmem %s3, %s383
      // Predicated region
      $region33: #{run.21} parent=31 // pred_check
        %p385 = pneg %p126
      $region34: #{run.21} parent=31 // pred_check_branch
        %387 = sbr.rel (%p385) target = $region36
      $region35: #{run.21} parent=31 // pred_region
        %s388 = smul.u32 4, %s19
      $region36: #{run.21} parent=31 // pred_fallthru
        _
    $region32: #{run.21} parent=5 // pred_fallthru
      _
    %p389 = scmp.le.s32.totalorder 2, %s9
    // Predicated region
    $region37: #{run.21} parent=5 // pred_check
      %p390 = pneg %p389
    $region38: #{run.21} parent=5 // pred_check_branch
      %392 = sbr.rel (%p390) target = $region40
    $region39: #{run.21} parent=5 // pred_region
      %s393 = ssub.s32 %s9, 2
      // Predicated region
      $region41: #{run.21} parent=39 // pred_check
        %p394 = pneg %p132
      $region42: #{run.21} parent=39 // pred_check_branch
        %396 = sbr.rel (%p394) target = $region44
      $region43: #{run.21} parent=39 // pred_region
        %s397 = smul.u32 4, %s21
        %p398 = scmp.lt.s32.totalorder %s20, 1
        %s399 = scalar_select %p398, %s20, 1
        %p400 = scmp.lt.s32.totalorder %s397, 3
        %s401 = scalar_select %p400, %s397, 3
        %s402 = smul.addr %s401, 2
        %s403 = smul.addr %s399, 8
        %s404 = sadd.s32 %s402, %s403
        %s405 = smul.addr %s404, 8
        %s406 = scalar_lea.vmem %s3, %s405
      $region44: #{run.21} parent=39 // pred_fallthru
        _
    $region40: #{run.21} parent=5 // pred_fallthru
      _
  $region6: #{run.21} parent=0 // loop_footer
    %s13 = sadd.s32 1, %s9
  $region7: #{run.21} parent=0 // loop_footer_branch
    %8 = sbr.rel target = $region3
  $region8: #{run.21} parent=0 // loop_exit
    _

</llo_original>
